<compile_context>
chip_gen: v7x
topology: tpu7x:2x2x1
jax: 0.10.0
libtpu: 0.0.40
codegen_flags: <defaults>
</compile_context>

<pallas_src>
import functools

import jax
import jax.numpy as jnp
from jax.experimental import pallas as pl
from jax.experimental.pallas import tpu as pltpu


def _round_up(x, m):
    return ((x + m - 1) // m) * m


def _default_vmem_limit():
    """Generation-aware scoped-VMEM budget (v5e/v6e: 128 MiB phys, v7x: 64)."""
    try:
        cap = int(pltpu.get_tpu_info().vmem_capacity_bytes)
        if cap >= 96 * 1024 * 1024:
            return 96 * 1024 * 1024
        return max(32 * 1024 * 1024, cap * 3 // 4)
    except Exception:  # pragma: no cover - conservative fallback
        return 48 * 1024 * 1024


_VMEM_LIMIT = _default_vmem_limit()


# --------------------------------------------------------------------------
# Tiled matmul + bias  (bf16 MXU operands, f32 accumulator in VMEM scratch)
# --------------------------------------------------------------------------
def _matmul_bias_kernel(x_ref, w_ref, b_ref, o_ref, acc_ref):
    @pl.when(pl.program_id(2) == 0)
    def _():
        acc_ref[...] = jnp.zeros_like(acc_ref)

    acc_ref[...] += jnp.dot(x_ref[...], w_ref[...],
                            preferred_element_type=jnp.float32)

    @pl.when(pl.program_id(2) == pl.num_programs(2) - 1)
    def _():
        o_ref[...] = (acc_ref[...] + b_ref[...]).astype(o_ref.dtype)


def matmul_bias(x, w, b):
    """y = x @ w + b   (x: (M,K) f32, w: (K,N) prepped bf16, b: (N,) f32)."""
    M, K = x.shape
    _, N = w.shape
    tm = min(_round_up(M, 16), 512)
    tk = K if K <= 2048 else 1024       # keep K untiled unless very large
    tn = N if N <= 512 else 512         # lane-dense 512-wide output tiles
    Mp, Kp, Np = _round_up(M, tm), _round_up(K, tk), _round_up(N, tn)

    xb = x.astype(jnp.bfloat16)
    wb = w if w.dtype == jnp.bfloat16 else w.astype(jnp.bfloat16)
    bb = b.astype(jnp.float32).reshape(1, N)
    if (Mp, Kp) != (M, K):
        xb = jnp.pad(xb, ((0, Mp - M), (0, Kp - K)))
    if (Kp, Np) != (K, N):
        wb = jnp.pad(wb, ((0, Kp - K), (0, Np - N)))
    if Np != N:
        bb = jnp.pad(bb, ((0, 0), (0, Np - N)))

    out = pl.pallas_call(
        _matmul_bias_kernel,
        grid=(Mp // tm, Np // tn, Kp // tk),
        in_specs=[
            pl.BlockSpec((tm, tk), lambda i, j, k: (i, k)),
            pl.BlockSpec((tk, tn), lambda i, j, k: (k, j)),
            pl.BlockSpec((1, tn), lambda i, j, k: (0, j)),
        ],
        out_specs=pl.BlockSpec((tm, tn), lambda i, j, k: (i, j)),
        out_shape=jax.ShapeDtypeStruct((Mp, Np), jnp.float32),
        scratch_shapes=[pltpu.VMEM((tm, tn), jnp.float32)],
        compiler_params=pltpu.CompilerParams(
            dimension_semantics=("parallel", "parallel", "arbitrary"),
            vmem_limit_bytes=_VMEM_LIMIT),
    )(xb, wb, bb)
    return out[:M, :N]


# --------------------------------------------------------------------------
# 3x3 conv (padding=1): nine shifted matmuls over a bf16 haloed activation,
# f32 VMEM accumulator, optional fused BatchNorm statistics epilogue.
# --------------------------------------------------------------------------
def _conv3x3_kernel(*refs, hh, wp, with_stats):
    if with_stats:
        x_ref, w_ref, b_ref, m_ref, o_ref, sum_ref, sq_ref, acc_ref = refs
    else:
        x_ref, w_ref, b_ref, o_ref, acc_ref = refs
    rows = hh * wp
    acc_ref[...] = jnp.zeros_like(acc_ref)
    for dj in range(3):                                   # one misaligned slice / dj
        xj = x_ref[0, dj:dj + rows + 2 * wp, :]
        for di in range(3):                               # sublane-aligned (wp % 8 == 0)
            xs = xj[di * wp:di * wp + rows, :]
            acc_ref[...] += jnp.dot(xs, w_ref[di * 3 + dj],
                                    preferred_element_type=jnp.float32)
    y = acc_ref[...] + b_ref[...]
    o_ref[0] = y
    if with_stats:
        m = m_ref[...]                                    # (rows,1) column-validity mask
        sum_ref[0] = jnp.sum(y * m, axis=0, keepdims=True)
        sq_ref[0] = jnp.sum(y * y * m, axis=0, keepdims=True)


def conv3x3(x_nhwc, wt, b2, *, with_stats=False):
    """3x3 conv, padding=1. wt: (9,C,O) bf16 prepped, b2: (1,O) f32.

    with_stats=True additionally returns per-channel sum / sumsq over the
    valid output pixels (for the following BatchNorm), computed in-kernel.
    """
    # TODO(synk): row-group tiling of the haloed input (needed only for much
    # larger H*W*C on v7x) would require overlapping input blocks / manual DMA.
    B, H, W, C = x_nhwc.shape
    O = wt.shape[2]
    Wp = _round_up(W + 2, 8)                 # sublane-aligned padded width
    in_rows = (H + 2) * Wp
    rows = H * Wp
    rows_pad = _round_up(in_rows + 2, 8)     # +2 for the max tap-shift overhang

    xp = jnp.pad(x_nhwc.astype(jnp.bfloat16),
                 ((0, 0), (1, 1), (1, Wp - W - 1), (0, 0)))
    xp = xp.reshape(B, in_rows, C)
    if rows_pad != in_rows:
        xp = jnp.pad(xp, ((0, 0), (0, rows_pad - in_rows), (0, 0)))

    ins = [xp, wt, b2]
    in_specs = [
        pl.BlockSpec((1, rows_pad, C), lambda b: (b, 0, 0)),
        pl.BlockSpec((9, C, O), lambda b: (0, 0, 0)),
        pl.BlockSpec((1, O), lambda b: (0, 0)),
    ]
    out_specs = pl.BlockSpec((1, rows, O), lambda b: (b, 0, 0))
    out_shape = jax.ShapeDtypeStruct((B, rows, O), jnp.float32)
    if with_stats:
        mask = jnp.tile((jnp.arange(Wp) < W).astype(jnp.float32), H).reshape(rows, 1)
        ins.append(mask)
        in_specs.append(pl.BlockSpec((rows, 1), lambda b: (0, 0)))
        out_specs = [out_specs,
                     pl.BlockSpec((1, 1, O), lambda b: (b, 0, 0)),
                     pl.BlockSpec((1, 1, O), lambda b: (b, 0, 0))]
        out_shape = (out_shape,
                     jax.ShapeDtypeStruct((B, 1, O), jnp.float32),
                     jax.ShapeDtypeStruct((B, 1, O), jnp.float32))

    res = pl.pallas_call(
        functools.partial(_conv3x3_kernel, hh=H, wp=Wp, with_stats=with_stats),
        grid=(B,),
        in_specs=in_specs,
        out_specs=out_specs,
        out_shape=out_shape,
        scratch_shapes=[pltpu.VMEM((rows, O), jnp.float32)],
        compiler_params=pltpu.CompilerParams(
            dimension_semantics=("parallel",),
            vmem_limit_bytes=_VMEM_LIMIT),
    )(*ins)

    if with_stats:
        y, psum, psq = res
        y = y.reshape(B, H, Wp, O)[:, :, :W, :]
        return y, jnp.sum(psum, axis=(0, 1)), jnp.sum(psq, axis=(0, 1))
    return res.reshape(B, H, Wp, O)[:, :, :W, :]


# --------------------------------------------------------------------------
# BatchNorm apply (+ optional SiLU / residual), lane-dense for small C.
# Stats come fused from the producing conv3x3; scale/shift precomputed per
# channel (tiny C-length JAX ops).
# --------------------------------------------------------------------------
def _bn_apply_kernel(*refs, silu, with_residual):
    if with_residual:
        x_ref, sc_ref, sh_ref, r_ref, o_ref = refs
    else:
        x_ref, sc_ref, sh_ref, o_ref = refs
        r_ref = None
    y = x_ref[...] * sc_ref[...] + sh_ref[...]
    if silu:
        y = y * jax.nn.sigmoid(y)
    if r_ref is not None:
        y = y + r_ref[...]
    o_ref[...] = y


def batchnorm_act(x2d, ssum, ssq, count, gamma, beta, *, silu,
                  residual=None, eps=1e-5):
    # TODO(synk): only training-mode batch statistics are modelled (no
    # running-stats / eval path), matching the reference forward as written.
    M, C = x2d.shape
    mean = ssum / count
    var = jnp.maximum(ssq / count - mean * mean, 0.0)
    scale = gamma.astype(jnp.float32) * jax.lax.rsqrt(var + eps)
    shift = beta.astype(jnp.float32) - mean * scale

    k = max(1, 128 // C) if C < 128 else 1          # pack k rows per lane-row
    mk = -(-M // k)
    tm = min(_round_up(mk, 8), 1024)
    mk_pad = _round_up(mk, tm)
    m_pad = mk_pad * k

    def pack(a):
        a = a.astype(jnp.float32)
        if m_pad != M:
            a = jnp.pad(a, ((0, m_pad - M), (0, 0)))
        return a.reshape(mk_pad, k * C)

    ins = [pack(x2d),
           jnp.tile(scale, k).reshape(1, k * C),
           jnp.tile(shift, k).reshape(1, k * C)]
    in_specs = [pl.BlockSpec((tm, k * C), lambda i: (i, 0)),
                pl.BlockSpec((1, k * C), lambda i: (0, 0)),
                pl.BlockSpec((1, k * C), lambda i: (0, 0))]
    if residual is not None:
        ins.append(pack(residual))
        in_specs.append(pl.BlockSpec((tm, k * C), lambda i: (i, 0)))

    out = pl.pallas_call(
        functools.partial(_bn_apply_kernel, silu=silu,
                          with_residual=residual is not None),
        grid=(mk_pad // tm,),
        in_specs=in_specs,
        out_specs=pl.BlockSpec((tm, k * C), lambda i: (i, 0)),
        out_shape=jax.ShapeDtypeStruct((mk_pad, k * C), jnp.float32),
        compiler_params=pltpu.CompilerParams(
            dimension_semantics=("parallel",),
            vmem_limit_bytes=_VMEM_LIMIT),
    )(*ins)
    return out.reshape(m_pad, C)[:M]


# --------------------------------------------------------------------------
# Fused projection + BSQ quantization + codebook matmul (row-tiled,
# per-tile partial mse/entropy sums, bf16 MXU operands)
# --------------------------------------------------------------------------
def _bsq_fused_kernel(x_ref, pw_ref, pb_ref, base_ref, cbd_ref, cbo_ref,
                      q_ref, idx_ref, mse_ref, ent_ref, *, n_valid, tm, bits):
    i = pl.program_id(0)
    x = x_ref[...].astype(jnp.bfloat16)                        # (tm, D)
    xp = jnp.dot(x, pw_ref[...],
                 preferred_element_type=jnp.float32) + pb_ref[...]
    l1 = jnp.sum(jnp.abs(xp), axis=-1, keepdims=True)          # F.normalize p=1
    xn = xp / jnp.maximum(l1, 1e-12)

    inv_s = 1.0 / (bits ** 0.5)
    pos = xn > 0
    sign = jnp.where(pos, inv_s, -inv_s)
    bit = jnp.where(pos, 1.0, 0.0)                             # exact {0,1} code

    # mask rows past the true length (row padding for tiling)
    row = i * tm + jax.lax.broadcasted_iota(jnp.int32, (tm, 1), 0)
    valid = (row < n_valid).astype(jnp.float32)

    diff = sign - xn
    mse_ref[...] = jnp.sum(diff * diff * valid, keepdims=True).reshape(1, 1, 1)

    sp = jax.nn.sigmoid(2.0 * xn)                              # tau = 1
    ent = -(sp * jnp.log(sp + 1e-10) + (1.0 - sp) * jnp.log(1.0 - sp + 1e-10))
    ent_ref[...] = jnp.sum(ent * valid, keepdims=True).reshape(1, 1, 1)

    idx_ref[...] = jnp.sum(bit * base_ref[...], axis=-1,
                           keepdims=True).astype(jnp.int32)
    # [code, 1-code] @ cb  ==  code @ (cb[:bits]-cb[bits:]) + colsum(cb[bits:])
    q_ref[...] = jnp.dot(bit.astype(jnp.bfloat16), cbd_ref[...],
                         preferred_element_type=jnp.float32) + cbo_ref[...]


def bsq_project_quantize(xf, pw, pb, base, cb_diff, cb_off, bits):
    N, D = xf.shape
    tm = min(_round_up(N, 8), 512)
    Np = _round_up(N, tm)
    xp = xf.astype(jnp.float32)
    if Np != N:
        xp = jnp.pad(xp, ((0, Np - N), (0, 0)))
    nt = Np // tm

    q, idx, mse_p, ent_p = pl.pallas_call(
        functools.partial(_bsq_fused_kernel, n_valid=N, tm=tm, bits=bits),
        grid=(nt,),
        in_specs=[
            pl.BlockSpec((tm, D), lambda i: (i, 0)),
            pl.BlockSpec((D, bits), lambda i: (0, 0)),
            pl.BlockSpec((1, bits), lambda i: (0, 0)),
            pl.BlockSpec((1, bits), lambda i: (0, 0)),
            pl.BlockSpec((bits, D), lambda i: (0, 0)),
            pl.BlockSpec((1, D), lambda i: (0, 0)),
        ],
        out_specs=[
            pl.BlockSpec((tm, D), lambda i: (i, 0)),
            pl.BlockSpec((tm, 1), lambda i: (i, 0)),
            pl.BlockSpec((1, 1, 1), lambda i: (i, 0, 0)),
            pl.BlockSpec((1, 1, 1), lambda i: (i, 0, 0)),
        ],
        out_shape=(
            jax.ShapeDtypeStruct((Np, D), jnp.float32),
            jax.ShapeDtypeStruct((Np, 1), jnp.int32),
            jax.ShapeDtypeStruct((nt, 1, 1), jnp.float32),
            jax.ShapeDtypeStruct((nt, 1, 1), jnp.float32),
        ),
        compiler_params=pltpu.CompilerParams(
            dimension_semantics=("parallel",),
            vmem_limit_bytes=_VMEM_LIMIT),
    )(xp, pw, pb, base, cb_diff, cb_off)
    return q[:N], idx[:N], jnp.sum(mse_p), jnp.sum(ent_p)


# --------------------------------------------------------------------------
# MSE: lane-dense row-tiled squared-difference reduction (partial sums)
# --------------------------------------------------------------------------
def _mse_kernel(a_ref, b_ref, o_ref):
    d = a_ref[...] - b_ref[...]
    o_ref[...] = jnp.sum(d * d, keepdims=True).reshape(1, 1, 1)


def mse_loss(a, b):
    a1 = a.reshape(-1).astype(jnp.float32)
    b1 = b.reshape(-1).astype(jnp.float32)
    n = a1.shape[0]
    lanes = 512 if n >= 512 * 64 else 128
    rows = -(-n // lanes)
    tr = min(_round_up(rows, 8), 512)
    rows_p = _round_up(rows, tr)
    npad = rows_p * lanes
    if npad != n:
        a1 = jnp.pad(a1, (0, npad - n))
        b1 = jnp.pad(b1, (0, npad - n))
    a2 = a1.reshape(rows_p, lanes)
    b2 = b1.reshape(rows_p, lanes)
    nt = rows_p // tr
    s = pl.pallas_call(
        _mse_kernel,
        grid=(nt,),
        in_specs=[pl.BlockSpec((tr, lanes), lambda i: (i, 0)),
                  pl.BlockSpec((tr, lanes), lambda i: (i, 0))],
        out_specs=pl.BlockSpec((1, 1, 1), lambda i: (i, 0, 0)),
        out_shape=jax.ShapeDtypeStruct((nt, 1, 1), jnp.float32),
        compiler_params=pltpu.CompilerParams(
            dimension_semantics=("parallel",),
            vmem_limit_bytes=_VMEM_LIMIT),
    )(a2, b2)
    return jnp.sum(s) / n


# --------------------------------------------------------------------------
# Conv layers built from (reshape glue) + Pallas matmul
# --------------------------------------------------------------------------
def conv_patchify(x_nhwc, wm, bias, s):
    """Conv2d with kernel == stride == s.  wm: (s*s*C, O) bf16 prepped."""
    B, H, W, C = x_nhwc.shape
    O = wm.shape[1]
    h, w_ = H // s, W // s
    p = (x_nhwc.reshape(B, h, s, w_, s, C)
         .transpose(0, 1, 3, 2, 4, 5)
         .reshape(B * h * w_, s * s * C))
    y = matmul_bias(p, wm, bias)
    return y.reshape(B, h, w_, O)


def deconv_patchify(x_nhwc, wm, bias_rep, s):
    """ConvTranspose2d with kernel == stride == s.  wm: (C, O*s*s) bf16 prepped."""
    B, h, w_, C = x_nhwc.shape
    O = wm.shape[1] // (s * s)
    y = matmul_bias(x_nhwc.reshape(B * h * w_, C), wm, bias_rep)
    y = (y.reshape(B, h, w_, O, s, s)
         .transpose(0, 1, 4, 2, 5, 3)
         .reshape(B, h * s, w_ * s, O))
    return y


def resblock(x_nhwc, p):
    B, H, W, C = x_nhwc.shape
    M = B * H * W
    x2 = x_nhwc.reshape(M, C)
    y, s1, q1 = conv3x3(x_nhwc, p["conv1_w"], p["conv1_b"], with_stats=True)
    y = batchnorm_act(y.reshape(M, C), s1, q1, float(M),
                      p["bn1_g"], p["bn1_b"], silu=True)
    y, s2, q2 = conv3x3(y.reshape(B, H, W, C), p["conv2_w"], p["conv2_b"],
                        with_stats=True)
    y = batchnorm_act(y.reshape(M, C), s2, q2, float(M),
                      p["bn2_g"], p["bn2_b"], silu=False, residual=x2)
    return y.reshape(B, H, W, C)


# --------------------------------------------------------------------------
# BSQVectorQuantize forward
# --------------------------------------------------------------------------
def bsq_vq_forward(x_nchw, params, *, d_embedding, patch_size, bits, beta):
    gamma = 0.25 * beta
    img = x_nchw.astype(jnp.float32)
    B = img.shape[0]
    s = patch_size // 2

    x_nhwc0 = jnp.transpose(img, (0, 2, 3, 1))                 # NCHW -> NHWC

    # ---- encoder (self.conv) ----
    x = conv_patchify(x_nhwc0, params["conv1_w"], params["conv1_b"], s)
    x = resblock(x, params["res1"])
    x = conv_patchify(x, params["conv2_w"], params["conv2_b"], s)
    x = resblock(x, params["res2"])
    x = conv3x3(x, params["conv3_w"], params["conv3_b"])

    _, h, w, D = x.shape
    L = h * w
    xf = x.reshape(B * L, D)

    # ---- fused projection + BSQ quantization + codebook matmul ----
    quantized, idx, mse_sum, ent_sum = bsq_project_quantize(
        xf, params["proj_w"], params["proj_b"], params["code_base"],
        params["cb_diff"], params["cb_off"], bits)
    n_elem = B * L * bits
    loss = beta * mse_sum / n_elem
    quantized = quantized.reshape(B, L, D)

    # ---- decoder (self.deconv) ----
    q_nhwc = quantized.reshape(B, h, w, D)
    y = conv3x3(q_nhwc, params["dec1_w"], params["dec1_b"])
    y = resblock(y, params["dres1"])
    y = deconv_patchify(y, params["dec2_w"], params["dec2_b"], s)
    y = resblock(y, params["dres2"])
    y = deconv_patchify(y, params["dec3_w"], params["dec3_b"], s)
    recons = jnp.transpose(y, (0, 3, 1, 2))                    # NHWC -> NCHW

    loss = loss + mse_loss(y, x_nhwc0)                         # NHWC vs NHWC
    loss = loss + (-(ent_sum / n_elem)) * gamma

    encoding_indices = idx.reshape(B, L)                       # int32 codes
    return encoding_indices, quantized, recons, loss


# --------------------------------------------------------------------------
# One-time parameter prep (transposes / reshapes / bf16 casts baked offline)
# --------------------------------------------------------------------------
def prepare_params(raw, *, patch_size, bits):
    s = patch_size // 2

    def prep_patch_conv(w, b):
        O, C = w.shape[0], w.shape[1]
        wm = jnp.transpose(w, (2, 3, 1, 0)).reshape(s * s * C, O).astype(jnp.bfloat16)
        return wm, b.astype(jnp.float32)

    def prep_conv3(w, b):
        O, C = w.shape[0], w.shape[1]
        wt = jnp.transpose(w, (2, 3, 1, 0)).reshape(9, C, O).astype(jnp.bfloat16)
        return wt, b.astype(jnp.float32).reshape(1, O)

    def prep_deconv(w, b):
        C, O = w.shape[0], w.shape[1]
        wm = w.reshape(C, O * s * s).astype(jnp.bfloat16)
        bm = jnp.repeat(b.astype(jnp.float32), s * s)
        return wm, bm

    def prep_res(p):
        c1w, c1b = prep_conv3(p["conv1_w"], p["conv1_b"])
        c2w, c2b = prep_conv3(p["conv2_w"], p["conv2_b"])
        return dict(conv1_w=c1w, conv1_b=c1b,
                    bn1_g=p["bn1_g"].astype(jnp.float32),
                    bn1_b=p["bn1_b"].astype(jnp.float32),
                    conv2_w=c2w, conv2_b=c2b,
                    bn2_g=p["bn2_g"].astype(jnp.float32),
                    bn2_b=p["bn2_b"].astype(jnp.float32))

    out = {}
    out["conv1_w"], out["conv1_b"] = prep_patch_conv(raw["conv1_w"], raw["conv1_b"])
    out["res1"] = prep_res(raw["res1"])
    out["conv2_w"], out["conv2_b"] = prep_patch_conv(raw["conv2_w"], raw["conv2_b"])
    out["res2"] = prep_res(raw["res2"])
    out["conv3_w"], out["conv3_b"] = prep_conv3(raw["conv3_w"], raw["conv3_b"])

    out["proj_w"] = raw["proj_w"].T.astype(jnp.bfloat16)               # (D, bits)
    out["proj_b"] = raw["proj_b"].astype(jnp.float32).reshape(1, bits)
    cb = raw["codebook"].astype(jnp.float32)
    out["cb_diff"] = (cb[:bits] - cb[bits:]).astype(jnp.bfloat16)
    out["cb_off"] = jnp.sum(cb[bits:], axis=0, keepdims=True)
    out["code_base"] = (2.0 ** jnp.arange(bits - 1, -1, -1,
                                          dtype=jnp.float32)).reshape(1, bits)

    out["dec1_w"], out["dec1_b"] = prep_conv3(raw["dec1_w"], raw["dec1_b"])
    out["dres1"] = prep_res(raw["dres1"])
    out["dec2_w"], out["dec2_b"] = prep_deconv(raw["dec2_w"], raw["dec2_b"])
    out["dres2"] = prep_res(raw["dres2"])
    out["dec3_w"], out["dec3_b"] = prep_deconv(raw["dec3_w"], raw["dec3_b"])
    return out


# --------------------------------------------------------------------------
# deterministic parameter init (synthetic — no checkpoint loading)
# --------------------------------------------------------------------------
def init_params(key, in_chan, d_embedding, patch_size, bits):
    k = patch_size // 2
    d4, d2 = d_embedding // 4, d_embedding // 2
    keys = iter(jax.random.split(key, 64))

    def nrm(shape, scale=0.05):
        return (scale * jax.random.normal(next(keys), shape)).astype(jnp.float32)

    def res_params(c):
        return dict(
            conv1_w=nrm((c, c, 3, 3)), conv1_b=nrm((c,)),
            bn1_g=jnp.ones((c,), jnp.float32), bn1_b=jnp.zeros((c,), jnp.float32),
            conv2_w=nrm((c, c, 3, 3)), conv2_b=nrm((c,)),
            bn2_g=jnp.ones((c,), jnp.float32), bn2_b=jnp.zeros((c,), jnp.float32),
        )

    return dict(
        conv1_w=nrm((d4, in_chan, k, k)), conv1_b=nrm((d4,)),
        res1=res_params(d4),
        conv2_w=nrm((d2, d4, k, k)), conv2_b=nrm((d2,)),
        res2=res_params(d2),
        conv3_w=nrm((d_embedding, d2, 3, 3)), conv3_b=nrm((d_embedding,)),
        proj_w=nrm((bits, d_embedding)), proj_b=nrm((bits,)),
        codebook=nrm((2 * bits, d_embedding)),
        dec1_w=nrm((d2, d_embedding, 3, 3)), dec1_b=nrm((d2,)),
        dres1=res_params(d2),
        dec2_w=nrm((d2, d4, k, k)), dec2_b=nrm((d4,)),   # ConvTranspose: (in,out,k,k)
        dres2=res_params(d4),
        dec3_w=nrm((d4, in_chan, k, k)), dec3_b=nrm((in_chan,)),
    )


# --------------------------------------------------------------------------
if __name__ == "__main__":
    # small, self-consistent config (patch_size must satisfy (patch//2)^2 == patch,
    # i.e. patch_size=4, for the PyTorch module's own view() to be valid)
    B, in_chan, H, W = 2, 3, 16, 16
    d_embedding, patch_size, bits, beta = 64, 4, 8, 0.15

    key = jax.random.PRNGKey(0)
    kx, kp = jax.random.split(key)
    x = jax.random.normal(kx, (B, in_chan, H, W), dtype=jnp.float32)
    raw_params = init_params(kp, in_chan, d_embedding, patch_size, bits)
    params = prepare_params(raw_params, patch_size=patch_size, bits=bits)

    fwd = jax.jit(functools.partial(
        bsq_vq_forward, d_embedding=d_embedding, patch_size=patch_size,
        bits=bits, beta=beta))

    encoding_indices, quantized, recons, loss = fwd(x, params)
    jax.block_until_ready((encoding_indices, quantized, recons, loss))

    assert encoding_indices.shape == (B, (H // patch_size) * (W // patch_size))
    assert quantized.shape == (B, (H // patch_size) * (W // patch_size), d_embedding)
    assert recons.shape == (B, in_chan, H, W)
    assert bool(jnp.isfinite(loss))

    print("KERNEL_OK")
</pallas_src>

<mosaic_0001>
module attributes {stable_mosaic.version = 11 : i64} {
  func.func @_matmul_bias_kernel(%arg0: i32, %arg1: i32, %arg2: i32, %arg3: memref<128x12xbf16, #tpu.memory_space<vmem>>, %arg4: memref<12x16xbf16, #tpu.memory_space<vmem>>, %arg5: memref<1x16xf32, #tpu.memory_space<vmem>>, %arg6: memref<128x16xf32, #tpu.memory_space<vmem>>, %arg7: memref<128x16xf32, #tpu.memory_space<vmem>>) attributes {dimension_semantics = [#tpu.dimension_semantics<parallel>, #tpu.dimension_semantics<parallel>, #tpu.dimension_semantics<arbitrary>], iteration_bounds = array<i64: 1, 1, 1>, scalar_prefetch = 0 : i64, scratch_operands = 1 : i64, tpu.core_type = #tpu.core_type<tc>, window_params = [{transform_indices = @transform_0, window_bounds = array<i64: 128, 12>}, {transform_indices = @transform_1, window_bounds = array<i64: 12, 16>}, {transform_indices = @transform_2, window_bounds = array<i64: 1, 16>}, {transform_indices = @transform_3, window_bounds = array<i64: 128, 16>}]} {
    %c0_i32 = arith.constant 0 : i32
    %0 = arith.cmpi eq, %arg2, %c0_i32 : i32
    %1 = arith.extui %0 : i1 to i32
    %c0_i32_0 = arith.constant 0 : i32
    %2 = arith.cmpi ne, %1, %c0_i32_0 : i32
    scf.if %2 {
      %cst_10 = arith.constant 0.000000e+00 : f32
      %12 = vector.broadcast %cst_10 : f32 to vector<128x16xf32>
      %c0_11 = arith.constant 0 : index
      %c0_12 = arith.constant 0 : index
      %13 = vector.load %arg7[%c0_11, %c0_12] : memref<128x16xf32, #tpu.memory_space<vmem>>, vector<128x16xf32>
      tpu.vector_store %arg7[%c0_11, %c0_12], %12 {strides = array<i32>} : memref<128x16xf32, #tpu.memory_space<vmem>>, vector<128x16xf32>,
    } else {
    }
    %c0 = arith.constant 0 : index
    %c0_1 = arith.constant 0 : index
    %3 = vector.load %arg7[%c0, %c0_1] : memref<128x16xf32, #tpu.memory_space<vmem>>, vector<128x16xf32>
    %c0_2 = arith.constant 0 : index
    %c0_3 = arith.constant 0 : index
    %4 = vector.load %arg3[%c0_2, %c0_3] : memref<128x12xbf16, #tpu.memory_space<vmem>>, vector<128x12xbf16>
    %c0_4 = arith.constant 0 : index
    %c0_5 = arith.constant 0 : index
    %5 = vector.load %arg4[%c0_4, %c0_5] : memref<12x16xbf16, #tpu.memory_space<vmem>>, vector<12x16xbf16>
    %cst = arith.constant dense<0.000000e+00> : vector<128x16xf32>
    %6 = tpu.matmul %4, %5, %cst {dimension_numbers = #tpu.dot_dimension_numbers<[1], [0], [0], [1], [0, 0, 1, 1], [], []>} : vector<128x12xbf16>, vector<12x16xbf16>, vector<128x16xf32> -> vector<128x16xf32>
    %7 = arith.addf %3, %6 : vector<128x16xf32>
    %c0_6 = arith.constant 0 : index
    %c0_7 = arith.constant 0 : index
    %8 = vector.load %arg7[%c0_6, %c0_7] : memref<128x16xf32, #tpu.memory_space<vmem>>, vector<128x16xf32>
    tpu.vector_store %arg7[%c0_6, %c0_7], %7 {strides = array<i32>} : memref<128x16xf32, #tpu.memory_space<vmem>>, vector<128x16xf32>,
    %c0_i32_8 = arith.constant 0 : i32
    %9 = arith.cmpi eq, %arg2, %c0_i32_8 : i32
    %10 = arith.extui %9 : i1 to i32
    %c0_i32_9 = arith.constant 0 : i32
    %11 = arith.cmpi ne, %10, %c0_i32_9 : i32
    scf.if %11 {
      %c0_10 = arith.constant 0 : index
      %c0_11 = arith.constant 0 : index
      %12 = vector.load %arg7[%c0_10, %c0_11] : memref<128x16xf32, #tpu.memory_space<vmem>>, vector<128x16xf32>
      %c0_12 = arith.constant 0 : index
      %c0_13 = arith.constant 0 : index
      %13 = vector.load %arg5[%c0_12, %c0_13] : memref<1x16xf32, #tpu.memory_space<vmem>>, vector<1x16xf32>
      %14 = vector.broadcast %13 : vector<1x16xf32> to vector<128x16xf32>
      %15 = arith.addf %12, %14 : vector<128x16xf32>
      %c0_14 = arith.constant 0 : index
      %c0_15 = arith.constant 0 : index
      %16 = vector.load %arg6[%c0_14, %c0_15] : memref<128x16xf32, #tpu.memory_space<vmem>>, vector<128x16xf32>
      tpu.vector_store %arg6[%c0_14, %c0_15], %15 {strides = array<i32>} : memref<128x16xf32, #tpu.memory_space<vmem>>, vector<128x16xf32>,
    } else {
    }
    return
  }
  func.func @transform_0(%arg0: i32, %arg1: i32, %arg2: i32) -> (i32, i32) {
    %c0_i32 = arith.constant 0 : i32
    return %arg0, %arg2 : i32, i32
  }
  func.func @transform_1(%arg0: i32, %arg1: i32, %arg2: i32) -> (i32, i32) {
    %c0_i32 = arith.constant 0 : i32
    return %arg2, %arg1 : i32, i32
  }
  func.func @transform_2(%arg0: i32, %arg1: i32, %arg2: i32) -> (i32, i32) {
    %c0_i32 = arith.constant 0 : i32
    %c0_i32_0 = arith.constant 0 : i32
    return %c0_i32, %arg1 : i32, i32
  }
  func.func @transform_3(%arg0: i32, %arg1: i32, %arg2: i32) -> (i32, i32) {
    %c0_i32 = arith.constant 0 : i32
    return %arg0, %arg1 : i32, i32
  }
}

module attributes {stable_mosaic.version = 11 : i64} {
  func.func @_conv3x3_kernel(%arg0: i32, %arg1: memref<1x168x16xbf16, #tpu.memory_space<vmem>>, %arg2: memref<9x16x16xbf16, #tpu.memory_space<vmem>>, %arg3: memref<1x16xf32, #tpu.memory_space<vmem>>, %arg4: memref<128x1xf32, #tpu.memory_space<vmem>>, %arg5: memref<1x128x16xf32, #tpu.memory_space<vmem>>, %arg6: memref<1x1x16xf32, #tpu.memory_space<vmem>>, %arg7: memref<1x1x16xf32, #tpu.memory_space<vmem>>, %arg8: memref<128x16xf32, #tpu.memory_space<vmem>>) attributes {dimension_semantics = [#tpu.dimension_semantics<parallel>], iteration_bounds = array<i64: 2>, scalar_prefetch = 0 : i64, scratch_operands = 1 : i64, tpu.core_type = #tpu.core_type<tc>, window_params = [{transform_indices = @transform_0, window_bounds = array<i64: 1, 168, 16>}, {pipeline_mode = #tpu.pipeline_mode<synchronous>, transform_indices = @transform_1, window_bounds = array<i64: 9, 16, 16>}, {pipeline_mode = #tpu.pipeline_mode<synchronous>, transform_indices = @transform_2, window_bounds = array<i64: 1, 16>}, {pipeline_mode = #tpu.pipeline_mode<synchronous>, transform_indices = @transform_3, window_bounds = array<i64: 128, 1>}, {transform_indices = @transform_4, window_bounds = array<i64: 1, 128, 16>}, {transform_indices = @transform_5, window_bounds = array<i64: 1, 1, 16>}, {transform_indices = @transform_6, window_bounds = array<i64: 1, 1, 16>}]} {
    %cst = arith.constant 0.000000e+00 : f32
    %0 = vector.broadcast %cst : f32 to vector<128x16xf32>
    %c0 = arith.constant 0 : index
    %c0_0 = arith.constant 0 : index
    %1 = vector.load %arg8[%c0, %c0_0] : memref<128x16xf32, #tpu.memory_space<vmem>>, vector<128x16xf32>
    tpu.vector_store %arg8[%c0, %c0_0], %0 {strides = array<i32>} : memref<128x16xf32, #tpu.memory_space<vmem>>, vector<128x16xf32>,
    %c0_1 = arith.constant 0 : index
    %c0_2 = arith.constant 0 : index
    %c0_3 = arith.constant 0 : index
    %2 = vector.load %arg1[%c0_1, %c0_2, %c0_3] : memref<1x168x16xbf16, #tpu.memory_space<vmem>>, vector<1x160x16xbf16>
    %3 = vector.shape_cast %2 : vector<1x160x16xbf16> to vector<160x16xbf16>
    %4 = vector.extract_strided_slice %3 {offsets = [0, 0], sizes = [128, 16], strides = [1, 1]} : vector<160x16xbf16> to vector<128x16xbf16>
    %c0_4 = arith.constant 0 : index
    %c0_5 = arith.constant 0 : index
    %5 = vector.load %arg8[%c0_4, %c0_5] : memref<128x16xf32, #tpu.memory_space<vmem>>, vector<128x16xf32>
    %c0_6 = arith.constant 0 : index
    %c0_7 = arith.constant 0 : index
    %c0_8 = arith.constant 0 : index
    %6 = vector.load %arg2[%c0_6, %c0_7, %c0_8] : memref<9x16x16xbf16, #tpu.memory_space<vmem>>, vector<1x16x16xbf16>
    %7 = vector.shape_cast %6 : vector<1x16x16xbf16> to vector<16x16xbf16>
    %cst_9 = arith.constant dense<0.000000e+00> : vector<128x16xf32>
    %8 = tpu.matmul %4, %7, %cst_9 {dimension_numbers = #tpu.dot_dimension_numbers<[1], [0], [0], [1], [0, 0, 1, 1], [], []>} : vector<128x16xbf16>, vector<16x16xbf16>, vector<128x16xf32> -> vector<128x16xf32>
    %9 = arith.addf %5, %8 : vector<128x16xf32>
    %c0_10 = arith.constant 0 : index
    %c0_11 = arith.constant 0 : index
    %10 = vector.load %arg8[%c0_10, %c0_11] : memref<128x16xf32, #tpu.memory_space<vmem>>, vector<128x16xf32>
    tpu.vector_store %arg8[%c0_10, %c0_11], %9 {strides = array<i32>} : memref<128x16xf32, #tpu.memory_space<vmem>>, vector<128x16xf32>,
    %11 = vector.extract_strided_slice %3 {offsets = [16, 0], sizes = [128, 16], strides = [1, 1]} : vector<160x16xbf16> to vector<128x16xbf16>
    %c0_12 = arith.constant 0 : index
    %c0_13 = arith.constant 0 : index
    %12 = vector.load %arg8[%c0_12, %c0_13] : memref<128x16xf32, #tpu.memory_space<vmem>>, vector<128x16xf32>
    %c3 = arith.constant 3 : index
    %c0_14 = arith.constant 0 : index
    %c0_15 = arith.constant 0 : index
    %13 = vector.load %arg2[%c3, %c0_14, %c0_15] : memref<9x16x16xbf16, #tpu.memory_space<vmem>>, vector<1x16x16xbf16>
    %14 = vector.shape_cast %13 : vector<1x16x16xbf16> to vector<16x16xbf16>
    %cst_16 = arith.constant dense<0.000000e+00> : vector<128x16xf32>
    %15 = tpu.matmul %11, %14, %cst_16 {dimension_numbers = #tpu.dot_dimension_numbers<[1], [0], [0], [1], [0, 0, 1, 1], [], []>} : vector<128x16xbf16>, vector<16x16xbf16>, vector<128x16xf32> -> vector<128x16xf32>
    %16 = arith.addf %12, %15 : vector<128x16xf32>
    %c0_17 = arith.constant 0 : index
    %c0_18 = arith.constant 0 : index
    %17 = vector.load %arg8[%c0_17, %c0_18] : memref<128x16xf32, #tpu.memory_space<vmem>>, vector<128x16xf32>
    tpu.vector_store %arg8[%c0_17, %c0_18], %16 {strides = array<i32>} : memref<128x16xf32, #tpu.memory_space<vmem>>, vector<128x16xf32>,
    %18 = vector.extract_strided_slice %3 {offsets = [32, 0], sizes = [128, 16], strides = [1, 1]} : vector<160x16xbf16> to vector<128x16xbf16>
    %c0_19 = arith.constant 0 : index
    %c0_20 = arith.constant 0 : index
    %19 = vector.load %arg8[%c0_19, %c0_20] : memref<128x16xf32, #tpu.memory_space<vmem>>, vector<128x16xf32>
    %c6 = arith.constant 6 : index
    %c0_21 = arith.constant 0 : index
    %c0_22 = arith.constant 0 : index
    %20 = vector.load %arg2[%c6, %c0_21, %c0_22] : memref<9x16x16xbf16, #tpu.memory_space<vmem>>, vector<1x16x16xbf16>
    %21 = vector.shape_cast %20 : vector<1x16x16xbf16> to vector<16x16xbf16>
    %cst_23 = arith.constant dense<0.000000e+00> : vector<128x16xf32>
    %22 = tpu.matmul %18, %21, %cst_23 {dimension_numbers = #tpu.dot_dimension_numbers<[1], [0], [0], [1], [0, 0, 1, 1], [], []>} : vector<128x16xbf16>, vector<16x16xbf16>, vector<128x16xf32> -> vector<128x16xf32>
    %23 = arith.addf %19, %22 : vector<128x16xf32>
    %c0_24 = arith.constant 0 : index
    %c0_25 = arith.constant 0 : index
    %24 = vector.load %arg8[%c0_24, %c0_25] : memref<128x16xf32, #tpu.memory_space<vmem>>, vector<128x16xf32>
    tpu.vector_store %arg8[%c0_24, %c0_25], %23 {strides = array<i32>} : memref<128x16xf32, #tpu.memory_space<vmem>>, vector<128x16xf32>,
    %c0_26 = arith.constant 0 : index
    %c1 = arith.constant 1 : index
    %c0_27 = arith.constant 0 : index
    %25 = vector.load %arg1[%c0_26, %c1, %c0_27] : memref<1x168x16xbf16, #tpu.memory_space<vmem>>, vector<1x160x16xbf16>
    %26 = vector.shape_cast %25 : vector<1x160x16xbf16> to vector<160x16xbf16>
    %27 = vector.extract_strided_slice %26 {offsets = [0, 0], sizes = [128, 16], strides = [1, 1]} : vector<160x16xbf16> to vector<128x16xbf16>
    %c0_28 = arith.constant 0 : index
    %c0_29 = arith.constant 0 : index
    %28 = vector.load %arg8[%c0_28, %c0_29] : memref<128x16xf32, #tpu.memory_space<vmem>>, vector<128x16xf32>
    %c1_30 = arith.constant 1 : index
    %c0_31 = arith.constant 0 : index
    %c0_32 = arith.constant 0 : index
    %29 = vector.load %arg2[%c1_30, %c0_31, %c0_32] : memref<9x16x16xbf16, #tpu.memory_space<vmem>>, vector<1x16x16xbf16>
    %30 = vector.shape_cast %29 : vector<1x16x16xbf16> to vector<16x16xbf16>
    %cst_33 = arith.constant dense<0.000000e+00> : vector<128x16xf32>
    %31 = tpu.matmul %27, %30, %cst_33 {dimension_numbers = #tpu.dot_dimension_numbers<[1], [0], [0], [1], [0, 0, 1, 1], [], []>} : vector<128x16xbf16>, vector<16x16xbf16>, vector<128x16xf32> -> vector<128x16xf32>
    %32 = arith.addf %28, %31 : vector<128x16xf32>
    %c0_34 = arith.constant 0 : index
    %c0_35 = arith.constant 0 : index
    %33 = vector.load %arg8[%c0_34, %c0_35] : memref<128x16xf32, #tpu.memory_space<vmem>>, vector<128x16xf32>
    tpu.vector_store %arg8[%c0_34, %c0_35], %32 {strides = array<i32>} : memref<128x16xf32, #tpu.memory_space<vmem>>, vector<128x16xf32>,
    %34 = vector.extract_strided_slice %26 {offsets = [16, 0], sizes = [128, 16], strides = [1, 1]} : vector<160x16xbf16> to vector<128x16xbf16>
    %c0_36 = arith.constant 0 : index
    %c0_37 = arith.constant 0 : index
    %35 = vector.load %arg8[%c0_36, %c0_37] : memref<128x16xf32, #tpu.memory_space<vmem>>, vector<128x16xf32>
    %c4 = arith.constant 4 : index
    %c0_38 = arith.constant 0 : index
    %c0_39 = arith.constant 0 : index
    %36 = vector.load %arg2[%c4, %c0_38, %c0_39] : memref<9x16x16xbf16, #tpu.memory_space<vmem>>, vector<1x16x16xbf16>
    %37 = vector.shape_cast %36 : vector<1x16x16xbf16> to vector<16x16xbf16>
    %cst_40 = arith.constant dense<0.000000e+00> : vector<128x16xf32>
    %38 = tpu.matmul %34, %37, %cst_40 {dimension_numbers = #tpu.dot_dimension_numbers<[1], [0], [0], [1], [0, 0, 1, 1], [], []>} : vector<128x16xbf16>, vector<16x16xbf16>, vector<128x16xf32> -> vector<128x16xf32>
    %39 = arith.addf %35, %38 : vector<128x16xf32>
    %c0_41 = arith.constant 0 : index
    %c0_42 = arith.constant 0 : index
    %40 = vector.load %arg8[%c0_41, %c0_42] : memref<128x16xf32, #tpu.memory_space<vmem>>, vector<128x16xf32>
    tpu.vector_store %arg8[%c0_41, %c0_42], %39 {strides = array<i32>} : memref<128x16xf32, #tpu.memory_space<vmem>>, vector<128x16xf32>,
    %41 = vector.extract_strided_slice %26 {offsets = [32, 0], sizes = [128, 16], strides = [1, 1]} : vector<160x16xbf16> to vector<128x16xbf16>
    %c0_43 = arith.constant 0 : index
    %c0_44 = arith.constant 0 : index
    %42 = vector.load %arg8[%c0_43, %c0_44] : memref<128x16xf32, #tpu.memory_space<vmem>>, vector<128x16xf32>
    %c7 = arith.constant 7 : index
    %c0_45 = arith.constant 0 : index
    %c0_46 = arith.constant 0 : index
    %43 = vector.load %arg2[%c7, %c0_45, %c0_46] : memref<9x16x16xbf16, #tpu.memory_space<vmem>>, vector<1x16x16xbf16>
    %44 = vector.shape_cast %43 : vector<1x16x16xbf16> to vector<16x16xbf16>
    %cst_47 = arith.constant dense<0.000000e+00> : vector<128x16xf32>
    %45 = tpu.matmul %41, %44, %cst_47 {dimension_numbers = #tpu.dot_dimension_numbers<[1], [0], [0], [1], [0, 0, 1, 1], [], []>} : vector<128x16xbf16>, vector<16x16xbf16>, vector<128x16xf32> -> vector<128x16xf32>
    %46 = arith.addf %42, %45 : vector<128x16xf32>
    %c0_48 = arith.constant 0 : index
    %c0_49 = arith.constant 0 : index
    %47 = vector.load %arg8[%c0_48, %c0_49] : memref<128x16xf32, #tpu.memory_space<vmem>>, vector<128x16xf32>
    tpu.vector_store %arg8[%c0_48, %c0_49], %46 {strides = array<i32>} : memref<128x16xf32, #tpu.memory_space<vmem>>, vector<128x16xf32>,
    %c0_50 = arith.constant 0 : index
    %c2 = arith.constant 2 : index
    %c0_51 = arith.constant 0 : index
    %48 = vector.load %arg1[%c0_50, %c2, %c0_51] : memref<1x168x16xbf16, #tpu.memory_space<vmem>>, vector<1x160x16xbf16>
    %49 = vector.shape_cast %48 : vector<1x160x16xbf16> to vector<160x16xbf16>
    %50 = vector.extract_strided_slice %49 {offsets = [0, 0], sizes = [128, 16], strides = [1, 1]} : vector<160x16xbf16> to vector<128x16xbf16>
    %c0_52 = arith.constant 0 : index
    %c0_53 = arith.constant 0 : index
    %51 = vector.load %arg8[%c0_52, %c0_53] : memref<128x16xf32, #tpu.memory_space<vmem>>, vector<128x16xf32>
    %c2_54 = arith.constant 2 : index
    %c0_55 = arith.constant 0 : index
    %c0_56 = arith.constant 0 : index
    %52 = vector.load %arg2[%c2_54, %c0_55, %c0_56] : memref<9x16x16xbf16, #tpu.memory_space<vmem>>, vector<1x16x16xbf16>
    %53 = vector.shape_cast %52 : vector<1x16x16xbf16> to vector<16x16xbf16>
    %cst_57 = arith.constant dense<0.000000e+00> : vector<128x16xf32>
    %54 = tpu.matmul %50, %53, %cst_57 {dimension_numbers = #tpu.dot_dimension_numbers<[1], [0], [0], [1], [0, 0, 1, 1], [], []>} : vector<128x16xbf16>, vector<16x16xbf16>, vector<128x16xf32> -> vector<128x16xf32>
    %55 = arith.addf %51, %54 : vector<128x16xf32>
    %c0_58 = arith.constant 0 : index
    %c0_59 = arith.constant 0 : index
    %56 = vector.load %arg8[%c0_58, %c0_59] : memref<128x16xf32, #tpu.memory_space<vmem>>, vector<128x16xf32>
    tpu.vector_store %arg8[%c0_58, %c0_59], %55 {strides = array<i32>} : memref<128x16xf32, #tpu.memory_space<vmem>>, vector<128x16xf32>,
    %57 = vector.extract_strided_slice %49 {offsets = [16, 0], sizes = [128, 16], strides = [1, 1]} : vector<160x16xbf16> to vector<128x16xbf16>
    %c0_60 = arith.constant 0 : index
    %c0_61 = arith.constant 0 : index
    %58 = vector.load %arg8[%c0_60, %c0_61] : memref<128x16xf32, #tpu.memory_space<vmem>>, vector<128x16xf32>
    %c5 = arith.constant 5 : index
    %c0_62 = arith.constant 0 : index
    %c0_63 = arith.constant 0 : index
    %59 = vector.load %arg2[%c5, %c0_62, %c0_63] : memref<9x16x16xbf16, #tpu.memory_space<vmem>>, vector<1x16x16xbf16>
    %60 = vector.shape_cast %59 : vector<1x16x16xbf16> to vector<16x16xbf16>
    %cst_64 = arith.constant dense<0.000000e+00> : vector<128x16xf32>
    %61 = tpu.matmul %57, %60, %cst_64 {dimension_numbers = #tpu.dot_dimension_numbers<[1], [0], [0], [1], [0, 0, 1, 1], [], []>} : vector<128x16xbf16>, vector<16x16xbf16>, vector<128x16xf32> -> vector<128x16xf32>
    %62 = arith.addf %58, %61 : vector<128x16xf32>
    %c0_65 = arith.constant 0 : index
    %c0_66 = arith.constant 0 : index
    %63 = vector.load %arg8[%c0_65, %c0_66] : memref<128x16xf32, #tpu.memory_space<vmem>>, vector<128x16xf32>
    tpu.vector_store %arg8[%c0_65, %c0_66], %62 {strides = array<i32>} : memref<128x16xf32, #tpu.memory_space<vmem>>, vector<128x16xf32>,
    %64 = vector.extract_strided_slice %49 {offsets = [32, 0], sizes = [128, 16], strides = [1, 1]} : vector<160x16xbf16> to vector<128x16xbf16>
    %c0_67 = arith.constant 0 : index
    %c0_68 = arith.constant 0 : index
    %65 = vector.load %arg8[%c0_67, %c0_68] : memref<128x16xf32, #tpu.memory_space<vmem>>, vector<128x16xf32>
    %c8 = arith.constant 8 : index
    %c0_69 = arith.constant 0 : index
    %c0_70 = arith.constant 0 : index
    %66 = vector.load %arg2[%c8, %c0_69, %c0_70] : memref<9x16x16xbf16, #tpu.memory_space<vmem>>, vector<1x16x16xbf16>
    %67 = vector.shape_cast %66 : vector<1x16x16xbf16> to vector<16x16xbf16>
    %cst_71 = arith.constant dense<0.000000e+00> : vector<128x16xf32>
    %68 = tpu.matmul %64, %67, %cst_71 {dimension_numbers = #tpu.dot_dimension_numbers<[1], [0], [0], [1], [0, 0, 1, 1], [], []>} : vector<128x16xbf16>, vector<16x16xbf16>, vector<128x16xf32> -> vector<128x16xf32>
    %69 = arith.addf %65, %68 : vector<128x16xf32>
    %c0_72 = arith.constant 0 : index
    %c0_73 = arith.constant 0 : index
    %70 = vector.load %arg8[%c0_72, %c0_73] : memref<128x16xf32, #tpu.memory_space<vmem>>, vector<128x16xf32>
    tpu.vector_store %arg8[%c0_72, %c0_73], %69 {strides = array<i32>} : memref<128x16xf32, #tpu.memory_space<vmem>>, vector<128x16xf32>,
    %c0_74 = arith.constant 0 : index
    %c0_75 = arith.constant 0 : index
    %71 = vector.load %arg8[%c0_74, %c0_75] : memref<128x16xf32, #tpu.memory_space<vmem>>, vector<128x16xf32>
    %c0_76 = arith.constant 0 : index
    %c0_77 = arith.constant 0 : index
    %72 = vector.load %arg3[%c0_76, %c0_77] : memref<1x16xf32, #tpu.memory_space<vmem>>, vector<1x16xf32>
    %73 = vector.broadcast %72 : vector<1x16xf32> to vector<128x16xf32>
    %74 = arith.addf %71, %73 : vector<128x16xf32>
    %c0_78 = arith.constant 0 : index
    %c0_79 = arith.constant 0 : index
    %c0_80 = arith.constant 0 : index
    %75 = vector.load %arg5[%c0_78, %c0_79, %c0_80] : memref<1x128x16xf32, #tpu.memory_space<vmem>>, vector<1x128x16xf32>
    %76 = vector.shape_cast %75 : vector<1x128x16xf32> to vector<128x16xf32>
    %77 = vector.shape_cast %74 : vector<128x16xf32> to vector<1x128x16xf32>
    tpu.vector_store %arg5[%c0_78, %c0_79, %c0_80], %77 {strides = array<i32>} : memref<1x128x16xf32, #tpu.memory_space<vmem>>, vector<1x128x16xf32>,
    %c0_81 = arith.constant 0 : index
    %c0_82 = arith.constant 0 : index
    %78 = vector.load %arg4[%c0_81, %c0_82] : memref<128x1xf32, #tpu.memory_space<vmem>>, vector<128x1xf32>
    %79 = vector.broadcast %78 : vector<128x1xf32> to vector<128x16xf32>
    %80 = arith.mulf %74, %79 : vector<128x16xf32>
    %cst_83 = arith.constant dense<0.000000e+00> : vector<16xf32>
    %81 = vector.multi_reduction <add>, %80, %cst_83 [0] : vector<128x16xf32> to vector<16xf32>
    %82 = vector.shape_cast %81 : vector<16xf32> to vector<1x16xf32>
    %c0_84 = arith.constant 0 : index
    %c0_85 = arith.constant 0 : index
    %c0_86 = arith.constant 0 : index
    %83 = vector.load %arg6[%c0_84, %c0_85, %c0_86] : memref<1x1x16xf32, #tpu.memory_space<vmem>>, vector<1x1x16xf32>
    %84 = vector.shape_cast %83 : vector<1x1x16xf32> to vector<1x16xf32>
    %85 = vector.shape_cast %82 : vector<1x16xf32> to vector<1x1x16xf32>
    tpu.vector_store %arg6[%c0_84, %c0_85, %c0_86], %85 {strides = array<i32>} : memref<1x1x16xf32, #tpu.memory_space<vmem>>, vector<1x1x16xf32>,
    %86 = arith.mulf %74, %74 : vector<128x16xf32>
    %87 = vector.broadcast %78 : vector<128x1xf32> to vector<128x16xf32>
    %88 = arith.mulf %86, %87 : vector<128x16xf32>
    %cst_87 = arith.constant dense<0.000000e+00> : vector<16xf32>
    %89 = vector.multi_reduction <add>, %88, %cst_87 [0] : vector<128x16xf32> to vector<16xf32>
    %90 = vector.shape_cast %89 : vector<16xf32> to vector<1x16xf32>
    %c0_88 = arith.constant 0 : index
    %c0_89 = arith.constant 0 : index
    %c0_90 = arith.constant 0 : index
    %91 = vector.load %arg7[%c0_88, %c0_89, %c0_90] : memref<1x1x16xf32, #tpu.memory_space<vmem>>, vector<1x1x16xf32>
    %92 = vector.shape_cast %91 : vector<1x1x16xf32> to vector<1x16xf32>
    %93 = vector.shape_cast %90 : vector<1x16xf32> to vector<1x1x16xf32>
    tpu.vector_store %arg7[%c0_88, %c0_89, %c0_90], %93 {strides = array<i32>} : memref<1x1x16xf32, #tpu.memory_space<vmem>>, vector<1x1x16xf32>,
    return
  }
  func.func @transform_0(%arg0: i32) -> (i32, i32, i32) {
    %c0_i32 = arith.constant 0 : i32
    %c0_i32_0 = arith.constant 0 : i32
    %c0_i32_1 = arith.constant 0 : i32
    return %arg0, %c0_i32, %c0_i32_0 : i32, i32, i32
  }
  func.func @transform_1(%arg0: i32) -> (i32, i32, i32) {
    %c0_i32 = arith.constant 0 : i32
    %c0_i32_0 = arith.constant 0 : i32
    %c0_i32_1 = arith.constant 0 : i32
    %c0_i32_2 = arith.constant 0 : i32
    return %c0_i32, %c0_i32_0, %c0_i32_1 : i32, i32, i32
  }
  func.func @transform_2(%arg0: i32) -> (i32, i32) {
    %c0_i32 = arith.constant 0 : i32
    %c0_i32_0 = arith.constant 0 : i32
    %c0_i32_1 = arith.constant 0 : i32
    return %c0_i32, %c0_i32_0 : i32, i32
  }
  func.func @transform_3(%arg0: i32) -> (i32, i32) {
    %c0_i32 = arith.constant 0 : i32
    %c0_i32_0 = arith.constant 0 : i32
    %c0_i32_1 = arith.constant 0 : i32
    return %c0_i32, %c0_i32_0 : i32, i32
  }
  func.func @transform_4(%arg0: i32) -> (i32, i32, i32) {
    %c0_i32 = arith.constant 0 : i32
    %c0_i32_0 = arith.constant 0 : i32
    %c0_i32_1 = arith.constant 0 : i32
    return %arg0, %c0_i32, %c0_i32_0 : i32, i32, i32
  }
  func.func @transform_5(%arg0: i32) -> (i32, i32, i32) {
    %c0_i32 = arith.constant 0 : i32
    %c0_i32_0 = arith.constant 0 : i32
    %c0_i32_1 = arith.constant 0 : i32
    return %arg0, %c0_i32, %c0_i32_0 : i32, i32, i32
  }
  func.func @transform_6(%arg0: i32) -> (i32, i32, i32) {
    %c0_i32 = arith.constant 0 : i32
    %c0_i32_0 = arith.constant 0 : i32
    %c0_i32_1 = arith.constant 0 : i32
    return %arg0, %c0_i32, %c0_i32_0 : i32, i32, i32
  }
}

module attributes {stable_mosaic.version = 11 : i64} {
  func.func @_bn_apply_kernel(%arg0: i32, %arg1: memref<16x128xf32, #tpu.memory_space<vmem>>, %arg2: memref<1x128xf32, #tpu.memory_space<vmem>>, %arg3: memref<1x128xf32, #tpu.memory_space<vmem>>, %arg4: memref<16x128xf32, #tpu.memory_space<vmem>>) attributes {dimension_semantics = [#tpu.dimension_semantics<parallel>], iteration_bounds = array<i64: 1>, scalar_prefetch = 0 : i64, scratch_operands = 0 : i64, tpu.core_type = #tpu.core_type<tc>, window_params = [{transform_indices = @transform_0, window_bounds = array<i64: 16, 128>}, {pipeline_mode = #tpu.pipeline_mode<synchronous>, transform_indices = @transform_1, window_bounds = array<i64: 1, 128>}, {pipeline_mode = #tpu.pipeline_mode<synchronous>, transform_indices = @transform_2, window_bounds = array<i64: 1, 128>}, {transform_indices = @transform_3, window_bounds = array<i64: 16, 128>}]} {
    %c0 = arith.constant 0 : index
    %c0_0 = arith.constant 0 : index
    %0 = vector.load %arg1[%c0, %c0_0] : memref<16x128xf32, #tpu.memory_space<vmem>>, vector<16x128xf32>
    %c0_1 = arith.constant 0 : index
    %c0_2 = arith.constant 0 : index
    %1 = vector.load %arg2[%c0_1, %c0_2] : memref<1x128xf32, #tpu.memory_space<vmem>>, vector<1x128xf32>
    %2 = vector.broadcast %1 : vector<1x128xf32> to vector<16x128xf32>
    %3 = arith.mulf %0, %2 : vector<16x128xf32>
    %c0_3 = arith.constant 0 : index
    %c0_4 = arith.constant 0 : index
    %4 = vector.load %arg3[%c0_3, %c0_4] : memref<1x128xf32, #tpu.memory_space<vmem>>, vector<1x128xf32>
    %5 = vector.broadcast %4 : vector<1x128xf32> to vector<16x128xf32>
    %6 = arith.addf %3, %5 : vector<16x128xf32>
    %7 = arith.negf %6 : vector<16x128xf32>
    %8 = math.exp %7 : vector<16x128xf32>
    %cst = arith.constant 1.000000e+00 : f32
    %9 = vector.broadcast %cst : f32 to vector<16x128xf32>
    %10 = arith.addf %9, %8 : vector<16x128xf32>
    %11 = arith.divf %9, %10 : vector<16x128xf32>
    %12 = arith.mulf %6, %11 : vector<16x128xf32>
    %c0_5 = arith.constant 0 : index
    %c0_6 = arith.constant 0 : index
    %13 = vector.load %arg4[%c0_5, %c0_6] : memref<16x128xf32, #tpu.memory_space<vmem>>, vector<16x128xf32>
    tpu.vector_store %arg4[%c0_5, %c0_6], %12 {strides = array<i32>} : memref<16x128xf32, #tpu.memory_space<vmem>>, vector<16x128xf32>,
    return
  }
  func.func @transform_0(%arg0: i32) -> (i32, i32) {
    %c0_i32 = arith.constant 0 : i32
    %c0_i32_0 = arith.constant 0 : i32
    return %arg0, %c0_i32 : i32, i32
  }
  func.func @transform_1(%arg0: i32) -> (i32, i32) {
    %c0_i32 = arith.constant 0 : i32
    %c0_i32_0 = arith.constant 0 : i32
    %c0_i32_1 = arith.constant 0 : i32
    return %c0_i32, %c0_i32_0 : i32, i32
  }
  func.func @transform_2(%arg0: i32) -> (i32, i32) {
    %c0_i32 = arith.constant 0 : i32
    %c0_i32_0 = arith.constant 0 : i32
    %c0_i32_1 = arith.constant 0 : i32
    return %c0_i32, %c0_i32_0 : i32, i32
  }
  func.func @transform_3(%arg0: i32) -> (i32, i32) {
    %c0_i32 = arith.constant 0 : i32
    %c0_i32_0 = arith.constant 0 : i32
    return %arg0, %c0_i32 : i32, i32
  }
}

module attributes {stable_mosaic.version = 11 : i64} {
  func.func @_bn_apply_kernel(%arg0: i32, %arg1: memref<16x128xf32, #tpu.memory_space<vmem>>, %arg2: memref<1x128xf32, #tpu.memory_space<vmem>>, %arg3: memref<1x128xf32, #tpu.memory_space<vmem>>, %arg4: memref<16x128xf32, #tpu.memory_space<vmem>>, %arg5: memref<16x128xf32, #tpu.memory_space<vmem>>) attributes {dimension_semantics = [#tpu.dimension_semantics<parallel>], iteration_bounds = array<i64: 1>, scalar_prefetch = 0 : i64, scratch_operands = 0 : i64, tpu.core_type = #tpu.core_type<tc>, window_params = [{transform_indices = @transform_0, window_bounds = array<i64: 16, 128>}, {pipeline_mode = #tpu.pipeline_mode<synchronous>, transform_indices = @transform_1, window_bounds = array<i64: 1, 128>}, {pipeline_mode = #tpu.pipeline_mode<synchronous>, transform_indices = @transform_2, window_bounds = array<i64: 1, 128>}, {transform_indices = @transform_3, window_bounds = array<i64: 16, 128>}, {transform_indices = @transform_4, window_bounds = array<i64: 16, 128>}]} {
    %c0 = arith.constant 0 : index
    %c0_0 = arith.constant 0 : index
    %0 = vector.load %arg1[%c0, %c0_0] : memref<16x128xf32, #tpu.memory_space<vmem>>, vector<16x128xf32>
    %c0_1 = arith.constant 0 : index
    %c0_2 = arith.constant 0 : index
    %1 = vector.load %arg2[%c0_1, %c0_2] : memref<1x128xf32, #tpu.memory_space<vmem>>, vector<1x128xf32>
    %2 = vector.broadcast %1 : vector<1x128xf32> to vector<16x128xf32>
    %3 = arith.mulf %0, %2 : vector<16x128xf32>
    %c0_3 = arith.constant 0 : index
    %c0_4 = arith.constant 0 : index
    %4 = vector.load %arg3[%c0_3, %c0_4] : memref<1x128xf32, #tpu.memory_space<vmem>>, vector<1x128xf32>
    %5 = vector.broadcast %4 : vector<1x128xf32> to vector<16x128xf32>
    %6 = arith.addf %3, %5 : vector<16x128xf32>
    %c0_5 = arith.constant 0 : index
    %c0_6 = arith.constant 0 : index
    %7 = vector.load %arg4[%c0_5, %c0_6] : memref<16x128xf32, #tpu.memory_space<vmem>>, vector<16x128xf32>
    %8 = arith.addf %6, %7 : vector<16x128xf32>
    %c0_7 = arith.constant 0 : index
    %c0_8 = arith.constant 0 : index
    %9 = vector.load %arg5[%c0_7, %c0_8] : memref<16x128xf32, #tpu.memory_space<vmem>>, vector<16x128xf32>
    tpu.vector_store %arg5[%c0_7, %c0_8], %8 {strides = array<i32>} : memref<16x128xf32, #tpu.memory_space<vmem>>, vector<16x128xf32>,
    return
  }
  func.func @transform_0(%arg0: i32) -> (i32, i32) {
    %c0_i32 = arith.constant 0 : i32
    %c0_i32_0 = arith.constant 0 : i32
    return %arg0, %c0_i32 : i32, i32
  }
  func.func @transform_1(%arg0: i32) -> (i32, i32) {
    %c0_i32 = arith.constant 0 : i32
    %c0_i32_0 = arith.constant 0 : i32
    %c0_i32_1 = arith.constant 0 : i32
    return %c0_i32, %c0_i32_0 : i32, i32
  }
  func.func @transform_2(%arg0: i32) -> (i32, i32) {
    %c0_i32 = arith.constant 0 : i32
    %c0_i32_0 = arith.constant 0 : i32
    %c0_i32_1 = arith.constant 0 : i32
    return %c0_i32, %c0_i32_0 : i32, i32
  }
  func.func @transform_3(%arg0: i32) -> (i32, i32) {
    %c0_i32 = arith.constant 0 : i32
    %c0_i32_0 = arith.constant 0 : i32
    return %arg0, %c0_i32 : i32, i32
  }
  func.func @transform_4(%arg0: i32) -> (i32, i32) {
    %c0_i32 = arith.constant 0 : i32
    %c0_i32_0 = arith.constant 0 : i32
    return %arg0, %c0_i32 : i32, i32
  }
}

module attributes {stable_mosaic.version = 11 : i64} {
  func.func @_matmul_bias_kernel(%arg0: i32, %arg1: i32, %arg2: i32, %arg3: memref<32x64xbf16, #tpu.memory_space<vmem>>, %arg4: memref<64x32xbf16, #tpu.memory_space<vmem>>, %arg5: memref<1x32xf32, #tpu.memory_space<vmem>>, %arg6: memref<32x32xf32, #tpu.memory_space<vmem>>, %arg7: memref<32x32xf32, #tpu.memory_space<vmem>>) attributes {dimension_semantics = [#tpu.dimension_semantics<parallel>, #tpu.dimension_semantics<parallel>, #tpu.dimension_semantics<arbitrary>], iteration_bounds = array<i64: 1, 1, 1>, scalar_prefetch = 0 : i64, scratch_operands = 1 : i64, tpu.core_type = #tpu.core_type<tc>, window_params = [{transform_indices = @transform_0, window_bounds = array<i64: 32, 64>}, {transform_indices = @transform_1, window_bounds = array<i64: 64, 32>}, {transform_indices = @transform_2, window_bounds = array<i64: 1, 32>}, {transform_indices = @transform_3, window_bounds = array<i64: 32, 32>}]} {
    %c0_i32 = arith.constant 0 : i32
    %0 = arith.cmpi eq, %arg2, %c0_i32 : i32
    %1 = arith.extui %0 : i1 to i32
    %c0_i32_0 = arith.constant 0 : i32
    %2 = arith.cmpi ne, %1, %c0_i32_0 : i32
    scf.if %2 {
      %cst_10 = arith.constant 0.000000e+00 : f32
      %12 = vector.broadcast %cst_10 : f32 to vector<32x32xf32>
      %c0_11 = arith.constant 0 : index
      %c0_12 = arith.constant 0 : index
      %13 = vector.load %arg7[%c0_11, %c0_12] : memref<32x32xf32, #tpu.memory_space<vmem>>, vector<32x32xf32>
      tpu.vector_store %arg7[%c0_11, %c0_12], %12 {strides = array<i32>} : memref<32x32xf32, #tpu.memory_space<vmem>>, vector<32x32xf32>,
    } else {
    }
    %c0 = arith.constant 0 : index
    %c0_1 = arith.constant 0 : index
    %3 = vector.load %arg7[%c0, %c0_1] : memref<32x32xf32, #tpu.memory_space<vmem>>, vector<32x32xf32>
    %c0_2 = arith.constant 0 : index
    %c0_3 = arith.constant 0 : index
    %4 = vector.load %arg3[%c0_2, %c0_3] : memref<32x64xbf16, #tpu.memory_space<vmem>>, vector<32x64xbf16>
    %c0_4 = arith.constant 0 : index
    %c0_5 = arith.constant 0 : index
    %5 = vector.load %arg4[%c0_4, %c0_5] : memref<64x32xbf16, #tpu.memory_space<vmem>>, vector<64x32xbf16>
    %cst = arith.constant dense<0.000000e+00> : vector<32x32xf32>
    %6 = tpu.matmul %4, %5, %cst {dimension_numbers = #tpu.dot_dimension_numbers<[1], [0], [0], [1], [0, 0, 1, 1], [], []>} : vector<32x64xbf16>, vector<64x32xbf16>, vector<32x32xf32> -> vector<32x32xf32>
    %7 = arith.addf %3, %6 : vector<32x32xf32>
    %c0_6 = arith.constant 0 : index
    %c0_7 = arith.constant 0 : index
    %8 = vector.load %arg7[%c0_6, %c0_7] : memref<32x32xf32, #tpu.memory_space<vmem>>, vector<32x32xf32>
    tpu.vector_store %arg7[%c0_6, %c0_7], %7 {strides = array<i32>} : memref<32x32xf32, #tpu.memory_space<vmem>>, vector<32x32xf32>,
    %c0_i32_8 = arith.constant 0 : i32
    %9 = arith.cmpi eq, %arg2, %c0_i32_8 : i32
    %10 = arith.extui %9 : i1 to i32
    %c0_i32_9 = arith.constant 0 : i32
    %11 = arith.cmpi ne, %10, %c0_i32_9 : i32
    scf.if %11 {
      %c0_10 = arith.constant 0 : index
      %c0_11 = arith.constant 0 : index
      %12 = vector.load %arg7[%c0_10, %c0_11] : memref<32x32xf32, #tpu.memory_space<vmem>>, vector<32x32xf32>
      %c0_12 = arith.constant 0 : index
      %c0_13 = arith.constant 0 : index
      %13 = vector.load %arg5[%c0_12, %c0_13] : memref<1x32xf32, #tpu.memory_space<vmem>>, vector<1x32xf32>
      %14 = vector.broadcast %13 : vector<1x32xf32> to vector<32x32xf32>
      %15 = arith.addf %12, %14 : vector<32x32xf32>
      %c0_14 = arith.constant 0 : index
      %c0_15 = arith.constant 0 : index
      %16 = vector.load %arg6[%c0_14, %c0_15] : memref<32x32xf32, #tpu.memory_space<vmem>>, vector<32x32xf32>
      tpu.vector_store %arg6[%c0_14, %c0_15], %15 {strides = array<i32>} : memref<32x32xf32, #tpu.memory_space<vmem>>, vector<32x32xf32>,
    } else {
    }
    return
  }
  func.func @transform_0(%arg0: i32, %arg1: i32, %arg2: i32) -> (i32, i32) {
    %c0_i32 = arith.constant 0 : i32
    return %arg0, %arg2 : i32, i32
  }
  func.func @transform_1(%arg0: i32, %arg1: i32, %arg2: i32) -> (i32, i32) {
    %c0_i32 = arith.constant 0 : i32
    return %arg2, %arg1 : i32, i32
  }
  func.func @transform_2(%arg0: i32, %arg1: i32, %arg2: i32) -> (i32, i32) {
    %c0_i32 = arith.constant 0 : i32
    %c0_i32_0 = arith.constant 0 : i32
    return %c0_i32, %arg1 : i32, i32
  }
  func.func @transform_3(%arg0: i32, %arg1: i32, %arg2: i32) -> (i32, i32) {
    %c0_i32 = arith.constant 0 : i32
    return %arg0, %arg1 : i32, i32
  }
}

module attributes {stable_mosaic.version = 11 : i64} {
  func.func @_bn_apply_kernel(%arg0: i32, %arg1: memref<8x128xf32, #tpu.memory_space<vmem>>, %arg2: memref<1x128xf32, #tpu.memory_space<vmem>>, %arg3: memref<1x128xf32, #tpu.memory_space<vmem>>, %arg4: memref<8x128xf32, #tpu.memory_space<vmem>>) attributes {dimension_semantics = [#tpu.dimension_semantics<parallel>], iteration_bounds = array<i64: 1>, scalar_prefetch = 0 : i64, scratch_operands = 0 : i64, tpu.core_type = #tpu.core_type<tc>, window_params = [{transform_indices = @transform_0, window_bounds = array<i64: 8, 128>}, {pipeline_mode = #tpu.pipeline_mode<synchronous>, transform_indices = @transform_1, window_bounds = array<i64: 1, 128>}, {pipeline_mode = #tpu.pipeline_mode<synchronous>, transform_indices = @transform_2, window_bounds = array<i64: 1, 128>}, {transform_indices = @transform_3, window_bounds = array<i64: 8, 128>}]} {
    %c0 = arith.constant 0 : index
    %c0_0 = arith.constant 0 : index
    %0 = vector.load %arg1[%c0, %c0_0] : memref<8x128xf32, #tpu.memory_space<vmem>>, vector<8x128xf32>
    %c0_1 = arith.constant 0 : index
    %c0_2 = arith.constant 0 : index
    %1 = vector.load %arg2[%c0_1, %c0_2] : memref<1x128xf32, #tpu.memory_space<vmem>>, vector<1x128xf32>
    %2 = vector.broadcast %1 : vector<1x128xf32> to vector<8x128xf32>
    %3 = arith.mulf %0, %2 : vector<8x128xf32>
    %c0_3 = arith.constant 0 : index
    %c0_4 = arith.constant 0 : index
    %4 = vector.load %arg3[%c0_3, %c0_4] : memref<1x128xf32, #tpu.memory_space<vmem>>, vector<1x128xf32>
    %5 = vector.broadcast %4 : vector<1x128xf32> to vector<8x128xf32>
    %6 = arith.addf %3, %5 : vector<8x128xf32>
    %7 = arith.negf %6 : vector<8x128xf32>
    %8 = math.exp %7 : vector<8x128xf32>
    %cst = arith.constant 1.000000e+00 : f32
    %9 = vector.broadcast %cst : f32 to vector<8x128xf32>
    %10 = arith.addf %9, %8 : vector<8x128xf32>
    %11 = arith.divf %9, %10 : vector<8x128xf32>
    %12 = arith.mulf %6, %11 : vector<8x128xf32>
    %c0_5 = arith.constant 0 : index
    %c0_6 = arith.constant 0 : index
    %13 = vector.load %arg4[%c0_5, %c0_6] : memref<8x128xf32, #tpu.memory_space<vmem>>, vector<8x128xf32>
    tpu.vector_store %arg4[%c0_5, %c0_6], %12 {strides = array<i32>} : memref<8x128xf32, #tpu.memory_space<vmem>>, vector<8x128xf32>,
    return
  }
  func.func @transform_0(%arg0: i32) -> (i32, i32) {
    %c0_i32 = arith.constant 0 : i32
    %c0_i32_0 = arith.constant 0 : i32
    return %arg0, %c0_i32 : i32, i32
  }
  func.func @transform_1(%arg0: i32) -> (i32, i32) {
    %c0_i32 = arith.constant 0 : i32
    %c0_i32_0 = arith.constant 0 : i32
    %c0_i32_1 = arith.constant 0 : i32
    return %c0_i32, %c0_i32_0 : i32, i32
  }
  func.func @transform_2(%arg0: i32) -> (i32, i32) {
    %c0_i32 = arith.constant 0 : i32
    %c0_i32_0 = arith.constant 0 : i32
    %c0_i32_1 = arith.constant 0 : i32
    return %c0_i32, %c0_i32_0 : i32, i32
  }
  func.func @transform_3(%arg0: i32) -> (i32, i32) {
    %c0_i32 = arith.constant 0 : i32
    %c0_i32_0 = arith.constant 0 : i32
    return %arg0, %c0_i32 : i32, i32
  }
}

module attributes {stable_mosaic.version = 11 : i64} {
  func.func @_conv3x3_kernel(%arg0: i32, %arg1: memref<1x56x32xbf16, #tpu.memory_space<vmem>>, %arg2: memref<9x32x32xbf16, #tpu.memory_space<vmem>>, %arg3: memref<1x32xf32, #tpu.memory_space<vmem>>, %arg4: memref<32x1xf32, #tpu.memory_space<vmem>>, %arg5: memref<1x32x32xf32, #tpu.memory_space<vmem>>, %arg6: memref<1x1x32xf32, #tpu.memory_space<vmem>>, %arg7: memref<1x1x32xf32, #tpu.memory_space<vmem>>, %arg8: memref<32x32xf32, #tpu.memory_space<vmem>>) attributes {dimension_semantics = [#tpu.dimension_semantics<parallel>], iteration_bounds = array<i64: 2>, scalar_prefetch = 0 : i64, scratch_operands = 1 : i64, tpu.core_type = #tpu.core_type<tc>, window_params = [{transform_indices = @transform_0, window_bounds = array<i64: 1, 56, 32>}, {pipeline_mode = #tpu.pipeline_mode<synchronous>, transform_indices = @transform_1, window_bounds = array<i64: 9, 32, 32>}, {pipeline_mode = #tpu.pipeline_mode<synchronous>, transform_indices = @transform_2, window_bounds = array<i64: 1, 32>}, {pipeline_mode = #tpu.pipeline_mode<synchronous>, transform_indices = @transform_3, window_bounds = array<i64: 32, 1>}, {transform_indices = @transform_4, window_bounds = array<i64: 1, 32, 32>}, {transform_indices = @transform_5, window_bounds = array<i64: 1, 1, 32>}, {transform_indices = @transform_6, window_bounds = array<i64: 1, 1, 32>}]} {
    %cst = arith.constant 0.000000e+00 : f32
    %0 = vector.broadcast %cst : f32 to vector<32x32xf32>
    %c0 = arith.constant 0 : index
    %c0_0 = arith.constant 0 : index
    %1 = vector.load %arg8[%c0, %c0_0] : memref<32x32xf32, #tpu.memory_space<vmem>>, vector<32x32xf32>
    tpu.vector_store %arg8[%c0, %c0_0], %0 {strides = array<i32>} : memref<32x32xf32, #tpu.memory_space<vmem>>, vector<32x32xf32>,
    %c0_1 = arith.constant 0 : index
    %c0_2 = arith.constant 0 : index
    %c0_3 = arith.constant 0 : index
    %2 = vector.load %arg1[%c0_1, %c0_2, %c0_3] : memref<1x56x32xbf16, #tpu.memory_space<vmem>>, vector<1x48x32xbf16>
    %3 = vector.shape_cast %2 : vector<1x48x32xbf16> to vector<48x32xbf16>
    %4 = vector.extract_strided_slice %3 {offsets = [0, 0], sizes = [32, 32], strides = [1, 1]} : vector<48x32xbf16> to vector<32x32xbf16>
    %c0_4 = arith.constant 0 : index
    %c0_5 = arith.constant 0 : index
    %5 = vector.load %arg8[%c0_4, %c0_5] : memref<32x32xf32, #tpu.memory_space<vmem>>, vector<32x32xf32>
    %c0_6 = arith.constant 0 : index
    %c0_7 = arith.constant 0 : index
    %c0_8 = arith.constant 0 : index
    %6 = vector.load %arg2[%c0_6, %c0_7, %c0_8] : memref<9x32x32xbf16, #tpu.memory_space<vmem>>, vector<1x32x32xbf16>
    %7 = vector.shape_cast %6 : vector<1x32x32xbf16> to vector<32x32xbf16>
    %cst_9 = arith.constant dense<0.000000e+00> : vector<32x32xf32>
    %8 = tpu.matmul %4, %7, %cst_9 {dimension_numbers = #tpu.dot_dimension_numbers<[1], [0], [0], [1], [0, 0, 1, 1], [], []>} : vector<32x32xbf16>, vector<32x32xbf16>, vector<32x32xf32> -> vector<32x32xf32>
    %9 = arith.addf %5, %8 : vector<32x32xf32>
    %c0_10 = arith.constant 0 : index
    %c0_11 = arith.constant 0 : index
    %10 = vector.load %arg8[%c0_10, %c0_11] : memref<32x32xf32, #tpu.memory_space<vmem>>, vector<32x32xf32>
    tpu.vector_store %arg8[%c0_10, %c0_11], %9 {strides = array<i32>} : memref<32x32xf32, #tpu.memory_space<vmem>>, vector<32x32xf32>,
    %11 = vector.extract_strided_slice %3 {offsets = [8, 0], sizes = [32, 32], strides = [1, 1]} : vector<48x32xbf16> to vector<32x32xbf16>
    %c0_12 = arith.constant 0 : index
    %c0_13 = arith.constant 0 : index
    %12 = vector.load %arg8[%c0_12, %c0_13] : memref<32x32xf32, #tpu.memory_space<vmem>>, vector<32x32xf32>
    %c3 = arith.constant 3 : index
    %c0_14 = arith.constant 0 : index
    %c0_15 = arith.constant 0 : index
    %13 = vector.load %arg2[%c3, %c0_14, %c0_15] : memref<9x32x32xbf16, #tpu.memory_space<vmem>>, vector<1x32x32xbf16>
    %14 = vector.shape_cast %13 : vector<1x32x32xbf16> to vector<32x32xbf16>
    %cst_16 = arith.constant dense<0.000000e+00> : vector<32x32xf32>
    %15 = tpu.matmul %11, %14, %cst_16 {dimension_numbers = #tpu.dot_dimension_numbers<[1], [0], [0], [1], [0, 0, 1, 1], [], []>} : vector<32x32xbf16>, vector<32x32xbf16>, vector<32x32xf32> -> vector<32x32xf32>
    %16 = arith.addf %12, %15 : vector<32x32xf32>
    %c0_17 = arith.constant 0 : index
    %c0_18 = arith.constant 0 : index
    %17 = vector.load %arg8[%c0_17, %c0_18] : memref<32x32xf32, #tpu.memory_space<vmem>>, vector<32x32xf32>
    tpu.vector_store %arg8[%c0_17, %c0_18], %16 {strides = array<i32>} : memref<32x32xf32, #tpu.memory_space<vmem>>, vector<32x32xf32>,
    %18 = vector.extract_strided_slice %3 {offsets = [16, 0], sizes = [32, 32], strides = [1, 1]} : vector<48x32xbf16> to vector<32x32xbf16>
    %c0_19 = arith.constant 0 : index
    %c0_20 = arith.constant 0 : index
    %19 = vector.load %arg8[%c0_19, %c0_20] : memref<32x32xf32, #tpu.memory_space<vmem>>, vector<32x32xf32>
    %c6 = arith.constant 6 : index
    %c0_21 = arith.constant 0 : index
    %c0_22 = arith.constant 0 : index
    %20 = vector.load %arg2[%c6, %c0_21, %c0_22] : memref<9x32x32xbf16, #tpu.memory_space<vmem>>, vector<1x32x32xbf16>
    %21 = vector.shape_cast %20 : vector<1x32x32xbf16> to vector<32x32xbf16>
    %cst_23 = arith.constant dense<0.000000e+00> : vector<32x32xf32>
    %22 = tpu.matmul %18, %21, %cst_23 {dimension_numbers = #tpu.dot_dimension_numbers<[1], [0], [0], [1], [0, 0, 1, 1], [], []>} : vector<32x32xbf16>, vector<32x32xbf16>, vector<32x32xf32> -> vector<32x32xf32>
    %23 = arith.addf %19, %22 : vector<32x32xf32>
    %c0_24 = arith.constant 0 : index
    %c0_25 = arith.constant 0 : index
    %24 = vector.load %arg8[%c0_24, %c0_25] : memref<32x32xf32, #tpu.memory_space<vmem>>, vector<32x32xf32>
    tpu.vector_store %arg8[%c0_24, %c0_25], %23 {strides = array<i32>} : memref<32x32xf32, #tpu.memory_space<vmem>>, vector<32x32xf32>,
    %c0_26 = arith.constant 0 : index
    %c1 = arith.constant 1 : index
    %c0_27 = arith.constant 0 : index
    %25 = vector.load %arg1[%c0_26, %c1, %c0_27] : memref<1x56x32xbf16, #tpu.memory_space<vmem>>, vector<1x48x32xbf16>
    %26 = vector.shape_cast %25 : vector<1x48x32xbf16> to vector<48x32xbf16>
    %27 = vector.extract_strided_slice %26 {offsets = [0, 0], sizes = [32, 32], strides = [1, 1]} : vector<48x32xbf16> to vector<32x32xbf16>
    %c0_28 = arith.constant 0 : index
    %c0_29 = arith.constant 0 : index
    %28 = vector.load %arg8[%c0_28, %c0_29] : memref<32x32xf32, #tpu.memory_space<vmem>>, vector<32x32xf32>
    %c1_30 = arith.constant 1 : index
    %c0_31 = arith.constant 0 : index
    %c0_32 = arith.constant 0 : index
    %29 = vector.load %arg2[%c1_30, %c0_31, %c0_32] : memref<9x32x32xbf16, #tpu.memory_space<vmem>>, vector<1x32x32xbf16>
    %30 = vector.shape_cast %29 : vector<1x32x32xbf16> to vector<32x32xbf16>
    %cst_33 = arith.constant dense<0.000000e+00> : vector<32x32xf32>
    %31 = tpu.matmul %27, %30, %cst_33 {dimension_numbers = #tpu.dot_dimension_numbers<[1], [0], [0], [1], [0, 0, 1, 1], [], []>} : vector<32x32xbf16>, vector<32x32xbf16>, vector<32x32xf32> -> vector<32x32xf32>
    %32 = arith.addf %28, %31 : vector<32x32xf32>
    %c0_34 = arith.constant 0 : index
    %c0_35 = arith.constant 0 : index
    %33 = vector.load %arg8[%c0_34, %c0_35] : memref<32x32xf32, #tpu.memory_space<vmem>>, vector<32x32xf32>
    tpu.vector_store %arg8[%c0_34, %c0_35], %32 {strides = array<i32>} : memref<32x32xf32, #tpu.memory_space<vmem>>, vector<32x32xf32>,
    %34 = vector.extract_strided_slice %26 {offsets = [8, 0], sizes = [32, 32], strides = [1, 1]} : vector<48x32xbf16> to vector<32x32xbf16>
    %c0_36 = arith.constant 0 : index
    %c0_37 = arith.constant 0 : index
    %35 = vector.load %arg8[%c0_36, %c0_37] : memref<32x32xf32, #tpu.memory_space<vmem>>, vector<32x32xf32>
    %c4 = arith.constant 4 : index
    %c0_38 = arith.constant 0 : index
    %c0_39 = arith.constant 0 : index
    %36 = vector.load %arg2[%c4, %c0_38, %c0_39] : memref<9x32x32xbf16, #tpu.memory_space<vmem>>, vector<1x32x32xbf16>
    %37 = vector.shape_cast %36 : vector<1x32x32xbf16> to vector<32x32xbf16>
    %cst_40 = arith.constant dense<0.000000e+00> : vector<32x32xf32>
    %38 = tpu.matmul %34, %37, %cst_40 {dimension_numbers = #tpu.dot_dimension_numbers<[1], [0], [0], [1], [0, 0, 1, 1], [], []>} : vector<32x32xbf16>, vector<32x32xbf16>, vector<32x32xf32> -> vector<32x32xf32>
    %39 = arith.addf %35, %38 : vector<32x32xf32>
    %c0_41 = arith.constant 0 : index
    %c0_42 = arith.constant 0 : index
    %40 = vector.load %arg8[%c0_41, %c0_42] : memref<32x32xf32, #tpu.memory_space<vmem>>, vector<32x32xf32>
    tpu.vector_store %arg8[%c0_41, %c0_42], %39 {strides = array<i32>} : memref<32x32xf32, #tpu.memory_space<vmem>>, vector<32x32xf32>,
    %41 = vector.extract_strided_slice %26 {offsets = [16, 0], sizes = [32, 32], strides = [1, 1]} : vector<48x32xbf16> to vector<32x32xbf16>
    %c0_43 = arith.constant 0 : index
    %c0_44 = arith.constant 0 : index
    %42 = vector.load %arg8[%c0_43, %c0_44] : memref<32x32xf32, #tpu.memory_space<vmem>>, vector<32x32xf32>
    %c7 = arith.constant 7 : index
    %c0_45 = arith.constant 0 : index
    %c0_46 = arith.constant 0 : index
    %43 = vector.load %arg2[%c7, %c0_45, %c0_46] : memref<9x32x32xbf16, #tpu.memory_space<vmem>>, vector<1x32x32xbf16>
    %44 = vector.shape_cast %43 : vector<1x32x32xbf16> to vector<32x32xbf16>
    %cst_47 = arith.constant dense<0.000000e+00> : vector<32x32xf32>
    %45 = tpu.matmul %41, %44, %cst_47 {dimension_numbers = #tpu.dot_dimension_numbers<[1], [0], [0], [1], [0, 0, 1, 1], [], []>} : vector<32x32xbf16>, vector<32x32xbf16>, vector<32x32xf32> -> vector<32x32xf32>
    %46 = arith.addf %42, %45 : vector<32x32xf32>
    %c0_48 = arith.constant 0 : index
    %c0_49 = arith.constant 0 : index
    %47 = vector.load %arg8[%c0_48, %c0_49] : memref<32x32xf32, #tpu.memory_space<vmem>>, vector<32x32xf32>
    tpu.vector_store %arg8[%c0_48, %c0_49], %46 {strides = array<i32>} : memref<32x32xf32, #tpu.memory_space<vmem>>, vector<32x32xf32>,
    %c0_50 = arith.constant 0 : index
    %c2 = arith.constant 2 : index
    %c0_51 = arith.constant 0 : index
    %48 = vector.load %arg1[%c0_50, %c2, %c0_51] : memref<1x56x32xbf16, #tpu.memory_space<vmem>>, vector<1x48x32xbf16>
    %49 = vector.shape_cast %48 : vector<1x48x32xbf16> to vector<48x32xbf16>
    %50 = vector.extract_strided_slice %49 {offsets = [0, 0], sizes = [32, 32], strides = [1, 1]} : vector<48x32xbf16> to vector<32x32xbf16>
    %c0_52 = arith.constant 0 : index
    %c0_53 = arith.constant 0 : index
    %51 = vector.load %arg8[%c0_52, %c0_53] : memref<32x32xf32, #tpu.memory_space<vmem>>, vector<32x32xf32>
    %c2_54 = arith.constant 2 : index
    %c0_55 = arith.constant 0 : index
    %c0_56 = arith.constant 0 : index
    %52 = vector.load %arg2[%c2_54, %c0_55, %c0_56] : memref<9x32x32xbf16, #tpu.memory_space<vmem>>, vector<1x32x32xbf16>
    %53 = vector.shape_cast %52 : vector<1x32x32xbf16> to vector<32x32xbf16>
    %cst_57 = arith.constant dense<0.000000e+00> : vector<32x32xf32>
    %54 = tpu.matmul %50, %53, %cst_57 {dimension_numbers = #tpu.dot_dimension_numbers<[1], [0], [0], [1], [0, 0, 1, 1], [], []>} : vector<32x32xbf16>, vector<32x32xbf16>, vector<32x32xf32> -> vector<32x32xf32>
    %55 = arith.addf %51, %54 : vector<32x32xf32>
    %c0_58 = arith.constant 0 : index
    %c0_59 = arith.constant 0 : index
    %56 = vector.load %arg8[%c0_58, %c0_59] : memref<32x32xf32, #tpu.memory_space<vmem>>, vector<32x32xf32>
    tpu.vector_store %arg8[%c0_58, %c0_59], %55 {strides = array<i32>} : memref<32x32xf32, #tpu.memory_space<vmem>>, vector<32x32xf32>,
    %57 = vector.extract_strided_slice %49 {offsets = [8, 0], sizes = [32, 32], strides = [1, 1]} : vector<48x32xbf16> to vector<32x32xbf16>
    %c0_60 = arith.constant 0 : index
    %c0_61 = arith.constant 0 : index
    %58 = vector.load %arg8[%c0_60, %c0_61] : memref<32x32xf32, #tpu.memory_space<vmem>>, vector<32x32xf32>
    %c5 = arith.constant 5 : index
    %c0_62 = arith.constant 0 : index
    %c0_63 = arith.constant 0 : index
    %59 = vector.load %arg2[%c5, %c0_62, %c0_63] : memref<9x32x32xbf16, #tpu.memory_space<vmem>>, vector<1x32x32xbf16>
    %60 = vector.shape_cast %59 : vector<1x32x32xbf16> to vector<32x32xbf16>
    %cst_64 = arith.constant dense<0.000000e+00> : vector<32x32xf32>
    %61 = tpu.matmul %57, %60, %cst_64 {dimension_numbers = #tpu.dot_dimension_numbers<[1], [0], [0], [1], [0, 0, 1, 1], [], []>} : vector<32x32xbf16>, vector<32x32xbf16>, vector<32x32xf32> -> vector<32x32xf32>
    %62 = arith.addf %58, %61 : vector<32x32xf32>
    %c0_65 = arith.constant 0 : index
    %c0_66 = arith.constant 0 : index
    %63 = vector.load %arg8[%c0_65, %c0_66] : memref<32x32xf32, #tpu.memory_space<vmem>>, vector<32x32xf32>
    tpu.vector_store %arg8[%c0_65, %c0_66], %62 {strides = array<i32>} : memref<32x32xf32, #tpu.memory_space<vmem>>, vector<32x32xf32>,
    %64 = vector.extract_strided_slice %49 {offsets = [16, 0], sizes = [32, 32], strides = [1, 1]} : vector<48x32xbf16> to vector<32x32xbf16>
    %c0_67 = arith.constant 0 : index
    %c0_68 = arith.constant 0 : index
    %65 = vector.load %arg8[%c0_67, %c0_68] : memref<32x32xf32, #tpu.memory_space<vmem>>, vector<32x32xf32>
    %c8 = arith.constant 8 : index
    %c0_69 = arith.constant 0 : index
    %c0_70 = arith.constant 0 : index
    %66 = vector.load %arg2[%c8, %c0_69, %c0_70] : memref<9x32x32xbf16, #tpu.memory_space<vmem>>, vector<1x32x32xbf16>
    %67 = vector.shape_cast %66 : vector<1x32x32xbf16> to vector<32x32xbf16>
    %cst_71 = arith.constant dense<0.000000e+00> : vector<32x32xf32>
    %68 = tpu.matmul %64, %67, %cst_71 {dimension_numbers = #tpu.dot_dimension_numbers<[1], [0], [0], [1], [0, 0, 1, 1], [], []>} : vector<32x32xbf16>, vector<32x32xbf16>, vector<32x32xf32> -> vector<32x32xf32>
    %69 = arith.addf %65, %68 : vector<32x32xf32>
    %c0_72 = arith.constant 0 : index
    %c0_73 = arith.constant 0 : index
    %70 = vector.load %arg8[%c0_72, %c0_73] : memref<32x32xf32, #tpu.memory_space<vmem>>, vector<32x32xf32>
    tpu.vector_store %arg8[%c0_72, %c0_73], %69 {strides = array<i32>} : memref<32x32xf32, #tpu.memory_space<vmem>>, vector<32x32xf32>,
    %c0_74 = arith.constant 0 : index
    %c0_75 = arith.constant 0 : index
    %71 = vector.load %arg8[%c0_74, %c0_75] : memref<32x32xf32, #tpu.memory_space<vmem>>, vector<32x32xf32>
    %c0_76 = arith.constant 0 : index
    %c0_77 = arith.constant 0 : index
    %72 = vector.load %arg3[%c0_76, %c0_77] : memref<1x32xf32, #tpu.memory_space<vmem>>, vector<1x32xf32>
    %73 = vector.broadcast %72 : vector<1x32xf32> to vector<32x32xf32>
    %74 = arith.addf %71, %73 : vector<32x32xf32>
    %c0_78 = arith.constant 0 : index
    %c0_79 = arith.constant 0 : index
    %c0_80 = arith.constant 0 : index
    %75 = vector.load %arg5[%c0_78, %c0_79, %c0_80] : memref<1x32x32xf32, #tpu.memory_space<vmem>>, vector<1x32x32xf32>
    %76 = vector.shape_cast %75 : vector<1x32x32xf32> to vector<32x32xf32>
    %77 = vector.shape_cast %74 : vector<32x32xf32> to vector<1x32x32xf32>
    tpu.vector_store %arg5[%c0_78, %c0_79, %c0_80], %77 {strides = array<i32>} : memref<1x32x32xf32, #tpu.memory_space<vmem>>, vector<1x32x32xf32>,
    %c0_81 = arith.constant 0 : index
    %c0_82 = arith.constant 0 : index
    %78 = vector.load %arg4[%c0_81, %c0_82] : memref<32x1xf32, #tpu.memory_space<vmem>>, vector<32x1xf32>
    %79 = vector.broadcast %78 : vector<32x1xf32> to vector<32x32xf32>
    %80 = arith.mulf %74, %79 : vector<32x32xf32>
    %cst_83 = arith.constant dense<0.000000e+00> : vector<32xf32>
    %81 = vector.multi_reduction <add>, %80, %cst_83 [0] : vector<32x32xf32> to vector<32xf32>
    %82 = vector.shape_cast %81 : vector<32xf32> to vector<1x32xf32>
    %c0_84 = arith.constant 0 : index
    %c0_85 = arith.constant 0 : index
    %c0_86 = arith.constant 0 : index
    %83 = vector.load %arg6[%c0_84, %c0_85, %c0_86] : memref<1x1x32xf32, #tpu.memory_space<vmem>>, vector<1x1x32xf32>
    %84 = vector.shape_cast %83 : vector<1x1x32xf32> to vector<1x32xf32>
    %85 = vector.shape_cast %82 : vector<1x32xf32> to vector<1x1x32xf32>
    tpu.vector_store %arg6[%c0_84, %c0_85, %c0_86], %85 {strides = array<i32>} : memref<1x1x32xf32, #tpu.memory_space<vmem>>, vector<1x1x32xf32>,
    %86 = arith.mulf %74, %74 : vector<32x32xf32>
    %87 = vector.broadcast %78 : vector<32x1xf32> to vector<32x32xf32>
    %88 = arith.mulf %86, %87 : vector<32x32xf32>
    %cst_87 = arith.constant dense<0.000000e+00> : vector<32xf32>
    %89 = vector.multi_reduction <add>, %88, %cst_87 [0] : vector<32x32xf32> to vector<32xf32>
    %90 = vector.shape_cast %89 : vector<32xf32> to vector<1x32xf32>
    %c0_88 = arith.constant 0 : index
    %c0_89 = arith.constant 0 : index
    %c0_90 = arith.constant 0 : index
    %91 = vector.load %arg7[%c0_88, %c0_89, %c0_90] : memref<1x1x32xf32, #tpu.memory_space<vmem>>, vector<1x1x32xf32>
    %92 = vector.shape_cast %91 : vector<1x1x32xf32> to vector<1x32xf32>
    %93 = vector.shape_cast %90 : vector<1x32xf32> to vector<1x1x32xf32>
    tpu.vector_store %arg7[%c0_88, %c0_89, %c0_90], %93 {strides = array<i32>} : memref<1x1x32xf32, #tpu.memory_space<vmem>>, vector<1x1x32xf32>,
    return
  }
  func.func @transform_0(%arg0: i32) -> (i32, i32, i32) {
    %c0_i32 = arith.constant 0 : i32
    %c0_i32_0 = arith.constant 0 : i32
    %c0_i32_1 = arith.constant 0 : i32
    return %arg0, %c0_i32, %c0_i32_0 : i32, i32, i32
  }
  func.func @transform_1(%arg0: i32) -> (i32, i32, i32) {
    %c0_i32 = arith.constant 0 : i32
    %c0_i32_0 = arith.constant 0 : i32
    %c0_i32_1 = arith.constant 0 : i32
    %c0_i32_2 = arith.constant 0 : i32
    return %c0_i32, %c0_i32_0, %c0_i32_1 : i32, i32, i32
  }
  func.func @transform_2(%arg0: i32) -> (i32, i32) {
    %c0_i32 = arith.constant 0 : i32
    %c0_i32_0 = arith.constant 0 : i32
    %c0_i32_1 = arith.constant 0 : i32
    return %c0_i32, %c0_i32_0 : i32, i32
  }
  func.func @transform_3(%arg0: i32) -> (i32, i32) {
    %c0_i32 = arith.constant 0 : i32
    %c0_i32_0 = arith.constant 0 : i32
    %c0_i32_1 = arith.constant 0 : i32
    return %c0_i32, %c0_i32_0 : i32, i32
  }
  func.func @transform_4(%arg0: i32) -> (i32, i32, i32) {
    %c0_i32 = arith.constant 0 : i32
    %c0_i32_0 = arith.constant 0 : i32
    %c0_i32_1 = arith.constant 0 : i32
    return %arg0, %c0_i32, %c0_i32_0 : i32, i32, i32
  }
  func.func @transform_5(%arg0: i32) -> (i32, i32, i32) {
    %c0_i32 = arith.constant 0 : i32
    %c0_i32_0 = arith.constant 0 : i32
    %c0_i32_1 = arith.constant 0 : i32
    return %arg0, %c0_i32, %c0_i32_0 : i32, i32, i32
  }
  func.func @transform_6(%arg0: i32) -> (i32, i32, i32) {
    %c0_i32 = arith.constant 0 : i32
    %c0_i32_0 = arith.constant 0 : i32
    %c0_i32_1 = arith.constant 0 : i32
    return %arg0, %c0_i32, %c0_i32_0 : i32, i32, i32
  }
}

module attributes {stable_mosaic.version = 11 : i64} {
  func.func @_bsq_fused_kernel(%arg0: i32, %arg1: memref<32x64xf32, #tpu.memory_space<vmem>>, %arg2: memref<64x8xbf16, #tpu.memory_space<vmem>>, %arg3: memref<1x8xf32, #tpu.memory_space<vmem>>, %arg4: memref<1x8xf32, #tpu.memory_space<vmem>>, %arg5: memref<8x64xbf16, #tpu.memory_space<vmem>>, %arg6: memref<1x64xf32, #tpu.memory_space<vmem>>, %arg7: memref<32x64xf32, #tpu.memory_space<vmem>>, %arg8: memref<32x1xi32, #tpu.memory_space<vmem>>, %arg9: memref<1x1x1xf32, #tpu.memory_space<vmem>>, %arg10: memref<1x1x1xf32, #tpu.memory_space<vmem>>) attributes {dimension_semantics = [#tpu.dimension_semantics<parallel>], iteration_bounds = array<i64: 1>, scalar_prefetch = 0 : i64, scratch_operands = 0 : i64, tpu.core_type = #tpu.core_type<tc>, window_params = [{transform_indices = @transform_0, window_bounds = array<i64: 32, 64>}, {pipeline_mode = #tpu.pipeline_mode<synchronous>, transform_indices = @transform_1, window_bounds = array<i64: 64, 8>}, {pipeline_mode = #tpu.pipeline_mode<synchronous>, transform_indices = @transform_2, window_bounds = array<i64: 1, 8>}, {pipeline_mode = #tpu.pipeline_mode<synchronous>, transform_indices = @transform_3, window_bounds = array<i64: 1, 8>}, {pipeline_mode = #tpu.pipeline_mode<synchronous>, transform_indices = @transform_4, window_bounds = array<i64: 8, 64>}, {pipeline_mode = #tpu.pipeline_mode<synchronous>, transform_indices = @transform_5, window_bounds = array<i64: 1, 64>}, {transform_indices = @transform_6, window_bounds = array<i64: 32, 64>}, {transform_indices = @transform_7, window_bounds = array<i64: 32, 1>}, {transform_indices = @transform_8, window_bounds = array<i64: 1, 1, 1>}, {transform_indices = @transform_9, window_bounds = array<i64: 1, 1, 1>}]} {
    %c0 = arith.constant 0 : index
    %c0_0 = arith.constant 0 : index
    %0 = vector.load %arg1[%c0, %c0_0] : memref<32x64xf32, #tpu.memory_space<vmem>>, vector<32x64xf32>
    %1 = arith.truncf %0 : vector<32x64xf32> to vector<32x64xbf16>
    %c0_1 = arith.constant 0 : index
    %c0_2 = arith.constant 0 : index
    %2 = vector.load %arg2[%c0_1, %c0_2] : memref<64x8xbf16, #tpu.memory_space<vmem>>, vector<64x8xbf16>
    %cst = arith.constant dense<0.000000e+00> : vector<32x8xf32>
    %3 = tpu.matmul %1, %2, %cst {dimension_numbers = #tpu.dot_dimension_numbers<[1], [0], [0], [1], [0, 0, 1, 1], [], []>} : vector<32x64xbf16>, vector<64x8xbf16>, vector<32x8xf32> -> vector<32x8xf32>
    %c0_3 = arith.constant 0 : index
    %c0_4 = arith.constant 0 : index
    %4 = vector.load %arg3[%c0_3, %c0_4] : memref<1x8xf32, #tpu.memory_space<vmem>>, vector<1x8xf32>
    %5 = vector.broadcast %4 : vector<1x8xf32> to vector<32x8xf32>
    %6 = arith.addf %3, %5 : vector<32x8xf32>
    %7 = math.absf %6 : vector<32x8xf32>
    %cst_5 = arith.constant dense<0.000000e+00> : vector<32xf32>
    %8 = vector.multi_reduction <add>, %7, %cst_5 [1] : vector<32x8xf32> to vector<32xf32>
    %9 = vector.shape_cast %8 : vector<32xf32> to vector<32x1xf32>
    %cst_6 = arith.constant 9.99999996E-13 : f32
    %10 = vector.broadcast %cst_6 : f32 to vector<32x1xf32>
    %11 = arith.maximumf %9, %10 : vector<32x1xf32>
    %12 = vector.broadcast %11 : vector<32x1xf32> to vector<32x8xf32>
    %13 = arith.divf %6, %12 : vector<32x8xf32>
    %cst_7 = arith.constant 0.000000e+00 : f32
    %14 = vector.broadcast %cst_7 : f32 to vector<32x8xf32>
    %15 = arith.cmpf ogt, %13, %14 : vector<32x8xf32>
    %cst_8 = arith.constant 0.353553385 : f32
    %cst_9 = arith.constant -0.353553385 : f32
    %16 = vector.broadcast %cst_8 : f32 to vector<32x8xf32>
    %17 = vector.broadcast %cst_9 : f32 to vector<32x8xf32>
    %18 = arith.select %15, %16, %17 : vector<32x8xi1>, vector<32x8xf32>
    %cst_10 = arith.constant 1.000000e+00 : f32
    %cst_11 = arith.constant 0.000000e+00 : f32
    %19 = vector.broadcast %cst_10 : f32 to vector<32x8xf32>
    %20 = vector.broadcast %cst_11 : f32 to vector<32x8xf32>
    %21 = arith.select %15, %19, %20 : vector<32x8xi1>, vector<32x8xf32>
    %c32_i32 = arith.constant 32 : i32
    %22 = arith.muli %arg0, %c32_i32 : i32
    %23 = tpu.iota {dimensions = array<i32: 0>} : vector<32x1xi32>
    %24 = vector.broadcast %22 : i32 to vector<32x1xi32>
    %25 = arith.addi %24, %23 : vector<32x1xi32>
    %c32_i32_12 = arith.constant 32 : i32
    %26 = vector.broadcast %c32_i32_12 : i32 to vector<32x1xi32>
    %27 = arith.cmpi slt, %25, %26 : vector<32x1xi32>
    %28 = arith.extui %27 : vector<32x1xi1> to vector<32x1xi32>
    %29 = arith.sitofp %28 : vector<32x1xi32> to vector<32x1xf32>
    %30 = arith.subf %18, %13 : vector<32x8xf32>
    %31 = arith.mulf %30, %30 : vector<32x8xf32>
    %32 = vector.broadcast %29 : vector<32x1xf32> to vector<32x8xf32>
    %33 = arith.mulf %31, %32 : vector<32x8xf32>
    %34 = vector.shape_cast %33 : vector<32x8xf32> to vector<1x32x8xf32>
    %cst_13 = arith.constant dense<0.000000e+00> : vector<1xf32>
    %35 = vector.multi_reduction <add>, %34, %cst_13 [1, 2] : vector<1x32x8xf32> to vector<1xf32>
    %36 = vector.shape_cast %35 : vector<1xf32> to vector<1x1x1xf32>
    %37 = vector.extract %36[0, 0, 0] : f32 from vector<1x1x1xf32>
    %38 = vector.broadcast %37 : f32 to vector<1x1xf32>
    %39 = vector.shape_cast %38 : vector<1x1xf32> to vector<1x1x1xf32>
    %c0_14 = arith.constant 0 : index
    %c0_15 = arith.constant 0 : index
    %c0_16 = arith.constant 0 : index
    %40 = vector.load %arg9[%c0_14, %c0_15, %c0_16] : memref<1x1x1xf32, #tpu.memory_space<vmem>>, vector<1x1x1xf32>
    tpu.vector_store %arg9[%c0_14, %c0_15, %c0_16], %39 {strides = array<i32>} : memref<1x1x1xf32, #tpu.memory_space<vmem>>, vector<1x1x1xf32>,
    %cst_17 = arith.constant 2.000000e+00 : f32
    %41 = vector.broadcast %cst_17 : f32 to vector<32x8xf32>
    %42 = arith.mulf %41, %13 : vector<32x8xf32>
    %43 = arith.negf %42 : vector<32x8xf32>
    %44 = math.exp %43 : vector<32x8xf32>
    %cst_18 = arith.constant 1.000000e+00 : f32
    %45 = vector.broadcast %cst_18 : f32 to vector<32x8xf32>
    %46 = arith.addf %45, %44 : vector<32x8xf32>
    %47 = arith.divf %45, %46 : vector<32x8xf32>
    %cst_19 = arith.constant 1.000000e-10 : f32
    %48 = vector.broadcast %cst_19 : f32 to vector<32x8xf32>
    %49 = arith.addf %47, %48 : vector<32x8xf32>
    %50 = math.log %49 : vector<32x8xf32>
    %51 = arith.mulf %47, %50 : vector<32x8xf32>
    %cst_20 = arith.constant 1.000000e+00 : f32
    %52 = vector.broadcast %cst_20 : f32 to vector<32x8xf32>
    %53 = arith.subf %52, %47 : vector<32x8xf32>
    %cst_21 = arith.constant 1.000000e+00 : f32
    %54 = vector.broadcast %cst_21 : f32 to vector<32x8xf32>
    %55 = arith.subf %54, %47 : vector<32x8xf32>
    %cst_22 = arith.constant 1.000000e-10 : f32
    %56 = vector.broadcast %cst_22 : f32 to vector<32x8xf32>
    %57 = arith.addf %55, %56 : vector<32x8xf32>
    %58 = math.log %57 : vector<32x8xf32>
    %59 = arith.mulf %53, %58 : vector<32x8xf32>
    %60 = arith.addf %51, %59 : vector<32x8xf32>
    %cst_23 = arith.constant 0.000000e+00 : f32
    %61 = vector.broadcast %cst_23 : f32 to vector<32x8xf32>
    %62 = arith.subf %61, %60 : vector<32x8xf32>
    %63 = vector.broadcast %29 : vector<32x1xf32> to vector<32x8xf32>
    %64 = arith.mulf %62, %63 : vector<32x8xf32>
    %65 = vector.shape_cast %64 : vector<32x8xf32> to vector<1x32x8xf32>
    %cst_24 = arith.constant dense<0.000000e+00> : vector<1xf32>
    %66 = vector.multi_reduction <add>, %65, %cst_24 [1, 2] : vector<1x32x8xf32> to vector<1xf32>
    %67 = vector.shape_cast %66 : vector<1xf32> to vector<1x1x1xf32>
    %68 = vector.extract %67[0, 0, 0] : f32 from vector<1x1x1xf32>
    %69 = vector.broadcast %68 : f32 to vector<1x1xf32>
    %70 = vector.shape_cast %69 : vector<1x1xf32> to vector<1x1x1xf32>
    %c0_25 = arith.constant 0 : index
    %c0_26 = arith.constant 0 : index
    %c0_27 = arith.constant 0 : index
    %71 = vector.load %arg10[%c0_25, %c0_26, %c0_27] : memref<1x1x1xf32, #tpu.memory_space<vmem>>, vector<1x1x1xf32>
    tpu.vector_store %arg10[%c0_25, %c0_26, %c0_27], %70 {strides = array<i32>} : memref<1x1x1xf32, #tpu.memory_space<vmem>>, vector<1x1x1xf32>,
    %c0_28 = arith.constant 0 : index
    %c0_29 = arith.constant 0 : index
    %72 = vector.load %arg4[%c0_28, %c0_29] : memref<1x8xf32, #tpu.memory_space<vmem>>, vector<1x8xf32>
    %73 = vector.broadcast %72 : vector<1x8xf32> to vector<32x8xf32>
    %74 = arith.mulf %21, %73 : vector<32x8xf32>
    %cst_30 = arith.constant dense<0.000000e+00> : vector<32xf32>
    %75 = vector.multi_reduction <add>, %74, %cst_30 [1] : vector<32x8xf32> to vector<32xf32>
    %76 = vector.shape_cast %75 : vector<32xf32> to vector<32x1xf32>
    %77 = arith.fptosi %76 : vector<32x1xf32> to vector<32x1xi32>
    %c0_31 = arith.constant 0 : index
    %c0_32 = arith.constant 0 : index
    %78 = vector.load %arg8[%c0_31, %c0_32] : memref<32x1xi32, #tpu.memory_space<vmem>>, vector<32x1xi32>
    tpu.vector_store %arg8[%c0_31, %c0_32], %77 {strides = array<i32>} : memref<32x1xi32, #tpu.memory_space<vmem>>, vector<32x1xi32>,
    %79 = arith.truncf %21 : vector<32x8xf32> to vector<32x8xbf16>
    %c0_33 = arith.constant 0 : index
    %c0_34 = arith.constant 0 : index
    %80 = vector.load %arg5[%c0_33, %c0_34] : memref<8x64xbf16, #tpu.memory_space<vmem>>, vector<8x64xbf16>
    %cst_35 = arith.constant dense<0.000000e+00> : vector<32x64xf32>
    %81 = tpu.matmul %79, %80, %cst_35 {dimension_numbers = #tpu.dot_dimension_numbers<[1], [0], [0], [1], [0, 0, 1, 1], [], []>} : vector<32x8xbf16>, vector<8x64xbf16>, vector<32x64xf32> -> vector<32x64xf32>
    %c0_36 = arith.constant 0 : index
    %c0_37 = arith.constant 0 : index
    %82 = vector.load %arg6[%c0_36, %c0_37] : memref<1x64xf32, #tpu.memory_space<vmem>>, vector<1x64xf32>
    %83 = vector.broadcast %82 : vector<1x64xf32> to vector<32x64xf32>
    %84 = arith.addf %81, %83 : vector<32x64xf32>
    %c0_38 = arith.constant 0 : index
    %c0_39 = arith.constant 0 : index
    %85 = vector.load %arg7[%c0_38, %c0_39] : memref<32x64xf32, #tpu.memory_space<vmem>>, vector<32x64xf32>
    tpu.vector_store %arg7[%c0_38, %c0_39], %84 {strides = array<i32>} : memref<32x64xf32, #tpu.memory_space<vmem>>, vector<32x64xf32>,
    return
  }
  func.func @transform_0(%arg0: i32) -> (i32, i32) {
    %c0_i32 = arith.constant 0 : i32
    %c0_i32_0 = arith.constant 0 : i32
    return %arg0, %c0_i32 : i32, i32
  }
  func.func @transform_1(%arg0: i32) -> (i32, i32) {
    %c0_i32 = arith.constant 0 : i32
    %c0_i32_0 = arith.constant 0 : i32
    %c0_i32_1 = arith.constant 0 : i32
    return %c0_i32, %c0_i32_0 : i32, i32
  }
  func.func @transform_2(%arg0: i32) -> (i32, i32) {
    %c0_i32 = arith.constant 0 : i32
    %c0_i32_0 = arith.constant 0 : i32
    %c0_i32_1 = arith.constant 0 : i32
    return %c0_i32, %c0_i32_0 : i32, i32
  }
  func.func @transform_3(%arg0: i32) -> (i32, i32) {
    %c0_i32 = arith.constant 0 : i32
    %c0_i32_0 = arith.constant 0 : i32
    %c0_i32_1 = arith.constant 0 : i32
    return %c0_i32, %c0_i32_0 : i32, i32
  }
  func.func @transform_4(%arg0: i32) -> (i32, i32) {
    %c0_i32 = arith.constant 0 : i32
    %c0_i32_0 = arith.constant 0 : i32
    %c0_i32_1 = arith.constant 0 : i32
    return %c0_i32, %c0_i32_0 : i32, i32
  }
  func.func @transform_5(%arg0: i32) -> (i32, i32) {
    %c0_i32 = arith.constant 0 : i32
    %c0_i32_0 = arith.constant 0 : i32
    %c0_i32_1 = arith.constant 0 : i32
    return %c0_i32, %c0_i32_0 : i32, i32
  }
  func.func @transform_6(%arg0: i32) -> (i32, i32) {
    %c0_i32 = arith.constant 0 : i32
    %c0_i32_0 = arith.constant 0 : i32
    return %arg0, %c0_i32 : i32, i32
  }
  func.func @transform_7(%arg0: i32) -> (i32, i32) {
    %c0_i32 = arith.constant 0 : i32
    %c0_i32_0 = arith.constant 0 : i32
    return %arg0, %c0_i32 : i32, i32
  }
  func.func @transform_8(%arg0: i32) -> (i32, i32, i32) {
    %c0_i32 = arith.constant 0 : i32
    %c0_i32_0 = arith.constant 0 : i32
    %c0_i32_1 = arith.constant 0 : i32
    return %arg0, %c0_i32, %c0_i32_0 : i32, i32, i32
  }
  func.func @transform_9(%arg0: i32) -> (i32, i32, i32) {
    %c0_i32 = arith.constant 0 : i32
    %c0_i32_0 = arith.constant 0 : i32
    %c0_i32_1 = arith.constant 0 : i32
    return %arg0, %c0_i32, %c0_i32_0 : i32, i32, i32
  }
}

module attributes {stable_mosaic.version = 11 : i64} {
  func.func @_bn_apply_kernel(%arg0: i32, %arg1: memref<8x128xf32, #tpu.memory_space<vmem>>, %arg2: memref<1x128xf32, #tpu.memory_space<vmem>>, %arg3: memref<1x128xf32, #tpu.memory_space<vmem>>, %arg4: memref<8x128xf32, #tpu.memory_space<vmem>>, %arg5: memref<8x128xf32, #tpu.memory_space<vmem>>) attributes {dimension_semantics = [#tpu.dimension_semantics<parallel>], iteration_bounds = array<i64: 1>, scalar_prefetch = 0 : i64, scratch_operands = 0 : i64, tpu.core_type = #tpu.core_type<tc>, window_params = [{transform_indices = @transform_0, window_bounds = array<i64: 8, 128>}, {pipeline_mode = #tpu.pipeline_mode<synchronous>, transform_indices = @transform_1, window_bounds = array<i64: 1, 128>}, {pipeline_mode = #tpu.pipeline_mode<synchronous>, transform_indices = @transform_2, window_bounds = array<i64: 1, 128>}, {transform_indices = @transform_3, window_bounds = array<i64: 8, 128>}, {transform_indices = @transform_4, window_bounds = array<i64: 8, 128>}]} {
    %c0 = arith.constant 0 : index
    %c0_0 = arith.constant 0 : index
    %0 = vector.load %arg1[%c0, %c0_0] : memref<8x128xf32, #tpu.memory_space<vmem>>, vector<8x128xf32>
    %c0_1 = arith.constant 0 : index
    %c0_2 = arith.constant 0 : index
    %1 = vector.load %arg2[%c0_1, %c0_2] : memref<1x128xf32, #tpu.memory_space<vmem>>, vector<1x128xf32>
    %2 = vector.broadcast %1 : vector<1x128xf32> to vector<8x128xf32>
    %3 = arith.mulf %0, %2 : vector<8x128xf32>
    %c0_3 = arith.constant 0 : index
    %c0_4 = arith.constant 0 : index
    %4 = vector.load %arg3[%c0_3, %c0_4] : memref<1x128xf32, #tpu.memory_space<vmem>>, vector<1x128xf32>
    %5 = vector.broadcast %4 : vector<1x128xf32> to vector<8x128xf32>
    %6 = arith.addf %3, %5 : vector<8x128xf32>
    %c0_5 = arith.constant 0 : index
    %c0_6 = arith.constant 0 : index
    %7 = vector.load %arg4[%c0_5, %c0_6] : memref<8x128xf32, #tpu.memory_space<vmem>>, vector<8x128xf32>
    %8 = arith.addf %6, %7 : vector<8x128xf32>
    %c0_7 = arith.constant 0 : index
    %c0_8 = arith.constant 0 : index
    %9 = vector.load %arg5[%c0_7, %c0_8] : memref<8x128xf32, #tpu.memory_space<vmem>>, vector<8x128xf32>
    tpu.vector_store %arg5[%c0_7, %c0_8], %8 {strides = array<i32>} : memref<8x128xf32, #tpu.memory_space<vmem>>, vector<8x128xf32>,
    return
  }
  func.func @transform_0(%arg0: i32) -> (i32, i32) {
    %c0_i32 = arith.constant 0 : i32
    %c0_i32_0 = arith.constant 0 : i32
    return %arg0, %c0_i32 : i32, i32
  }
  func.func @transform_1(%arg0: i32) -> (i32, i32) {
    %c0_i32 = arith.constant 0 : i32
    %c0_i32_0 = arith.constant 0 : i32
    %c0_i32_1 = arith.constant 0 : i32
    return %c0_i32, %c0_i32_0 : i32, i32
  }
  func.func @transform_2(%arg0: i32) -> (i32, i32) {
    %c0_i32 = arith.constant 0 : i32
    %c0_i32_0 = arith.constant 0 : i32
    %c0_i32_1 = arith.constant 0 : i32
    return %c0_i32, %c0_i32_0 : i32, i32
  }
  func.func @transform_3(%arg0: i32) -> (i32, i32) {
    %c0_i32 = arith.constant 0 : i32
    %c0_i32_0 = arith.constant 0 : i32
    return %arg0, %c0_i32 : i32, i32
  }
  func.func @transform_4(%arg0: i32) -> (i32, i32) {
    %c0_i32 = arith.constant 0 : i32
    %c0_i32_0 = arith.constant 0 : i32
    return %arg0, %c0_i32 : i32, i32
  }
}

module attributes {stable_mosaic.version = 11 : i64} {
  func.func @_conv3x3_kernel(%arg0: i32, %arg1: memref<1x56x32xbf16, #tpu.memory_space<vmem>>, %arg2: memref<9x32x64xbf16, #tpu.memory_space<vmem>>, %arg3: memref<1x64xf32, #tpu.memory_space<vmem>>, %arg4: memref<1x32x64xf32, #tpu.memory_space<vmem>>, %arg5: memref<32x64xf32, #tpu.memory_space<vmem>>) attributes {dimension_semantics = [#tpu.dimension_semantics<parallel>], iteration_bounds = array<i64: 2>, scalar_prefetch = 0 : i64, scratch_operands = 1 : i64, tpu.core_type = #tpu.core_type<tc>, window_params = [{transform_indices = @transform_0, window_bounds = array<i64: 1, 56, 32>}, {pipeline_mode = #tpu.pipeline_mode<synchronous>, transform_indices = @transform_1, window_bounds = array<i64: 9, 32, 64>}, {pipeline_mode = #tpu.pipeline_mode<synchronous>, transform_indices = @transform_2, window_bounds = array<i64: 1, 64>}, {transform_indices = @transform_3, window_bounds = array<i64: 1, 32, 64>}]} {
    %cst = arith.constant 0.000000e+00 : f32
    %0 = vector.broadcast %cst : f32 to vector<32x64xf32>
    %c0 = arith.constant 0 : index
    %c0_0 = arith.constant 0 : index
    %1 = vector.load %arg5[%c0, %c0_0] : memref<32x64xf32, #tpu.memory_space<vmem>>, vector<32x64xf32>
    tpu.vector_store %arg5[%c0, %c0_0], %0 {strides = array<i32>} : memref<32x64xf32, #tpu.memory_space<vmem>>, vector<32x64xf32>,
    %c0_1 = arith.constant 0 : index
    %c0_2 = arith.constant 0 : index
    %c0_3 = arith.constant 0 : index
    %2 = vector.load %arg1[%c0_1, %c0_2, %c0_3] : memref<1x56x32xbf16, #tpu.memory_space<vmem>>, vector<1x48x32xbf16>
    %3 = vector.shape_cast %2 : vector<1x48x32xbf16> to vector<48x32xbf16>
    %4 = vector.extract_strided_slice %3 {offsets = [0, 0], sizes = [32, 32], strides = [1, 1]} : vector<48x32xbf16> to vector<32x32xbf16>
    %c0_4 = arith.constant 0 : index
    %c0_5 = arith.constant 0 : index
    %5 = vector.load %arg5[%c0_4, %c0_5] : memref<32x64xf32, #tpu.memory_space<vmem>>, vector<32x64xf32>
    %c0_6 = arith.constant 0 : index
    %c0_7 = arith.constant 0 : index
    %c0_8 = arith.constant 0 : index
    %6 = vector.load %arg2[%c0_6, %c0_7, %c0_8] : memref<9x32x64xbf16, #tpu.memory_space<vmem>>, vector<1x32x64xbf16>
    %7 = vector.shape_cast %6 : vector<1x32x64xbf16> to vector<32x64xbf16>
    %cst_9 = arith.constant dense<0.000000e+00> : vector<32x64xf32>
    %8 = tpu.matmul %4, %7, %cst_9 {dimension_numbers = #tpu.dot_dimension_numbers<[1], [0], [0], [1], [0, 0, 1, 1], [], []>} : vector<32x32xbf16>, vector<32x64xbf16>, vector<32x64xf32> -> vector<32x64xf32>
    %9 = arith.addf %5, %8 : vector<32x64xf32>
    %c0_10 = arith.constant 0 : index
    %c0_11 = arith.constant 0 : index
    %10 = vector.load %arg5[%c0_10, %c0_11] : memref<32x64xf32, #tpu.memory_space<vmem>>, vector<32x64xf32>
    tpu.vector_store %arg5[%c0_10, %c0_11], %9 {strides = array<i32>} : memref<32x64xf32, #tpu.memory_space<vmem>>, vector<32x64xf32>,
    %11 = vector.extract_strided_slice %3 {offsets = [8, 0], sizes = [32, 32], strides = [1, 1]} : vector<48x32xbf16> to vector<32x32xbf16>
    %c0_12 = arith.constant 0 : index
    %c0_13 = arith.constant 0 : index
    %12 = vector.load %arg5[%c0_12, %c0_13] : memref<32x64xf32, #tpu.memory_space<vmem>>, vector<32x64xf32>
    %c3 = arith.constant 3 : index
    %c0_14 = arith.constant 0 : index
    %c0_15 = arith.constant 0 : index
    %13 = vector.load %arg2[%c3, %c0_14, %c0_15] : memref<9x32x64xbf16, #tpu.memory_space<vmem>>, vector<1x32x64xbf16>
    %14 = vector.shape_cast %13 : vector<1x32x64xbf16> to vector<32x64xbf16>
    %cst_16 = arith.constant dense<0.000000e+00> : vector<32x64xf32>
    %15 = tpu.matmul %11, %14, %cst_16 {dimension_numbers = #tpu.dot_dimension_numbers<[1], [0], [0], [1], [0, 0, 1, 1], [], []>} : vector<32x32xbf16>, vector<32x64xbf16>, vector<32x64xf32> -> vector<32x64xf32>
    %16 = arith.addf %12, %15 : vector<32x64xf32>
    %c0_17 = arith.constant 0 : index
    %c0_18 = arith.constant 0 : index
    %17 = vector.load %arg5[%c0_17, %c0_18] : memref<32x64xf32, #tpu.memory_space<vmem>>, vector<32x64xf32>
    tpu.vector_store %arg5[%c0_17, %c0_18], %16 {strides = array<i32>} : memref<32x64xf32, #tpu.memory_space<vmem>>, vector<32x64xf32>,
    %18 = vector.extract_strided_slice %3 {offsets = [16, 0], sizes = [32, 32], strides = [1, 1]} : vector<48x32xbf16> to vector<32x32xbf16>
    %c0_19 = arith.constant 0 : index
    %c0_20 = arith.constant 0 : index
    %19 = vector.load %arg5[%c0_19, %c0_20] : memref<32x64xf32, #tpu.memory_space<vmem>>, vector<32x64xf32>
    %c6 = arith.constant 6 : index
    %c0_21 = arith.constant 0 : index
    %c0_22 = arith.constant 0 : index
    %20 = vector.load %arg2[%c6, %c0_21, %c0_22] : memref<9x32x64xbf16, #tpu.memory_space<vmem>>, vector<1x32x64xbf16>
    %21 = vector.shape_cast %20 : vector<1x32x64xbf16> to vector<32x64xbf16>
    %cst_23 = arith.constant dense<0.000000e+00> : vector<32x64xf32>
    %22 = tpu.matmul %18, %21, %cst_23 {dimension_numbers = #tpu.dot_dimension_numbers<[1], [0], [0], [1], [0, 0, 1, 1], [], []>} : vector<32x32xbf16>, vector<32x64xbf16>, vector<32x64xf32> -> vector<32x64xf32>
    %23 = arith.addf %19, %22 : vector<32x64xf32>
    %c0_24 = arith.constant 0 : index
    %c0_25 = arith.constant 0 : index
    %24 = vector.load %arg5[%c0_24, %c0_25] : memref<32x64xf32, #tpu.memory_space<vmem>>, vector<32x64xf32>
    tpu.vector_store %arg5[%c0_24, %c0_25], %23 {strides = array<i32>} : memref<32x64xf32, #tpu.memory_space<vmem>>, vector<32x64xf32>,
    %c0_26 = arith.constant 0 : index
    %c1 = arith.constant 1 : index
    %c0_27 = arith.constant 0 : index
    %25 = vector.load %arg1[%c0_26, %c1, %c0_27] : memref<1x56x32xbf16, #tpu.memory_space<vmem>>, vector<1x48x32xbf16>
    %26 = vector.shape_cast %25 : vector<1x48x32xbf16> to vector<48x32xbf16>
    %27 = vector.extract_strided_slice %26 {offsets = [0, 0], sizes = [32, 32], strides = [1, 1]} : vector<48x32xbf16> to vector<32x32xbf16>
    %c0_28 = arith.constant 0 : index
    %c0_29 = arith.constant 0 : index
    %28 = vector.load %arg5[%c0_28, %c0_29] : memref<32x64xf32, #tpu.memory_space<vmem>>, vector<32x64xf32>
    %c1_30 = arith.constant 1 : index
    %c0_31 = arith.constant 0 : index
    %c0_32 = arith.constant 0 : index
    %29 = vector.load %arg2[%c1_30, %c0_31, %c0_32] : memref<9x32x64xbf16, #tpu.memory_space<vmem>>, vector<1x32x64xbf16>
    %30 = vector.shape_cast %29 : vector<1x32x64xbf16> to vector<32x64xbf16>
    %cst_33 = arith.constant dense<0.000000e+00> : vector<32x64xf32>
    %31 = tpu.matmul %27, %30, %cst_33 {dimension_numbers = #tpu.dot_dimension_numbers<[1], [0], [0], [1], [0, 0, 1, 1], [], []>} : vector<32x32xbf16>, vector<32x64xbf16>, vector<32x64xf32> -> vector<32x64xf32>
    %32 = arith.addf %28, %31 : vector<32x64xf32>
    %c0_34 = arith.constant 0 : index
    %c0_35 = arith.constant 0 : index
    %33 = vector.load %arg5[%c0_34, %c0_35] : memref<32x64xf32, #tpu.memory_space<vmem>>, vector<32x64xf32>
    tpu.vector_store %arg5[%c0_34, %c0_35], %32 {strides = array<i32>} : memref<32x64xf32, #tpu.memory_space<vmem>>, vector<32x64xf32>,
    %34 = vector.extract_strided_slice %26 {offsets = [8, 0], sizes = [32, 32], strides = [1, 1]} : vector<48x32xbf16> to vector<32x32xbf16>
    %c0_36 = arith.constant 0 : index
    %c0_37 = arith.constant 0 : index
    %35 = vector.load %arg5[%c0_36, %c0_37] : memref<32x64xf32, #tpu.memory_space<vmem>>, vector<32x64xf32>
    %c4 = arith.constant 4 : index
    %c0_38 = arith.constant 0 : index
    %c0_39 = arith.constant 0 : index
    %36 = vector.load %arg2[%c4, %c0_38, %c0_39] : memref<9x32x64xbf16, #tpu.memory_space<vmem>>, vector<1x32x64xbf16>
    %37 = vector.shape_cast %36 : vector<1x32x64xbf16> to vector<32x64xbf16>
    %cst_40 = arith.constant dense<0.000000e+00> : vector<32x64xf32>
    %38 = tpu.matmul %34, %37, %cst_40 {dimension_numbers = #tpu.dot_dimension_numbers<[1], [0], [0], [1], [0, 0, 1, 1], [], []>} : vector<32x32xbf16>, vector<32x64xbf16>, vector<32x64xf32> -> vector<32x64xf32>
    %39 = arith.addf %35, %38 : vector<32x64xf32>
    %c0_41 = arith.constant 0 : index
    %c0_42 = arith.constant 0 : index
    %40 = vector.load %arg5[%c0_41, %c0_42] : memref<32x64xf32, #tpu.memory_space<vmem>>, vector<32x64xf32>
    tpu.vector_store %arg5[%c0_41, %c0_42], %39 {strides = array<i32>} : memref<32x64xf32, #tpu.memory_space<vmem>>, vector<32x64xf32>,
    %41 = vector.extract_strided_slice %26 {offsets = [16, 0], sizes = [32, 32], strides = [1, 1]} : vector<48x32xbf16> to vector<32x32xbf16>
    %c0_43 = arith.constant 0 : index
    %c0_44 = arith.constant 0 : index
    %42 = vector.load %arg5[%c0_43, %c0_44] : memref<32x64xf32, #tpu.memory_space<vmem>>, vector<32x64xf32>
    %c7 = arith.constant 7 : index
    %c0_45 = arith.constant 0 : index
    %c0_46 = arith.constant 0 : index
    %43 = vector.load %arg2[%c7, %c0_45, %c0_46] : memref<9x32x64xbf16, #tpu.memory_space<vmem>>, vector<1x32x64xbf16>
    %44 = vector.shape_cast %43 : vector<1x32x64xbf16> to vector<32x64xbf16>
    %cst_47 = arith.constant dense<0.000000e+00> : vector<32x64xf32>
    %45 = tpu.matmul %41, %44, %cst_47 {dimension_numbers = #tpu.dot_dimension_numbers<[1], [0], [0], [1], [0, 0, 1, 1], [], []>} : vector<32x32xbf16>, vector<32x64xbf16>, vector<32x64xf32> -> vector<32x64xf32>
    %46 = arith.addf %42, %45 : vector<32x64xf32>
    %c0_48 = arith.constant 0 : index
    %c0_49 = arith.constant 0 : index
    %47 = vector.load %arg5[%c0_48, %c0_49] : memref<32x64xf32, #tpu.memory_space<vmem>>, vector<32x64xf32>
    tpu.vector_store %arg5[%c0_48, %c0_49], %46 {strides = array<i32>} : memref<32x64xf32, #tpu.memory_space<vmem>>, vector<32x64xf32>,
    %c0_50 = arith.constant 0 : index
    %c2 = arith.constant 2 : index
    %c0_51 = arith.constant 0 : index
    %48 = vector.load %arg1[%c0_50, %c2, %c0_51] : memref<1x56x32xbf16, #tpu.memory_space<vmem>>, vector<1x48x32xbf16>
    %49 = vector.shape_cast %48 : vector<1x48x32xbf16> to vector<48x32xbf16>
    %50 = vector.extract_strided_slice %49 {offsets = [0, 0], sizes = [32, 32], strides = [1, 1]} : vector<48x32xbf16> to vector<32x32xbf16>
    %c0_52 = arith.constant 0 : index
    %c0_53 = arith.constant 0 : index
    %51 = vector.load %arg5[%c0_52, %c0_53] : memref<32x64xf32, #tpu.memory_space<vmem>>, vector<32x64xf32>
    %c2_54 = arith.constant 2 : index
    %c0_55 = arith.constant 0 : index
    %c0_56 = arith.constant 0 : index
    %52 = vector.load %arg2[%c2_54, %c0_55, %c0_56] : memref<9x32x64xbf16, #tpu.memory_space<vmem>>, vector<1x32x64xbf16>
    %53 = vector.shape_cast %52 : vector<1x32x64xbf16> to vector<32x64xbf16>
    %cst_57 = arith.constant dense<0.000000e+00> : vector<32x64xf32>
    %54 = tpu.matmul %50, %53, %cst_57 {dimension_numbers = #tpu.dot_dimension_numbers<[1], [0], [0], [1], [0, 0, 1, 1], [], []>} : vector<32x32xbf16>, vector<32x64xbf16>, vector<32x64xf32> -> vector<32x64xf32>
    %55 = arith.addf %51, %54 : vector<32x64xf32>
    %c0_58 = arith.constant 0 : index
    %c0_59 = arith.constant 0 : index
    %56 = vector.load %arg5[%c0_58, %c0_59] : memref<32x64xf32, #tpu.memory_space<vmem>>, vector<32x64xf32>
    tpu.vector_store %arg5[%c0_58, %c0_59], %55 {strides = array<i32>} : memref<32x64xf32, #tpu.memory_space<vmem>>, vector<32x64xf32>,
    %57 = vector.extract_strided_slice %49 {offsets = [8, 0], sizes = [32, 32], strides = [1, 1]} : vector<48x32xbf16> to vector<32x32xbf16>
    %c0_60 = arith.constant 0 : index
    %c0_61 = arith.constant 0 : index
    %58 = vector.load %arg5[%c0_60, %c0_61] : memref<32x64xf32, #tpu.memory_space<vmem>>, vector<32x64xf32>
    %c5 = arith.constant 5 : index
    %c0_62 = arith.constant 0 : index
    %c0_63 = arith.constant 0 : index
    %59 = vector.load %arg2[%c5, %c0_62, %c0_63] : memref<9x32x64xbf16, #tpu.memory_space<vmem>>, vector<1x32x64xbf16>
    %60 = vector.shape_cast %59 : vector<1x32x64xbf16> to vector<32x64xbf16>
    %cst_64 = arith.constant dense<0.000000e+00> : vector<32x64xf32>
    %61 = tpu.matmul %57, %60, %cst_64 {dimension_numbers = #tpu.dot_dimension_numbers<[1], [0], [0], [1], [0, 0, 1, 1], [], []>} : vector<32x32xbf16>, vector<32x64xbf16>, vector<32x64xf32> -> vector<32x64xf32>
    %62 = arith.addf %58, %61 : vector<32x64xf32>
    %c0_65 = arith.constant 0 : index
    %c0_66 = arith.constant 0 : index
    %63 = vector.load %arg5[%c0_65, %c0_66] : memref<32x64xf32, #tpu.memory_space<vmem>>, vector<32x64xf32>
    tpu.vector_store %arg5[%c0_65, %c0_66], %62 {strides = array<i32>} : memref<32x64xf32, #tpu.memory_space<vmem>>, vector<32x64xf32>,
    %64 = vector.extract_strided_slice %49 {offsets = [16, 0], sizes = [32, 32], strides = [1, 1]} : vector<48x32xbf16> to vector<32x32xbf16>
    %c0_67 = arith.constant 0 : index
    %c0_68 = arith.constant 0 : index
    %65 = vector.load %arg5[%c0_67, %c0_68] : memref<32x64xf32, #tpu.memory_space<vmem>>, vector<32x64xf32>
    %c8 = arith.constant 8 : index
    %c0_69 = arith.constant 0 : index
    %c0_70 = arith.constant 0 : index
    %66 = vector.load %arg2[%c8, %c0_69, %c0_70] : memref<9x32x64xbf16, #tpu.memory_space<vmem>>, vector<1x32x64xbf16>
    %67 = vector.shape_cast %66 : vector<1x32x64xbf16> to vector<32x64xbf16>
    %cst_71 = arith.constant dense<0.000000e+00> : vector<32x64xf32>
    %68 = tpu.matmul %64, %67, %cst_71 {dimension_numbers = #tpu.dot_dimension_numbers<[1], [0], [0], [1], [0, 0, 1, 1], [], []>} : vector<32x32xbf16>, vector<32x64xbf16>, vector<32x64xf32> -> vector<32x64xf32>
    %69 = arith.addf %65, %68 : vector<32x64xf32>
    %c0_72 = arith.constant 0 : index
    %c0_73 = arith.constant 0 : index
    %70 = vector.load %arg5[%c0_72, %c0_73] : memref<32x64xf32, #tpu.memory_space<vmem>>, vector<32x64xf32>
    tpu.vector_store %arg5[%c0_72, %c0_73], %69 {strides = array<i32>} : memref<32x64xf32, #tpu.memory_space<vmem>>, vector<32x64xf32>,
    %c0_74 = arith.constant 0 : index
    %c0_75 = arith.constant 0 : index
    %71 = vector.load %arg5[%c0_74, %c0_75] : memref<32x64xf32, #tpu.memory_space<vmem>>, vector<32x64xf32>
    %c0_76 = arith.constant 0 : index
    %c0_77 = arith.constant 0 : index
    %72 = vector.load %arg3[%c0_76, %c0_77] : memref<1x64xf32, #tpu.memory_space<vmem>>, vector<1x64xf32>
    %73 = vector.broadcast %72 : vector<1x64xf32> to vector<32x64xf32>
    %74 = arith.addf %71, %73 : vector<32x64xf32>
    %c0_78 = arith.constant 0 : index
    %c0_79 = arith.constant 0 : index
    %c0_80 = arith.constant 0 : index
    %75 = vector.load %arg4[%c0_78, %c0_79, %c0_80] : memref<1x32x64xf32, #tpu.memory_space<vmem>>, vector<1x32x64xf32>
    %76 = vector.shape_cast %75 : vector<1x32x64xf32> to vector<32x64xf32>
    %77 = vector.shape_cast %74 : vector<32x64xf32> to vector<1x32x64xf32>
    tpu.vector_store %arg4[%c0_78, %c0_79, %c0_80], %77 {strides = array<i32>} : memref<1x32x64xf32, #tpu.memory_space<vmem>>, vector<1x32x64xf32>,
    return
  }
  func.func @transform_0(%arg0: i32) -> (i32, i32, i32) {
    %c0_i32 = arith.constant 0 : i32
    %c0_i32_0 = arith.constant 0 : i32
    %c0_i32_1 = arith.constant 0 : i32
    return %arg0, %c0_i32, %c0_i32_0 : i32, i32, i32
  }
  func.func @transform_1(%arg0: i32) -> (i32, i32, i32) {
    %c0_i32 = arith.constant 0 : i32
    %c0_i32_0 = arith.constant 0 : i32
    %c0_i32_1 = arith.constant 0 : i32
    %c0_i32_2 = arith.constant 0 : i32
    return %c0_i32, %c0_i32_0, %c0_i32_1 : i32, i32, i32
  }
  func.func @transform_2(%arg0: i32) -> (i32, i32) {
    %c0_i32 = arith.constant 0 : i32
    %c0_i32_0 = arith.constant 0 : i32
    %c0_i32_1 = arith.constant 0 : i32
    return %c0_i32, %c0_i32_0 : i32, i32
  }
  func.func @transform_3(%arg0: i32) -> (i32, i32, i32) {
    %c0_i32 = arith.constant 0 : i32
    %c0_i32_0 = arith.constant 0 : i32
    %c0_i32_1 = arith.constant 0 : i32
    return %arg0, %c0_i32, %c0_i32_0 : i32, i32, i32
  }
}

module attributes {stable_mosaic.version = 11 : i64} {
  func.func @_matmul_bias_kernel(%arg0: i32, %arg1: i32, %arg2: i32, %arg3: memref<32x32xbf16, #tpu.memory_space<vmem>>, %arg4: memref<32x64xbf16, #tpu.memory_space<vmem>>, %arg5: memref<1x64xf32, #tpu.memory_space<vmem>>, %arg6: memref<32x64xf32, #tpu.memory_space<vmem>>, %arg7: memref<32x64xf32, #tpu.memory_space<vmem>>) attributes {dimension_semantics = [#tpu.dimension_semantics<parallel>, #tpu.dimension_semantics<parallel>, #tpu.dimension_semantics<arbitrary>], iteration_bounds = array<i64: 1, 1, 1>, scalar_prefetch = 0 : i64, scratch_operands = 1 : i64, tpu.core_type = #tpu.core_type<tc>, window_params = [{transform_indices = @transform_0, window_bounds = array<i64: 32, 32>}, {transform_indices = @transform_1, window_bounds = array<i64: 32, 64>}, {transform_indices = @transform_2, window_bounds = array<i64: 1, 64>}, {transform_indices = @transform_3, window_bounds = array<i64: 32, 64>}]} {
    %c0_i32 = arith.constant 0 : i32
    %0 = arith.cmpi eq, %arg2, %c0_i32 : i32
    %1 = arith.extui %0 : i1 to i32
    %c0_i32_0 = arith.constant 0 : i32
    %2 = arith.cmpi ne, %1, %c0_i32_0 : i32
    scf.if %2 {
      %cst_10 = arith.constant 0.000000e+00 : f32
      %12 = vector.broadcast %cst_10 : f32 to vector<32x64xf32>
      %c0_11 = arith.constant 0 : index
      %c0_12 = arith.constant 0 : index
      %13 = vector.load %arg7[%c0_11, %c0_12] : memref<32x64xf32, #tpu.memory_space<vmem>>, vector<32x64xf32>
      tpu.vector_store %arg7[%c0_11, %c0_12], %12 {strides = array<i32>} : memref<32x64xf32, #tpu.memory_space<vmem>>, vector<32x64xf32>,
    } else {
    }
    %c0 = arith.constant 0 : index
    %c0_1 = arith.constant 0 : index
    %3 = vector.load %arg7[%c0, %c0_1] : memref<32x64xf32, #tpu.memory_space<vmem>>, vector<32x64xf32>
    %c0_2 = arith.constant 0 : index
    %c0_3 = arith.constant 0 : index
    %4 = vector.load %arg3[%c0_2, %c0_3] : memref<32x32xbf16, #tpu.memory_space<vmem>>, vector<32x32xbf16>
    %c0_4 = arith.constant 0 : index
    %c0_5 = arith.constant 0 : index
    %5 = vector.load %arg4[%c0_4, %c0_5] : memref<32x64xbf16, #tpu.memory_space<vmem>>, vector<32x64xbf16>
    %cst = arith.constant dense<0.000000e+00> : vector<32x64xf32>
    %6 = tpu.matmul %4, %5, %cst {dimension_numbers = #tpu.dot_dimension_numbers<[1], [0], [0], [1], [0, 0, 1, 1], [], []>} : vector<32x32xbf16>, vector<32x64xbf16>, vector<32x64xf32> -> vector<32x64xf32>
    %7 = arith.addf %3, %6 : vector<32x64xf32>
    %c0_6 = arith.constant 0 : index
    %c0_7 = arith.constant 0 : index
    %8 = vector.load %arg7[%c0_6, %c0_7] : memref<32x64xf32, #tpu.memory_space<vmem>>, vector<32x64xf32>
    tpu.vector_store %arg7[%c0_6, %c0_7], %7 {strides = array<i32>} : memref<32x64xf32, #tpu.memory_space<vmem>>, vector<32x64xf32>,
    %c0_i32_8 = arith.constant 0 : i32
    %9 = arith.cmpi eq, %arg2, %c0_i32_8 : i32
    %10 = arith.extui %9 : i1 to i32
    %c0_i32_9 = arith.constant 0 : i32
    %11 = arith.cmpi ne, %10, %c0_i32_9 : i32
    scf.if %11 {
      %c0_10 = arith.constant 0 : index
      %c0_11 = arith.constant 0 : index
      %12 = vector.load %arg7[%c0_10, %c0_11] : memref<32x64xf32, #tpu.memory_space<vmem>>, vector<32x64xf32>
      %c0_12 = arith.constant 0 : index
      %c0_13 = arith.constant 0 : index
      %13 = vector.load %arg5[%c0_12, %c0_13] : memref<1x64xf32, #tpu.memory_space<vmem>>, vector<1x64xf32>
      %14 = vector.broadcast %13 : vector<1x64xf32> to vector<32x64xf32>
      %15 = arith.addf %12, %14 : vector<32x64xf32>
      %c0_14 = arith.constant 0 : index
      %c0_15 = arith.constant 0 : index
      %16 = vector.load %arg6[%c0_14, %c0_15] : memref<32x64xf32, #tpu.memory_space<vmem>>, vector<32x64xf32>
      tpu.vector_store %arg6[%c0_14, %c0_15], %15 {strides = array<i32>} : memref<32x64xf32, #tpu.memory_space<vmem>>, vector<32x64xf32>,
    } else {
    }
    return
  }
  func.func @transform_0(%arg0: i32, %arg1: i32, %arg2: i32) -> (i32, i32) {
    %c0_i32 = arith.constant 0 : i32
    return %arg0, %arg2 : i32, i32
  }
  func.func @transform_1(%arg0: i32, %arg1: i32, %arg2: i32) -> (i32, i32) {
    %c0_i32 = arith.constant 0 : i32
    return %arg2, %arg1 : i32, i32
  }
  func.func @transform_2(%arg0: i32, %arg1: i32, %arg2: i32) -> (i32, i32) {
    %c0_i32 = arith.constant 0 : i32
    %c0_i32_0 = arith.constant 0 : i32
    return %c0_i32, %arg1 : i32, i32
  }
  func.func @transform_3(%arg0: i32, %arg1: i32, %arg2: i32) -> (i32, i32) {
    %c0_i32 = arith.constant 0 : i32
    return %arg0, %arg1 : i32, i32
  }
}

module attributes {stable_mosaic.version = 11 : i64} {
  func.func @_conv3x3_kernel(%arg0: i32, %arg1: memref<1x56x64xbf16, #tpu.memory_space<vmem>>, %arg2: memref<9x64x32xbf16, #tpu.memory_space<vmem>>, %arg3: memref<1x32xf32, #tpu.memory_space<vmem>>, %arg4: memref<1x32x32xf32, #tpu.memory_space<vmem>>, %arg5: memref<32x32xf32, #tpu.memory_space<vmem>>) attributes {dimension_semantics = [#tpu.dimension_semantics<parallel>], iteration_bounds = array<i64: 2>, scalar_prefetch = 0 : i64, scratch_operands = 1 : i64, tpu.core_type = #tpu.core_type<tc>, window_params = [{transform_indices = @transform_0, window_bounds = array<i64: 1, 56, 64>}, {pipeline_mode = #tpu.pipeline_mode<synchronous>, transform_indices = @transform_1, window_bounds = array<i64: 9, 64, 32>}, {pipeline_mode = #tpu.pipeline_mode<synchronous>, transform_indices = @transform_2, window_bounds = array<i64: 1, 32>}, {transform_indices = @transform_3, window_bounds = array<i64: 1, 32, 32>}]} {
    %cst = arith.constant 0.000000e+00 : f32
    %0 = vector.broadcast %cst : f32 to vector<32x32xf32>
    %c0 = arith.constant 0 : index
    %c0_0 = arith.constant 0 : index
    %1 = vector.load %arg5[%c0, %c0_0] : memref<32x32xf32, #tpu.memory_space<vmem>>, vector<32x32xf32>
    tpu.vector_store %arg5[%c0, %c0_0], %0 {strides = array<i32>} : memref<32x32xf32, #tpu.memory_space<vmem>>, vector<32x32xf32>,
    %c0_1 = arith.constant 0 : index
    %c0_2 = arith.constant 0 : index
    %c0_3 = arith.constant 0 : index
    %2 = vector.load %arg1[%c0_1, %c0_2, %c0_3] : memref<1x56x64xbf16, #tpu.memory_space<vmem>>, vector<1x48x64xbf16>
    %3 = vector.shape_cast %2 : vector<1x48x64xbf16> to vector<48x64xbf16>
    %4 = vector.extract_strided_slice %3 {offsets = [0, 0], sizes = [32, 64], strides = [1, 1]} : vector<48x64xbf16> to vector<32x64xbf16>
    %c0_4 = arith.constant 0 : index
    %c0_5 = arith.constant 0 : index
    %5 = vector.load %arg5[%c0_4, %c0_5] : memref<32x32xf32, #tpu.memory_space<vmem>>, vector<32x32xf32>
    %c0_6 = arith.constant 0 : index
    %c0_7 = arith.constant 0 : index
    %c0_8 = arith.constant 0 : index
    %6 = vector.load %arg2[%c0_6, %c0_7, %c0_8] : memref<9x64x32xbf16, #tpu.memory_space<vmem>>, vector<1x64x32xbf16>
    %7 = vector.shape_cast %6 : vector<1x64x32xbf16> to vector<64x32xbf16>
    %cst_9 = arith.constant dense<0.000000e+00> : vector<32x32xf32>
    %8 = tpu.matmul %4, %7, %cst_9 {dimension_numbers = #tpu.dot_dimension_numbers<[1], [0], [0], [1], [0, 0, 1, 1], [], []>} : vector<32x64xbf16>, vector<64x32xbf16>, vector<32x32xf32> -> vector<32x32xf32>
    %9 = arith.addf %5, %8 : vector<32x32xf32>
    %c0_10 = arith.constant 0 : index
    %c0_11 = arith.constant 0 : index
    %10 = vector.load %arg5[%c0_10, %c0_11] : memref<32x32xf32, #tpu.memory_space<vmem>>, vector<32x32xf32>
    tpu.vector_store %arg5[%c0_10, %c0_11], %9 {strides = array<i32>} : memref<32x32xf32, #tpu.memory_space<vmem>>, vector<32x32xf32>,
    %11 = vector.extract_strided_slice %3 {offsets = [8, 0], sizes = [32, 64], strides = [1, 1]} : vector<48x64xbf16> to vector<32x64xbf16>
    %c0_12 = arith.constant 0 : index
    %c0_13 = arith.constant 0 : index
    %12 = vector.load %arg5[%c0_12, %c0_13] : memref<32x32xf32, #tpu.memory_space<vmem>>, vector<32x32xf32>
    %c3 = arith.constant 3 : index
    %c0_14 = arith.constant 0 : index
    %c0_15 = arith.constant 0 : index
    %13 = vector.load %arg2[%c3, %c0_14, %c0_15] : memref<9x64x32xbf16, #tpu.memory_space<vmem>>, vector<1x64x32xbf16>
    %14 = vector.shape_cast %13 : vector<1x64x32xbf16> to vector<64x32xbf16>
    %cst_16 = arith.constant dense<0.000000e+00> : vector<32x32xf32>
    %15 = tpu.matmul %11, %14, %cst_16 {dimension_numbers = #tpu.dot_dimension_numbers<[1], [0], [0], [1], [0, 0, 1, 1], [], []>} : vector<32x64xbf16>, vector<64x32xbf16>, vector<32x32xf32> -> vector<32x32xf32>
    %16 = arith.addf %12, %15 : vector<32x32xf32>
    %c0_17 = arith.constant 0 : index
    %c0_18 = arith.constant 0 : index
    %17 = vector.load %arg5[%c0_17, %c0_18] : memref<32x32xf32, #tpu.memory_space<vmem>>, vector<32x32xf32>
    tpu.vector_store %arg5[%c0_17, %c0_18], %16 {strides = array<i32>} : memref<32x32xf32, #tpu.memory_space<vmem>>, vector<32x32xf32>,
    %18 = vector.extract_strided_slice %3 {offsets = [16, 0], sizes = [32, 64], strides = [1, 1]} : vector<48x64xbf16> to vector<32x64xbf16>
    %c0_19 = arith.constant 0 : index
    %c0_20 = arith.constant 0 : index
    %19 = vector.load %arg5[%c0_19, %c0_20] : memref<32x32xf32, #tpu.memory_space<vmem>>, vector<32x32xf32>
    %c6 = arith.constant 6 : index
    %c0_21 = arith.constant 0 : index
    %c0_22 = arith.constant 0 : index
    %20 = vector.load %arg2[%c6, %c0_21, %c0_22] : memref<9x64x32xbf16, #tpu.memory_space<vmem>>, vector<1x64x32xbf16>
    %21 = vector.shape_cast %20 : vector<1x64x32xbf16> to vector<64x32xbf16>
    %cst_23 = arith.constant dense<0.000000e+00> : vector<32x32xf32>
    %22 = tpu.matmul %18, %21, %cst_23 {dimension_numbers = #tpu.dot_dimension_numbers<[1], [0], [0], [1], [0, 0, 1, 1], [], []>} : vector<32x64xbf16>, vector<64x32xbf16>, vector<32x32xf32> -> vector<32x32xf32>
    %23 = arith.addf %19, %22 : vector<32x32xf32>
    %c0_24 = arith.constant 0 : index
    %c0_25 = arith.constant 0 : index
    %24 = vector.load %arg5[%c0_24, %c0_25] : memref<32x32xf32, #tpu.memory_space<vmem>>, vector<32x32xf32>
    tpu.vector_store %arg5[%c0_24, %c0_25], %23 {strides = array<i32>} : memref<32x32xf32, #tpu.memory_space<vmem>>, vector<32x32xf32>,
    %c0_26 = arith.constant 0 : index
    %c1 = arith.constant 1 : index
    %c0_27 = arith.constant 0 : index
    %25 = vector.load %arg1[%c0_26, %c1, %c0_27] : memref<1x56x64xbf16, #tpu.memory_space<vmem>>, vector<1x48x64xbf16>
    %26 = vector.shape_cast %25 : vector<1x48x64xbf16> to vector<48x64xbf16>
    %27 = vector.extract_strided_slice %26 {offsets = [0, 0], sizes = [32, 64], strides = [1, 1]} : vector<48x64xbf16> to vector<32x64xbf16>
    %c0_28 = arith.constant 0 : index
    %c0_29 = arith.constant 0 : index
    %28 = vector.load %arg5[%c0_28, %c0_29] : memref<32x32xf32, #tpu.memory_space<vmem>>, vector<32x32xf32>
    %c1_30 = arith.constant 1 : index
    %c0_31 = arith.constant 0 : index
    %c0_32 = arith.constant 0 : index
    %29 = vector.load %arg2[%c1_30, %c0_31, %c0_32] : memref<9x64x32xbf16, #tpu.memory_space<vmem>>, vector<1x64x32xbf16>
    %30 = vector.shape_cast %29 : vector<1x64x32xbf16> to vector<64x32xbf16>
    %cst_33 = arith.constant dense<0.000000e+00> : vector<32x32xf32>
    %31 = tpu.matmul %27, %30, %cst_33 {dimension_numbers = #tpu.dot_dimension_numbers<[1], [0], [0], [1], [0, 0, 1, 1], [], []>} : vector<32x64xbf16>, vector<64x32xbf16>, vector<32x32xf32> -> vector<32x32xf32>
    %32 = arith.addf %28, %31 : vector<32x32xf32>
    %c0_34 = arith.constant 0 : index
    %c0_35 = arith.constant 0 : index
    %33 = vector.load %arg5[%c0_34, %c0_35] : memref<32x32xf32, #tpu.memory_space<vmem>>, vector<32x32xf32>
    tpu.vector_store %arg5[%c0_34, %c0_35], %32 {strides = array<i32>} : memref<32x32xf32, #tpu.memory_space<vmem>>, vector<32x32xf32>,
    %34 = vector.extract_strided_slice %26 {offsets = [8, 0], sizes = [32, 64], strides = [1, 1]} : vector<48x64xbf16> to vector<32x64xbf16>
    %c0_36 = arith.constant 0 : index
    %c0_37 = arith.constant 0 : index
    %35 = vector.load %arg5[%c0_36, %c0_37] : memref<32x32xf32, #tpu.memory_space<vmem>>, vector<32x32xf32>
    %c4 = arith.constant 4 : index
    %c0_38 = arith.constant 0 : index
    %c0_39 = arith.constant 0 : index
    %36 = vector.load %arg2[%c4, %c0_38, %c0_39] : memref<9x64x32xbf16, #tpu.memory_space<vmem>>, vector<1x64x32xbf16>
    %37 = vector.shape_cast %36 : vector<1x64x32xbf16> to vector<64x32xbf16>
    %cst_40 = arith.constant dense<0.000000e+00> : vector<32x32xf32>
    %38 = tpu.matmul %34, %37, %cst_40 {dimension_numbers = #tpu.dot_dimension_numbers<[1], [0], [0], [1], [0, 0, 1, 1], [], []>} : vector<32x64xbf16>, vector<64x32xbf16>, vector<32x32xf32> -> vector<32x32xf32>
    %39 = arith.addf %35, %38 : vector<32x32xf32>
    %c0_41 = arith.constant 0 : index
    %c0_42 = arith.constant 0 : index
    %40 = vector.load %arg5[%c0_41, %c0_42] : memref<32x32xf32, #tpu.memory_space<vmem>>, vector<32x32xf32>
    tpu.vector_store %arg5[%c0_41, %c0_42], %39 {strides = array<i32>} : memref<32x32xf32, #tpu.memory_space<vmem>>, vector<32x32xf32>,
    %41 = vector.extract_strided_slice %26 {offsets = [16, 0], sizes = [32, 64], strides = [1, 1]} : vector<48x64xbf16> to vector<32x64xbf16>
    %c0_43 = arith.constant 0 : index
    %c0_44 = arith.constant 0 : index
    %42 = vector.load %arg5[%c0_43, %c0_44] : memref<32x32xf32, #tpu.memory_space<vmem>>, vector<32x32xf32>
    %c7 = arith.constant 7 : index
    %c0_45 = arith.constant 0 : index
    %c0_46 = arith.constant 0 : index
    %43 = vector.load %arg2[%c7, %c0_45, %c0_46] : memref<9x64x32xbf16, #tpu.memory_space<vmem>>, vector<1x64x32xbf16>
    %44 = vector.shape_cast %43 : vector<1x64x32xbf16> to vector<64x32xbf16>
    %cst_47 = arith.constant dense<0.000000e+00> : vector<32x32xf32>
    %45 = tpu.matmul %41, %44, %cst_47 {dimension_numbers = #tpu.dot_dimension_numbers<[1], [0], [0], [1], [0, 0, 1, 1], [], []>} : vector<32x64xbf16>, vector<64x32xbf16>, vector<32x32xf32> -> vector<32x32xf32>
    %46 = arith.addf %42, %45 : vector<32x32xf32>
    %c0_48 = arith.constant 0 : index
    %c0_49 = arith.constant 0 : index
    %47 = vector.load %arg5[%c0_48, %c0_49] : memref<32x32xf32, #tpu.memory_space<vmem>>, vector<32x32xf32>
    tpu.vector_store %arg5[%c0_48, %c0_49], %46 {strides = array<i32>} : memref<32x32xf32, #tpu.memory_space<vmem>>, vector<32x32xf32>,
    %c0_50 = arith.constant 0 : index
    %c2 = arith.constant 2 : index
    %c0_51 = arith.constant 0 : index
    %48 = vector.load %arg1[%c0_50, %c2, %c0_51] : memref<1x56x64xbf16, #tpu.memory_space<vmem>>, vector<1x48x64xbf16>
    %49 = vector.shape_cast %48 : vector<1x48x64xbf16> to vector<48x64xbf16>
    %50 = vector.extract_strided_slice %49 {offsets = [0, 0], sizes = [32, 64], strides = [1, 1]} : vector<48x64xbf16> to vector<32x64xbf16>
    %c0_52 = arith.constant 0 : index
    %c0_53 = arith.constant 0 : index
    %51 = vector.load %arg5[%c0_52, %c0_53] : memref<32x32xf32, #tpu.memory_space<vmem>>, vector<32x32xf32>
    %c2_54 = arith.constant 2 : index
    %c0_55 = arith.constant 0 : index
    %c0_56 = arith.constant 0 : index
    %52 = vector.load %arg2[%c2_54, %c0_55, %c0_56] : memref<9x64x32xbf16, #tpu.memory_space<vmem>>, vector<1x64x32xbf16>
    %53 = vector.shape_cast %52 : vector<1x64x32xbf16> to vector<64x32xbf16>
    %cst_57 = arith.constant dense<0.000000e+00> : vector<32x32xf32>
    %54 = tpu.matmul %50, %53, %cst_57 {dimension_numbers = #tpu.dot_dimension_numbers<[1], [0], [0], [1], [0, 0, 1, 1], [], []>} : vector<32x64xbf16>, vector<64x32xbf16>, vector<32x32xf32> -> vector<32x32xf32>
    %55 = arith.addf %51, %54 : vector<32x32xf32>
    %c0_58 = arith.constant 0 : index
    %c0_59 = arith.constant 0 : index
    %56 = vector.load %arg5[%c0_58, %c0_59] : memref<32x32xf32, #tpu.memory_space<vmem>>, vector<32x32xf32>
    tpu.vector_store %arg5[%c0_58, %c0_59], %55 {strides = array<i32>} : memref<32x32xf32, #tpu.memory_space<vmem>>, vector<32x32xf32>,
    %57 = vector.extract_strided_slice %49 {offsets = [8, 0], sizes = [32, 64], strides = [1, 1]} : vector<48x64xbf16> to vector<32x64xbf16>
    %c0_60 = arith.constant 0 : index
    %c0_61 = arith.constant 0 : index
    %58 = vector.load %arg5[%c0_60, %c0_61] : memref<32x32xf32, #tpu.memory_space<vmem>>, vector<32x32xf32>
    %c5 = arith.constant 5 : index
    %c0_62 = arith.constant 0 : index
    %c0_63 = arith.constant 0 : index
    %59 = vector.load %arg2[%c5, %c0_62, %c0_63] : memref<9x64x32xbf16, #tpu.memory_space<vmem>>, vector<1x64x32xbf16>
    %60 = vector.shape_cast %59 : vector<1x64x32xbf16> to vector<64x32xbf16>
    %cst_64 = arith.constant dense<0.000000e+00> : vector<32x32xf32>
    %61 = tpu.matmul %57, %60, %cst_64 {dimension_numbers = #tpu.dot_dimension_numbers<[1], [0], [0], [1], [0, 0, 1, 1], [], []>} : vector<32x64xbf16>, vector<64x32xbf16>, vector<32x32xf32> -> vector<32x32xf32>
    %62 = arith.addf %58, %61 : vector<32x32xf32>
    %c0_65 = arith.constant 0 : index
    %c0_66 = arith.constant 0 : index
    %63 = vector.load %arg5[%c0_65, %c0_66] : memref<32x32xf32, #tpu.memory_space<vmem>>, vector<32x32xf32>
    tpu.vector_store %arg5[%c0_65, %c0_66], %62 {strides = array<i32>} : memref<32x32xf32, #tpu.memory_space<vmem>>, vector<32x32xf32>,
    %64 = vector.extract_strided_slice %49 {offsets = [16, 0], sizes = [32, 64], strides = [1, 1]} : vector<48x64xbf16> to vector<32x64xbf16>
    %c0_67 = arith.constant 0 : index
    %c0_68 = arith.constant 0 : index
    %65 = vector.load %arg5[%c0_67, %c0_68] : memref<32x32xf32, #tpu.memory_space<vmem>>, vector<32x32xf32>
    %c8 = arith.constant 8 : index
    %c0_69 = arith.constant 0 : index
    %c0_70 = arith.constant 0 : index
    %66 = vector.load %arg2[%c8, %c0_69, %c0_70] : memref<9x64x32xbf16, #tpu.memory_space<vmem>>, vector<1x64x32xbf16>
    %67 = vector.shape_cast %66 : vector<1x64x32xbf16> to vector<64x32xbf16>
    %cst_71 = arith.constant dense<0.000000e+00> : vector<32x32xf32>
    %68 = tpu.matmul %64, %67, %cst_71 {dimension_numbers = #tpu.dot_dimension_numbers<[1], [0], [0], [1], [0, 0, 1, 1], [], []>} : vector<32x64xbf16>, vector<64x32xbf16>, vector<32x32xf32> -> vector<32x32xf32>
    %69 = arith.addf %65, %68 : vector<32x32xf32>
    %c0_72 = arith.constant 0 : index
    %c0_73 = arith.constant 0 : index
    %70 = vector.load %arg5[%c0_72, %c0_73] : memref<32x32xf32, #tpu.memory_space<vmem>>, vector<32x32xf32>
    tpu.vector_store %arg5[%c0_72, %c0_73], %69 {strides = array<i32>} : memref<32x32xf32, #tpu.memory_space<vmem>>, vector<32x32xf32>,
    %c0_74 = arith.constant 0 : index
    %c0_75 = arith.constant 0 : index
    %71 = vector.load %arg5[%c0_74, %c0_75] : memref<32x32xf32, #tpu.memory_space<vmem>>, vector<32x32xf32>
    %c0_76 = arith.constant 0 : index
    %c0_77 = arith.constant 0 : index
    %72 = vector.load %arg3[%c0_76, %c0_77] : memref<1x32xf32, #tpu.memory_space<vmem>>, vector<1x32xf32>
    %73 = vector.broadcast %72 : vector<1x32xf32> to vector<32x32xf32>
    %74 = arith.addf %71, %73 : vector<32x32xf32>
    %c0_78 = arith.constant 0 : index
    %c0_79 = arith.constant 0 : index
    %c0_80 = arith.constant 0 : index
    %75 = vector.load %arg4[%c0_78, %c0_79, %c0_80] : memref<1x32x32xf32, #tpu.memory_space<vmem>>, vector<1x32x32xf32>
    %76 = vector.shape_cast %75 : vector<1x32x32xf32> to vector<32x32xf32>
    %77 = vector.shape_cast %74 : vector<32x32xf32> to vector<1x32x32xf32>
    tpu.vector_store %arg4[%c0_78, %c0_79, %c0_80], %77 {strides = array<i32>} : memref<1x32x32xf32, #tpu.memory_space<vmem>>, vector<1x32x32xf32>,
    return
  }
  func.func @transform_0(%arg0: i32) -> (i32, i32, i32) {
    %c0_i32 = arith.constant 0 : i32
    %c0_i32_0 = arith.constant 0 : i32
    %c0_i32_1 = arith.constant 0 : i32
    return %arg0, %c0_i32, %c0_i32_0 : i32, i32, i32
  }
  func.func @transform_1(%arg0: i32) -> (i32, i32, i32) {
    %c0_i32 = arith.constant 0 : i32
    %c0_i32_0 = arith.constant 0 : i32
    %c0_i32_1 = arith.constant 0 : i32
    %c0_i32_2 = arith.constant 0 : i32
    return %c0_i32, %c0_i32_0, %c0_i32_1 : i32, i32, i32
  }
  func.func @transform_2(%arg0: i32) -> (i32, i32) {
    %c0_i32 = arith.constant 0 : i32
    %c0_i32_0 = arith.constant 0 : i32
    %c0_i32_1 = arith.constant 0 : i32
    return %c0_i32, %c0_i32_0 : i32, i32
  }
  func.func @transform_3(%arg0: i32) -> (i32, i32, i32) {
    %c0_i32 = arith.constant 0 : i32
    %c0_i32_0 = arith.constant 0 : i32
    %c0_i32_1 = arith.constant 0 : i32
    return %arg0, %c0_i32, %c0_i32_0 : i32, i32, i32
  }
}

module attributes {stable_mosaic.version = 11 : i64} {
  func.func @_matmul_bias_kernel(%arg0: i32, %arg1: i32, %arg2: i32, %arg3: memref<128x16xbf16, #tpu.memory_space<vmem>>, %arg4: memref<16x12xbf16, #tpu.memory_space<vmem>>, %arg5: memref<1x12xf32, #tpu.memory_space<vmem>>, %arg6: memref<128x12xf32, #tpu.memory_space<vmem>>, %arg7: memref<128x12xf32, #tpu.memory_space<vmem>>) attributes {dimension_semantics = [#tpu.dimension_semantics<parallel>, #tpu.dimension_semantics<parallel>, #tpu.dimension_semantics<arbitrary>], iteration_bounds = array<i64: 1, 1, 1>, scalar_prefetch = 0 : i64, scratch_operands = 1 : i64, tpu.core_type = #tpu.core_type<tc>, window_params = [{transform_indices = @transform_0, window_bounds = array<i64: 128, 16>}, {transform_indices = @transform_1, window_bounds = array<i64: 16, 12>}, {transform_indices = @transform_2, window_bounds = array<i64: 1, 12>}, {transform_indices = @transform_3, window_bounds = array<i64: 128, 12>}]} {
    %c0_i32 = arith.constant 0 : i32
    %0 = arith.cmpi eq, %arg2, %c0_i32 : i32
    %1 = arith.extui %0 : i1 to i32
    %c0_i32_0 = arith.constant 0 : i32
    %2 = arith.cmpi ne, %1, %c0_i32_0 : i32
    scf.if %2 {
      %cst_10 = arith.constant 0.000000e+00 : f32
      %12 = vector.broadcast %cst_10 : f32 to vector<128x12xf32>
      %c0_11 = arith.constant 0 : index
      %c0_12 = arith.constant 0 : index
      %13 = vector.load %arg7[%c0_11, %c0_12] : memref<128x12xf32, #tpu.memory_space<vmem>>, vector<128x12xf32>
      tpu.vector_store %arg7[%c0_11, %c0_12], %12 {strides = array<i32>} : memref<128x12xf32, #tpu.memory_space<vmem>>, vector<128x12xf32>,
    } else {
    }
    %c0 = arith.constant 0 : index
    %c0_1 = arith.constant 0 : index
    %3 = vector.load %arg7[%c0, %c0_1] : memref<128x12xf32, #tpu.memory_space<vmem>>, vector<128x12xf32>
    %c0_2 = arith.constant 0 : index
    %c0_3 = arith.constant 0 : index
    %4 = vector.load %arg3[%c0_2, %c0_3] : memref<128x16xbf16, #tpu.memory_space<vmem>>, vector<128x16xbf16>
    %c0_4 = arith.constant 0 : index
    %c0_5 = arith.constant 0 : index
    %5 = vector.load %arg4[%c0_4, %c0_5] : memref<16x12xbf16, #tpu.memory_space<vmem>>, vector<16x12xbf16>
    %cst = arith.constant dense<0.000000e+00> : vector<128x12xf32>
    %6 = tpu.matmul %4, %5, %cst {dimension_numbers = #tpu.dot_dimension_numbers<[1], [0], [0], [1], [0, 0, 1, 1], [], []>} : vector<128x16xbf16>, vector<16x12xbf16>, vector<128x12xf32> -> vector<128x12xf32>
    %7 = arith.addf %3, %6 : vector<128x12xf32>
    %c0_6 = arith.constant 0 : index
    %c0_7 = arith.constant 0 : index
    %8 = vector.load %arg7[%c0_6, %c0_7] : memref<128x12xf32, #tpu.memory_space<vmem>>, vector<128x12xf32>
    tpu.vector_store %arg7[%c0_6, %c0_7], %7 {strides = array<i32>} : memref<128x12xf32, #tpu.memory_space<vmem>>, vector<128x12xf32>,
    %c0_i32_8 = arith.constant 0 : i32
    %9 = arith.cmpi eq, %arg2, %c0_i32_8 : i32
    %10 = arith.extui %9 : i1 to i32
    %c0_i32_9 = arith.constant 0 : i32
    %11 = arith.cmpi ne, %10, %c0_i32_9 : i32
    scf.if %11 {
      %c0_10 = arith.constant 0 : index
      %c0_11 = arith.constant 0 : index
      %12 = vector.load %arg7[%c0_10, %c0_11] : memref<128x12xf32, #tpu.memory_space<vmem>>, vector<128x12xf32>
      %c0_12 = arith.constant 0 : index
      %c0_13 = arith.constant 0 : index
      %13 = vector.load %arg5[%c0_12, %c0_13] : memref<1x12xf32, #tpu.memory_space<vmem>>, vector<1x12xf32>
      %14 = vector.broadcast %13 : vector<1x12xf32> to vector<128x12xf32>
      %15 = arith.addf %12, %14 : vector<128x12xf32>
      %c0_14 = arith.constant 0 : index
      %c0_15 = arith.constant 0 : index
      %16 = vector.load %arg6[%c0_14, %c0_15] : memref<128x12xf32, #tpu.memory_space<vmem>>, vector<128x12xf32>
      tpu.vector_store %arg6[%c0_14, %c0_15], %15 {strides = array<i32>} : memref<128x12xf32, #tpu.memory_space<vmem>>, vector<128x12xf32>,
    } else {
    }
    return
  }
  func.func @transform_0(%arg0: i32, %arg1: i32, %arg2: i32) -> (i32, i32) {
    %c0_i32 = arith.constant 0 : i32
    return %arg0, %arg2 : i32, i32
  }
  func.func @transform_1(%arg0: i32, %arg1: i32, %arg2: i32) -> (i32, i32) {
    %c0_i32 = arith.constant 0 : i32
    return %arg2, %arg1 : i32, i32
  }
  func.func @transform_2(%arg0: i32, %arg1: i32, %arg2: i32) -> (i32, i32) {
    %c0_i32 = arith.constant 0 : i32
    %c0_i32_0 = arith.constant 0 : i32
    return %c0_i32, %arg1 : i32, i32
  }
  func.func @transform_3(%arg0: i32, %arg1: i32, %arg2: i32) -> (i32, i32) {
    %c0_i32 = arith.constant 0 : i32
    return %arg0, %arg1 : i32, i32
  }
}

module attributes {stable_mosaic.version = 11 : i64} {
  func.func @_mse_kernel(%arg0: i32, %arg1: memref<16x128xf32, #tpu.memory_space<vmem>>, %arg2: memref<16x128xf32, #tpu.memory_space<vmem>>, %arg3: memref<1x1x1xf32, #tpu.memory_space<vmem>>) attributes {dimension_semantics = [#tpu.dimension_semantics<parallel>], iteration_bounds = array<i64: 1>, scalar_prefetch = 0 : i64, scratch_operands = 0 : i64, tpu.core_type = #tpu.core_type<tc>, window_params = [{transform_indices = @transform_0, window_bounds = array<i64: 16, 128>}, {transform_indices = @transform_1, window_bounds = array<i64: 16, 128>}, {transform_indices = @transform_2, window_bounds = array<i64: 1, 1, 1>}]} {
    %c0 = arith.constant 0 : index
    %c0_0 = arith.constant 0 : index
    %0 = vector.load %arg1[%c0, %c0_0] : memref<16x128xf32, #tpu.memory_space<vmem>>, vector<16x128xf32>
    %c0_1 = arith.constant 0 : index
    %c0_2 = arith.constant 0 : index
    %1 = vector.load %arg2[%c0_1, %c0_2] : memref<16x128xf32, #tpu.memory_space<vmem>>, vector<16x128xf32>
    %2 = arith.subf %0, %1 : vector<16x128xf32>
    %3 = arith.mulf %2, %2 : vector<16x128xf32>
    %4 = vector.shape_cast %3 : vector<16x128xf32> to vector<1x16x128xf32>
    %cst = arith.constant dense<0.000000e+00> : vector<1xf32>
    %5 = vector.multi_reduction <add>, %4, %cst [1, 2] : vector<1x16x128xf32> to vector<1xf32>
    %6 = vector.shape_cast %5 : vector<1xf32> to vector<1x1x1xf32>
    %7 = vector.extract %6[0, 0, 0] : f32 from vector<1x1x1xf32>
    %8 = vector.broadcast %7 : f32 to vector<1x1xf32>
    %9 = vector.shape_cast %8 : vector<1x1xf32> to vector<1x1x1xf32>
    %c0_3 = arith.constant 0 : index
    %c0_4 = arith.constant 0 : index
    %c0_5 = arith.constant 0 : index
    %10 = vector.load %arg3[%c0_3, %c0_4, %c0_5] : memref<1x1x1xf32, #tpu.memory_space<vmem>>, vector<1x1x1xf32>
    tpu.vector_store %arg3[%c0_3, %c0_4, %c0_5], %9 {strides = array<i32>} : memref<1x1x1xf32, #tpu.memory_space<vmem>>, vector<1x1x1xf32>,
    return
  }
  func.func @transform_0(%arg0: i32) -> (i32, i32) {
    %c0_i32 = arith.constant 0 : i32
    %c0_i32_0 = arith.constant 0 : i32
    return %arg0, %c0_i32 : i32, i32
  }
  func.func @transform_1(%arg0: i32) -> (i32, i32) {
    %c0_i32 = arith.constant 0 : i32
    %c0_i32_0 = arith.constant 0 : i32
    return %arg0, %c0_i32 : i32, i32
  }
  func.func @transform_2(%arg0: i32) -> (i32, i32, i32) {
    %c0_i32 = arith.constant 0 : i32
    %c0_i32_0 = arith.constant 0 : i32
    %c0_i32_1 = arith.constant 0 : i32
    return %arg0, %c0_i32, %c0_i32_0 : i32, i32, i32
  }
}

</mosaic_0001>

<llo_original>
// kernel: tile.123
$region0: #{tile.123}
  #allocation0 [shape = 's32[1]{0}', space=sflag, size = 0x4, scoped, tag = 'scoped memory for tile.123']
  %s0 = inlined_call_operand.vmem [shape: f32[16], index: 0, kind: input, shape index: {}]
  %s1 = inlined_call_operand.vmem [shape: f32[8,16], index: 1, kind: output, shape index: {}]
  // Predicated region
  $region2: #{tile.123} parent=0 // pred_check
    _
  $region3: #{tile.123} parent=0 // pred_check_branch
    %3 = sbr.rel (0) target = $region5
  $region4: #{tile.123} parent=0 // pred_region
    _
  $region5: #{tile.123} parent=0 // pred_fallthru
    _
  %v4 = vld [vmem:[%s0] ss:$0 sm:$0xff]
  %5 = vst [vmem:[%s1] sm:$0xff] %v4

// kernel: tile.153
$region0: #{tile.153}
  #allocation0 [shape = 's32[1]{0}', space=sflag, size = 0x4, scoped, tag = 'scoped memory for tile.153']
  %s0 = inlined_call_operand.vmem [shape: f32[8], index: 0, kind: input, shape index: {}]
  %s1 = inlined_call_operand.vmem [shape: f32[4,8], index: 1, kind: output, shape index: {}]
  // Predicated region
  $region2: #{tile.153} parent=0 // pred_check
    _
  $region3: #{tile.153} parent=0 // pred_check_branch
    %3 = sbr.rel (0) target = $region5
  $region4: #{tile.153} parent=0 // pred_region
    _
  $region5: #{tile.153} parent=0 // pred_fallthru
    _
  %v4 = vld [vmem:[%s0] ss:$0 sm:$0xff]
  %5 = vst [vmem:[%s1] sm:$0xf] %v4

// kernel: tile.1
$region0: #{tile.1}
  %s0 = inlined_call_operand.vmem [shape: f32[4,8], index: 0, kind: input, shape index: {}]
  %s1 = inlined_call_operand.vmem [shape: f32[32,1], index: 1, kind: output, shape index: {}]
  $region1: #{tile.1} parent=0
    #allocation0 [shape = 'u8[4096]{0}', space=vmem, size = 0x1000, scoped, tag = 'scoped mem for input reshape']
    %s3 = sshllo.u32 0, 4
    %v4 = vld [vmem:[%s0] sm:%s3]
    %5 = vst [vmem:[#allocation0] sm:%s3] %v4
    %v6 = vld [vmem:[#allocation0] sm:$0xf]
    %vm7 = vcmask 7168
    %8 = vst.msk [vmem:[%s1] ss:$8 sm:$0xf] %vm7, %v6
    %v9 = vld [vmem:[#allocation0] sm:$0xf]
    %10 = vrot.lane.b32.xlu0 %v9, 127
    %v11 = vpop.permute.xlu0 %10
    %vm12 = vcmask 7168
    %s13 = scalar_lea.vmem %s1, 1
    %14 = vst.msk [vmem:[%s13] ss:$8 sm:$0xf] %vm12, %v11
    %v15 = vld [vmem:[#allocation0] sm:$0xf]
    %16 = vrot.lane.b32.xlu0 %v15, 126
    %v17 = vpop.permute.xlu0 %16
    %vm18 = vcmask 7168
    %s19 = scalar_lea.vmem %s1, 2
    %20 = vst.msk [vmem:[%s19] ss:$8 sm:$0xf] %vm18, %v17
    %v21 = vld [vmem:[#allocation0] sm:$0xf]
    %22 = vrot.lane.b32.xlu0 %v21, 125
    %v23 = vpop.permute.xlu0 %22
    %vm24 = vcmask 7168
    %s25 = scalar_lea.vmem %s1, 3
    %26 = vst.msk [vmem:[%s25] ss:$8 sm:$0xf] %vm24, %v23
    %v27 = vld [vmem:[#allocation0] sm:$0xf]
    %28 = vrot.lane.b32.xlu0 %v27, 124
    %v29 = vpop.permute.xlu0 %28
    %vm30 = vcmask 7168
    %s31 = scalar_lea.vmem %s1, 4
    %32 = vst.msk [vmem:[%s31] ss:$8 sm:$0xf] %vm30, %v29
    %v33 = vld [vmem:[#allocation0] sm:$0xf]
    %34 = vrot.lane.b32.xlu0 %v33, 123
    %v35 = vpop.permute.xlu0 %34
    %vm36 = vcmask 7168
    %s37 = scalar_lea.vmem %s1, 5
    %38 = vst.msk [vmem:[%s37] ss:$8 sm:$0xf] %vm36, %v35
    %v39 = vld [vmem:[#allocation0] sm:$0xf]
    %40 = vrot.lane.b32.xlu0 %v39, 122
    %v41 = vpop.permute.xlu0 %40
    %vm42 = vcmask 7168
    %s43 = scalar_lea.vmem %s1, 6
    %44 = vst.msk [vmem:[%s43] ss:$8 sm:$0xf] %vm42, %v41
    %v45 = vld [vmem:[#allocation0] sm:$0xf]
    %46 = vrot.lane.b32.xlu0 %v45, 121
    %v47 = vpop.permute.xlu0 %46
    %vm48 = vcmask 7168
    %s49 = scalar_lea.vmem %s1, 7
    %50 = vst.msk [vmem:[%s49] ss:$8 sm:$0xf] %vm48, %v47

// kernel: tile.0
$region0: #{tile.0}
  %s0 = inlined_call_operand.vmem [shape: f32[8,16], index: 0, kind: input, shape index: {}]
  %s1 = inlined_call_operand.vmem [shape: f32[128,1], index: 1, kind: output, shape index: {}]
  %v2 = vld [vmem:[%s0] sm:$0xff]
  %vm3 = vcmask 7168
  %4 = vst.msk [vmem:[%s1] ss:$16 sm:$0x3] %vm3, %v2
  %5 = vst.msk [vmem:[%s1] ss:$16 sm:$0xc] %vm3, %v2
  %6 = vst.msk [vmem:[%s1] ss:$16 sm:$0x30] %vm3, %v2
  %7 = vst.msk [vmem:[%s1] ss:$16 sm:$0xc0] %vm3, %v2
  %v8 = vld [vmem:[%s0] sm:$0xff]
  %9 = vrot.lane.b32.xlu0 %v8, 127
  %v10 = vpop.permute.xlu0 %9
  %vm11 = vcmask 7168
  %s12 = scalar_lea.vmem %s1, 1
  %13 = vst.msk [vmem:[%s12] ss:$16 sm:$0x3] %vm11, %v10
  %s14 = scalar_lea.vmem %s1, 1
  %15 = vst.msk [vmem:[%s14] ss:$16 sm:$0xc] %vm11, %v10
  %s16 = scalar_lea.vmem %s1, 1
  %17 = vst.msk [vmem:[%s16] ss:$16 sm:$0x30] %vm11, %v10
  %s18 = scalar_lea.vmem %s1, 1
  %19 = vst.msk [vmem:[%s18] ss:$16 sm:$0xc0] %vm11, %v10
  %v20 = vld [vmem:[%s0] sm:$0xff]
  %21 = vrot.lane.b32.xlu0 %v20, 126
  %v22 = vpop.permute.xlu0 %21
  %vm23 = vcmask 7168
  %s24 = scalar_lea.vmem %s1, 2
  %25 = vst.msk [vmem:[%s24] ss:$16 sm:$0x3] %vm23, %v22
  %s26 = scalar_lea.vmem %s1, 2
  %27 = vst.msk [vmem:[%s26] ss:$16 sm:$0xc] %vm23, %v22
  %s28 = scalar_lea.vmem %s1, 2
  %29 = vst.msk [vmem:[%s28] ss:$16 sm:$0x30] %vm23, %v22
  %s30 = scalar_lea.vmem %s1, 2
  %31 = vst.msk [vmem:[%s30] ss:$16 sm:$0xc0] %vm23, %v22
  %v32 = vld [vmem:[%s0] sm:$0xff]
  %33 = vrot.lane.b32.xlu0 %v32, 125
  %v34 = vpop.permute.xlu0 %33
  %vm35 = vcmask 7168
  %s36 = scalar_lea.vmem %s1, 3
  %37 = vst.msk [vmem:[%s36] ss:$16 sm:$0x3] %vm35, %v34
  %s38 = scalar_lea.vmem %s1, 3
  %39 = vst.msk [vmem:[%s38] ss:$16 sm:$0xc] %vm35, %v34
  %s40 = scalar_lea.vmem %s1, 3
  %41 = vst.msk [vmem:[%s40] ss:$16 sm:$0x30] %vm35, %v34
  %s42 = scalar_lea.vmem %s1, 3
  %43 = vst.msk [vmem:[%s42] ss:$16 sm:$0xc0] %vm35, %v34
  %v44 = vld [vmem:[%s0] sm:$0xff]
  %45 = vrot.lane.b32.xlu0 %v44, 124
  %v46 = vpop.permute.xlu0 %45
  %vm47 = vcmask 7168
  %s48 = scalar_lea.vmem %s1, 4
  %49 = vst.msk [vmem:[%s48] ss:$16 sm:$0x3] %vm47, %v46
  %s50 = scalar_lea.vmem %s1, 4
  %51 = vst.msk [vmem:[%s50] ss:$16 sm:$0xc] %vm47, %v46
  %s52 = scalar_lea.vmem %s1, 4
  %53 = vst.msk [vmem:[%s52] ss:$16 sm:$0x30] %vm47, %v46
  %s54 = scalar_lea.vmem %s1, 4
  %55 = vst.msk [vmem:[%s54] ss:$16 sm:$0xc0] %vm47, %v46
  %v56 = vld [vmem:[%s0] sm:$0xff]
  %57 = vrot.lane.b32.xlu0 %v56, 123
  %v58 = vpop.permute.xlu0 %57
  %vm59 = vcmask 7168
  %s60 = scalar_lea.vmem %s1, 5
  %61 = vst.msk [vmem:[%s60] ss:$16 sm:$0x3] %vm59, %v58
  %s62 = scalar_lea.vmem %s1, 5
  %63 = vst.msk [vmem:[%s62] ss:$16 sm:$0xc] %vm59, %v58
  %s64 = scalar_lea.vmem %s1, 5
  %65 = vst.msk [vmem:[%s64] ss:$16 sm:$0x30] %vm59, %v58
  %s66 = scalar_lea.vmem %s1, 5
  %67 = vst.msk [vmem:[%s66] ss:$16 sm:$0xc0] %vm59, %v58
  %v68 = vld [vmem:[%s0] sm:$0xff]
  %69 = vrot.lane.b32.xlu0 %v68, 122
  %v70 = vpop.permute.xlu0 %69
  %vm71 = vcmask 7168
  %s72 = scalar_lea.vmem %s1, 6
  %73 = vst.msk [vmem:[%s72] ss:$16 sm:$0x3] %vm71, %v70
  %s74 = scalar_lea.vmem %s1, 6
  %75 = vst.msk [vmem:[%s74] ss:$16 sm:$0xc] %vm71, %v70
  %s76 = scalar_lea.vmem %s1, 6
  %77 = vst.msk [vmem:[%s76] ss:$16 sm:$0x30] %vm71, %v70
  %s78 = scalar_lea.vmem %s1, 6
  %79 = vst.msk [vmem:[%s78] ss:$16 sm:$0xc0] %vm71, %v70
  %v80 = vld [vmem:[%s0] sm:$0xff]
  %81 = vrot.lane.b32.xlu0 %v80, 121
  %v82 = vpop.permute.xlu0 %81
  %vm83 = vcmask 7168
  %s84 = scalar_lea.vmem %s1, 7
  %85 = vst.msk [vmem:[%s84] ss:$16 sm:$0x3] %vm83, %v82
  %s86 = scalar_lea.vmem %s1, 7
  %87 = vst.msk [vmem:[%s86] ss:$16 sm:$0xc] %vm83, %v82
  %s88 = scalar_lea.vmem %s1, 7
  %89 = vst.msk [vmem:[%s88] ss:$16 sm:$0x30] %vm83, %v82
  %s90 = scalar_lea.vmem %s1, 7
  %91 = vst.msk [vmem:[%s90] ss:$16 sm:$0xc0] %vm83, %v82
  %v92 = vld [vmem:[%s0] sm:$0xff]
  %93 = vrot.lane.b32.xlu0 %v92, 120
  %v94 = vpop.permute.xlu0 %93
  %vm95 = vcmask 7168
  %s96 = scalar_lea.vmem %s1, 8
  %97 = vst.msk [vmem:[%s96] ss:$16 sm:$0x3] %vm95, %v94
  %s98 = scalar_lea.vmem %s1, 8
  %99 = vst.msk [vmem:[%s98] ss:$16 sm:$0xc] %vm95, %v94
  %s100 = scalar_lea.vmem %s1, 8
  %101 = vst.msk [vmem:[%s100] ss:$16 sm:$0x30] %vm95, %v94
  %s102 = scalar_lea.vmem %s1, 8
  %103 = vst.msk [vmem:[%s102] ss:$16 sm:$0xc0] %vm95, %v94
  %v104 = vld [vmem:[%s0] sm:$0xff]
  %105 = vrot.lane.b32.xlu0 %v104, 119
  %v106 = vpop.permute.xlu0 %105
  %vm107 = vcmask 7168
  %s108 = scalar_lea.vmem %s1, 9
  %109 = vst.msk [vmem:[%s108] ss:$16 sm:$0x3] %vm107, %v106
  %s110 = scalar_lea.vmem %s1, 9
  %111 = vst.msk [vmem:[%s110] ss:$16 sm:$0xc] %vm107, %v106
  %s112 = scalar_lea.vmem %s1, 9
  %113 = vst.msk [vmem:[%s112] ss:$16 sm:$0x30] %vm107, %v106
  %s114 = scalar_lea.vmem %s1, 9
  %115 = vst.msk [vmem:[%s114] ss:$16 sm:$0xc0] %vm107, %v106
  %v116 = vld [vmem:[%s0] sm:$0xff]
  %117 = vrot.lane.b32.xlu0 %v116, 118
  %v118 = vpop.permute.xlu0 %117
  %vm119 = vcmask 7168
  %s120 = scalar_lea.vmem %s1, 10
  %121 = vst.msk [vmem:[%s120] ss:$16 sm:$0x3] %vm119, %v118
  %s122 = scalar_lea.vmem %s1, 10
  %123 = vst.msk [vmem:[%s122] ss:$16 sm:$0xc] %vm119, %v118
  %s124 = scalar_lea.vmem %s1, 10
  %125 = vst.msk [vmem:[%s124] ss:$16 sm:$0x30] %vm119, %v118
  %s126 = scalar_lea.vmem %s1, 10
  %127 = vst.msk [vmem:[%s126] ss:$16 sm:$0xc0] %vm119, %v118
  %v128 = vld [vmem:[%s0] sm:$0xff]
  %129 = vrot.lane.b32.xlu0 %v128, 117
  %v130 = vpop.permute.xlu0 %129
  %vm131 = vcmask 7168
  %s132 = scalar_lea.vmem %s1, 11
  %133 = vst.msk [vmem:[%s132] ss:$16 sm:$0x3] %vm131, %v130
  %s134 = scalar_lea.vmem %s1, 11
  %135 = vst.msk [vmem:[%s134] ss:$16 sm:$0xc] %vm131, %v130
  %s136 = scalar_lea.vmem %s1, 11
  %137 = vst.msk [vmem:[%s136] ss:$16 sm:$0x30] %vm131, %v130
  %s138 = scalar_lea.vmem %s1, 11
  %139 = vst.msk [vmem:[%s138] ss:$16 sm:$0xc0] %vm131, %v130
  %v140 = vld [vmem:[%s0] sm:$0xff]
  %141 = vrot.lane.b32.xlu0 %v140, 116
  %v142 = vpop.permute.xlu0 %141
  %vm143 = vcmask 7168
  %s144 = scalar_lea.vmem %s1, 12
  %145 = vst.msk [vmem:[%s144] ss:$16 sm:$0x3] %vm143, %v142
  %s146 = scalar_lea.vmem %s1, 12
  %147 = vst.msk [vmem:[%s146] ss:$16 sm:$0xc] %vm143, %v142
  %s148 = scalar_lea.vmem %s1, 12
  %149 = vst.msk [vmem:[%s148] ss:$16 sm:$0x30] %vm143, %v142
  %s150 = scalar_lea.vmem %s1, 12
  %151 = vst.msk [vmem:[%s150] ss:$16 sm:$0xc0] %vm143, %v142
  %v152 = vld [vmem:[%s0] sm:$0xff]
  %153 = vrot.lane.b32.xlu0 %v152, 115
  %v154 = vpop.permute.xlu0 %153
  %vm155 = vcmask 7168
  %s156 = scalar_lea.vmem %s1, 13
  %157 = vst.msk [vmem:[%s156] ss:$16 sm:$0x3] %vm155, %v154
  %s158 = scalar_lea.vmem %s1, 13
  %159 = vst.msk [vmem:[%s158] ss:$16 sm:$0xc] %vm155, %v154
  %s160 = scalar_lea.vmem %s1, 13
  %161 = vst.msk [vmem:[%s160] ss:$16 sm:$0x30] %vm155, %v154
  %s162 = scalar_lea.vmem %s1, 13
  %163 = vst.msk [vmem:[%s162] ss:$16 sm:$0xc0] %vm155, %v154
  %v164 = vld [vmem:[%s0] sm:$0xff]
  %165 = vrot.lane.b32.xlu0 %v164, 114
  %v166 = vpop.permute.xlu0 %165
  %vm167 = vcmask 7168
  %s168 = scalar_lea.vmem %s1, 14
  %169 = vst.msk [vmem:[%s168] ss:$16 sm:$0x3] %vm167, %v166
  %s170 = scalar_lea.vmem %s1, 14
  %171 = vst.msk [vmem:[%s170] ss:$16 sm:$0xc] %vm167, %v166
  %s172 = scalar_lea.vmem %s1, 14
  %173 = vst.msk [vmem:[%s172] ss:$16 sm:$0x30] %vm167, %v166
  %s174 = scalar_lea.vmem %s1, 14
  %175 = vst.msk [vmem:[%s174] ss:$16 sm:$0xc0] %vm167, %v166
  %v176 = vld [vmem:[%s0] sm:$0xff]
  %177 = vrot.lane.b32.xlu0 %v176, 113
  %v178 = vpop.permute.xlu0 %177
  %vm179 = vcmask 7168
  %s180 = scalar_lea.vmem %s1, 15
  %181 = vst.msk [vmem:[%s180] ss:$16 sm:$0x3] %vm179, %v178
  %s182 = scalar_lea.vmem %s1, 15
  %183 = vst.msk [vmem:[%s182] ss:$16 sm:$0xc] %vm179, %v178
  %s184 = scalar_lea.vmem %s1, 15
  %185 = vst.msk [vmem:[%s184] ss:$16 sm:$0x30] %vm179, %v178
  %s186 = scalar_lea.vmem %s1, 15
  %187 = vst.msk [vmem:[%s186] ss:$16 sm:$0xc0] %vm179, %v178

// kernel: tile.134
$region0: #{tile.134}
  %s0 = inlined_call_operand.vmem [shape: f32[8,16], index: 0, kind: input, shape index: {}]
  %s1 = inlined_call_operand.vmem [shape: f32[1,128], index: 1, kind: output, shape index: {}]
  $region1: #{tile.134} parent=0
    #allocation0 [shape = 'u8[4096]{0}', space=vmem, size = 0x1000, scoped, tag = 'scoped mem for output reshape']
    %v2 = vld [vmem:[%s0] sm:$0x1]
    %vm3 = vcmask 130048
    %4 = vst.msk [vmem:[#allocation0] sm:$0x1] %vm3, %v2
    %s5 = scalar_lea.vmem %s0, 7
    %v6 = vld [vmem:[%s5] sm:$0x1]
    %7 = vrot.lane.b32.xlu0 %v6, 112
    %v8 = vpop.permute.xlu0 %7
    %vm9 = vcmask 1048448
    %10 = vst.msk [vmem:[#allocation0] sm:$0x1] %vm9, %v8
    %s11 = scalar_lea.vmem %s0, 6
    %v12 = vld [vmem:[%s11] sm:$0x1]
    %13 = vrot.lane.b32.xlu0 %v12, 96
    %v14 = vpop.permute.xlu0 %13
    %vm15 = vcmask 917248
    %16 = vst.msk [vmem:[#allocation0] sm:$0x1] %vm15, %v14
    %s17 = scalar_lea.vmem %s0, 5
    %v18 = vld [vmem:[%s17] sm:$0x1]
    %19 = vrot.lane.b32.xlu0 %v18, 80
    %v20 = vpop.permute.xlu0 %19
    %vm21 = vcmask 786048
    %22 = vst.msk [vmem:[#allocation0] sm:$0x1] %vm21, %v20
    %s23 = scalar_lea.vmem %s0, 4
    %v24 = vld [vmem:[%s23] sm:$0x1]
    %25 = vrot.lane.b32.xlu0 %v24, 64
    %v26 = vpop.permute.xlu0 %25
    %vm27 = vcmask 654848
    %28 = vst.msk [vmem:[#allocation0] sm:$0x1] %vm27, %v26
    %s29 = scalar_lea.vmem %s0, 3
    %v30 = vld [vmem:[%s29] sm:$0x1]
    %31 = vrot.lane.b32.xlu0 %v30, 48
    %v32 = vpop.permute.xlu0 %31
    %vm33 = vcmask 523648
    %34 = vst.msk [vmem:[#allocation0] sm:$0x1] %vm33, %v32
    %s35 = scalar_lea.vmem %s0, 2
    %v36 = vld [vmem:[%s35] sm:$0x1]
    %37 = vrot.lane.b32.xlu0 %v36, 32
    %v38 = vpop.permute.xlu0 %37
    %vm39 = vcmask 392448
    %40 = vst.msk [vmem:[#allocation0] sm:$0x1] %vm39, %v38
    %s41 = scalar_lea.vmem %s0, 1
    %v42 = vld [vmem:[%s41] sm:$0x1]
    %43 = vrot.lane.b32.xlu0 %v42, 16
    %v44 = vpop.permute.xlu0 %43
    %vm45 = vcmask 261248
    %46 = vst.msk [vmem:[#allocation0] sm:$0x1] %vm45, %v44
    %s48 = sshllo.u32 0, 1
    %v50 = vld [vmem:[#allocation0] sm:%s48]
    %s51 = sshllo.u32 0, 1
    %52 = vst [vmem:[%s1] sm:%s51] %v50

// kernel: bsq_vq_forward.26
$region0: #{bsq_vq_forward.26}
  #allocation0 [shape = 'u32[]', space=smem, size = 0x4, offset = 0x4, fixed_abs, tag = 'smem constant byte address 0x4 - core index']
  #allocation1 [shape = 'u32[144,128]{1,0:T(1,128)}', space=vmem, size = 0x12000, scoped, tag = 'internal scratch']
  %s0 = inlined_call_operand.vmem [shape: f32[16,128], index: 0, kind: input, shape index: {}]
  %s1 = inlined_call_operand.vmem [shape: f32[1,128], index: 1, kind: input, shape index: {}]
  %s2 = inlined_call_operand.vmem [shape: f32[1,128], index: 2, kind: input, shape index: {}]
  %s3 = inlined_call_operand.vmem [shape: f32[16,128], index: 3, kind: output, shape index: {}]
  %s4 = sld [smem:[#allocation0]]
  $region22: #{bsq_vq_forward.26} parent=0
    _
  %s6 = ssub.s32 1, %s4
  %s7 = scalar_select 0, %s6, %s4
  // Predicated region
  $region2: #{bsq_vq_forward.26} parent=0 // pred_check
    _
  $region3: #{bsq_vq_forward.26} parent=0 // pred_check_branch
    %9 = sbr.rel (0) target = $region5
  $region4: #{bsq_vq_forward.26} parent=0 // pred_region
    _
  $region5: #{bsq_vq_forward.26} parent=0 // pred_fallthru
    _
  // Predicated region
  $region6: #{bsq_vq_forward.26} parent=0 // pred_check
    _
  $region7: #{bsq_vq_forward.26} parent=0 // pred_check_branch
    %11 = sbr.rel (0) target = $region9
  $region8: #{bsq_vq_forward.26} parent=0 // pred_region
    _
  $region9: #{bsq_vq_forward.26} parent=0 // pred_fallthru
    _
  // Predicated region
  $region10: #{bsq_vq_forward.26} parent=0 // pred_check
    _
  $region11: #{bsq_vq_forward.26} parent=0 // pred_check_branch
    %13 = sbr.rel (0) target = $region13
  $region12: #{bsq_vq_forward.26} parent=0 // pred_region
    _
  $region13: #{bsq_vq_forward.26} parent=0 // pred_fallthru
    _
  %v14 = vld [vmem:[%s0] sm:$0xff]
  %v15 = vld [vmem:[%s0 + $0x8] sm:$0xff]
  %v16 = vld [vmem:[%s1] sm:$0x1]
  %v18 = vlaneseq
  %v19 = vshrl.u32 %v18, 7
  %v20 = vsub.s32 0, %v19
  %v21 = vrot.slane %v16, %v20
  %v23 = vmul.f32 %v14, %v21
  %v24 = vmul.f32 %v15, %v21
  %v25 = vld [vmem:[%s2] sm:$0x1]
  %v27 = vlaneseq
  %v28 = vshrl.u32 %v27, 7
  %v29 = vsub.s32 0, %v28
  %v30 = vrot.slane %v25, %v29
  %v32 = vadd.f32 %v23, %v30
  %v33 = vadd.f32 %v24, %v30
  %v34 = vxor.u32 %v32, 2147483648
  %v35 = vxor.u32 %v33, 2147483648
  %v36 = vmul.f32 %v34, 1.442695
  %v37 = vpow.pop %v36
  %v38 = vmul.f32 %v35, 1.442695
  %v39 = vpow.pop %v38
  %v40 = vadd.f32 %v37, 1.0
  %v41 = vadd.f32 %v39, 1.0
  %v42 = vrcp.pop %v40
  %v43 = vmul.f32 1.0, %v42
  %v44 = vrcp.pop %v41
  %v45 = vmul.f32 1.0, %v44
  %v46 = vmul.f32 %v32, %v43
  %v47 = vmul.f32 %v33, %v45
  %48 = vst [vmem:[%s3] sm:$0xff] %v46
  %49 = vst [vmem:[%s3 + $0x8] sm:$0xff] %v47
  // Predicated region
  $region14: #{bsq_vq_forward.26} parent=0 // pred_check
    _
  $region15: #{bsq_vq_forward.26} parent=0 // pred_check_branch
    %51 = sbr.rel (0) target = $region17
  $region16: #{bsq_vq_forward.26} parent=0 // pred_region
    _
  $region17: #{bsq_vq_forward.26} parent=0 // pred_fallthru
    _
  // Predicated region
  $region18: #{bsq_vq_forward.26} parent=0 // pred_check
    _
  $region19: #{bsq_vq_forward.26} parent=0 // pred_check_branch
    %53 = sbr.rel (0) target = $region21
  $region20: #{bsq_vq_forward.26} parent=0 // pred_region
    _
  $region21: #{bsq_vq_forward.26} parent=0 // pred_fallthru
    _

// kernel: bsq_vq_forward.24
$region0: #{bsq_vq_forward.24}
  #allocation0 [shape = 'u32[]', space=smem, size = 0x4, offset = 0x4, fixed_abs, tag = 'smem constant byte address 0x4 - core index']
  #allocation1 [shape = 'u32[144,128]{1,0:T(1,128)}', space=vmem, size = 0x12000, scoped, tag = 'internal scratch']
  #allocation2 [shape = 'f32[128,16]{1,0:T(8,128)}', space=vmem, size = 0x10000, scoped, tag = 'scratch operand']
  %s0 = inlined_call_operand.vmem [shape: bf16[128,12], index: 0, kind: input, shape index: {}]
  %s1 = inlined_call_operand.vmem [shape: bf16[12,16], index: 1, kind: input, shape index: {}]
  %s2 = inlined_call_operand.vmem [shape: f32[1,16], index: 2, kind: input, shape index: {}]
  %s3 = inlined_call_operand.vmem [shape: f32[128,16], index: 3, kind: output, shape index: {}]
  %s4 = sld [smem:[#allocation0]]
  $region30: #{bsq_vq_forward.24} parent=0
    _
  %s6 = ssub.s32 1, %s4
  %s7 = scalar_select 0, %s6, %s4
  // Predicated region
  $region2: #{bsq_vq_forward.24} parent=0 // pred_check
    _
  $region3: #{bsq_vq_forward.24} parent=0 // pred_check_branch
    %9 = sbr.rel (0) target = $region5
  $region4: #{bsq_vq_forward.24} parent=0 // pred_region
    _
  $region5: #{bsq_vq_forward.24} parent=0 // pred_fallthru
    _
  // Predicated region
  $region6: #{bsq_vq_forward.24} parent=0 // pred_check
    _
  $region7: #{bsq_vq_forward.24} parent=0 // pred_check_branch
    %11 = sbr.rel (0) target = $region9
  $region8: #{bsq_vq_forward.24} parent=0 // pred_region
    _
  $region9: #{bsq_vq_forward.24} parent=0 // pred_fallthru
    _
  // Predicated region
  $region10: #{bsq_vq_forward.24} parent=0 // pred_check
    _
  $region11: #{bsq_vq_forward.24} parent=0 // pred_check_branch
    %13 = sbr.rel (0) target = $region13
  $region12: #{bsq_vq_forward.24} parent=0 // pred_region
    _
  $region13: #{bsq_vq_forward.24} parent=0 // pred_fallthru
    _
  %p15 = scmp.eq.s32.totalorder 0, 0
  // Predicated region
  $region14: #{bsq_vq_forward.24} parent=0 // pred_check
    %p16 = pneg %p15
  $region15: #{bsq_vq_forward.24} parent=0 // pred_check_branch
    %18 = sbr.rel (%p16) target = $region17
  $region16: #{bsq_vq_forward.24} parent=0 // pred_region
    %vm19 = vcmask 130048
    %20 = vst.msk [vmem:[#allocation2] sm:$0xff] %vm19, 0.0
    %21 = vst.msk [vmem:[#allocation2 + $0x8] sm:$0xff] %vm19, 0.0
    %22 = vst.msk [vmem:[#allocation2 + $0x10] sm:$0xff] %vm19, 0.0
    %23 = vst.msk [vmem:[#allocation2 + $0x18] sm:$0xff] %vm19, 0.0
    %24 = vst.msk [vmem:[#allocation2 + $0x20] sm:$0xff] %vm19, 0.0
    %25 = vst.msk [vmem:[#allocation2 + $0x28] sm:$0xff] %vm19, 0.0
    %26 = vst.msk [vmem:[#allocation2 + $0x30] sm:$0xff] %vm19, 0.0
    %27 = vst.msk [vmem:[#allocation2 + $0x38] sm:$0xff] %vm19, 0.0
    %28 = vst.msk [vmem:[#allocation2 + $0x40] sm:$0xff] %vm19, 0.0
    %29 = vst.msk [vmem:[#allocation2 + $0x48] sm:$0xff] %vm19, 0.0
    %30 = vst.msk [vmem:[#allocation2 + $0x50] sm:$0xff] %vm19, 0.0
    %31 = vst.msk [vmem:[#allocation2 + $0x58] sm:$0xff] %vm19, 0.0
    %32 = vst.msk [vmem:[#allocation2 + $0x60] sm:$0xff] %vm19, 0.0
    %33 = vst.msk [vmem:[#allocation2 + $0x68] sm:$0xff] %vm19, 0.0
    %34 = vst.msk [vmem:[#allocation2 + $0x70] sm:$0xff] %vm19, 0.0
    %35 = vst.msk [vmem:[#allocation2 + $0x78] sm:$0xff] %vm19, 0.0
  $region17: #{bsq_vq_forward.24} parent=0 // pred_fallthru
    _
  %v36 = vld [vmem:[#allocation2] sm:$0xff]
  %v37 = vld [vmem:[#allocation2 + $0x8] sm:$0xff]
  %v38 = vld [vmem:[#allocation2 + $0x10] sm:$0xff]
  %v39 = vld [vmem:[#allocation2 + $0x18] sm:$0xff]
  %v40 = vld [vmem:[#allocation2 + $0x20] sm:$0xff]
  %v41 = vld [vmem:[#allocation2 + $0x28] sm:$0xff]
  %v42 = vld [vmem:[#allocation2 + $0x30] sm:$0xff]
  %v43 = vld [vmem:[#allocation2 + $0x38] sm:$0xff]
  %v44 = vld [vmem:[#allocation2 + $0x40] sm:$0xff]
  %v45 = vld [vmem:[#allocation2 + $0x48] sm:$0xff]
  %v46 = vld [vmem:[#allocation2 + $0x50] sm:$0xff]
  %v47 = vld [vmem:[#allocation2 + $0x58] sm:$0xff]
  %v48 = vld [vmem:[#allocation2 + $0x60] sm:$0xff]
  %v49 = vld [vmem:[#allocation2 + $0x68] sm:$0xff]
  %v50 = vld [vmem:[#allocation2 + $0x70] sm:$0xff]
  %v51 = vld [vmem:[#allocation2 + $0x78] sm:$0xff]
  %v52 = vld [vmem:[%s0] sm:$0xf]
  %v53 = vld [vmem:[%s0 + $0x4] sm:$0xf]
  %v54 = vld [vmem:[%s0 + $0x8] sm:$0xf]
  %v55 = vld [vmem:[%s0 + $0xc] sm:$0xf]
  %v56 = vld [vmem:[%s0 + $0x10] sm:$0xf]
  %v57 = vld [vmem:[%s0 + $0x14] sm:$0xf]
  %v58 = vld [vmem:[%s0 + $0x18] sm:$0xf]
  %v59 = vld [vmem:[%s0 + $0x1c] sm:$0xf]
  %v60 = vld [vmem:[%s0 + $0x20] sm:$0xf]
  %v61 = vld [vmem:[%s0 + $0x24] sm:$0xf]
  %v62 = vld [vmem:[%s0 + $0x28] sm:$0xf]
  %v63 = vld [vmem:[%s0 + $0x2c] sm:$0xf]
  %v64 = vld [vmem:[%s0 + $0x30] sm:$0xf]
  %v65 = vld [vmem:[%s0 + $0x34] sm:$0xf]
  %v66 = vld [vmem:[%s0 + $0x38] sm:$0xf]
  %v67 = vld [vmem:[%s0 + $0x3c] sm:$0xf]
  %v68 = vld [vmem:[%s1] sm:$0xf]
  %v69 = vld [vmem:[%s1 + $0x4] sm:$0x3]
  %v86 = vunpack.c.l.b16 %v52
  %v87 = vunpack.c.l.b16 %v53
  %v88 = vunpack.c.l.b16 %v54
  %v89 = vunpack.c.l.b16 %v55
  %v90 = vunpack.c.l.b16 %v56
  %v91 = vunpack.c.l.b16 %v57
  %v92 = vunpack.c.l.b16 %v58
  %v93 = vunpack.c.l.b16 %v59
  %v94 = vunpack.c.l.b16 %v60
  %v95 = vunpack.c.l.b16 %v61
  %v96 = vunpack.c.l.b16 %v62
  %v97 = vunpack.c.l.b16 %v63
  %v98 = vunpack.c.l.b16 %v64
  %v99 = vunpack.c.l.b16 %v65
  %v100 = vunpack.c.l.b16 %v66
  %v101 = vunpack.c.l.b16 %v67
  %v102 = vpack.c.b16 %v87, %v86
  %v103 = vpack.c.b16 %v89, %v88
  %v104 = vpack.c.b16 %v91, %v90
  %v105 = vpack.c.b16 %v93, %v92
  %v106 = vpack.c.b16 %v95, %v94
  %v107 = vpack.c.b16 %v97, %v96
  %v108 = vpack.c.b16 %v99, %v98
  %v109 = vpack.c.b16 %v101, %v100
  %v112 = vunpack.c.l.b16 %v68
  %v113 = vunpack.c.l.b16 %v69
  %v114 = vpack.c.b16 %v113, %v112
  %vm115 = vcmask 97280
  %v117 = vsel %vm115, %v102, 0
  %v120 = vsel %vm115, %v103, 0
  %v123 = vsel %vm115, %v104, 0
  %v126 = vsel %vm115, %v105, 0
  %v129 = vsel %vm115, %v106, 0
  %v132 = vsel %vm115, %v107, 0
  %v135 = vsel %vm115, %v108, 0
  %v138 = vsel %vm115, %v109, 0
  %vm140 = vcmask 1045504
  %v142 = vsel %vm140, %v114, 0
  %144 = vmatprep.subr.bf16.mxu0 0
  %145 = vmatpush1.bf16.msra.mxu0 %v142
  %146 = vmatprep.subr.bf16.mxu0 0
  %147 = vmatpush1.bf16.msra.mxu0 0
  %148 = vmatprep.subr.bf16.mxu0 0
  %149 = vmatpush1.bf16.msra.mxu0 0
  %150 = vmatprep.subr.bf16.mxu0 0
  %151 = vmatpush1.bf16.msra.mxu0 0
  %152 = vmatprep.subr.bf16.mxu0 0
  %153 = vmatpush1.bf16.msra.mxu0 0
  %154 = vmatprep.subr.bf16.mxu0 0
  %155 = vmatpush1.bf16.msra.mxu0 0
  %156 = vmatprep.subr.bf16.mxu0 0
  %157 = vmatpush1.bf16.msra.mxu0 0
  %158 = vmatprep.subr.bf16.mxu0 0
  %159 = vmatpush1.bf16.msra.mxu0 0
  %160 = vmatprep.subr.bf16.mxu0 0
  %161 = vmatpush1.bf16.msra.mxu0 0
  %162 = vmatprep.subr.bf16.mxu0 0
  %163 = vmatpush1.bf16.msra.mxu0 0
  %164 = vmatprep.subr.bf16.mxu0 0
  %165 = vmatpush1.bf16.msra.mxu0 0
  %166 = vmatprep.subr.bf16.mxu0 0
  %167 = vmatpush1.bf16.msra.mxu0 0
  %168 = vmatprep.subr.bf16.mxu0 0
  %169 = vmatpush1.bf16.msra.mxu0 0
  %170 = vmatprep.subr.bf16.mxu0 0
  %171 = vmatpush1.bf16.msra.mxu0 0
  %172 = vmatprep.subr.bf16.mxu0 0
  %173 = vmatpush1.bf16.msra.mxu0 0
  %174 = vmatprep.subr.bf16.mxu0 0
  %175 = vmatpush1.bf16.msra.mxu0 0
  %176 = vmatprep.mubr.bf16.mxu0 0
  %177 = vmatmul.mubr.bf16.gmra.mrb[0].mxu0 %v117
  %v178 = vpop.f32.mrb[0].mxu0
  %v179 = vadd.f32 0.0, %v178
  %v180 = vpop.f32.mrb[0].mxu0
  %v181 = vpop.f32.mrb[0].mxu0
  %v182 = vadd.f32 0.0, %v181
  %v183 = vpop.f32.mrb[0].mxu0
  %184 = vmatprep.mubr.bf16.mxu0 0
  %185 = vmatmul.mubr.bf16.gmra.mrb[0].mxu0 %v120
  %v186 = vpop.f32.mrb[0].mxu0
  %v187 = vadd.f32 0.0, %v186
  %v188 = vpop.f32.mrb[0].mxu0
  %v189 = vpop.f32.mrb[0].mxu0
  %v190 = vadd.f32 0.0, %v189
  %v191 = vpop.f32.mrb[0].mxu0
  %192 = vmatprep.mubr.bf16.mxu0 0
  %193 = vmatmul.mubr.bf16.gmra.mrb[0].mxu0 %v123
  %v194 = vpop.f32.mrb[0].mxu0
  %v195 = vadd.f32 0.0, %v194
  %v196 = vpop.f32.mrb[0].mxu0
  %v197 = vpop.f32.mrb[0].mxu0
  %v198 = vadd.f32 0.0, %v197
  %v199 = vpop.f32.mrb[0].mxu0
  %200 = vmatprep.mubr.bf16.mxu0 0
  %201 = vmatmul.mubr.bf16.gmra.mrb[0].mxu0 %v126
  %v202 = vpop.f32.mrb[0].mxu0
  %v203 = vadd.f32 0.0, %v202
  %v204 = vpop.f32.mrb[0].mxu0
  %v205 = vpop.f32.mrb[0].mxu0
  %v206 = vadd.f32 0.0, %v205
  %v207 = vpop.f32.mrb[0].mxu0
  %208 = vmatprep.mubr.bf16.mxu0 0
  %209 = vmatmul.mubr.bf16.gmra.mrb[0].mxu0 %v129
  %v210 = vpop.f32.mrb[0].mxu0
  %v211 = vadd.f32 0.0, %v210
  %v212 = vpop.f32.mrb[0].mxu0
  %v213 = vpop.f32.mrb[0].mxu0
  %v214 = vadd.f32 0.0, %v213
  %v215 = vpop.f32.mrb[0].mxu0
  %216 = vmatprep.mubr.bf16.mxu0 0
  %217 = vmatmul.mubr.bf16.gmra.mrb[0].mxu0 %v132
  %v218 = vpop.f32.mrb[0].mxu0
  %v219 = vadd.f32 0.0, %v218
  %v220 = vpop.f32.mrb[0].mxu0
  %v221 = vpop.f32.mrb[0].mxu0
  %v222 = vadd.f32 0.0, %v221
  %v223 = vpop.f32.mrb[0].mxu0
  %224 = vmatprep.mubr.bf16.mxu0 0
  %225 = vmatmul.mubr.bf16.gmra.mrb[0].mxu0 %v135
  %v226 = vpop.f32.mrb[0].mxu0
  %v227 = vadd.f32 0.0, %v226
  %v228 = vpop.f32.mrb[0].mxu0
  %v229 = vpop.f32.mrb[0].mxu0
  %v230 = vadd.f32 0.0, %v229
  %v231 = vpop.f32.mrb[0].mxu0
  %232 = vmatprep.mubr.bf16.mxu0 0
  %233 = vmatmul.mubr.bf16.gmra.mrb[0].mxu0 %v138
  %v234 = vpop.f32.mrb[0].mxu0
  %v235 = vadd.f32 0.0, %v234
  %v236 = vpop.f32.mrb[0].mxu0
  %v237 = vpop.f32.mrb[0].mxu0
  %v238 = vadd.f32 0.0, %v237
  %v239 = vpop.f32.mrb[0].mxu0
  %240 = vdwg.mxu0
  %v241 = vadd.f32 %v36, %v179
  %v242 = vadd.f32 %v37, %v182
  %v243 = vadd.f32 %v38, %v187
  %v244 = vadd.f32 %v39, %v190
  %v245 = vadd.f32 %v40, %v195
  %v246 = vadd.f32 %v41, %v198
  %v247 = vadd.f32 %v42, %v203
  %v248 = vadd.f32 %v43, %v206
  %v249 = vadd.f32 %v44, %v211
  %v250 = vadd.f32 %v45, %v214
  %v251 = vadd.f32 %v46, %v219
  %v252 = vadd.f32 %v47, %v222
  %v253 = vadd.f32 %v48, %v227
  %v254 = vadd.f32 %v49, %v230
  %v255 = vadd.f32 %v50, %v235
  %v256 = vadd.f32 %v51, %v238
  %vm257 = vcmask 130048
  %258 = vst.msk [vmem:[#allocation2] sm:$0xff] %vm257, %v241
  %259 = vst.msk [vmem:[#allocation2 + $0x8] sm:$0xff] %vm257, %v242
  %260 = vst.msk [vmem:[#allocation2 + $0x10] sm:$0xff] %vm257, %v243
  %261 = vst.msk [vmem:[#allocation2 + $0x18] sm:$0xff] %vm257, %v244
  %262 = vst.msk [vmem:[#allocation2 + $0x20] sm:$0xff] %vm257, %v245
  %263 = vst.msk [vmem:[#allocation2 + $0x28] sm:$0xff] %vm257, %v246
  %264 = vst.msk [vmem:[#allocation2 + $0x30] sm:$0xff] %vm257, %v247
  %265 = vst.msk [vmem:[#allocation2 + $0x38] sm:$0xff] %vm257, %v248
  %266 = vst.msk [vmem:[#allocation2 + $0x40] sm:$0xff] %vm257, %v249
  %267 = vst.msk [vmem:[#allocation2 + $0x48] sm:$0xff] %vm257, %v250
  %268 = vst.msk [vmem:[#allocation2 + $0x50] sm:$0xff] %vm257, %v251
  %269 = vst.msk [vmem:[#allocation2 + $0x58] sm:$0xff] %vm257, %v252
  %270 = vst.msk [vmem:[#allocation2 + $0x60] sm:$0xff] %vm257, %v253
  %271 = vst.msk [vmem:[#allocation2 + $0x68] sm:$0xff] %vm257, %v254
  %272 = vst.msk [vmem:[#allocation2 + $0x70] sm:$0xff] %vm257, %v255
  %273 = vst.msk [vmem:[#allocation2 + $0x78] sm:$0xff] %vm257, %v256
  // Predicated region
  $region18: #{bsq_vq_forward.24} parent=0 // pred_check
    %p274 = pneg %p15
  $region19: #{bsq_vq_forward.24} parent=0 // pred_check_branch
    %276 = sbr.rel (%p274) target = $region21
  $region20: #{bsq_vq_forward.24} parent=0 // pred_region
    %v277 = vld [vmem:[#allocation2] sm:$0xff]
    %v278 = vld [vmem:[#allocation2 + $0x8] sm:$0xff]
    %v279 = vld [vmem:[#allocation2 + $0x10] sm:$0xff]
    %v280 = vld [vmem:[#allocation2 + $0x18] sm:$0xff]
    %v281 = vld [vmem:[#allocation2 + $0x20] sm:$0xff]
    %v282 = vld [vmem:[#allocation2 + $0x28] sm:$0xff]
    %v283 = vld [vmem:[#allocation2 + $0x30] sm:$0xff]
    %v284 = vld [vmem:[#allocation2 + $0x38] sm:$0xff]
    %v285 = vld [vmem:[#allocation2 + $0x40] sm:$0xff]
    %v286 = vld [vmem:[#allocation2 + $0x48] sm:$0xff]
    %v287 = vld [vmem:[#allocation2 + $0x50] sm:$0xff]
    %v288 = vld [vmem:[#allocation2 + $0x58] sm:$0xff]
    %v289 = vld [vmem:[#allocation2 + $0x60] sm:$0xff]
    %v290 = vld [vmem:[#allocation2 + $0x68] sm:$0xff]
    %v291 = vld [vmem:[#allocation2 + $0x70] sm:$0xff]
    %v292 = vld [vmem:[#allocation2 + $0x78] sm:$0xff]
    %v293 = vld [vmem:[%s2] sm:$0x1]
    %v295 = vlaneseq
    %v296 = vshrl.u32 %v295, 7
    %v297 = vsub.s32 0, %v296
    %v298 = vrot.slane %v293, %v297
    %v300 = vadd.f32 %v277, %v298
    %v301 = vadd.f32 %v278, %v298
    %v302 = vadd.f32 %v279, %v298
    %v303 = vadd.f32 %v280, %v298
    %v304 = vadd.f32 %v281, %v298
    %v305 = vadd.f32 %v282, %v298
    %v306 = vadd.f32 %v283, %v298
    %v307 = vadd.f32 %v284, %v298
    %v308 = vadd.f32 %v285, %v298
    %v309 = vadd.f32 %v286, %v298
    %v310 = vadd.f32 %v287, %v298
    %v311 = vadd.f32 %v288, %v298
    %v312 = vadd.f32 %v289, %v298
    %v313 = vadd.f32 %v290, %v298
    %v314 = vadd.f32 %v291, %v298
    %v315 = vadd.f32 %v292, %v298
    %316 = vst.msk [vmem:[%s3] sm:$0xff] %vm257, %v300
    %317 = vst.msk [vmem:[%s3 + $0x8] sm:$0xff] %vm257, %v301
    %318 = vst.msk [vmem:[%s3 + $0x10] sm:$0xff] %vm257, %v302
    %319 = vst.msk [vmem:[%s3 + $0x18] sm:$0xff] %vm257, %v303
    %320 = vst.msk [vmem:[%s3 + $0x20] sm:$0xff] %vm257, %v304
    %321 = vst.msk [vmem:[%s3 + $0x28] sm:$0xff] %vm257, %v305
    %322 = vst.msk [vmem:[%s3 + $0x30] sm:$0xff] %vm257, %v306
    %323 = vst.msk [vmem:[%s3 + $0x38] sm:$0xff] %vm257, %v307
    %324 = vst.msk [vmem:[%s3 + $0x40] sm:$0xff] %vm257, %v308
    %325 = vst.msk [vmem:[%s3 + $0x48] sm:$0xff] %vm257, %v309
    %326 = vst.msk [vmem:[%s3 + $0x50] sm:$0xff] %vm257, %v310
    %327 = vst.msk [vmem:[%s3 + $0x58] sm:$0xff] %vm257, %v311
    %328 = vst.msk [vmem:[%s3 + $0x60] sm:$0xff] %vm257, %v312
    %329 = vst.msk [vmem:[%s3 + $0x68] sm:$0xff] %vm257, %v313
    %330 = vst.msk [vmem:[%s3 + $0x70] sm:$0xff] %vm257, %v314
    %331 = vst.msk [vmem:[%s3 + $0x78] sm:$0xff] %vm257, %v315
  $region21: #{bsq_vq_forward.24} parent=0 // pred_fallthru
    _
  // Predicated region
  $region22: #{bsq_vq_forward.24} parent=0 // pred_check
    _
  $region23: #{bsq_vq_forward.24} parent=0 // pred_check_branch
    %333 = sbr.rel (0) target = $region25
  $region24: #{bsq_vq_forward.24} parent=0 // pred_region
    _
  $region25: #{bsq_vq_forward.24} parent=0 // pred_fallthru
    _
  // Predicated region
  $region26: #{bsq_vq_forward.24} parent=0 // pred_check
    _
  $region27: #{bsq_vq_forward.24} parent=0 // pred_check_branch
    %335 = sbr.rel (0) target = $region29
  $region28: #{bsq_vq_forward.24} parent=0 // pred_region
    _
  $region29: #{bsq_vq_forward.24} parent=0 // pred_fallthru
    _

// kernel: bsq_vq_forward.28
$region0: #{bsq_vq_forward.28}
  #allocation0 [shape = 'u32[]', space=smem, size = 0x4, offset = 0x4, fixed_abs, tag = 'smem constant byte address 0x4 - core index']
  #allocation1 [shape = 'u32[144,128]{1,0:T(1,128)}', space=vmem, size = 0x12000, scoped, tag = 'internal scratch']
  %s0 = inlined_call_operand.vmem [shape: f32[16,128], index: 0, kind: input, shape index: {}]
  %s1 = inlined_call_operand.vmem [shape: f32[1,128], index: 1, kind: input, shape index: {}]
  %s2 = inlined_call_operand.vmem [shape: f32[1,128], index: 2, kind: input, shape index: {}]
  %s3 = inlined_call_operand.vmem [shape: f32[16,128], index: 3, kind: input, shape index: {}]
  %s4 = inlined_call_operand.vmem [shape: f32[16,128], index: 4, kind: output, shape index: {}]
  %s5 = sld [smem:[#allocation0]]
  $region26: #{bsq_vq_forward.28} parent=0
    _
  %s7 = ssub.s32 1, %s5
  %s8 = scalar_select 0, %s7, %s5
  // Predicated region
  $region2: #{bsq_vq_forward.28} parent=0 // pred_check
    _
  $region3: #{bsq_vq_forward.28} parent=0 // pred_check_branch
    %10 = sbr.rel (0) target = $region5
  $region4: #{bsq_vq_forward.28} parent=0 // pred_region
    _
  $region5: #{bsq_vq_forward.28} parent=0 // pred_fallthru
    _
  // Predicated region
  $region6: #{bsq_vq_forward.28} parent=0 // pred_check
    _
  $region7: #{bsq_vq_forward.28} parent=0 // pred_check_branch
    %12 = sbr.rel (0) target = $region9
  $region8: #{bsq_vq_forward.28} parent=0 // pred_region
    _
  $region9: #{bsq_vq_forward.28} parent=0 // pred_fallthru
    _
  // Predicated region
  $region10: #{bsq_vq_forward.28} parent=0 // pred_check
    _
  $region11: #{bsq_vq_forward.28} parent=0 // pred_check_branch
    %14 = sbr.rel (0) target = $region13
  $region12: #{bsq_vq_forward.28} parent=0 // pred_region
    _
  $region13: #{bsq_vq_forward.28} parent=0 // pred_fallthru
    _
  // Predicated region
  $region14: #{bsq_vq_forward.28} parent=0 // pred_check
    _
  $region15: #{bsq_vq_forward.28} parent=0 // pred_check_branch
    %16 = sbr.rel (0) target = $region17
  $region16: #{bsq_vq_forward.28} parent=0 // pred_region
    _
  $region17: #{bsq_vq_forward.28} parent=0 // pred_fallthru
    _
  %v17 = vld [vmem:[%s0] sm:$0xff]
  %v18 = vld [vmem:[%s0 + $0x8] sm:$0xff]
  %v19 = vld [vmem:[%s1] sm:$0x1]
  %v21 = vlaneseq
  %v22 = vshrl.u32 %v21, 7
  %v23 = vsub.s32 0, %v22
  %v24 = vrot.slane %v19, %v23
  %v26 = vmul.f32 %v17, %v24
  %v27 = vmul.f32 %v18, %v24
  %v28 = vld [vmem:[%s2] sm:$0x1]
  %v30 = vlaneseq
  %v31 = vshrl.u32 %v30, 7
  %v32 = vsub.s32 0, %v31
  %v33 = vrot.slane %v28, %v32
  %v35 = vadd.f32 %v26, %v33
  %v36 = vadd.f32 %v27, %v33
  %v37 = vld [vmem:[%s3] sm:$0xff]
  %v38 = vld [vmem:[%s3 + $0x8] sm:$0xff]
  %v39 = vadd.f32 %v35, %v37
  %v40 = vadd.f32 %v36, %v38
  %41 = vst [vmem:[%s4] sm:$0xff] %v39
  %42 = vst [vmem:[%s4 + $0x8] sm:$0xff] %v40
  // Predicated region
  $region18: #{bsq_vq_forward.28} parent=0 // pred_check
    _
  $region19: #{bsq_vq_forward.28} parent=0 // pred_check_branch
    %44 = sbr.rel (0) target = $region21
  $region20: #{bsq_vq_forward.28} parent=0 // pred_region
    _
  $region21: #{bsq_vq_forward.28} parent=0 // pred_fallthru
    _
  // Predicated region
  $region22: #{bsq_vq_forward.28} parent=0 // pred_check
    _
  $region23: #{bsq_vq_forward.28} parent=0 // pred_check_branch
    %46 = sbr.rel (0) target = $region25
  $region24: #{bsq_vq_forward.28} parent=0 // pred_region
    _
  $region25: #{bsq_vq_forward.28} parent=0 // pred_fallthru
    _

// kernel: tile.163
$region0: #{tile.163}
  #allocation0 [shape = 's32[1]{0}', space=sflag, size = 0x4, scoped, tag = 'scoped memory for tile.163']
  %s0 = inlined_call_operand.vmem [shape: f32[32], index: 0, kind: input, shape index: {}]
  %s1 = inlined_call_operand.vmem [shape: f32[4,32], index: 1, kind: output, shape index: {}]
  // Predicated region
  $region2: #{tile.163} parent=0 // pred_check
    _
  $region3: #{tile.163} parent=0 // pred_check_branch
    %3 = sbr.rel (0) target = $region5
  $region4: #{tile.163} parent=0 // pred_region
    _
  $region5: #{tile.163} parent=0 // pred_fallthru
    _
  %v4 = vld [vmem:[%s0] ss:$0 sm:$0xff]
  %5 = vst [vmem:[%s1] sm:$0xf] %v4

// kernel: tile.164
$region0: #{tile.164}
  %s0 = inlined_call_operand.vmem [shape: f32[4,32], index: 0, kind: input, shape index: {}]
  %s1 = inlined_call_operand.vmem [shape: f32[1,128], index: 1, kind: output, shape index: {}]
  $region1: #{tile.164} parent=0
    #allocation0 [shape = 'u8[4096]{0}', space=vmem, size = 0x1000, scoped, tag = 'scoped mem for output reshape']
    #allocation1 [shape = 'u8[4096]{0}', space=vmem, size = 0x1000, scoped, tag = 'scoped mem for input reshape']
    %s3 = sshllo.u32 0, 4
    %v4 = vld [vmem:[%s0] sm:%s3]
    %5 = vst [vmem:[#allocation1] sm:%s3] %v4
    %v6 = vld [vmem:[#allocation1] sm:$0x1]
    %vm7 = vcmask 261120
    %8 = vst.msk [vmem:[#allocation0] sm:$0x1] %vm7, %v6
    %s9 = scalar_lea.vmem [#allocation1], 3
    %v10 = vld [vmem:[%s9] sm:$0x1]
    %11 = vrot.lane.b32.xlu0 %v10, 96
    %v12 = vpop.permute.xlu0 %11
    %vm13 = vcmask 1048320
    %14 = vst.msk [vmem:[#allocation0] sm:$0x1] %vm13, %v12
    %s15 = scalar_lea.vmem [#allocation1], 2
    %v16 = vld [vmem:[%s15] sm:$0x1]
    %17 = vrot.lane.b32.xlu0 %v16, 64
    %v18 = vpop.permute.xlu0 %17
    %vm19 = vcmask 785920
    %20 = vst.msk [vmem:[#allocation0] sm:$0x1] %vm19, %v18
    %s21 = scalar_lea.vmem [#allocation1], 1
    %v22 = vld [vmem:[%s21] sm:$0x1]
    %23 = vrot.lane.b32.xlu0 %v22, 32
    %v24 = vpop.permute.xlu0 %23
    %vm25 = vcmask 523520
    %26 = vst.msk [vmem:[#allocation0] sm:$0x1] %vm25, %v24
    %s28 = sshllo.u32 0, 1
    %v30 = vld [vmem:[#allocation0] sm:%s28]
    %s31 = sshllo.u32 0, 1
    %32 = vst [vmem:[%s1] sm:%s31] %v30

// kernel: bsq_vq_forward.25
$region0: #{bsq_vq_forward.25}
  #allocation0 [shape = 'u32[]', space=smem, size = 0x4, offset = 0x4, fixed_abs, tag = 'smem constant byte address 0x4 - core index']
  #allocation1 [shape = 'u32[144,128]{1,0:T(1,128)}', space=vmem, size = 0x12000, scoped, tag = 'internal scratch']
  #allocation2 [shape = 'f32[128,16]{1,0:T(8,128)}', space=vmem, size = 0x10000, scoped, tag = 'scratch operand']
  %s0 = inlined_call_operand.vmem [shape: bf16[2,168,16], index: 0, kind: input, shape index: {}]
  %s1 = inlined_call_operand.vmem [shape: bf16[9,16,16], index: 1, kind: input, shape index: {}]
  %s2 = inlined_call_operand.vmem [shape: f32[1,16], index: 2, kind: input, shape index: {}]
  %s3 = inlined_call_operand.vmem [shape: f32[128,1], index: 3, kind: input, shape index: {}]
  %s4 = inlined_call_operand.vmem [shape: f32[2,128,16], index: 4, kind: output, shape index: {0}]
  %s5 = inlined_call_operand.vmem [shape: f32[2,1,16], index: 5, kind: output, shape index: {1}]
  %s6 = inlined_call_operand.vmem [shape: f32[2,1,16], index: 6, kind: output, shape index: {2}]
  %7 = xla_tuple %s4, %s5, %s6
  %s8 = sld [smem:[#allocation0]]
  $region65: #{bsq_vq_forward.25} parent=0
    _
  %s10 = ssub.s32 1, %s8
  %s11 = scalar_select 0, %s10, %s8
  loop: start=0, step=1, limit=4
  $region2: #{bsq_vq_forward.25} parent=0 // loop_pre_header
    _
  $region3: #{bsq_vq_forward.25} parent=0 // loop_header
    %s13 = sphi 0, %s17
    %p14 = scmp.ge.s32.totalorder %s13, 4
    %s23 = sphi 0, %s25
    %s26 = sphi 0, %s23
    %s27 = sphi 0, %s26
    %s43 = sphi 0, %s27
    %s47 = sphi 0, %s47
    %s49 = sphi 0, %s47
    %s50 = sphi 0, %s49
    %s64 = sphi 0, %s50
    %s68 = sphi 0, %s68
    %s70 = sphi 0, %s68
    %s71 = sphi 0, %s70
    %s85 = sphi 0, %s71
    %s89 = sphi 0, %s89
    %s91 = sphi 0, %s89
    %s92 = sphi 0, %s91
    %s106 = sphi 0, %s92
    %s112 = sphi 0, %s114
    %s115 = sphi 0, %s112
    %s116 = sphi 0, %s115
    %s132 = sphi 0, %s116
    %s138 = sphi 0, %s140
    %s141 = sphi 0, %s138
    %s142 = sphi 0, %s141
    %s158 = sphi 0, %s142
    %s164 = sphi 0, %s166
    %s167 = sphi 0, %s164
    %s168 = sphi 0, %s167
    %s184 = sphi 0, %s168
  $region4: #{bsq_vq_forward.25} parent=0 // loop_header_branch
    %16 = sbr.rel (%p14) target = $region8
  $region5: #{bsq_vq_forward.25} parent=0 // loop_body
    %s18 = ssub.s32 %s13, 1
    %s19 = ssub.s32 %s13, 2
    %s20 = sadd.s32 %s13, 1
    %s21 = ssub.s32 %s13, %s20
    %p22 = scmp.eq.s32.totalorder %s21, 0
    %s24 = sadd.s32 %s23, 1
    %s25 = scalar_select %p22, %s23, %s24
    %p28 = pneg %p22
    %p29 = scmp.eq.s32.totalorder %s13, 1
    %p30 = por %p28, %p29
    %p31 = scmp.ne.s32.totalorder %s23, %s26
    %p32 = scmp.eq.s32.totalorder %s13, 0
    %p33 = por %p31, %p32
    %p34 = scmp.ne.s32.totalorder %s23, %s26
    %p35 = scmp.eq.s32.totalorder %s18, 1
    %p36 = por %p34, %p35
    %p37 = scmp.ne.s32.totalorder %s26, %s27
    %p38 = scmp.eq.s32.totalorder %s18, 0
    %p39 = por %p37, %p38
    %p40 = scmp.ne.s32.totalorder %s26, %s27
    %p41 = scmp.eq.s32.totalorder %s19, 1
    %p42 = por %p40, %p41
    %p44 = scmp.ne.s32.totalorder %s27, %s43
    %p45 = scmp.eq.s32.totalorder %s19, 0
    %p46 = por %p44, %p45
    %s48 = sadd.s32 %s47, 1
    %p51 = scmp.eq.s32.totalorder %s13, 1
    %p52 = scmp.ne.s32.totalorder %s47, %s49
    %p53 = scmp.eq.s32.totalorder %s13, 0
    %p54 = por %p52, %p53
    %p55 = scmp.ne.s32.totalorder %s47, %s49
    %p56 = scmp.eq.s32.totalorder %s18, 1
    %p57 = por %p55, %p56
    %p58 = scmp.ne.s32.totalorder %s49, %s50
    %p59 = scmp.eq.s32.totalorder %s18, 0
    %p60 = por %p58, %p59
    %p61 = scmp.ne.s32.totalorder %s49, %s50
    %p62 = scmp.eq.s32.totalorder %s19, 1
    %p63 = por %p61, %p62
    %p65 = scmp.ne.s32.totalorder %s50, %s64
    %p66 = scmp.eq.s32.totalorder %s19, 0
    %p67 = por %p65, %p66
    %s69 = sadd.s32 %s68, 1
    %p72 = scmp.eq.s32.totalorder %s13, 1
    %p73 = scmp.ne.s32.totalorder %s68, %s70
    %p74 = scmp.eq.s32.totalorder %s13, 0
    %p75 = por %p73, %p74
    %p76 = scmp.ne.s32.totalorder %s68, %s70
    %p77 = scmp.eq.s32.totalorder %s18, 1
    %p78 = por %p76, %p77
    %p79 = scmp.ne.s32.totalorder %s70, %s71
    %p80 = scmp.eq.s32.totalorder %s18, 0
    %p81 = por %p79, %p80
    %p82 = scmp.ne.s32.totalorder %s70, %s71
    %p83 = scmp.eq.s32.totalorder %s19, 1
    %p84 = por %p82, %p83
    %p86 = scmp.ne.s32.totalorder %s71, %s85
    %p87 = scmp.eq.s32.totalorder %s19, 0
    %p88 = por %p86, %p87
    %s90 = sadd.s32 %s89, 1
    %p93 = scmp.eq.s32.totalorder %s13, 1
    %p94 = scmp.ne.s32.totalorder %s89, %s91
    %p95 = scmp.eq.s32.totalorder %s13, 0
    %p96 = por %p94, %p95
    %p97 = scmp.ne.s32.totalorder %s89, %s91
    %p98 = scmp.eq.s32.totalorder %s18, 1
    %p99 = por %p97, %p98
    %p100 = scmp.ne.s32.totalorder %s91, %s92
    %p101 = scmp.eq.s32.totalorder %s18, 0
    %p102 = por %p100, %p101
    %p103 = scmp.ne.s32.totalorder %s91, %s92
    %p104 = scmp.eq.s32.totalorder %s19, 1
    %p105 = por %p103, %p104
    %p107 = scmp.ne.s32.totalorder %s92, %s106
    %p108 = scmp.eq.s32.totalorder %s19, 0
    %p109 = por %p107, %p108
    %s110 = ssub.s32 %s13, %s20
    %p111 = scmp.eq.s32.totalorder %s110, 0
    %s113 = sadd.s32 %s112, 1
    %s114 = scalar_select %p111, %s112, %s113
    %p117 = pneg %p111
    %p118 = scmp.eq.s32.totalorder %s13, 1
    %p119 = por %p117, %p118
    %p120 = scmp.ne.s32.totalorder %s112, %s115
    %p121 = scmp.eq.s32.totalorder %s13, 0
    %p122 = por %p120, %p121
    %p123 = scmp.ne.s32.totalorder %s112, %s115
    %p124 = scmp.eq.s32.totalorder %s18, 1
    %p125 = por %p123, %p124
    %p126 = scmp.ne.s32.totalorder %s115, %s116
    %p127 = scmp.eq.s32.totalorder %s18, 0
    %p128 = por %p126, %p127
    %p129 = scmp.ne.s32.totalorder %s115, %s116
    %p130 = scmp.eq.s32.totalorder %s19, 1
    %p131 = por %p129, %p130
    %p133 = scmp.ne.s32.totalorder %s116, %s132
    %p134 = scmp.eq.s32.totalorder %s19, 0
    %p135 = por %p133, %p134
    %s136 = ssub.s32 %s13, %s20
    %p137 = scmp.eq.s32.totalorder %s136, 0
    %s139 = sadd.s32 %s138, 1
    %s140 = scalar_select %p137, %s138, %s139
    %p143 = pneg %p137
    %p144 = scmp.eq.s32.totalorder %s13, 1
    %p145 = por %p143, %p144
    %p146 = scmp.ne.s32.totalorder %s138, %s141
    %p147 = scmp.eq.s32.totalorder %s13, 0
    %p148 = por %p146, %p147
    %p149 = scmp.ne.s32.totalorder %s138, %s141
    %p150 = scmp.eq.s32.totalorder %s18, 1
    %p151 = por %p149, %p150
    %p152 = scmp.ne.s32.totalorder %s141, %s142
    %p153 = scmp.eq.s32.totalorder %s18, 0
    %p154 = por %p152, %p153
    %p155 = scmp.ne.s32.totalorder %s141, %s142
    %p156 = scmp.eq.s32.totalorder %s19, 1
    %p157 = por %p155, %p156
    %p159 = scmp.ne.s32.totalorder %s142, %s158
    %p160 = scmp.eq.s32.totalorder %s19, 0
    %p161 = por %p159, %p160
    %s162 = ssub.s32 %s13, %s20
    %p163 = scmp.eq.s32.totalorder %s162, 0
    %s165 = sadd.s32 %s164, 1
    %s166 = scalar_select %p163, %s164, %s165
    %p169 = pneg %p163
    %p170 = scmp.eq.s32.totalorder %s13, 1
    %p171 = por %p169, %p170
    %p172 = scmp.ne.s32.totalorder %s164, %s167
    %p173 = scmp.eq.s32.totalorder %s13, 0
    %p174 = por %p172, %p173
    %p175 = scmp.ne.s32.totalorder %s164, %s167
    %p176 = scmp.eq.s32.totalorder %s18, 1
    %p177 = por %p175, %p176
    %p178 = scmp.ne.s32.totalorder %s167, %s168
    %p179 = scmp.eq.s32.totalorder %s18, 0
    %p180 = por %p178, %p179
    %p181 = scmp.ne.s32.totalorder %s167, %s168
    %p182 = scmp.eq.s32.totalorder %s19, 1
    %p183 = por %p181, %p182
    %p185 = scmp.ne.s32.totalorder %s168, %s184
    %p186 = scmp.eq.s32.totalorder %s19, 0
    %p187 = por %p185, %p186
    %p188 = scmp.le.s32.totalorder 1, %s13
    %p189 = scmp.lt.s32.totalorder %s13, 3
    %p190 = pnand %p188, %p189
    %p191 = pneg %p190
    // Predicated region
    $region9: #{bsq_vq_forward.25} parent=5 // pred_check
      _
    $region10: #{bsq_vq_forward.25} parent=5 // pred_check_branch
      %193 = sbr.rel (%p190) target = $region12
    $region11: #{bsq_vq_forward.25} parent=5 // pred_region
      %s194 = ssub.s32 %s13, 1
      // Predicated region
      $region13: #{bsq_vq_forward.25} parent=11 // pred_check
        %p195 = pneg %p60
      $region14: #{bsq_vq_forward.25} parent=11 // pred_check_branch
        %197 = sbr.rel (%p195) target = $region16
      $region15: #{bsq_vq_forward.25} parent=11 // pred_region
        _
      $region16: #{bsq_vq_forward.25} parent=11 // pred_fallthru
        _
      // Predicated region
      $region17: #{bsq_vq_forward.25} parent=11 // pred_check
        %p198 = pneg %p81
      $region18: #{bsq_vq_forward.25} parent=11 // pred_check_branch
        %200 = sbr.rel (%p198) target = $region20
      $region19: #{bsq_vq_forward.25} parent=11 // pred_region
        _
      $region20: #{bsq_vq_forward.25} parent=11 // pred_fallthru
        _
      // Predicated region
      $region21: #{bsq_vq_forward.25} parent=11 // pred_check
        %p201 = pneg %p102
      $region22: #{bsq_vq_forward.25} parent=11 // pred_check_branch
        %203 = sbr.rel (%p201) target = $region24
      $region23: #{bsq_vq_forward.25} parent=11 // pred_region
        _
      $region24: #{bsq_vq_forward.25} parent=11 // pred_fallthru
        _
    $region12: #{bsq_vq_forward.25} parent=5 // pred_fallthru
      _
    %p204 = scmp.lt.s32.totalorder %s13, 2
    // Predicated region
    $region25: #{bsq_vq_forward.25} parent=5 // pred_check
      %p205 = pneg %p204
    $region26: #{bsq_vq_forward.25} parent=5 // pred_check_branch
      %207 = sbr.rel (%p205) target = $region28
    $region27: #{bsq_vq_forward.25} parent=5 // pred_region
      // Predicated region
      $region29: #{bsq_vq_forward.25} parent=27 // pred_check
        %p208 = pneg %p33
      $region30: #{bsq_vq_forward.25} parent=27 // pred_check_branch
        %210 = sbr.rel (%p208) target = $region32
      $region31: #{bsq_vq_forward.25} parent=27 // pred_region
        %p211 = scmp.lt.s32.totalorder %s13, 1
        %s212 = scalar_select %p211, %s13, 1
        %s213 = smul.addr %s212, 21
        %s214 = smul.addr %s213, 4
        %s215 = scalar_lea.vmem %s0, %s214
      $region32: #{bsq_vq_forward.25} parent=27 // pred_fallthru
        _
    $region28: #{bsq_vq_forward.25} parent=5 // pred_fallthru
      _
    %p216 = scmp.le.s32.totalorder 1, %s13
    %p217 = scmp.lt.s32.totalorder %s13, 3
    %p218 = pnand %p216, %p217
    %p219 = pneg %p218
    // Predicated region
    $region33: #{bsq_vq_forward.25} parent=5 // pred_check
      _
    $region34: #{bsq_vq_forward.25} parent=5 // pred_check_branch
      %221 = sbr.rel (%p218) target = $region36
    $region35: #{bsq_vq_forward.25} parent=5 // pred_region
      %s222 = ssub.s32 %s13, 1
      %p223 = scmp.lt.s32.totalorder %s18, 1
      %s224 = scalar_select %p223, %s18, 1
      %s225 = smul.addr %s224, 21
      %s226 = smul.addr %s225, 4
      %s227 = scalar_lea.vmem %s0, %s226
      %p228 = pneg %p39
      %p229 = pneg %p36
      %p230 = pneg %p60
      %p231 = pneg %p57
      %p232 = pneg %p81
      %p233 = pneg %p78
      %p234 = pneg %p102
      %p235 = pneg %p99
      %p236 = pneg %p128
      %p237 = pneg %p125
      %p238 = scmp.lt.s32.totalorder %s18, 1
      %s239 = scalar_select %p238, %s18, 1
      %s240 = smul.addr %s239, 16
      %s241 = smul.addr %s240, 8
      %s242 = scalar_lea.vmem %s4, %s241
      %p243 = pneg %p154
      %p244 = pneg %p151
      %p245 = scmp.lt.s32.totalorder %s18, 1
      %s246 = scalar_select %p245, %s18, 1
      %s247 = scalar_lea.vmem %s5, %s246
      %p248 = pneg %p180
      %p249 = pneg %p177
      %p250 = scmp.lt.s32.totalorder %s18, 1
      %s251 = scalar_select %p250, %s18, 1
      %s252 = scalar_lea.vmem %s6, %s251
      %p253 = scmp.lt.s32.totalorder %s18, 1
      %s254 = scalar_select %p253, %s18, 1
      %s255 = smul.addr %s254, 21
      %s256 = smul.addr %s255, 4
      %s257 = scalar_lea.vmem %s0, %s256
      %p258 = scmp.lt.s32.totalorder %s18, 1
      %s259 = scalar_select %p258, %s18, 1
      %s260 = smul.addr %s259, 16
      %s261 = smul.addr %s260, 8
      %s262 = scalar_lea.vmem %s4, %s261
      %p263 = scmp.lt.s32.totalorder %s18, 1
      %s264 = scalar_select %p263, %s18, 1
      %s265 = scalar_lea.vmem %s5, %s264
      %p266 = scmp.lt.s32.totalorder %s18, 1
      %s267 = scalar_select %p266, %s18, 1
      %s268 = scalar_lea.vmem %s6, %s267
      %vm270 = vcmask 130048
      %271 = vst.msk [vmem:[#allocation2] sm:$0xff] %vm270, 0.0
      %272 = vst.msk [vmem:[#allocation2 + $0x8] sm:$0xff] %vm270, 0.0
      %273 = vst.msk [vmem:[#allocation2 + $0x10] sm:$0xff] %vm270, 0.0
      %274 = vst.msk [vmem:[#allocation2 + $0x18] sm:$0xff] %vm270, 0.0
      %275 = vst.msk [vmem:[#allocation2 + $0x20] sm:$0xff] %vm270, 0.0
      %276 = vst.msk [vmem:[#allocation2 + $0x28] sm:$0xff] %vm270, 0.0
      %277 = vst.msk [vmem:[#allocation2 + $0x30] sm:$0xff] %vm270, 0.0
      %278 = vst.msk [vmem:[#allocation2 + $0x38] sm:$0xff] %vm270, 0.0
      %279 = vst.msk [vmem:[#allocation2 + $0x40] sm:$0xff] %vm270, 0.0
      %280 = vst.msk [vmem:[#allocation2 + $0x48] sm:$0xff] %vm270, 0.0
      %281 = vst.msk [vmem:[#allocation2 + $0x50] sm:$0xff] %vm270, 0.0
      %282 = vst.msk [vmem:[#allocation2 + $0x58] sm:$0xff] %vm270, 0.0
      %283 = vst.msk [vmem:[#allocation2 + $0x60] sm:$0xff] %vm270, 0.0
      %284 = vst.msk [vmem:[#allocation2 + $0x68] sm:$0xff] %vm270, 0.0
      %285 = vst.msk [vmem:[#allocation2 + $0x70] sm:$0xff] %vm270, 0.0
      %286 = vst.msk [vmem:[#allocation2 + $0x78] sm:$0xff] %vm270, 0.0
      %v287 = vld [vmem:[%s257] sm:$0xf]
      %v288 = vld [vmem:[%s257 + $0x4] sm:$0xf]
      %v289 = vld [vmem:[%s257 + $0x8] sm:$0xf]
      %v290 = vld [vmem:[%s257 + $0xc] sm:$0xf]
      %v291 = vld [vmem:[%s257 + $0x10] sm:$0xf]
      %v292 = vld [vmem:[%s257 + $0x14] sm:$0xf]
      %v293 = vld [vmem:[%s257 + $0x18] sm:$0xf]
      %v294 = vld [vmem:[%s257 + $0x1c] sm:$0xf]
      %v295 = vld [vmem:[%s257 + $0x20] sm:$0xf]
      %v296 = vld [vmem:[%s257 + $0x24] sm:$0xf]
      %v297 = vld [vmem:[%s257 + $0x28] sm:$0xf]
      %v298 = vld [vmem:[%s257 + $0x2c] sm:$0xf]
      %v299 = vld [vmem:[%s257 + $0x30] sm:$0xf]
      %v300 = vld [vmem:[%s257 + $0x34] sm:$0xf]
      %v301 = vld [vmem:[%s257 + $0x38] sm:$0xf]
      %v302 = vld [vmem:[%s257 + $0x3c] sm:$0xf]
      %v303 = vld [vmem:[%s257 + $0x40] sm:$0xf]
      %v304 = vld [vmem:[%s257 + $0x44] sm:$0xf]
      %v305 = vld [vmem:[%s257 + $0x48] sm:$0xf]
      %v306 = vld [vmem:[%s257 + $0x4c] sm:$0xf]
      %v307 = vld [vmem:[#allocation2] sm:$0xff]
      %v308 = vld [vmem:[#allocation2 + $0x8] sm:$0xff]
      %v309 = vld [vmem:[#allocation2 + $0x10] sm:$0xff]
      %v310 = vld [vmem:[#allocation2 + $0x18] sm:$0xff]
      %v311 = vld [vmem:[#allocation2 + $0x20] sm:$0xff]
      %v312 = vld [vmem:[#allocation2 + $0x28] sm:$0xff]
      %v313 = vld [vmem:[#allocation2 + $0x30] sm:$0xff]
      %v314 = vld [vmem:[#allocation2 + $0x38] sm:$0xff]
      %v315 = vld [vmem:[#allocation2 + $0x40] sm:$0xff]
      %v316 = vld [vmem:[#allocation2 + $0x48] sm:$0xff]
      %v317 = vld [vmem:[#allocation2 + $0x50] sm:$0xff]
      %v318 = vld [vmem:[#allocation2 + $0x58] sm:$0xff]
      %v319 = vld [vmem:[#allocation2 + $0x60] sm:$0xff]
      %v320 = vld [vmem:[#allocation2 + $0x68] sm:$0xff]
      %v321 = vld [vmem:[#allocation2 + $0x70] sm:$0xff]
      %v322 = vld [vmem:[#allocation2 + $0x78] sm:$0xff]
      %v323 = vld [vmem:[%s1] sm:$0xf]
      %v324 = vld [vmem:[%s1 + $0x4] sm:$0xf]
      %v341 = vunpack.c.l.b16 %v287
      %v342 = vunpack.c.l.b16 %v288
      %v343 = vunpack.c.l.b16 %v289
      %v344 = vunpack.c.l.b16 %v290
      %v345 = vunpack.c.l.b16 %v291
      %v346 = vunpack.c.l.b16 %v292
      %v347 = vunpack.c.l.b16 %v293
      %v348 = vunpack.c.l.b16 %v294
      %v349 = vunpack.c.l.b16 %v295
      %v350 = vunpack.c.l.b16 %v296
      %v351 = vunpack.c.l.b16 %v297
      %v352 = vunpack.c.l.b16 %v298
      %v353 = vunpack.c.l.b16 %v299
      %v354 = vunpack.c.l.b16 %v300
      %v355 = vunpack.c.l.b16 %v301
      %v356 = vunpack.c.l.b16 %v302
      %v357 = vpack.c.b16 %v342, %v341
      %v358 = vpack.c.b16 %v344, %v343
      %v359 = vpack.c.b16 %v346, %v345
      %v360 = vpack.c.b16 %v348, %v347
      %v361 = vpack.c.b16 %v350, %v349
      %v362 = vpack.c.b16 %v352, %v351
      %v363 = vpack.c.b16 %v354, %v353
      %v364 = vpack.c.b16 %v356, %v355
      %v367 = vunpack.c.l.b16 %v323
      %v368 = vunpack.c.l.b16 %v324
      %v369 = vpack.c.b16 %v368, %v367
      %v372 = vsel %vm270, %v357, 0
      %v375 = vsel %vm270, %v358, 0
      %v378 = vsel %vm270, %v359, 0
      %v381 = vsel %vm270, %v360, 0
      %v384 = vsel %vm270, %v361, 0
      %v387 = vsel %vm270, %v362, 0
      %v390 = vsel %vm270, %v363, 0
      %v393 = vsel %vm270, %v364, 0
      %395 = vmatprep.subr.bf16.mxu0 0
      %396 = vmatpush1.bf16.msra.mxu0 %v369
      %397 = vmatprep.subr.bf16.mxu0 0
      %398 = vmatpush1.bf16.msra.mxu0 0
      %399 = vmatprep.subr.bf16.mxu0 0
      %400 = vmatpush1.bf16.msra.mxu0 0
      %401 = vmatprep.subr.bf16.mxu0 0
      %402 = vmatpush1.bf16.msra.mxu0 0
      %403 = vmatprep.subr.bf16.mxu0 0
      %404 = vmatpush1.bf16.msra.mxu0 0
      %405 = vmatprep.subr.bf16.mxu0 0
      %406 = vmatpush1.bf16.msra.mxu0 0
      %407 = vmatprep.subr.bf16.mxu0 0
      %408 = vmatpush1.bf16.msra.mxu0 0
      %409 = vmatprep.subr.bf16.mxu0 0
      %410 = vmatpush1.bf16.msra.mxu0 0
      %411 = vmatprep.subr.bf16.mxu0 0
      %412 = vmatpush1.bf16.msra.mxu0 0
      %413 = vmatprep.subr.bf16.mxu0 0
      %414 = vmatpush1.bf16.msra.mxu0 0
      %415 = vmatprep.subr.bf16.mxu0 0
      %416 = vmatpush1.bf16.msra.mxu0 0
      %417 = vmatprep.subr.bf16.mxu0 0
      %418 = vmatpush1.bf16.msra.mxu0 0
      %419 = vmatprep.subr.bf16.mxu0 0
      %420 = vmatpush1.bf16.msra.mxu0 0
      %421 = vmatprep.subr.bf16.mxu0 0
      %422 = vmatpush1.bf16.msra.mxu0 0
      %423 = vmatprep.subr.bf16.mxu0 0
      %424 = vmatpush1.bf16.msra.mxu0 0
      %425 = vmatprep.subr.bf16.mxu0 0
      %426 = vmatpush1.bf16.msra.mxu0 0
      %427 = vmatprep.mubr.bf16.mxu0 0
      %428 = vmatmul.mubr.bf16.gmra.mrb[0].mxu0 %v372
      %v429 = vpop.f32.mrb[0].mxu0
      %v430 = vadd.f32 0.0, %v429
      %v431 = vpop.f32.mrb[0].mxu0
      %v432 = vpop.f32.mrb[0].mxu0
      %v433 = vadd.f32 0.0, %v432
      %v434 = vpop.f32.mrb[0].mxu0
      %435 = vmatprep.mubr.bf16.mxu0 0
      %436 = vmatmul.mubr.bf16.gmra.mrb[0].mxu0 %v375
      %v437 = vpop.f32.mrb[0].mxu0
      %v438 = vadd.f32 0.0, %v437
      %v439 = vpop.f32.mrb[0].mxu0
      %v440 = vpop.f32.mrb[0].mxu0
      %v441 = vadd.f32 0.0, %v440
      %v442 = vpop.f32.mrb[0].mxu0
      %443 = vmatprep.mubr.bf16.mxu0 0
      %444 = vmatmul.mubr.bf16.gmra.mrb[0].mxu0 %v378
      %v445 = vpop.f32.mrb[0].mxu0
      %v446 = vadd.f32 0.0, %v445
      %v447 = vpop.f32.mrb[0].mxu0
      %v448 = vpop.f32.mrb[0].mxu0
      %v449 = vadd.f32 0.0, %v448
      %v450 = vpop.f32.mrb[0].mxu0
      %451 = vmatprep.mubr.bf16.mxu0 0
      %452 = vmatmul.mubr.bf16.gmra.mrb[0].mxu0 %v381
      %v453 = vpop.f32.mrb[0].mxu0
      %v454 = vadd.f32 0.0, %v453
      %v455 = vpop.f32.mrb[0].mxu0
      %v456 = vpop.f32.mrb[0].mxu0
      %v457 = vadd.f32 0.0, %v456
      %v458 = vpop.f32.mrb[0].mxu0
      %459 = vmatprep.mubr.bf16.mxu0 0
      %460 = vmatmul.mubr.bf16.gmra.mrb[0].mxu0 %v384
      %v461 = vpop.f32.mrb[0].mxu0
      %v462 = vadd.f32 0.0, %v461
      %v463 = vpop.f32.mrb[0].mxu0
      %v464 = vpop.f32.mrb[0].mxu0
      %v465 = vadd.f32 0.0, %v464
      %v466 = vpop.f32.mrb[0].mxu0
      %467 = vmatprep.mubr.bf16.mxu0 0
      %468 = vmatmul.mubr.bf16.gmra.mrb[0].mxu0 %v387
      %v469 = vpop.f32.mrb[0].mxu0
      %v470 = vadd.f32 0.0, %v469
      %v471 = vpop.f32.mrb[0].mxu0
      %v472 = vpop.f32.mrb[0].mxu0
      %v473 = vadd.f32 0.0, %v472
      %v474 = vpop.f32.mrb[0].mxu0
      %475 = vmatprep.mubr.bf16.mxu0 0
      %476 = vmatmul.mubr.bf16.gmra.mrb[0].mxu0 %v390
      %v477 = vpop.f32.mrb[0].mxu0
      %v478 = vadd.f32 0.0, %v477
      %v479 = vpop.f32.mrb[0].mxu0
      %v480 = vpop.f32.mrb[0].mxu0
      %v481 = vadd.f32 0.0, %v480
      %v482 = vpop.f32.mrb[0].mxu0
      %483 = vmatprep.mubr.bf16.mxu0 0
      %484 = vmatmul.mubr.bf16.gmra.mrb[0].mxu0 %v393
      %v485 = vpop.f32.mrb[0].mxu0
      %v486 = vadd.f32 0.0, %v485
      %v487 = vpop.f32.mrb[0].mxu0
      %v488 = vpop.f32.mrb[0].mxu0
      %v489 = vadd.f32 0.0, %v488
      %v490 = vpop.f32.mrb[0].mxu0
      %491 = vdwg.mxu0
      %v492 = vadd.f32 %v307, %v430
      %v493 = vadd.f32 %v308, %v433
      %v494 = vadd.f32 %v309, %v438
      %v495 = vadd.f32 %v310, %v441
      %v496 = vadd.f32 %v311, %v446
      %v497 = vadd.f32 %v312, %v449
      %v498 = vadd.f32 %v313, %v454
      %v499 = vadd.f32 %v314, %v457
      %v500 = vadd.f32 %v315, %v462
      %v501 = vadd.f32 %v316, %v465
      %v502 = vadd.f32 %v317, %v470
      %v503 = vadd.f32 %v318, %v473
      %v504 = vadd.f32 %v319, %v478
      %v505 = vadd.f32 %v320, %v481
      %v506 = vadd.f32 %v321, %v486
      %v507 = vadd.f32 %v322, %v489
      %508 = vst.msk [vmem:[#allocation2] sm:$0xff] %vm270, %v492
      %509 = vst.msk [vmem:[#allocation2 + $0x8] sm:$0xff] %vm270, %v493
      %510 = vst.msk [vmem:[#allocation2 + $0x10] sm:$0xff] %vm270, %v494
      %511 = vst.msk [vmem:[#allocation2 + $0x18] sm:$0xff] %vm270, %v495
      %512 = vst.msk [vmem:[#allocation2 + $0x20] sm:$0xff] %vm270, %v496
      %513 = vst.msk [vmem:[#allocation2 + $0x28] sm:$0xff] %vm270, %v497
      %514 = vst.msk [vmem:[#allocation2 + $0x30] sm:$0xff] %vm270, %v498
      %515 = vst.msk [vmem:[#allocation2 + $0x38] sm:$0xff] %vm270, %v499
      %516 = vst.msk [vmem:[#allocation2 + $0x40] sm:$0xff] %vm270, %v500
      %517 = vst.msk [vmem:[#allocation2 + $0x48] sm:$0xff] %vm270, %v501
      %518 = vst.msk [vmem:[#allocation2 + $0x50] sm:$0xff] %vm270, %v502
      %519 = vst.msk [vmem:[#allocation2 + $0x58] sm:$0xff] %vm270, %v503
      %520 = vst.msk [vmem:[#allocation2 + $0x60] sm:$0xff] %vm270, %v504
      %521 = vst.msk [vmem:[#allocation2 + $0x68] sm:$0xff] %vm270, %v505
      %522 = vst.msk [vmem:[#allocation2 + $0x70] sm:$0xff] %vm270, %v506
      %523 = vst.msk [vmem:[#allocation2 + $0x78] sm:$0xff] %vm270, %v507
      %v524 = vld [vmem:[#allocation2] sm:$0xff]
      %v525 = vld [vmem:[#allocation2 + $0x8] sm:$0xff]
      %v526 = vld [vmem:[#allocation2 + $0x10] sm:$0xff]
      %v527 = vld [vmem:[#allocation2 + $0x18] sm:$0xff]
      %v528 = vld [vmem:[#allocation2 + $0x20] sm:$0xff]
      %v529 = vld [vmem:[#allocation2 + $0x28] sm:$0xff]
      %v530 = vld [vmem:[#allocation2 + $0x30] sm:$0xff]
      %v531 = vld [vmem:[#allocation2 + $0x38] sm:$0xff]
      %v532 = vld [vmem:[#allocation2 + $0x40] sm:$0xff]
      %v533 = vld [vmem:[#allocation2 + $0x48] sm:$0xff]
      %v534 = vld [vmem:[#allocation2 + $0x50] sm:$0xff]
      %v535 = vld [vmem:[#allocation2 + $0x58] sm:$0xff]
      %v536 = vld [vmem:[#allocation2 + $0x60] sm:$0xff]
      %v537 = vld [vmem:[#allocation2 + $0x68] sm:$0xff]
      %v538 = vld [vmem:[#allocation2 + $0x70] sm:$0xff]
      %v539 = vld [vmem:[#allocation2 + $0x78] sm:$0xff]
      %s540 = scalar_lea.vmem %s1, 24
      %v541 = vld [vmem:[%s540] sm:$0xf]
      %v542 = vld [vmem:[%s540 + $0x4] sm:$0xf]
      %v545 = vunpack.c.l.b16 %v303
      %v546 = vunpack.c.l.b16 %v304
      %v547 = vpack.c.b16 %v546, %v545
      %v550 = vunpack.c.l.b16 %v541
      %v551 = vunpack.c.l.b16 %v542
      %v552 = vpack.c.b16 %v551, %v550
      %v555 = vsel %vm270, %v547, 0
      %557 = vmatprep.subr.bf16.mxu0 0
      %558 = vmatpush1.bf16.msra.mxu0 %v552
      %559 = vmatprep.subr.bf16.mxu0 0
      %560 = vmatpush1.bf16.msra.mxu0 0
      %561 = vmatprep.subr.bf16.mxu0 0
      %562 = vmatpush1.bf16.msra.mxu0 0
      %563 = vmatprep.subr.bf16.mxu0 0
      %564 = vmatpush1.bf16.msra.mxu0 0
      %565 = vmatprep.subr.bf16.mxu0 0
      %566 = vmatpush1.bf16.msra.mxu0 0
      %567 = vmatprep.subr.bf16.mxu0 0
      %568 = vmatpush1.bf16.msra.mxu0 0
      %569 = vmatprep.subr.bf16.mxu0 0
      %570 = vmatpush1.bf16.msra.mxu0 0
      %571 = vmatprep.subr.bf16.mxu0 0
      %572 = vmatpush1.bf16.msra.mxu0 0
      %573 = vmatprep.subr.bf16.mxu0 0
      %574 = vmatpush1.bf16.msra.mxu0 0
      %575 = vmatprep.subr.bf16.mxu0 0
      %576 = vmatpush1.bf16.msra.mxu0 0
      %577 = vmatprep.subr.bf16.mxu0 0
      %578 = vmatpush1.bf16.msra.mxu0 0
      %579 = vmatprep.subr.bf16.mxu0 0
      %580 = vmatpush1.bf16.msra.mxu0 0
      %581 = vmatprep.subr.bf16.mxu0 0
      %582 = vmatpush1.bf16.msra.mxu0 0
      %583 = vmatprep.subr.bf16.mxu0 0
      %584 = vmatpush1.bf16.msra.mxu0 0
      %585 = vmatprep.subr.bf16.mxu0 0
      %586 = vmatpush1.bf16.msra.mxu0 0
      %587 = vmatprep.subr.bf16.mxu0 0
      %588 = vmatpush1.bf16.msra.mxu0 0
      %589 = vmatprep.mubr.bf16.mxu0 0
      %590 = vmatmul.mubr.bf16.gmra.mrb[0].mxu0 %v375
      %v591 = vpop.f32.mrb[0].mxu0
      %v592 = vadd.f32 0.0, %v591
      %v593 = vpop.f32.mrb[0].mxu0
      %v594 = vpop.f32.mrb[0].mxu0
      %v595 = vadd.f32 0.0, %v594
      %v596 = vpop.f32.mrb[0].mxu0
      %597 = vmatprep.mubr.bf16.mxu0 0
      %598 = vmatmul.mubr.bf16.gmra.mrb[0].mxu0 %v378
      %v599 = vpop.f32.mrb[0].mxu0
      %v600 = vadd.f32 0.0, %v599
      %v601 = vpop.f32.mrb[0].mxu0
      %v602 = vpop.f32.mrb[0].mxu0
      %v603 = vadd.f32 0.0, %v602
      %v604 = vpop.f32.mrb[0].mxu0
      %605 = vmatprep.mubr.bf16.mxu0 0
      %606 = vmatmul.mubr.bf16.gmra.mrb[0].mxu0 %v381
      %v607 = vpop.f32.mrb[0].mxu0
      %v608 = vadd.f32 0.0, %v607
      %v609 = vpop.f32.mrb[0].mxu0
      %v610 = vpop.f32.mrb[0].mxu0
      %v611 = vadd.f32 0.0, %v610
      %v612 = vpop.f32.mrb[0].mxu0
      %613 = vmatprep.mubr.bf16.mxu0 0
      %614 = vmatmul.mubr.bf16.gmra.mrb[0].mxu0 %v384
      %v615 = vpop.f32.mrb[0].mxu0
      %v616 = vadd.f32 0.0, %v615
      %v617 = vpop.f32.mrb[0].mxu0
      %v618 = vpop.f32.mrb[0].mxu0
      %v619 = vadd.f32 0.0, %v618
      %v620 = vpop.f32.mrb[0].mxu0
      %621 = vmatprep.mubr.bf16.mxu0 0
      %622 = vmatmul.mubr.bf16.gmra.mrb[0].mxu0 %v387
      %v623 = vpop.f32.mrb[0].mxu0
      %v624 = vadd.f32 0.0, %v623
      %v625 = vpop.f32.mrb[0].mxu0
      %v626 = vpop.f32.mrb[0].mxu0
      %v627 = vadd.f32 0.0, %v626
      %v628 = vpop.f32.mrb[0].mxu0
      %629 = vmatprep.mubr.bf16.mxu0 0
      %630 = vmatmul.mubr.bf16.gmra.mrb[0].mxu0 %v390
      %v631 = vpop.f32.mrb[0].mxu0
      %v632 = vadd.f32 0.0, %v631
      %v633 = vpop.f32.mrb[0].mxu0
      %v634 = vpop.f32.mrb[0].mxu0
      %v635 = vadd.f32 0.0, %v634
      %v636 = vpop.f32.mrb[0].mxu0
      %637 = vmatprep.mubr.bf16.mxu0 0
      %638 = vmatmul.mubr.bf16.gmra.mrb[0].mxu0 %v393
      %v639 = vpop.f32.mrb[0].mxu0
      %v640 = vadd.f32 0.0, %v639
      %v641 = vpop.f32.mrb[0].mxu0
      %v642 = vpop.f32.mrb[0].mxu0
      %v643 = vadd.f32 0.0, %v642
      %v644 = vpop.f32.mrb[0].mxu0
      %645 = vmatprep.mubr.bf16.mxu0 0
      %646 = vmatmul.mubr.bf16.gmra.mrb[0].mxu0 %v555
      %v647 = vpop.f32.mrb[0].mxu0
      %v648 = vadd.f32 0.0, %v647
      %v649 = vpop.f32.mrb[0].mxu0
      %v650 = vpop.f32.mrb[0].mxu0
      %v651 = vadd.f32 0.0, %v650
      %v652 = vpop.f32.mrb[0].mxu0
      %653 = vdwg.mxu0
      %v654 = vadd.f32 %v524, %v592
      %v655 = vadd.f32 %v525, %v595
      %v656 = vadd.f32 %v526, %v600
      %v657 = vadd.f32 %v527, %v603
      %v658 = vadd.f32 %v528, %v608
      %v659 = vadd.f32 %v529, %v611
      %v660 = vadd.f32 %v530, %v616
      %v661 = vadd.f32 %v531, %v619
      %v662 = vadd.f32 %v532, %v624
      %v663 = vadd.f32 %v533, %v627
      %v664 = vadd.f32 %v534, %v632
      %v665 = vadd.f32 %v535, %v635
      %v666 = vadd.f32 %v536, %v640
      %v667 = vadd.f32 %v537, %v643
      %v668 = vadd.f32 %v538, %v648
      %v669 = vadd.f32 %v539, %v651
      %670 = vst.msk [vmem:[#allocation2] sm:$0xff] %vm270, %v654
      %671 = vst.msk [vmem:[#allocation2 + $0x8] sm:$0xff] %vm270, %v655
      %672 = vst.msk [vmem:[#allocation2 + $0x10] sm:$0xff] %vm270, %v656
      %673 = vst.msk [vmem:[#allocation2 + $0x18] sm:$0xff] %vm270, %v657
      %674 = vst.msk [vmem:[#allocation2 + $0x20] sm:$0xff] %vm270, %v658
      %675 = vst.msk [vmem:[#allocation2 + $0x28] sm:$0xff] %vm270, %v659
      %676 = vst.msk [vmem:[#allocation2 + $0x30] sm:$0xff] %vm270, %v660
      %677 = vst.msk [vmem:[#allocation2 + $0x38] sm:$0xff] %vm270, %v661
      %678 = vst.msk [vmem:[#allocation2 + $0x40] sm:$0xff] %vm270, %v662
      %679 = vst.msk [vmem:[#allocation2 + $0x48] sm:$0xff] %vm270, %v663
      %680 = vst.msk [vmem:[#allocation2 + $0x50] sm:$0xff] %vm270, %v664
      %681 = vst.msk [vmem:[#allocation2 + $0x58] sm:$0xff] %vm270, %v665
      %682 = vst.msk [vmem:[#allocation2 + $0x60] sm:$0xff] %vm270, %v666
      %683 = vst.msk [vmem:[#allocation2 + $0x68] sm:$0xff] %vm270, %v667
      %684 = vst.msk [vmem:[#allocation2 + $0x70] sm:$0xff] %vm270, %v668
      %685 = vst.msk [vmem:[#allocation2 + $0x78] sm:$0xff] %vm270, %v669
      %v686 = vld [vmem:[#allocation2] sm:$0xff]
      %v687 = vld [vmem:[#allocation2 + $0x8] sm:$0xff]
      %v688 = vld [vmem:[#allocation2 + $0x10] sm:$0xff]
      %v689 = vld [vmem:[#allocation2 + $0x18] sm:$0xff]
      %v690 = vld [vmem:[#allocation2 + $0x20] sm:$0xff]
      %v691 = vld [vmem:[#allocation2 + $0x28] sm:$0xff]
      %v692 = vld [vmem:[#allocation2 + $0x30] sm:$0xff]
      %v693 = vld [vmem:[#allocation2 + $0x38] sm:$0xff]
      %v694 = vld [vmem:[#allocation2 + $0x40] sm:$0xff]
      %v695 = vld [vmem:[#allocation2 + $0x48] sm:$0xff]
      %v696 = vld [vmem:[#allocation2 + $0x50] sm:$0xff]
      %v697 = vld [vmem:[#allocation2 + $0x58] sm:$0xff]
      %v698 = vld [vmem:[#allocation2 + $0x60] sm:$0xff]
      %v699 = vld [vmem:[#allocation2 + $0x68] sm:$0xff]
      %v700 = vld [vmem:[#allocation2 + $0x70] sm:$0xff]
      %v701 = vld [vmem:[#allocation2 + $0x78] sm:$0xff]
      %s702 = scalar_lea.vmem %s1, 48
      %v703 = vld [vmem:[%s702] sm:$0xf]
      %v704 = vld [vmem:[%s702 + $0x4] sm:$0xf]
      %v707 = vunpack.c.l.b16 %v305
      %v708 = vunpack.c.l.b16 %v306
      %v709 = vpack.c.b16 %v708, %v707
      %v712 = vunpack.c.l.b16 %v703
      %v713 = vunpack.c.l.b16 %v704
      %v714 = vpack.c.b16 %v713, %v712
      %v717 = vsel %vm270, %v709, 0
      %719 = vmatprep.subr.bf16.mxu0 0
      %720 = vmatpush1.bf16.msra.mxu0 %v714
      %721 = vmatprep.subr.bf16.mxu0 0
      %722 = vmatpush1.bf16.msra.mxu0 0
      %723 = vmatprep.subr.bf16.mxu0 0
      %724 = vmatpush1.bf16.msra.mxu0 0
      %725 = vmatprep.subr.bf16.mxu0 0
      %726 = vmatpush1.bf16.msra.mxu0 0
      %727 = vmatprep.subr.bf16.mxu0 0
      %728 = vmatpush1.bf16.msra.mxu0 0
      %729 = vmatprep.subr.bf16.mxu0 0
      %730 = vmatpush1.bf16.msra.mxu0 0
      %731 = vmatprep.subr.bf16.mxu0 0
      %732 = vmatpush1.bf16.msra.mxu0 0
      %733 = vmatprep.subr.bf16.mxu0 0
      %734 = vmatpush1.bf16.msra.mxu0 0
      %735 = vmatprep.subr.bf16.mxu0 0
      %736 = vmatpush1.bf16.msra.mxu0 0
      %737 = vmatprep.subr.bf16.mxu0 0
      %738 = vmatpush1.bf16.msra.mxu0 0
      %739 = vmatprep.subr.bf16.mxu0 0
      %740 = vmatpush1.bf16.msra.mxu0 0
      %741 = vmatprep.subr.bf16.mxu0 0
      %742 = vmatpush1.bf16.msra.mxu0 0
      %743 = vmatprep.subr.bf16.mxu0 0
      %744 = vmatpush1.bf16.msra.mxu0 0
      %745 = vmatprep.subr.bf16.mxu0 0
      %746 = vmatpush1.bf16.msra.mxu0 0
      %747 = vmatprep.subr.bf16.mxu0 0
      %748 = vmatpush1.bf16.msra.mxu0 0
      %749 = vmatprep.subr.bf16.mxu0 0
      %750 = vmatpush1.bf16.msra.mxu0 0
      %751 = vmatprep.mubr.bf16.mxu0 0
      %752 = vmatmul.mubr.bf16.gmra.mrb[0].mxu0 %v378
      %v753 = vpop.f32.mrb[0].mxu0
      %v754 = vadd.f32 0.0, %v753
      %v755 = vpop.f32.mrb[0].mxu0
      %v756 = vpop.f32.mrb[0].mxu0
      %v757 = vadd.f32 0.0, %v756
      %v758 = vpop.f32.mrb[0].mxu0
      %759 = vmatprep.mubr.bf16.mxu0 0
      %760 = vmatmul.mubr.bf16.gmra.mrb[0].mxu0 %v381
      %v761 = vpop.f32.mrb[0].mxu0
      %v762 = vadd.f32 0.0, %v761
      %v763 = vpop.f32.mrb[0].mxu0
      %v764 = vpop.f32.mrb[0].mxu0
      %v765 = vadd.f32 0.0, %v764
      %v766 = vpop.f32.mrb[0].mxu0
      %767 = vmatprep.mubr.bf16.mxu0 0
      %768 = vmatmul.mubr.bf16.gmra.mrb[0].mxu0 %v384
      %v769 = vpop.f32.mrb[0].mxu0
      %v770 = vadd.f32 0.0, %v769
      %v771 = vpop.f32.mrb[0].mxu0
      %v772 = vpop.f32.mrb[0].mxu0
      %v773 = vadd.f32 0.0, %v772
      %v774 = vpop.f32.mrb[0].mxu0
      %775 = vmatprep.mubr.bf16.mxu0 0
      %776 = vmatmul.mubr.bf16.gmra.mrb[0].mxu0 %v387
      %v777 = vpop.f32.mrb[0].mxu0
      %v778 = vadd.f32 0.0, %v777
      %v779 = vpop.f32.mrb[0].mxu0
      %v780 = vpop.f32.mrb[0].mxu0
      %v781 = vadd.f32 0.0, %v780
      %v782 = vpop.f32.mrb[0].mxu0
      %783 = vmatprep.mubr.bf16.mxu0 0
      %784 = vmatmul.mubr.bf16.gmra.mrb[0].mxu0 %v390
      %v785 = vpop.f32.mrb[0].mxu0
      %v786 = vadd.f32 0.0, %v785
      %v787 = vpop.f32.mrb[0].mxu0
      %v788 = vpop.f32.mrb[0].mxu0
      %v789 = vadd.f32 0.0, %v788
      %v790 = vpop.f32.mrb[0].mxu0
      %791 = vmatprep.mubr.bf16.mxu0 0
      %792 = vmatmul.mubr.bf16.gmra.mrb[0].mxu0 %v393
      %v793 = vpop.f32.mrb[0].mxu0
      %v794 = vadd.f32 0.0, %v793
      %v795 = vpop.f32.mrb[0].mxu0
      %v796 = vpop.f32.mrb[0].mxu0
      %v797 = vadd.f32 0.0, %v796
      %v798 = vpop.f32.mrb[0].mxu0
      %799 = vmatprep.mubr.bf16.mxu0 0
      %800 = vmatmul.mubr.bf16.gmra.mrb[0].mxu0 %v555
      %v801 = vpop.f32.mrb[0].mxu0
      %v802 = vadd.f32 0.0, %v801
      %v803 = vpop.f32.mrb[0].mxu0
      %v804 = vpop.f32.mrb[0].mxu0
      %v805 = vadd.f32 0.0, %v804
      %v806 = vpop.f32.mrb[0].mxu0
      %807 = vmatprep.mubr.bf16.mxu0 0
      %808 = vmatmul.mubr.bf16.gmra.mrb[0].mxu0 %v717
      %v809 = vpop.f32.mrb[0].mxu0
      %v810 = vadd.f32 0.0, %v809
      %v811 = vpop.f32.mrb[0].mxu0
      %v812 = vpop.f32.mrb[0].mxu0
      %v813 = vadd.f32 0.0, %v812
      %v814 = vpop.f32.mrb[0].mxu0
      %815 = vdwg.mxu0
      %v816 = vadd.f32 %v686, %v754
      %v817 = vadd.f32 %v687, %v757
      %v818 = vadd.f32 %v688, %v762
      %v819 = vadd.f32 %v689, %v765
      %v820 = vadd.f32 %v690, %v770
      %v821 = vadd.f32 %v691, %v773
      %v822 = vadd.f32 %v692, %v778
      %v823 = vadd.f32 %v693, %v781
      %v824 = vadd.f32 %v694, %v786
      %v825 = vadd.f32 %v695, %v789
      %v826 = vadd.f32 %v696, %v794
      %v827 = vadd.f32 %v697, %v797
      %v828 = vadd.f32 %v698, %v802
      %v829 = vadd.f32 %v699, %v805
      %v830 = vadd.f32 %v700, %v810
      %v831 = vadd.f32 %v701, %v813
      %832 = vst.msk [vmem:[#allocation2] sm:$0xff] %vm270, %v816
      %833 = vst.msk [vmem:[#allocation2 + $0x8] sm:$0xff] %vm270, %v817
      %834 = vst.msk [vmem:[#allocation2 + $0x10] sm:$0xff] %vm270, %v818
      %835 = vst.msk [vmem:[#allocation2 + $0x18] sm:$0xff] %vm270, %v819
      %836 = vst.msk [vmem:[#allocation2 + $0x20] sm:$0xff] %vm270, %v820
      %837 = vst.msk [vmem:[#allocation2 + $0x28] sm:$0xff] %vm270, %v821
      %838 = vst.msk [vmem:[#allocation2 + $0x30] sm:$0xff] %vm270, %v822
      %839 = vst.msk [vmem:[#allocation2 + $0x38] sm:$0xff] %vm270, %v823
      %840 = vst.msk [vmem:[#allocation2 + $0x40] sm:$0xff] %vm270, %v824
      %841 = vst.msk [vmem:[#allocation2 + $0x48] sm:$0xff] %vm270, %v825
      %842 = vst.msk [vmem:[#allocation2 + $0x50] sm:$0xff] %vm270, %v826
      %843 = vst.msk [vmem:[#allocation2 + $0x58] sm:$0xff] %vm270, %v827
      %844 = vst.msk [vmem:[#allocation2 + $0x60] sm:$0xff] %vm270, %v828
      %845 = vst.msk [vmem:[#allocation2 + $0x68] sm:$0xff] %vm270, %v829
      %846 = vst.msk [vmem:[#allocation2 + $0x70] sm:$0xff] %vm270, %v830
      %847 = vst.msk [vmem:[#allocation2 + $0x78] sm:$0xff] %vm270, %v831
      %v848 = vld [vmem:[%s257] sm:$0xf]
      %v849 = vld [vmem:[%s257 + $0x4] sm:$0xf]
      %v850 = vld [vmem:[%s257 + $0x8] sm:$0xf]
      %v851 = vld [vmem:[%s257 + $0xc] sm:$0xf]
      %v852 = vld [vmem:[%s257 + $0x10] sm:$0xf]
      %v853 = vld [vmem:[%s257 + $0x14] sm:$0xf]
      %v854 = vld [vmem:[%s257 + $0x18] sm:$0xf]
      %v855 = vld [vmem:[%s257 + $0x1c] sm:$0xf]
      %v856 = vld [vmem:[%s257 + $0x20] sm:$0xf]
      %v857 = vld [vmem:[%s257 + $0x24] sm:$0xf]
      %v858 = vld [vmem:[%s257 + $0x28] sm:$0xf]
      %v859 = vld [vmem:[%s257 + $0x2c] sm:$0xf]
      %v860 = vld [vmem:[%s257 + $0x30] sm:$0xf]
      %v861 = vld [vmem:[%s257 + $0x34] sm:$0xf]
      %v862 = vld [vmem:[%s257 + $0x38] sm:$0xf]
      %v863 = vld [vmem:[%s257 + $0x3c] sm:$0xf]
      %v864 = vld [vmem:[%s257 + $0x40] sm:$0xf]
      %v865 = vld [vmem:[%s257 + $0x44] sm:$0xf]
      %v866 = vld [vmem:[%s257 + $0x48] sm:$0xf]
      %v867 = vld [vmem:[%s257 + $0x4c] sm:$0xf]
      %v868 = vld [vmem:[%s257 + $0x50] sm:$0x1]
      %v869 = vld [vmem:[#allocation2] sm:$0xff]
      %v870 = vld [vmem:[#allocation2 + $0x8] sm:$0xff]
      %v871 = vld [vmem:[#allocation2 + $0x10] sm:$0xff]
      %v872 = vld [vmem:[#allocation2 + $0x18] sm:$0xff]
      %v873 = vld [vmem:[#allocation2 + $0x20] sm:$0xff]
      %v874 = vld [vmem:[#allocation2 + $0x28] sm:$0xff]
      %v875 = vld [vmem:[#allocation2 + $0x30] sm:$0xff]
      %v876 = vld [vmem:[#allocation2 + $0x38] sm:$0xff]
      %v877 = vld [vmem:[#allocation2 + $0x40] sm:$0xff]
      %v878 = vld [vmem:[#allocation2 + $0x48] sm:$0xff]
      %v879 = vld [vmem:[#allocation2 + $0x50] sm:$0xff]
      %v880 = vld [vmem:[#allocation2 + $0x58] sm:$0xff]
      %v881 = vld [vmem:[#allocation2 + $0x60] sm:$0xff]
      %v882 = vld [vmem:[#allocation2 + $0x68] sm:$0xff]
      %v883 = vld [vmem:[#allocation2 + $0x70] sm:$0xff]
      %v884 = vld [vmem:[#allocation2 + $0x78] sm:$0xff]
      %s885 = scalar_lea.vmem %s1, 8
      %v886 = vld [vmem:[%s885] sm:$0xf]
      %v887 = vld [vmem:[%s885 + $0x4] sm:$0xf]
      %v905 = vunpack.c.l.b16 %v848
      %v906 = vunpack.c.l.b16 %v849
      %v907 = vunpack.c.l.b16 %v850
      %v908 = vunpack.c.l.b16 %v851
      %v909 = vunpack.c.l.b16 %v852
      %v910 = vunpack.c.l.b16 %v853
      %v911 = vunpack.c.l.b16 %v854
      %v912 = vunpack.c.l.b16 %v855
      %v913 = vunpack.c.l.b16 %v856
      %v914 = vunpack.c.l.b16 %v857
      %v915 = vunpack.c.l.b16 %v858
      %v916 = vunpack.c.l.b16 %v859
      %v917 = vunpack.c.l.b16 %v860
      %v918 = vunpack.c.l.b16 %v861
      %v919 = vunpack.c.l.b16 %v862
      %v920 = vunpack.c.l.b16 %v863
      %v921 = vunpack.c.l.b16 %v864
      %v922 = vpack.c.b16 %v906, %v905
      %v923 = vpack.c.b16 %v908, %v907
      %v924 = vpack.c.b16 %v910, %v909
      %v925 = vpack.c.b16 %v912, %v911
      %v926 = vpack.c.b16 %v914, %v913
      %v927 = vpack.c.b16 %v916, %v915
      %v928 = vpack.c.b16 %v918, %v917
      %v929 = vpack.c.b16 %v920, %v919
      %v930 = vpack.c.b16 %v921, %v921
      %vm931 = vsmask.f32 7424
      %v933 = vshrl.u32 %v922, 16
      %v935 = vshll.u32 %v922, 16
      %v937 = vrot.slane %v935, 1
      %v938 = vor.u32 %v933, %v937
      %v940 = vshll.u32 %v923, 16
      %v942 = vrot.slane %v940, 1
      %v943 = vsel %vm931, %v938, %v942
      %v944 = vshrl.u32 %v923, 16
      %v946 = vor.u32 %v944, %v942
      %v948 = vshll.u32 %v924, 16
      %v950 = vrot.slane %v948, 1
      %v951 = vsel %vm931, %v946, %v950
      %v952 = vshrl.u32 %v924, 16
      %v954 = vor.u32 %v952, %v950
      %v956 = vshll.u32 %v925, 16
      %v958 = vrot.slane %v956, 1
      %v959 = vsel %vm931, %v954, %v958
      %v960 = vshrl.u32 %v925, 16
      %v962 = vor.u32 %v960, %v958
      %v964 = vshll.u32 %v926, 16
      %v966 = vrot.slane %v964, 1
      %v967 = vsel %vm931, %v962, %v966
      %v968 = vshrl.u32 %v926, 16
      %v970 = vor.u32 %v968, %v966
      %v972 = vshll.u32 %v927, 16
      %v974 = vrot.slane %v972, 1
      %v975 = vsel %vm931, %v970, %v974
      %v976 = vshrl.u32 %v927, 16
      %v978 = vor.u32 %v976, %v974
      %v980 = vshll.u32 %v928, 16
      %v982 = vrot.slane %v980, 1
      %v983 = vsel %vm931, %v978, %v982
      %v984 = vshrl.u32 %v928, 16
      %v986 = vor.u32 %v984, %v982
      %v988 = vshll.u32 %v929, 16
      %v990 = vrot.slane %v988, 1
      %v991 = vsel %vm931, %v986, %v990
      %v992 = vshrl.u32 %v929, 16
      %v994 = vor.u32 %v992, %v990
      %v996 = vshll.u32 %v930, 16
      %v998 = vrot.slane %v996, 1
      %v999 = vsel %vm931, %v994, %v998
      %v1002 = vunpack.c.l.b16 %v886
      %v1003 = vunpack.c.l.b16 %v887
      %v1004 = vpack.c.b16 %v1003, %v1002
      %v1007 = vsel %vm270, %v943, 0
      %v1010 = vsel %vm270, %v951, 0
      %v1013 = vsel %vm270, %v959, 0
      %v1016 = vsel %vm270, %v967, 0
      %v1019 = vsel %vm270, %v975, 0
      %v1022 = vsel %vm270, %v983, 0
      %v1025 = vsel %vm270, %v991, 0
      %v1028 = vsel %vm270, %v999, 0
      %1030 = vmatprep.subr.bf16.mxu0 0
      %1031 = vmatpush1.bf16.msra.mxu0 %v1004
      %1032 = vmatprep.subr.bf16.mxu0 0
      %1033 = vmatpush1.bf16.msra.mxu0 0
      %1034 = vmatprep.subr.bf16.mxu0 0
      %1035 = vmatpush1.bf16.msra.mxu0 0
      %1036 = vmatprep.subr.bf16.mxu0 0
      %1037 = vmatpush1.bf16.msra.mxu0 0
      %1038 = vmatprep.subr.bf16.mxu0 0
      %1039 = vmatpush1.bf16.msra.mxu0 0
      %1040 = vmatprep.subr.bf16.mxu0 0
      %1041 = vmatpush1.bf16.msra.mxu0 0
      %1042 = vmatprep.subr.bf16.mxu0 0
      %1043 = vmatpush1.bf16.msra.mxu0 0
      %1044 = vmatprep.subr.bf16.mxu0 0
      %1045 = vmatpush1.bf16.msra.mxu0 0
      %1046 = vmatprep.subr.bf16.mxu0 0
      %1047 = vmatpush1.bf16.msra.mxu0 0
      %1048 = vmatprep.subr.bf16.mxu0 0
      %1049 = vmatpush1.bf16.msra.mxu0 0
      %1050 = vmatprep.subr.bf16.mxu0 0
      %1051 = vmatpush1.bf16.msra.mxu0 0
      %1052 = vmatprep.subr.bf16.mxu0 0
      %1053 = vmatpush1.bf16.msra.mxu0 0
      %1054 = vmatprep.subr.bf16.mxu0 0
      %1055 = vmatpush1.bf16.msra.mxu0 0
      %1056 = vmatprep.subr.bf16.mxu0 0
      %1057 = vmatpush1.bf16.msra.mxu0 0
      %1058 = vmatprep.subr.bf16.mxu0 0
      %1059 = vmatpush1.bf16.msra.mxu0 0
      %1060 = vmatprep.subr.bf16.mxu0 0
      %1061 = vmatpush1.bf16.msra.mxu0 0
      %1062 = vmatprep.mubr.bf16.mxu0 0
      %1063 = vmatmul.mubr.bf16.gmra.mrb[0].mxu0 %v1007
      %v1064 = vpop.f32.mrb[0].mxu0
      %v1065 = vadd.f32 0.0, %v1064
      %v1066 = vpop.f32.mrb[0].mxu0
      %v1067 = vpop.f32.mrb[0].mxu0
      %v1068 = vadd.f32 0.0, %v1067
      %v1069 = vpop.f32.mrb[0].mxu0
      %1070 = vmatprep.mubr.bf16.mxu0 0
      %1071 = vmatmul.mubr.bf16.gmra.mrb[0].mxu0 %v1010
      %v1072 = vpop.f32.mrb[0].mxu0
      %v1073 = vadd.f32 0.0, %v1072
      %v1074 = vpop.f32.mrb[0].mxu0
      %v1075 = vpop.f32.mrb[0].mxu0
      %v1076 = vadd.f32 0.0, %v1075
      %v1077 = vpop.f32.mrb[0].mxu0
      %1078 = vmatprep.mubr.bf16.mxu0 0
      %1079 = vmatmul.mubr.bf16.gmra.mrb[0].mxu0 %v1013
      %v1080 = vpop.f32.mrb[0].mxu0
      %v1081 = vadd.f32 0.0, %v1080
      %v1082 = vpop.f32.mrb[0].mxu0
      %v1083 = vpop.f32.mrb[0].mxu0
      %v1084 = vadd.f32 0.0, %v1083
      %v1085 = vpop.f32.mrb[0].mxu0
      %1086 = vmatprep.mubr.bf16.mxu0 0
      %1087 = vmatmul.mubr.bf16.gmra.mrb[0].mxu0 %v1016
      %v1088 = vpop.f32.mrb[0].mxu0
      %v1089 = vadd.f32 0.0, %v1088
      %v1090 = vpop.f32.mrb[0].mxu0
      %v1091 = vpop.f32.mrb[0].mxu0
      %v1092 = vadd.f32 0.0, %v1091
      %v1093 = vpop.f32.mrb[0].mxu0
      %1094 = vmatprep.mubr.bf16.mxu0 0
      %1095 = vmatmul.mubr.bf16.gmra.mrb[0].mxu0 %v1019
      %v1096 = vpop.f32.mrb[0].mxu0
      %v1097 = vadd.f32 0.0, %v1096
      %v1098 = vpop.f32.mrb[0].mxu0
      %v1099 = vpop.f32.mrb[0].mxu0
      %v1100 = vadd.f32 0.0, %v1099
      %v1101 = vpop.f32.mrb[0].mxu0
      %1102 = vmatprep.mubr.bf16.mxu0 0
      %1103 = vmatmul.mubr.bf16.gmra.mrb[0].mxu0 %v1022
      %v1104 = vpop.f32.mrb[0].mxu0
      %v1105 = vadd.f32 0.0, %v1104
      %v1106 = vpop.f32.mrb[0].mxu0
      %v1107 = vpop.f32.mrb[0].mxu0
      %v1108 = vadd.f32 0.0, %v1107
      %v1109 = vpop.f32.mrb[0].mxu0
      %1110 = vmatprep.mubr.bf16.mxu0 0
      %1111 = vmatmul.mubr.bf16.gmra.mrb[0].mxu0 %v1025
      %v1112 = vpop.f32.mrb[0].mxu0
      %v1113 = vadd.f32 0.0, %v1112
      %v1114 = vpop.f32.mrb[0].mxu0
      %v1115 = vpop.f32.mrb[0].mxu0
      %v1116 = vadd.f32 0.0, %v1115
      %v1117 = vpop.f32.mrb[0].mxu0
      %1118 = vmatprep.mubr.bf16.mxu0 0
      %1119 = vmatmul.mubr.bf16.gmra.mrb[0].mxu0 %v1028
      %v1120 = vpop.f32.mrb[0].mxu0
      %v1121 = vadd.f32 0.0, %v1120
      %v1122 = vpop.f32.mrb[0].mxu0
      %v1123 = vpop.f32.mrb[0].mxu0
      %v1124 = vadd.f32 0.0, %v1123
      %v1125 = vpop.f32.mrb[0].mxu0
      %1126 = vdwg.mxu0
      %v1127 = vadd.f32 %v869, %v1065
      %v1128 = vadd.f32 %v870, %v1068
      %v1129 = vadd.f32 %v871, %v1073
      %v1130 = vadd.f32 %v872, %v1076
      %v1131 = vadd.f32 %v873, %v1081
      %v1132 = vadd.f32 %v874, %v1084
      %v1133 = vadd.f32 %v875, %v1089
      %v1134 = vadd.f32 %v876, %v1092
      %v1135 = vadd.f32 %v877, %v1097
      %v1136 = vadd.f32 %v878, %v1100
      %v1137 = vadd.f32 %v879, %v1105
      %v1138 = vadd.f32 %v880, %v1108
      %v1139 = vadd.f32 %v881, %v1113
      %v1140 = vadd.f32 %v882, %v1116
      %v1141 = vadd.f32 %v883, %v1121
      %v1142 = vadd.f32 %v884, %v1124
      %1143 = vst.msk [vmem:[#allocation2] sm:$0xff] %vm270, %v1127
      %1144 = vst.msk [vmem:[#allocation2 + $0x8] sm:$0xff] %vm270, %v1128
      %1145 = vst.msk [vmem:[#allocation2 + $0x10] sm:$0xff] %vm270, %v1129
      %1146 = vst.msk [vmem:[#allocation2 + $0x18] sm:$0xff] %vm270, %v1130
      %1147 = vst.msk [vmem:[#allocation2 + $0x20] sm:$0xff] %vm270, %v1131
      %1148 = vst.msk [vmem:[#allocation2 + $0x28] sm:$0xff] %vm270, %v1132
      %1149 = vst.msk [vmem:[#allocation2 + $0x30] sm:$0xff] %vm270, %v1133
      %1150 = vst.msk [vmem:[#allocation2 + $0x38] sm:$0xff] %vm270, %v1134
      %1151 = vst.msk [vmem:[#allocation2 + $0x40] sm:$0xff] %vm270, %v1135
      %1152 = vst.msk [vmem:[#allocation2 + $0x48] sm:$0xff] %vm270, %v1136
      %1153 = vst.msk [vmem:[#allocation2 + $0x50] sm:$0xff] %vm270, %v1137
      %1154 = vst.msk [vmem:[#allocation2 + $0x58] sm:$0xff] %vm270, %v1138
      %1155 = vst.msk [vmem:[#allocation2 + $0x60] sm:$0xff] %vm270, %v1139
      %1156 = vst.msk [vmem:[#allocation2 + $0x68] sm:$0xff] %vm270, %v1140
      %1157 = vst.msk [vmem:[#allocation2 + $0x70] sm:$0xff] %vm270, %v1141
      %1158 = vst.msk [vmem:[#allocation2 + $0x78] sm:$0xff] %vm270, %v1142
      %v1159 = vld [vmem:[#allocation2] sm:$0xff]
      %v1160 = vld [vmem:[#allocation2 + $0x8] sm:$0xff]
      %v1161 = vld [vmem:[#allocation2 + $0x10] sm:$0xff]
      %v1162 = vld [vmem:[#allocation2 + $0x18] sm:$0xff]
      %v1163 = vld [vmem:[#allocation2 + $0x20] sm:$0xff]
      %v1164 = vld [vmem:[#allocation2 + $0x28] sm:$0xff]
      %v1165 = vld [vmem:[#allocation2 + $0x30] sm:$0xff]
      %v1166 = vld [vmem:[#allocation2 + $0x38] sm:$0xff]
      %v1167 = vld [vmem:[#allocation2 + $0x40] sm:$0xff]
      %v1168 = vld [vmem:[#allocation2 + $0x48] sm:$0xff]
      %v1169 = vld [vmem:[#allocation2 + $0x50] sm:$0xff]
      %v1170 = vld [vmem:[#allocation2 + $0x58] sm:$0xff]
      %v1171 = vld [vmem:[#allocation2 + $0x60] sm:$0xff]
      %v1172 = vld [vmem:[#allocation2 + $0x68] sm:$0xff]
      %v1173 = vld [vmem:[#allocation2 + $0x70] sm:$0xff]
      %v1174 = vld [vmem:[#allocation2 + $0x78] sm:$0xff]
      %s1175 = scalar_lea.vmem %s1, 32
      %v1176 = vld [vmem:[%s1175] sm:$0xf]
      %v1177 = vld [vmem:[%s1175 + $0x4] sm:$0xf]
      %v1180 = vunpack.c.l.b16 %v865
      %v1181 = vunpack.c.l.b16 %v866
      %v1182 = vpack.c.b16 %v1180, %v921
      %v1183 = vpack.c.b16 %v1181, %v1181
      %v1185 = vshll.u32 %v1182, 16
      %v1187 = vrot.slane %v1185, 1
      %v1188 = vsel %vm931, %v994, %v1187
      %v1189 = vshrl.u32 %v1182, 16
      %v1191 = vor.u32 %v1189, %v1187
      %v1193 = vshll.u32 %v1183, 16
      %v1195 = vrot.slane %v1193, 1
      %v1196 = vsel %vm931, %v1191, %v1195
      %v1199 = vunpack.c.l.b16 %v1176
      %v1200 = vunpack.c.l.b16 %v1177
      %v1201 = vpack.c.b16 %v1200, %v1199
      %v1204 = vsel %vm270, %v1188, 0
      %v1207 = vsel %vm270, %v1196, 0
      %1209 = vmatprep.subr.bf16.mxu0 0
      %1210 = vmatpush1.bf16.msra.mxu0 %v1201
      %1211 = vmatprep.subr.bf16.mxu0 0
      %1212 = vmatpush1.bf16.msra.mxu0 0
      %1213 = vmatprep.subr.bf16.mxu0 0
      %1214 = vmatpush1.bf16.msra.mxu0 0
      %1215 = vmatprep.subr.bf16.mxu0 0
      %1216 = vmatpush1.bf16.msra.mxu0 0
      %1217 = vmatprep.subr.bf16.mxu0 0
      %1218 = vmatpush1.bf16.msra.mxu0 0
      %1219 = vmatprep.subr.bf16.mxu0 0
      %1220 = vmatpush1.bf16.msra.mxu0 0
      %1221 = vmatprep.subr.bf16.mxu0 0
      %1222 = vmatpush1.bf16.msra.mxu0 0
      %1223 = vmatprep.subr.bf16.mxu0 0
      %1224 = vmatpush1.bf16.msra.mxu0 0
      %1225 = vmatprep.subr.bf16.mxu0 0
      %1226 = vmatpush1.bf16.msra.mxu0 0
      %1227 = vmatprep.subr.bf16.mxu0 0
      %1228 = vmatpush1.bf16.msra.mxu0 0
      %1229 = vmatprep.subr.bf16.mxu0 0
      %1230 = vmatpush1.bf16.msra.mxu0 0
      %1231 = vmatprep.subr.bf16.mxu0 0
      %1232 = vmatpush1.bf16.msra.mxu0 0
      %1233 = vmatprep.subr.bf16.mxu0 0
      %1234 = vmatpush1.bf16.msra.mxu0 0
      %1235 = vmatprep.subr.bf16.mxu0 0
      %1236 = vmatpush1.bf16.msra.mxu0 0
      %1237 = vmatprep.subr.bf16.mxu0 0
      %1238 = vmatpush1.bf16.msra.mxu0 0
      %1239 = vmatprep.subr.bf16.mxu0 0
      %1240 = vmatpush1.bf16.msra.mxu0 0
      %1241 = vmatprep.mubr.bf16.mxu0 0
      %1242 = vmatmul.mubr.bf16.gmra.mrb[0].mxu0 %v1010
      %v1243 = vpop.f32.mrb[0].mxu0
      %v1244 = vadd.f32 0.0, %v1243
      %v1245 = vpop.f32.mrb[0].mxu0
      %v1246 = vpop.f32.mrb[0].mxu0
      %v1247 = vadd.f32 0.0, %v1246
      %v1248 = vpop.f32.mrb[0].mxu0
      %1249 = vmatprep.mubr.bf16.mxu0 0
      %1250 = vmatmul.mubr.bf16.gmra.mrb[0].mxu0 %v1013
      %v1251 = vpop.f32.mrb[0].mxu0
      %v1252 = vadd.f32 0.0, %v1251
      %v1253 = vpop.f32.mrb[0].mxu0
      %v1254 = vpop.f32.mrb[0].mxu0
      %v1255 = vadd.f32 0.0, %v1254
      %v1256 = vpop.f32.mrb[0].mxu0
      %1257 = vmatprep.mubr.bf16.mxu0 0
      %1258 = vmatmul.mubr.bf16.gmra.mrb[0].mxu0 %v1016
      %v1259 = vpop.f32.mrb[0].mxu0
      %v1260 = vadd.f32 0.0, %v1259
      %v1261 = vpop.f32.mrb[0].mxu0
      %v1262 = vpop.f32.mrb[0].mxu0
      %v1263 = vadd.f32 0.0, %v1262
      %v1264 = vpop.f32.mrb[0].mxu0
      %1265 = vmatprep.mubr.bf16.mxu0 0
      %1266 = vmatmul.mubr.bf16.gmra.mrb[0].mxu0 %v1019
      %v1267 = vpop.f32.mrb[0].mxu0
      %v1268 = vadd.f32 0.0, %v1267
      %v1269 = vpop.f32.mrb[0].mxu0
      %v1270 = vpop.f32.mrb[0].mxu0
      %v1271 = vadd.f32 0.0, %v1270
      %v1272 = vpop.f32.mrb[0].mxu0
      %1273 = vmatprep.mubr.bf16.mxu0 0
      %1274 = vmatmul.mubr.bf16.gmra.mrb[0].mxu0 %v1022
      %v1275 = vpop.f32.mrb[0].mxu0
      %v1276 = vadd.f32 0.0, %v1275
      %v1277 = vpop.f32.mrb[0].mxu0
      %v1278 = vpop.f32.mrb[0].mxu0
      %v1279 = vadd.f32 0.0, %v1278
      %v1280 = vpop.f32.mrb[0].mxu0
      %1281 = vmatprep.mubr.bf16.mxu0 0
      %1282 = vmatmul.mubr.bf16.gmra.mrb[0].mxu0 %v1025
      %v1283 = vpop.f32.mrb[0].mxu0
      %v1284 = vadd.f32 0.0, %v1283
      %v1285 = vpop.f32.mrb[0].mxu0
      %v1286 = vpop.f32.mrb[0].mxu0
      %v1287 = vadd.f32 0.0, %v1286
      %v1288 = vpop.f32.mrb[0].mxu0
      %1289 = vmatprep.mubr.bf16.mxu0 0
      %1290 = vmatmul.mubr.bf16.gmra.mrb[0].mxu0 %v1204
      %v1291 = vpop.f32.mrb[0].mxu0
      %v1292 = vadd.f32 0.0, %v1291
      %v1293 = vpop.f32.mrb[0].mxu0
      %v1294 = vpop.f32.mrb[0].mxu0
      %v1295 = vadd.f32 0.0, %v1294
      %v1296 = vpop.f32.mrb[0].mxu0
      %1297 = vmatprep.mubr.bf16.mxu0 0
      %1298 = vmatmul.mubr.bf16.gmra.mrb[0].mxu0 %v1207
      %v1299 = vpop.f32.mrb[0].mxu0
      %v1300 = vadd.f32 0.0, %v1299
      %v1301 = vpop.f32.mrb[0].mxu0
      %v1302 = vpop.f32.mrb[0].mxu0
      %v1303 = vadd.f32 0.0, %v1302
      %v1304 = vpop.f32.mrb[0].mxu0
      %1305 = vdwg.mxu0
      %v1306 = vadd.f32 %v1159, %v1244
      %v1307 = vadd.f32 %v1160, %v1247
      %v1308 = vadd.f32 %v1161, %v1252
      %v1309 = vadd.f32 %v1162, %v1255
      %v1310 = vadd.f32 %v1163, %v1260
      %v1311 = vadd.f32 %v1164, %v1263
      %v1312 = vadd.f32 %v1165, %v1268
      %v1313 = vadd.f32 %v1166, %v1271
      %v1314 = vadd.f32 %v1167, %v1276
      %v1315 = vadd.f32 %v1168, %v1279
      %v1316 = vadd.f32 %v1169, %v1284
      %v1317 = vadd.f32 %v1170, %v1287
      %v1318 = vadd.f32 %v1171, %v1292
      %v1319 = vadd.f32 %v1172, %v1295
      %v1320 = vadd.f32 %v1173, %v1300
      %v1321 = vadd.f32 %v1174, %v1303
      %1322 = vst.msk [vmem:[#allocation2] sm:$0xff] %vm270, %v1306
      %1323 = vst.msk [vmem:[#allocation2 + $0x8] sm:$0xff] %vm270, %v1307
      %1324 = vst.msk [vmem:[#allocation2 + $0x10] sm:$0xff] %vm270, %v1308
      %1325 = vst.msk [vmem:[#allocation2 + $0x18] sm:$0xff] %vm270, %v1309
      %1326 = vst.msk [vmem:[#allocation2 + $0x20] sm:$0xff] %vm270, %v1310
      %1327 = vst.msk [vmem:[#allocation2 + $0x28] sm:$0xff] %vm270, %v1311
      %1328 = vst.msk [vmem:[#allocation2 + $0x30] sm:$0xff] %vm270, %v1312
      %1329 = vst.msk [vmem:[#allocation2 + $0x38] sm:$0xff] %vm270, %v1313
      %1330 = vst.msk [vmem:[#allocation2 + $0x40] sm:$0xff] %vm270, %v1314
      %1331 = vst.msk [vmem:[#allocation2 + $0x48] sm:$0xff] %vm270, %v1315
      %1332 = vst.msk [vmem:[#allocation2 + $0x50] sm:$0xff] %vm270, %v1316
      %1333 = vst.msk [vmem:[#allocation2 + $0x58] sm:$0xff] %vm270, %v1317
      %1334 = vst.msk [vmem:[#allocation2 + $0x60] sm:$0xff] %vm270, %v1318
      %1335 = vst.msk [vmem:[#allocation2 + $0x68] sm:$0xff] %vm270, %v1319
      %1336 = vst.msk [vmem:[#allocation2 + $0x70] sm:$0xff] %vm270, %v1320
      %1337 = vst.msk [vmem:[#allocation2 + $0x78] sm:$0xff] %vm270, %v1321
      %v1338 = vld [vmem:[#allocation2] sm:$0xff]
      %v1339 = vld [vmem:[#allocation2 + $0x8] sm:$0xff]
      %v1340 = vld [vmem:[#allocation2 + $0x10] sm:$0xff]
      %v1341 = vld [vmem:[#allocation2 + $0x18] sm:$0xff]
      %v1342 = vld [vmem:[#allocation2 + $0x20] sm:$0xff]
      %v1343 = vld [vmem:[#allocation2 + $0x28] sm:$0xff]
      %v1344 = vld [vmem:[#allocation2 + $0x30] sm:$0xff]
      %v1345 = vld [vmem:[#allocation2 + $0x38] sm:$0xff]
      %v1346 = vld [vmem:[#allocation2 + $0x40] sm:$0xff]
      %v1347 = vld [vmem:[#allocation2 + $0x48] sm:$0xff]
      %v1348 = vld [vmem:[#allocation2 + $0x50] sm:$0xff]
      %v1349 = vld [vmem:[#allocation2 + $0x58] sm:$0xff]
      %v1350 = vld [vmem:[#allocation2 + $0x60] sm:$0xff]
      %v1351 = vld [vmem:[#allocation2 + $0x68] sm:$0xff]
      %v1352 = vld [vmem:[#allocation2 + $0x70] sm:$0xff]
      %v1353 = vld [vmem:[#allocation2 + $0x78] sm:$0xff]
      %s1354 = scalar_lea.vmem %s1, 56
      %v1355 = vld [vmem:[%s1354] sm:$0xf]
      %v1356 = vld [vmem:[%s1354 + $0x4] sm:$0xf]
      %v1359 = vunpack.c.l.b16 %v867
      %v1360 = vunpack.c.l.b16 %v868
      %v1361 = vpack.c.b16 %v1359, %v1181
      %v1362 = vpack.c.b16 %v1360, %v1360
      %v1364 = vshll.u32 %v1361, 16
      %v1366 = vrot.slane %v1364, 1
      %v1367 = vsel %vm931, %v1191, %v1366
      %v1368 = vshrl.u32 %v1361, 16
      %v1370 = vor.u32 %v1368, %v1366
      %v1372 = vshll.u32 %v1362, 16
      %v1374 = vrot.slane %v1372, 1
      %v1375 = vsel %vm931, %v1370, %v1374
      %v1378 = vunpack.c.l.b16 %v1355
      %v1379 = vunpack.c.l.b16 %v1356
      %v1380 = vpack.c.b16 %v1379, %v1378
      %v1383 = vsel %vm270, %v1367, 0
      %v1386 = vsel %vm270, %v1375, 0
      %1388 = vmatprep.subr.bf16.mxu0 0
      %1389 = vmatpush1.bf16.msra.mxu0 %v1380
      %1390 = vmatprep.subr.bf16.mxu0 0
      %1391 = vmatpush1.bf16.msra.mxu0 0
      %1392 = vmatprep.subr.bf16.mxu0 0
      %1393 = vmatpush1.bf16.msra.mxu0 0
      %1394 = vmatprep.subr.bf16.mxu0 0
      %1395 = vmatpush1.bf16.msra.mxu0 0
      %1396 = vmatprep.subr.bf16.mxu0 0
      %1397 = vmatpush1.bf16.msra.mxu0 0
      %1398 = vmatprep.subr.bf16.mxu0 0
      %1399 = vmatpush1.bf16.msra.mxu0 0
      %1400 = vmatprep.subr.bf16.mxu0 0
      %1401 = vmatpush1.bf16.msra.mxu0 0
      %1402 = vmatprep.subr.bf16.mxu0 0
      %1403 = vmatpush1.bf16.msra.mxu0 0
      %1404 = vmatprep.subr.bf16.mxu0 0
      %1405 = vmatpush1.bf16.msra.mxu0 0
      %1406 = vmatprep.subr.bf16.mxu0 0
      %1407 = vmatpush1.bf16.msra.mxu0 0
      %1408 = vmatprep.subr.bf16.mxu0 0
      %1409 = vmatpush1.bf16.msra.mxu0 0
      %1410 = vmatprep.subr.bf16.mxu0 0
      %1411 = vmatpush1.bf16.msra.mxu0 0
      %1412 = vmatprep.subr.bf16.mxu0 0
      %1413 = vmatpush1.bf16.msra.mxu0 0
      %1414 = vmatprep.subr.bf16.mxu0 0
      %1415 = vmatpush1.bf16.msra.mxu0 0
      %1416 = vmatprep.subr.bf16.mxu0 0
      %1417 = vmatpush1.bf16.msra.mxu0 0
      %1418 = vmatprep.subr.bf16.mxu0 0
      %1419 = vmatpush1.bf16.msra.mxu0 0
      %1420 = vmatprep.mubr.bf16.mxu0 0
      %1421 = vmatmul.mubr.bf16.gmra.mrb[0].mxu0 %v1013
      %v1422 = vpop.f32.mrb[0].mxu0
      %v1423 = vadd.f32 0.0, %v1422
      %v1424 = vpop.f32.mrb[0].mxu0
      %v1425 = vpop.f32.mrb[0].mxu0
      %v1426 = vadd.f32 0.0, %v1425
      %v1427 = vpop.f32.mrb[0].mxu0
      %1428 = vmatprep.mubr.bf16.mxu0 0
      %1429 = vmatmul.mubr.bf16.gmra.mrb[0].mxu0 %v1016
      %v1430 = vpop.f32.mrb[0].mxu0
      %v1431 = vadd.f32 0.0, %v1430
      %v1432 = vpop.f32.mrb[0].mxu0
      %v1433 = vpop.f32.mrb[0].mxu0
      %v1434 = vadd.f32 0.0, %v1433
      %v1435 = vpop.f32.mrb[0].mxu0
      %1436 = vmatprep.mubr.bf16.mxu0 0
      %1437 = vmatmul.mubr.bf16.gmra.mrb[0].mxu0 %v1019
      %v1438 = vpop.f32.mrb[0].mxu0
      %v1439 = vadd.f32 0.0, %v1438
      %v1440 = vpop.f32.mrb[0].mxu0
      %v1441 = vpop.f32.mrb[0].mxu0
      %v1442 = vadd.f32 0.0, %v1441
      %v1443 = vpop.f32.mrb[0].mxu0
      %1444 = vmatprep.mubr.bf16.mxu0 0
      %1445 = vmatmul.mubr.bf16.gmra.mrb[0].mxu0 %v1022
      %v1446 = vpop.f32.mrb[0].mxu0
      %v1447 = vadd.f32 0.0, %v1446
      %v1448 = vpop.f32.mrb[0].mxu0
      %v1449 = vpop.f32.mrb[0].mxu0
      %v1450 = vadd.f32 0.0, %v1449
      %v1451 = vpop.f32.mrb[0].mxu0
      %1452 = vmatprep.mubr.bf16.mxu0 0
      %1453 = vmatmul.mubr.bf16.gmra.mrb[0].mxu0 %v1025
      %v1454 = vpop.f32.mrb[0].mxu0
      %v1455 = vadd.f32 0.0, %v1454
      %v1456 = vpop.f32.mrb[0].mxu0
      %v1457 = vpop.f32.mrb[0].mxu0
      %v1458 = vadd.f32 0.0, %v1457
      %v1459 = vpop.f32.mrb[0].mxu0
      %1460 = vmatprep.mubr.bf16.mxu0 0
      %1461 = vmatmul.mubr.bf16.gmra.mrb[0].mxu0 %v1204
      %v1462 = vpop.f32.mrb[0].mxu0
      %v1463 = vadd.f32 0.0, %v1462
      %v1464 = vpop.f32.mrb[0].mxu0
      %v1465 = vpop.f32.mrb[0].mxu0
      %v1466 = vadd.f32 0.0, %v1465
      %v1467 = vpop.f32.mrb[0].mxu0
      %1468 = vmatprep.mubr.bf16.mxu0 0
      %1469 = vmatmul.mubr.bf16.gmra.mrb[0].mxu0 %v1383
      %v1470 = vpop.f32.mrb[0].mxu0
      %v1471 = vadd.f32 0.0, %v1470
      %v1472 = vpop.f32.mrb[0].mxu0
      %v1473 = vpop.f32.mrb[0].mxu0
      %v1474 = vadd.f32 0.0, %v1473
      %v1475 = vpop.f32.mrb[0].mxu0
      %1476 = vmatprep.mubr.bf16.mxu0 0
      %1477 = vmatmul.mubr.bf16.gmra.mrb[0].mxu0 %v1386
      %v1478 = vpop.f32.mrb[0].mxu0
      %v1479 = vadd.f32 0.0, %v1478
      %v1480 = vpop.f32.mrb[0].mxu0
      %v1481 = vpop.f32.mrb[0].mxu0
      %v1482 = vadd.f32 0.0, %v1481
      %v1483 = vpop.f32.mrb[0].mxu0
      %1484 = vdwg.mxu0
      %v1485 = vadd.f32 %v1338, %v1423
      %v1486 = vadd.f32 %v1339, %v1426
      %v1487 = vadd.f32 %v1340, %v1431
      %v1488 = vadd.f32 %v1341, %v1434
      %v1489 = vadd.f32 %v1342, %v1439
      %v1490 = vadd.f32 %v1343, %v1442
      %v1491 = vadd.f32 %v1344, %v1447
      %v1492 = vadd.f32 %v1345, %v1450
      %v1493 = vadd.f32 %v1346, %v1455
      %v1494 = vadd.f32 %v1347, %v1458
      %v1495 = vadd.f32 %v1348, %v1463
      %v1496 = vadd.f32 %v1349, %v1466
      %v1497 = vadd.f32 %v1350, %v1471
      %v1498 = vadd.f32 %v1351, %v1474
      %v1499 = vadd.f32 %v1352, %v1479
      %v1500 = vadd.f32 %v1353, %v1482
      %1501 = vst.msk [vmem:[#allocation2] sm:$0xff] %vm270, %v1485
      %1502 = vst.msk [vmem:[#allocation2 + $0x8] sm:$0xff] %vm270, %v1486
      %1503 = vst.msk [vmem:[#allocation2 + $0x10] sm:$0xff] %vm270, %v1487
      %1504 = vst.msk [vmem:[#allocation2 + $0x18] sm:$0xff] %vm270, %v1488
      %1505 = vst.msk [vmem:[#allocation2 + $0x20] sm:$0xff] %vm270, %v1489
      %1506 = vst.msk [vmem:[#allocation2 + $0x28] sm:$0xff] %vm270, %v1490
      %1507 = vst.msk [vmem:[#allocation2 + $0x30] sm:$0xff] %vm270, %v1491
      %1508 = vst.msk [vmem:[#allocation2 + $0x38] sm:$0xff] %vm270, %v1492
      %1509 = vst.msk [vmem:[#allocation2 + $0x40] sm:$0xff] %vm270, %v1493
      %1510 = vst.msk [vmem:[#allocation2 + $0x48] sm:$0xff] %vm270, %v1494
      %1511 = vst.msk [vmem:[#allocation2 + $0x50] sm:$0xff] %vm270, %v1495
      %1512 = vst.msk [vmem:[#allocation2 + $0x58] sm:$0xff] %vm270, %v1496
      %1513 = vst.msk [vmem:[#allocation2 + $0x60] sm:$0xff] %vm270, %v1497
      %1514 = vst.msk [vmem:[#allocation2 + $0x68] sm:$0xff] %vm270, %v1498
      %1515 = vst.msk [vmem:[#allocation2 + $0x70] sm:$0xff] %vm270, %v1499
      %1516 = vst.msk [vmem:[#allocation2 + $0x78] sm:$0xff] %vm270, %v1500
      %v1517 = vld [vmem:[%s257] sm:$0xe]
      %v1518 = vld [vmem:[%s257 + $0x4] sm:$0xf]
      %v1519 = vld [vmem:[%s257 + $0x8] sm:$0xf]
      %v1520 = vld [vmem:[%s257 + $0xc] sm:$0xf]
      %v1521 = vld [vmem:[%s257 + $0x10] sm:$0xf]
      %v1522 = vld [vmem:[%s257 + $0x14] sm:$0xf]
      %v1523 = vld [vmem:[%s257 + $0x18] sm:$0xf]
      %v1524 = vld [vmem:[%s257 + $0x1c] sm:$0xf]
      %v1525 = vld [vmem:[%s257 + $0x20] sm:$0xf]
      %v1526 = vld [vmem:[%s257 + $0x24] sm:$0xf]
      %v1527 = vld [vmem:[%s257 + $0x28] sm:$0xf]
      %v1528 = vld [vmem:[%s257 + $0x2c] sm:$0xf]
      %v1529 = vld [vmem:[%s257 + $0x30] sm:$0xf]
      %v1530 = vld [vmem:[%s257 + $0x34] sm:$0xf]
      %v1531 = vld [vmem:[%s257 + $0x38] sm:$0xf]
      %v1532 = vld [vmem:[%s257 + $0x3c] sm:$0xf]
      %v1533 = vld [vmem:[%s257 + $0x40] sm:$0xf]
      %v1534 = vld [vmem:[%s257 + $0x44] sm:$0xf]
      %v1535 = vld [vmem:[%s257 + $0x48] sm:$0xf]
      %v1536 = vld [vmem:[%s257 + $0x4c] sm:$0xf]
      %v1537 = vld [vmem:[%s257 + $0x50] sm:$0x1]
      %v1538 = vld [vmem:[#allocation2] sm:$0xff]
      %v1539 = vld [vmem:[#allocation2 + $0x8] sm:$0xff]
      %v1540 = vld [vmem:[#allocation2 + $0x10] sm:$0xff]
      %v1541 = vld [vmem:[#allocation2 + $0x18] sm:$0xff]
      %v1542 = vld [vmem:[#allocation2 + $0x20] sm:$0xff]
      %v1543 = vld [vmem:[#allocation2 + $0x28] sm:$0xff]
      %v1544 = vld [vmem:[#allocation2 + $0x30] sm:$0xff]
      %v1545 = vld [vmem:[#allocation2 + $0x38] sm:$0xff]
      %v1546 = vld [vmem:[#allocation2 + $0x40] sm:$0xff]
      %v1547 = vld [vmem:[#allocation2 + $0x48] sm:$0xff]
      %v1548 = vld [vmem:[#allocation2 + $0x50] sm:$0xff]
      %v1549 = vld [vmem:[#allocation2 + $0x58] sm:$0xff]
      %v1550 = vld [vmem:[#allocation2 + $0x60] sm:$0xff]
      %v1551 = vld [vmem:[#allocation2 + $0x68] sm:$0xff]
      %v1552 = vld [vmem:[#allocation2 + $0x70] sm:$0xff]
      %v1553 = vld [vmem:[#allocation2 + $0x78] sm:$0xff]
      %s1554 = scalar_lea.vmem %s1, 16
      %v1555 = vld [vmem:[%s1554] sm:$0xf]
      %v1556 = vld [vmem:[%s1554 + $0x4] sm:$0xf]
      %v1574 = vunpack.c.l.b16 %v1517
      %v1575 = vunpack.c.l.b16 %v1518
      %v1576 = vunpack.c.l.b16 %v1519
      %v1577 = vunpack.c.l.b16 %v1520
      %v1578 = vunpack.c.l.b16 %v1521
      %v1579 = vunpack.c.l.b16 %v1522
      %v1580 = vunpack.c.l.b16 %v1523
      %v1581 = vunpack.c.l.b16 %v1524
      %v1582 = vunpack.c.l.b16 %v1525
      %v1583 = vunpack.c.l.b16 %v1526
      %v1584 = vunpack.c.l.b16 %v1527
      %v1585 = vunpack.c.l.b16 %v1528
      %v1586 = vunpack.c.l.b16 %v1529
      %v1587 = vunpack.c.l.b16 %v1530
      %v1588 = vunpack.c.l.b16 %v1531
      %v1589 = vunpack.c.l.b16 %v1532
      %v1590 = vunpack.c.l.b16 %v1533
      %v1591 = vpack.c.b16 %v1575, %v1574
      %v1592 = vpack.c.b16 %v1577, %v1576
      %v1593 = vpack.c.b16 %v1579, %v1578
      %v1594 = vpack.c.b16 %v1581, %v1580
      %v1595 = vpack.c.b16 %v1583, %v1582
      %v1596 = vpack.c.b16 %v1585, %v1584
      %v1597 = vpack.c.b16 %v1587, %v1586
      %v1598 = vpack.c.b16 %v1589, %v1588
      %v1599 = vpack.c.b16 %v1590, %v1590
      %vm1600 = vcmask 1046528
      %v1601 = vrot.slane %v1591, 1
      %v1602 = vrot.slane %v1592, 1
      %v1603 = vsel %vm1600, %v1601, %v1602
      %v1604 = vrot.slane %v1593, 1
      %v1605 = vsel %vm1600, %v1602, %v1604
      %v1606 = vrot.slane %v1594, 1
      %v1607 = vsel %vm1600, %v1604, %v1606
      %v1608 = vrot.slane %v1595, 1
      %v1609 = vsel %vm1600, %v1606, %v1608
      %v1610 = vrot.slane %v1596, 1
      %v1611 = vsel %vm1600, %v1608, %v1610
      %v1612 = vrot.slane %v1597, 1
      %v1613 = vsel %vm1600, %v1610, %v1612
      %v1614 = vrot.slane %v1598, 1
      %v1615 = vsel %vm1600, %v1612, %v1614
      %v1616 = vrot.slane %v1599, 1
      %v1617 = vsel %vm1600, %v1614, %v1616
      %v1620 = vunpack.c.l.b16 %v1555
      %v1621 = vunpack.c.l.b16 %v1556
      %v1622 = vpack.c.b16 %v1621, %v1620
      %v1625 = vsel %vm270, %v1603, 0
      %v1628 = vsel %vm270, %v1605, 0
      %v1631 = vsel %vm270, %v1607, 0
      %v1634 = vsel %vm270, %v1609, 0
      %v1637 = vsel %vm270, %v1611, 0
      %v1640 = vsel %vm270, %v1613, 0
      %v1643 = vsel %vm270, %v1615, 0
      %v1646 = vsel %vm270, %v1617, 0
      %1648 = vmatprep.subr.bf16.mxu0 0
      %1649 = vmatpush1.bf16.msra.mxu0 %v1622
      %1650 = vmatprep.subr.bf16.mxu0 0
      %1651 = vmatpush1.bf16.msra.mxu0 0
      %1652 = vmatprep.subr.bf16.mxu0 0
      %1653 = vmatpush1.bf16.msra.mxu0 0
      %1654 = vmatprep.subr.bf16.mxu0 0
      %1655 = vmatpush1.bf16.msra.mxu0 0
      %1656 = vmatprep.subr.bf16.mxu0 0
      %1657 = vmatpush1.bf16.msra.mxu0 0
      %1658 = vmatprep.subr.bf16.mxu0 0
      %1659 = vmatpush1.bf16.msra.mxu0 0
      %1660 = vmatprep.subr.bf16.mxu0 0
      %1661 = vmatpush1.bf16.msra.mxu0 0
      %1662 = vmatprep.subr.bf16.mxu0 0
      %1663 = vmatpush1.bf16.msra.mxu0 0
      %1664 = vmatprep.subr.bf16.mxu0 0
      %1665 = vmatpush1.bf16.msra.mxu0 0
      %1666 = vmatprep.subr.bf16.mxu0 0
      %1667 = vmatpush1.bf16.msra.mxu0 0
      %1668 = vmatprep.subr.bf16.mxu0 0
      %1669 = vmatpush1.bf16.msra.mxu0 0
      %1670 = vmatprep.subr.bf16.mxu0 0
      %1671 = vmatpush1.bf16.msra.mxu0 0
      %1672 = vmatprep.subr.bf16.mxu0 0
      %1673 = vmatpush1.bf16.msra.mxu0 0
      %1674 = vmatprep.subr.bf16.mxu0 0
      %1675 = vmatpush1.bf16.msra.mxu0 0
      %1676 = vmatprep.subr.bf16.mxu0 0
      %1677 = vmatpush1.bf16.msra.mxu0 0
      %1678 = vmatprep.subr.bf16.mxu0 0
      %1679 = vmatpush1.bf16.msra.mxu0 0
      %1680 = vmatprep.mubr.bf16.mxu0 0
      %1681 = vmatmul.mubr.bf16.gmra.mrb[0].mxu0 %v1625
      %v1682 = vpop.f32.mrb[0].mxu0
      %v1683 = vadd.f32 0.0, %v1682
      %v1684 = vpop.f32.mrb[0].mxu0
      %v1685 = vpop.f32.mrb[0].mxu0
      %v1686 = vadd.f32 0.0, %v1685
      %v1687 = vpop.f32.mrb[0].mxu0
      %1688 = vmatprep.mubr.bf16.mxu0 0
      %1689 = vmatmul.mubr.bf16.gmra.mrb[0].mxu0 %v1628
      %v1690 = vpop.f32.mrb[0].mxu0
      %v1691 = vadd.f32 0.0, %v1690
      %v1692 = vpop.f32.mrb[0].mxu0
      %v1693 = vpop.f32.mrb[0].mxu0
      %v1694 = vadd.f32 0.0, %v1693
      %v1695 = vpop.f32.mrb[0].mxu0
      %1696 = vmatprep.mubr.bf16.mxu0 0
      %1697 = vmatmul.mubr.bf16.gmra.mrb[0].mxu0 %v1631
      %v1698 = vpop.f32.mrb[0].mxu0
      %v1699 = vadd.f32 0.0, %v1698
      %v1700 = vpop.f32.mrb[0].mxu0
      %v1701 = vpop.f32.mrb[0].mxu0
      %v1702 = vadd.f32 0.0, %v1701
      %v1703 = vpop.f32.mrb[0].mxu0
      %1704 = vmatprep.mubr.bf16.mxu0 0
      %1705 = vmatmul.mubr.bf16.gmra.mrb[0].mxu0 %v1634
      %v1706 = vpop.f32.mrb[0].mxu0
      %v1707 = vadd.f32 0.0, %v1706
      %v1708 = vpop.f32.mrb[0].mxu0
      %v1709 = vpop.f32.mrb[0].mxu0
      %v1710 = vadd.f32 0.0, %v1709
      %v1711 = vpop.f32.mrb[0].mxu0
      %1712 = vmatprep.mubr.bf16.mxu0 0
      %1713 = vmatmul.mubr.bf16.gmra.mrb[0].mxu0 %v1637
      %v1714 = vpop.f32.mrb[0].mxu0
      %v1715 = vadd.f32 0.0, %v1714
      %v1716 = vpop.f32.mrb[0].mxu0
      %v1717 = vpop.f32.mrb[0].mxu0
      %v1718 = vadd.f32 0.0, %v1717
      %v1719 = vpop.f32.mrb[0].mxu0
      %1720 = vmatprep.mubr.bf16.mxu0 0
      %1721 = vmatmul.mubr.bf16.gmra.mrb[0].mxu0 %v1640
      %v1722 = vpop.f32.mrb[0].mxu0
      %v1723 = vadd.f32 0.0, %v1722
      %v1724 = vpop.f32.mrb[0].mxu0
      %v1725 = vpop.f32.mrb[0].mxu0
      %v1726 = vadd.f32 0.0, %v1725
      %v1727 = vpop.f32.mrb[0].mxu0
      %1728 = vmatprep.mubr.bf16.mxu0 0
      %1729 = vmatmul.mubr.bf16.gmra.mrb[0].mxu0 %v1643
      %v1730 = vpop.f32.mrb[0].mxu0
      %v1731 = vadd.f32 0.0, %v1730
      %v1732 = vpop.f32.mrb[0].mxu0
      %v1733 = vpop.f32.mrb[0].mxu0
      %v1734 = vadd.f32 0.0, %v1733
      %v1735 = vpop.f32.mrb[0].mxu0
      %1736 = vmatprep.mubr.bf16.mxu0 0
      %1737 = vmatmul.mubr.bf16.gmra.mrb[0].mxu0 %v1646
      %v1738 = vpop.f32.mrb[0].mxu0
      %v1739 = vadd.f32 0.0, %v1738
      %v1740 = vpop.f32.mrb[0].mxu0
      %v1741 = vpop.f32.mrb[0].mxu0
      %v1742 = vadd.f32 0.0, %v1741
      %v1743 = vpop.f32.mrb[0].mxu0
      %1744 = vdwg.mxu0
      %v1745 = vadd.f32 %v1538, %v1683
      %v1746 = vadd.f32 %v1539, %v1686
      %v1747 = vadd.f32 %v1540, %v1691
      %v1748 = vadd.f32 %v1541, %v1694
      %v1749 = vadd.f32 %v1542, %v1699
      %v1750 = vadd.f32 %v1543, %v1702
      %v1751 = vadd.f32 %v1544, %v1707
      %v1752 = vadd.f32 %v1545, %v1710
      %v1753 = vadd.f32 %v1546, %v1715
      %v1754 = vadd.f32 %v1547, %v1718
      %v1755 = vadd.f32 %v1548, %v1723
      %v1756 = vadd.f32 %v1549, %v1726
      %v1757 = vadd.f32 %v1550, %v1731
      %v1758 = vadd.f32 %v1551, %v1734
      %v1759 = vadd.f32 %v1552, %v1739
      %v1760 = vadd.f32 %v1553, %v1742
      %1761 = vst.msk [vmem:[#allocation2] sm:$0xff] %vm270, %v1745
      %1762 = vst.msk [vmem:[#allocation2 + $0x8] sm:$0xff] %vm270, %v1746
      %1763 = vst.msk [vmem:[#allocation2 + $0x10] sm:$0xff] %vm270, %v1747
      %1764 = vst.msk [vmem:[#allocation2 + $0x18] sm:$0xff] %vm270, %v1748
      %1765 = vst.msk [vmem:[#allocation2 + $0x20] sm:$0xff] %vm270, %v1749
      %1766 = vst.msk [vmem:[#allocation2 + $0x28] sm:$0xff] %vm270, %v1750
      %1767 = vst.msk [vmem:[#allocation2 + $0x30] sm:$0xff] %vm270, %v1751
      %1768 = vst.msk [vmem:[#allocation2 + $0x38] sm:$0xff] %vm270, %v1752
      %1769 = vst.msk [vmem:[#allocation2 + $0x40] sm:$0xff] %vm270, %v1753
      %1770 = vst.msk [vmem:[#allocation2 + $0x48] sm:$0xff] %vm270, %v1754
      %1771 = vst.msk [vmem:[#allocation2 + $0x50] sm:$0xff] %vm270, %v1755
      %1772 = vst.msk [vmem:[#allocation2 + $0x58] sm:$0xff] %vm270, %v1756
      %1773 = vst.msk [vmem:[#allocation2 + $0x60] sm:$0xff] %vm270, %v1757
      %1774 = vst.msk [vmem:[#allocation2 + $0x68] sm:$0xff] %vm270, %v1758
      %1775 = vst.msk [vmem:[#allocation2 + $0x70] sm:$0xff] %vm270, %v1759
      %1776 = vst.msk [vmem:[#allocation2 + $0x78] sm:$0xff] %vm270, %v1760
      %v1777 = vld [vmem:[#allocation2] sm:$0xff]
      %v1778 = vld [vmem:[#allocation2 + $0x8] sm:$0xff]
      %v1779 = vld [vmem:[#allocation2 + $0x10] sm:$0xff]
      %v1780 = vld [vmem:[#allocation2 + $0x18] sm:$0xff]
      %v1781 = vld [vmem:[#allocation2 + $0x20] sm:$0xff]
      %v1782 = vld [vmem:[#allocation2 + $0x28] sm:$0xff]
      %v1783 = vld [vmem:[#allocation2 + $0x30] sm:$0xff]
      %v1784 = vld [vmem:[#allocation2 + $0x38] sm:$0xff]
      %v1785 = vld [vmem:[#allocation2 + $0x40] sm:$0xff]
      %v1786 = vld [vmem:[#allocation2 + $0x48] sm:$0xff]
      %v1787 = vld [vmem:[#allocation2 + $0x50] sm:$0xff]
      %v1788 = vld [vmem:[#allocation2 + $0x58] sm:$0xff]
      %v1789 = vld [vmem:[#allocation2 + $0x60] sm:$0xff]
      %v1790 = vld [vmem:[#allocation2 + $0x68] sm:$0xff]
      %v1791 = vld [vmem:[#allocation2 + $0x70] sm:$0xff]
      %v1792 = vld [vmem:[#allocation2 + $0x78] sm:$0xff]
      %s1793 = scalar_lea.vmem %s1, 40
      %v1794 = vld [vmem:[%s1793] sm:$0xf]
      %v1795 = vld [vmem:[%s1793 + $0x4] sm:$0xf]
      %v1798 = vunpack.c.l.b16 %v1534
      %v1799 = vunpack.c.l.b16 %v1535
      %v1800 = vpack.c.b16 %v1798, %v1590
      %v1801 = vpack.c.b16 %v1799, %v1799
      %v1802 = vrot.slane %v1800, 1
      %v1803 = vsel %vm1600, %v1614, %v1802
      %v1804 = vrot.slane %v1801, 1
      %v1805 = vsel %vm1600, %v1802, %v1804
      %v1808 = vunpack.c.l.b16 %v1794
      %v1809 = vunpack.c.l.b16 %v1795
      %v1810 = vpack.c.b16 %v1809, %v1808
      %v1813 = vsel %vm270, %v1803, 0
      %v1816 = vsel %vm270, %v1805, 0
      %1818 = vmatprep.subr.bf16.mxu0 0
      %1819 = vmatpush1.bf16.msra.mxu0 %v1810
      %1820 = vmatprep.subr.bf16.mxu0 0
      %1821 = vmatpush1.bf16.msra.mxu0 0
      %1822 = vmatprep.subr.bf16.mxu0 0
      %1823 = vmatpush1.bf16.msra.mxu0 0
      %1824 = vmatprep.subr.bf16.mxu0 0
      %1825 = vmatpush1.bf16.msra.mxu0 0
      %1826 = vmatprep.subr.bf16.mxu0 0
      %1827 = vmatpush1.bf16.msra.mxu0 0
      %1828 = vmatprep.subr.bf16.mxu0 0
      %1829 = vmatpush1.bf16.msra.mxu0 0
      %1830 = vmatprep.subr.bf16.mxu0 0
      %1831 = vmatpush1.bf16.msra.mxu0 0
      %1832 = vmatprep.subr.bf16.mxu0 0
      %1833 = vmatpush1.bf16.msra.mxu0 0
      %1834 = vmatprep.subr.bf16.mxu0 0
      %1835 = vmatpush1.bf16.msra.mxu0 0
      %1836 = vmatprep.subr.bf16.mxu0 0
      %1837 = vmatpush1.bf16.msra.mxu0 0
      %1838 = vmatprep.subr.bf16.mxu0 0
      %1839 = vmatpush1.bf16.msra.mxu0 0
      %1840 = vmatprep.subr.bf16.mxu0 0
      %1841 = vmatpush1.bf16.msra.mxu0 0
      %1842 = vmatprep.subr.bf16.mxu0 0
      %1843 = vmatpush1.bf16.msra.mxu0 0
      %1844 = vmatprep.subr.bf16.mxu0 0
      %1845 = vmatpush1.bf16.msra.mxu0 0
      %1846 = vmatprep.subr.bf16.mxu0 0
      %1847 = vmatpush1.bf16.msra.mxu0 0
      %1848 = vmatprep.subr.bf16.mxu0 0
      %1849 = vmatpush1.bf16.msra.mxu0 0
      %1850 = vmatprep.mubr.bf16.mxu0 0
      %1851 = vmatmul.mubr.bf16.gmra.mrb[0].mxu0 %v1628
      %v1852 = vpop.f32.mrb[0].mxu0
      %v1853 = vadd.f32 0.0, %v1852
      %v1854 = vpop.f32.mrb[0].mxu0
      %v1855 = vpop.f32.mrb[0].mxu0
      %v1856 = vadd.f32 0.0, %v1855
      %v1857 = vpop.f32.mrb[0].mxu0
      %1858 = vmatprep.mubr.bf16.mxu0 0
      %1859 = vmatmul.mubr.bf16.gmra.mrb[0].mxu0 %v1631
      %v1860 = vpop.f32.mrb[0].mxu0
      %v1861 = vadd.f32 0.0, %v1860
      %v1862 = vpop.f32.mrb[0].mxu0
      %v1863 = vpop.f32.mrb[0].mxu0
      %v1864 = vadd.f32 0.0, %v1863
      %v1865 = vpop.f32.mrb[0].mxu0
      %1866 = vmatprep.mubr.bf16.mxu0 0
      %1867 = vmatmul.mubr.bf16.gmra.mrb[0].mxu0 %v1634
      %v1868 = vpop.f32.mrb[0].mxu0
      %v1869 = vadd.f32 0.0, %v1868
      %v1870 = vpop.f32.mrb[0].mxu0
      %v1871 = vpop.f32.mrb[0].mxu0
      %v1872 = vadd.f32 0.0, %v1871
      %v1873 = vpop.f32.mrb[0].mxu0
      %1874 = vmatprep.mubr.bf16.mxu0 0
      %1875 = vmatmul.mubr.bf16.gmra.mrb[0].mxu0 %v1637
      %v1876 = vpop.f32.mrb[0].mxu0
      %v1877 = vadd.f32 0.0, %v1876
      %v1878 = vpop.f32.mrb[0].mxu0
      %v1879 = vpop.f32.mrb[0].mxu0
      %v1880 = vadd.f32 0.0, %v1879
      %v1881 = vpop.f32.mrb[0].mxu0
      %1882 = vmatprep.mubr.bf16.mxu0 0
      %1883 = vmatmul.mubr.bf16.gmra.mrb[0].mxu0 %v1640
      %v1884 = vpop.f32.mrb[0].mxu0
      %v1885 = vadd.f32 0.0, %v1884
      %v1886 = vpop.f32.mrb[0].mxu0
      %v1887 = vpop.f32.mrb[0].mxu0
      %v1888 = vadd.f32 0.0, %v1887
      %v1889 = vpop.f32.mrb[0].mxu0
      %1890 = vmatprep.mubr.bf16.mxu0 0
      %1891 = vmatmul.mubr.bf16.gmra.mrb[0].mxu0 %v1643
      %v1892 = vpop.f32.mrb[0].mxu0
      %v1893 = vadd.f32 0.0, %v1892
      %v1894 = vpop.f32.mrb[0].mxu0
      %v1895 = vpop.f32.mrb[0].mxu0
      %v1896 = vadd.f32 0.0, %v1895
      %v1897 = vpop.f32.mrb[0].mxu0
      %1898 = vmatprep.mubr.bf16.mxu0 0
      %1899 = vmatmul.mubr.bf16.gmra.mrb[0].mxu0 %v1813
      %v1900 = vpop.f32.mrb[0].mxu0
      %v1901 = vadd.f32 0.0, %v1900
      %v1902 = vpop.f32.mrb[0].mxu0
      %v1903 = vpop.f32.mrb[0].mxu0
      %v1904 = vadd.f32 0.0, %v1903
      %v1905 = vpop.f32.mrb[0].mxu0
      %1906 = vmatprep.mubr.bf16.mxu0 0
      %1907 = vmatmul.mubr.bf16.gmra.mrb[0].mxu0 %v1816
      %v1908 = vpop.f32.mrb[0].mxu0
      %v1909 = vadd.f32 0.0, %v1908
      %v1910 = vpop.f32.mrb[0].mxu0
      %v1911 = vpop.f32.mrb[0].mxu0
      %v1912 = vadd.f32 0.0, %v1911
      %v1913 = vpop.f32.mrb[0].mxu0
      %1914 = vdwg.mxu0
      %v1915 = vadd.f32 %v1777, %v1853
      %v1916 = vadd.f32 %v1778, %v1856
      %v1917 = vadd.f32 %v1779, %v1861
      %v1918 = vadd.f32 %v1780, %v1864
      %v1919 = vadd.f32 %v1781, %v1869
      %v1920 = vadd.f32 %v1782, %v1872
      %v1921 = vadd.f32 %v1783, %v1877
      %v1922 = vadd.f32 %v1784, %v1880
      %v1923 = vadd.f32 %v1785, %v1885
      %v1924 = vadd.f32 %v1786, %v1888
      %v1925 = vadd.f32 %v1787, %v1893
      %v1926 = vadd.f32 %v1788, %v1896
      %v1927 = vadd.f32 %v1789, %v1901
      %v1928 = vadd.f32 %v1790, %v1904
      %v1929 = vadd.f32 %v1791, %v1909
      %v1930 = vadd.f32 %v1792, %v1912
      %1931 = vst.msk [vmem:[#allocation2] sm:$0xff] %vm270, %v1915
      %1932 = vst.msk [vmem:[#allocation2 + $0x8] sm:$0xff] %vm270, %v1916
      %1933 = vst.msk [vmem:[#allocation2 + $0x10] sm:$0xff] %vm270, %v1917
      %1934 = vst.msk [vmem:[#allocation2 + $0x18] sm:$0xff] %vm270, %v1918
      %1935 = vst.msk [vmem:[#allocation2 + $0x20] sm:$0xff] %vm270, %v1919
      %1936 = vst.msk [vmem:[#allocation2 + $0x28] sm:$0xff] %vm270, %v1920
      %1937 = vst.msk [vmem:[#allocation2 + $0x30] sm:$0xff] %vm270, %v1921
      %1938 = vst.msk [vmem:[#allocation2 + $0x38] sm:$0xff] %vm270, %v1922
      %1939 = vst.msk [vmem:[#allocation2 + $0x40] sm:$0xff] %vm270, %v1923
      %1940 = vst.msk [vmem:[#allocation2 + $0x48] sm:$0xff] %vm270, %v1924
      %1941 = vst.msk [vmem:[#allocation2 + $0x50] sm:$0xff] %vm270, %v1925
      %1942 = vst.msk [vmem:[#allocation2 + $0x58] sm:$0xff] %vm270, %v1926
      %1943 = vst.msk [vmem:[#allocation2 + $0x60] sm:$0xff] %vm270, %v1927
      %1944 = vst.msk [vmem:[#allocation2 + $0x68] sm:$0xff] %vm270, %v1928
      %1945 = vst.msk [vmem:[#allocation2 + $0x70] sm:$0xff] %vm270, %v1929
      %1946 = vst.msk [vmem:[#allocation2 + $0x78] sm:$0xff] %vm270, %v1930
      %v1947 = vld [vmem:[#allocation2] sm:$0xff]
      %v1948 = vld [vmem:[#allocation2 + $0x8] sm:$0xff]
      %v1949 = vld [vmem:[#allocation2 + $0x10] sm:$0xff]
      %v1950 = vld [vmem:[#allocation2 + $0x18] sm:$0xff]
      %v1951 = vld [vmem:[#allocation2 + $0x20] sm:$0xff]
      %v1952 = vld [vmem:[#allocation2 + $0x28] sm:$0xff]
      %v1953 = vld [vmem:[#allocation2 + $0x30] sm:$0xff]
      %v1954 = vld [vmem:[#allocation2 + $0x38] sm:$0xff]
      %v1955 = vld [vmem:[#allocation2 + $0x40] sm:$0xff]
      %v1956 = vld [vmem:[#allocation2 + $0x48] sm:$0xff]
      %v1957 = vld [vmem:[#allocation2 + $0x50] sm:$0xff]
      %v1958 = vld [vmem:[#allocation2 + $0x58] sm:$0xff]
      %v1959 = vld [vmem:[#allocation2 + $0x60] sm:$0xff]
      %v1960 = vld [vmem:[#allocation2 + $0x68] sm:$0xff]
      %v1961 = vld [vmem:[#allocation2 + $0x70] sm:$0xff]
      %v1962 = vld [vmem:[#allocation2 + $0x78] sm:$0xff]
      %s1963 = scalar_lea.vmem %s1, 64
      %v1964 = vld [vmem:[%s1963] sm:$0xf]
      %v1965 = vld [vmem:[%s1963 + $0x4] sm:$0xf]
      %v1968 = vunpack.c.l.b16 %v1536
      %v1969 = vunpack.c.l.b16 %v1537
      %v1970 = vpack.c.b16 %v1968, %v1799
      %v1971 = vpack.c.b16 %v1969, %v1969
      %v1972 = vrot.slane %v1970, 1
      %v1973 = vsel %vm1600, %v1802, %v1972
      %v1974 = vrot.slane %v1971, 1
      %v1975 = vsel %vm1600, %v1972, %v1974
      %v1978 = vunpack.c.l.b16 %v1964
      %v1979 = vunpack.c.l.b16 %v1965
      %v1980 = vpack.c.b16 %v1979, %v1978
      %v1983 = vsel %vm270, %v1973, 0
      %v1986 = vsel %vm270, %v1975, 0
      %1988 = vmatprep.subr.bf16.mxu0 0
      %1989 = vmatpush1.bf16.msra.mxu0 %v1980
      %1990 = vmatprep.subr.bf16.mxu0 0
      %1991 = vmatpush1.bf16.msra.mxu0 0
      %1992 = vmatprep.subr.bf16.mxu0 0
      %1993 = vmatpush1.bf16.msra.mxu0 0
      %1994 = vmatprep.subr.bf16.mxu0 0
      %1995 = vmatpush1.bf16.msra.mxu0 0
      %1996 = vmatprep.subr.bf16.mxu0 0
      %1997 = vmatpush1.bf16.msra.mxu0 0
      %1998 = vmatprep.subr.bf16.mxu0 0
      %1999 = vmatpush1.bf16.msra.mxu0 0
      %2000 = vmatprep.subr.bf16.mxu0 0
      %2001 = vmatpush1.bf16.msra.mxu0 0
      %2002 = vmatprep.subr.bf16.mxu0 0
      %2003 = vmatpush1.bf16.msra.mxu0 0
      %2004 = vmatprep.subr.bf16.mxu0 0
      %2005 = vmatpush1.bf16.msra.mxu0 0
      %2006 = vmatprep.subr.bf16.mxu0 0
      %2007 = vmatpush1.bf16.msra.mxu0 0
      %2008 = vmatprep.subr.bf16.mxu0 0
      %2009 = vmatpush1.bf16.msra.mxu0 0
      %2010 = vmatprep.subr.bf16.mxu0 0
      %2011 = vmatpush1.bf16.msra.mxu0 0
      %2012 = vmatprep.subr.bf16.mxu0 0
      %2013 = vmatpush1.bf16.msra.mxu0 0
      %2014 = vmatprep.subr.bf16.mxu0 0
      %2015 = vmatpush1.bf16.msra.mxu0 0
      %2016 = vmatprep.subr.bf16.mxu0 0
      %2017 = vmatpush1.bf16.msra.mxu0 0
      %2018 = vmatprep.subr.bf16.mxu0 0
      %2019 = vmatpush1.bf16.msra.mxu0 0
      %2020 = vmatprep.mubr.bf16.mxu0 0
      %2021 = vmatmul.mubr.bf16.gmra.mrb[0].mxu0 %v1631
      %v2022 = vpop.f32.mrb[0].mxu0
      %v2023 = vadd.f32 0.0, %v2022
      %v2024 = vpop.f32.mrb[0].mxu0
      %v2025 = vpop.f32.mrb[0].mxu0
      %v2026 = vadd.f32 0.0, %v2025
      %v2027 = vpop.f32.mrb[0].mxu0
      %2028 = vmatprep.mubr.bf16.mxu0 0
      %2029 = vmatmul.mubr.bf16.gmra.mrb[0].mxu0 %v1634
      %v2030 = vpop.f32.mrb[0].mxu0
      %v2031 = vadd.f32 0.0, %v2030
      %v2032 = vpop.f32.mrb[0].mxu0
      %v2033 = vpop.f32.mrb[0].mxu0
      %v2034 = vadd.f32 0.0, %v2033
      %v2035 = vpop.f32.mrb[0].mxu0
      %2036 = vmatprep.mubr.bf16.mxu0 0
      %2037 = vmatmul.mubr.bf16.gmra.mrb[0].mxu0 %v1637
      %v2038 = vpop.f32.mrb[0].mxu0
      %v2039 = vadd.f32 0.0, %v2038
      %v2040 = vpop.f32.mrb[0].mxu0
      %v2041 = vpop.f32.mrb[0].mxu0
      %v2042 = vadd.f32 0.0, %v2041
      %v2043 = vpop.f32.mrb[0].mxu0
      %2044 = vmatprep.mubr.bf16.mxu0 0
      %2045 = vmatmul.mubr.bf16.gmra.mrb[0].mxu0 %v1640
      %v2046 = vpop.f32.mrb[0].mxu0
      %v2047 = vadd.f32 0.0, %v2046
      %v2048 = vpop.f32.mrb[0].mxu0
      %v2049 = vpop.f32.mrb[0].mxu0
      %v2050 = vadd.f32 0.0, %v2049
      %v2051 = vpop.f32.mrb[0].mxu0
      %2052 = vmatprep.mubr.bf16.mxu0 0
      %2053 = vmatmul.mubr.bf16.gmra.mrb[0].mxu0 %v1643
      %v2054 = vpop.f32.mrb[0].mxu0
      %v2055 = vadd.f32 0.0, %v2054
      %v2056 = vpop.f32.mrb[0].mxu0
      %v2057 = vpop.f32.mrb[0].mxu0
      %v2058 = vadd.f32 0.0, %v2057
      %v2059 = vpop.f32.mrb[0].mxu0
      %2060 = vmatprep.mubr.bf16.mxu0 0
      %2061 = vmatmul.mubr.bf16.gmra.mrb[0].mxu0 %v1813
      %v2062 = vpop.f32.mrb[0].mxu0
      %v2063 = vadd.f32 0.0, %v2062
      %v2064 = vpop.f32.mrb[0].mxu0
      %v2065 = vpop.f32.mrb[0].mxu0
      %v2066 = vadd.f32 0.0, %v2065
      %v2067 = vpop.f32.mrb[0].mxu0
      %2068 = vmatprep.mubr.bf16.mxu0 0
      %2069 = vmatmul.mubr.bf16.gmra.mrb[0].mxu0 %v1983
      %v2070 = vpop.f32.mrb[0].mxu0
      %v2071 = vadd.f32 0.0, %v2070
      %v2072 = vpop.f32.mrb[0].mxu0
      %v2073 = vpop.f32.mrb[0].mxu0
      %v2074 = vadd.f32 0.0, %v2073
      %v2075 = vpop.f32.mrb[0].mxu0
      %2076 = vmatprep.mubr.bf16.mxu0 0
      %2077 = vmatmul.mubr.bf16.gmra.mrb[0].mxu0 %v1986
      %v2078 = vpop.f32.mrb[0].mxu0
      %v2079 = vadd.f32 0.0, %v2078
      %v2080 = vpop.f32.mrb[0].mxu0
      %v2081 = vpop.f32.mrb[0].mxu0
      %v2082 = vadd.f32 0.0, %v2081
      %v2083 = vpop.f32.mrb[0].mxu0
      %2084 = vdwg.mxu0
      %v2085 = vadd.f32 %v1947, %v2023
      %v2086 = vadd.f32 %v1948, %v2026
      %v2087 = vadd.f32 %v1949, %v2031
      %v2088 = vadd.f32 %v1950, %v2034
      %v2089 = vadd.f32 %v1951, %v2039
      %v2090 = vadd.f32 %v1952, %v2042
      %v2091 = vadd.f32 %v1953, %v2047
      %v2092 = vadd.f32 %v1954, %v2050
      %v2093 = vadd.f32 %v1955, %v2055
      %v2094 = vadd.f32 %v1956, %v2058
      %v2095 = vadd.f32 %v1957, %v2063
      %v2096 = vadd.f32 %v1958, %v2066
      %v2097 = vadd.f32 %v1959, %v2071
      %v2098 = vadd.f32 %v1960, %v2074
      %v2099 = vadd.f32 %v1961, %v2079
      %v2100 = vadd.f32 %v1962, %v2082
      %2101 = vst.msk [vmem:[#allocation2] sm:$0xff] %vm270, %v2085
      %2102 = vst.msk [vmem:[#allocation2 + $0x8] sm:$0xff] %vm270, %v2086
      %2103 = vst.msk [vmem:[#allocation2 + $0x10] sm:$0xff] %vm270, %v2087
      %2104 = vst.msk [vmem:[#allocation2 + $0x18] sm:$0xff] %vm270, %v2088
      %2105 = vst.msk [vmem:[#allocation2 + $0x20] sm:$0xff] %vm270, %v2089
      %2106 = vst.msk [vmem:[#allocation2 + $0x28] sm:$0xff] %vm270, %v2090
      %2107 = vst.msk [vmem:[#allocation2 + $0x30] sm:$0xff] %vm270, %v2091
      %2108 = vst.msk [vmem:[#allocation2 + $0x38] sm:$0xff] %vm270, %v2092
      %2109 = vst.msk [vmem:[#allocation2 + $0x40] sm:$0xff] %vm270, %v2093
      %2110 = vst.msk [vmem:[#allocation2 + $0x48] sm:$0xff] %vm270, %v2094
      %2111 = vst.msk [vmem:[#allocation2 + $0x50] sm:$0xff] %vm270, %v2095
      %2112 = vst.msk [vmem:[#allocation2 + $0x58] sm:$0xff] %vm270, %v2096
      %2113 = vst.msk [vmem:[#allocation2 + $0x60] sm:$0xff] %vm270, %v2097
      %2114 = vst.msk [vmem:[#allocation2 + $0x68] sm:$0xff] %vm270, %v2098
      %2115 = vst.msk [vmem:[#allocation2 + $0x70] sm:$0xff] %vm270, %v2099
      %2116 = vst.msk [vmem:[#allocation2 + $0x78] sm:$0xff] %vm270, %v2100
      %v2117 = vld [vmem:[#allocation2] sm:$0xff]
      %v2118 = vld [vmem:[#allocation2 + $0x8] sm:$0xff]
      %v2119 = vld [vmem:[#allocation2 + $0x10] sm:$0xff]
      %v2120 = vld [vmem:[#allocation2 + $0x18] sm:$0xff]
      %v2121 = vld [vmem:[#allocation2 + $0x20] sm:$0xff]
      %v2122 = vld [vmem:[#allocation2 + $0x28] sm:$0xff]
      %v2123 = vld [vmem:[#allocation2 + $0x30] sm:$0xff]
      %v2124 = vld [vmem:[#allocation2 + $0x38] sm:$0xff]
      %v2125 = vld [vmem:[#allocation2 + $0x40] sm:$0xff]
      %v2126 = vld [vmem:[#allocation2 + $0x48] sm:$0xff]
      %v2127 = vld [vmem:[#allocation2 + $0x50] sm:$0xff]
      %v2128 = vld [vmem:[#allocation2 + $0x58] sm:$0xff]
      %v2129 = vld [vmem:[#allocation2 + $0x60] sm:$0xff]
      %v2130 = vld [vmem:[#allocation2 + $0x68] sm:$0xff]
      %v2131 = vld [vmem:[#allocation2 + $0x70] sm:$0xff]
      %v2132 = vld [vmem:[#allocation2 + $0x78] sm:$0xff]
      %v2133 = vld [vmem:[%s2] sm:$0x1]
      %v2135 = vlaneseq
      %v2136 = vshrl.u32 %v2135, 7
      %v2137 = vsub.s32 0, %v2136
      %v2138 = vrot.slane %v2133, %v2137
      %v2140 = vadd.f32 %v2117, %v2138
      %v2141 = vadd.f32 %v2118, %v2138
      %v2142 = vadd.f32 %v2119, %v2138
      %v2143 = vadd.f32 %v2120, %v2138
      %v2144 = vadd.f32 %v2121, %v2138
      %v2145 = vadd.f32 %v2122, %v2138
      %v2146 = vadd.f32 %v2123, %v2138
      %v2147 = vadd.f32 %v2124, %v2138
      %v2148 = vadd.f32 %v2125, %v2138
      %v2149 = vadd.f32 %v2126, %v2138
      %v2150 = vadd.f32 %v2127, %v2138
      %v2151 = vadd.f32 %v2128, %v2138
      %v2152 = vadd.f32 %v2129, %v2138
      %v2153 = vadd.f32 %v2130, %v2138
      %v2154 = vadd.f32 %v2131, %v2138
      %v2155 = vadd.f32 %v2132, %v2138
      %2156 = vst.msk [vmem:[%s262] sm:$0xff] %vm270, %v2140
      %2157 = vst.msk [vmem:[%s262 + $0x8] sm:$0xff] %vm270, %v2141
      %2158 = vst.msk [vmem:[%s262 + $0x10] sm:$0xff] %vm270, %v2142
      %2159 = vst.msk [vmem:[%s262 + $0x18] sm:$0xff] %vm270, %v2143
      %2160 = vst.msk [vmem:[%s262 + $0x20] sm:$0xff] %vm270, %v2144
      %2161 = vst.msk [vmem:[%s262 + $0x28] sm:$0xff] %vm270, %v2145
      %2162 = vst.msk [vmem:[%s262 + $0x30] sm:$0xff] %vm270, %v2146
      %2163 = vst.msk [vmem:[%s262 + $0x38] sm:$0xff] %vm270, %v2147
      %2164 = vst.msk [vmem:[%s262 + $0x40] sm:$0xff] %vm270, %v2148
      %2165 = vst.msk [vmem:[%s262 + $0x48] sm:$0xff] %vm270, %v2149
      %2166 = vst.msk [vmem:[%s262 + $0x50] sm:$0xff] %vm270, %v2150
      %2167 = vst.msk [vmem:[%s262 + $0x58] sm:$0xff] %vm270, %v2151
      %2168 = vst.msk [vmem:[%s262 + $0x60] sm:$0xff] %vm270, %v2152
      %2169 = vst.msk [vmem:[%s262 + $0x68] sm:$0xff] %vm270, %v2153
      %2170 = vst.msk [vmem:[%s262 + $0x70] sm:$0xff] %vm270, %v2154
      %2171 = vst.msk [vmem:[%s262 + $0x78] sm:$0xff] %vm270, %v2155
      %v2172 = vld [vmem:[%s3] sm:$0xff]
      %v2173 = vld [vmem:[%s3 + $0x8] sm:$0xff]
      %v2174 = vld [vmem:[%s3 + $0x10] sm:$0xff]
      %v2175 = vld [vmem:[%s3 + $0x18] sm:$0xff]
      %v2176 = vld [vmem:[%s3 + $0x20] sm:$0xff]
      %v2177 = vld [vmem:[%s3 + $0x28] sm:$0xff]
      %v2178 = vld [vmem:[%s3 + $0x30] sm:$0xff]
      %v2179 = vld [vmem:[%s3 + $0x38] sm:$0xff]
      %v2180 = vld [vmem:[%s3 + $0x40] sm:$0xff]
      %v2181 = vld [vmem:[%s3 + $0x48] sm:$0xff]
      %v2182 = vld [vmem:[%s3 + $0x50] sm:$0xff]
      %v2183 = vld [vmem:[%s3 + $0x58] sm:$0xff]
      %v2184 = vld [vmem:[%s3 + $0x60] sm:$0xff]
      %v2185 = vld [vmem:[%s3 + $0x68] sm:$0xff]
      %v2186 = vld [vmem:[%s3 + $0x70] sm:$0xff]
      %v2187 = vld [vmem:[%s3 + $0x78] sm:$0xff]
      %2189 = vset.pattern.permute.xlu0 0
      %2190 = vperm.xlu0 %2189, %v2172
      %v2191 = vpop.permute.xlu0 %2190
      %2194 = vset.pattern.permute.xlu0 0
      %2195 = vperm.xlu0 %2194, %v2173
      %v2196 = vpop.permute.xlu0 %2195
      %2199 = vset.pattern.permute.xlu0 0
      %2200 = vperm.xlu0 %2199, %v2174
      %v2201 = vpop.permute.xlu0 %2200
      %2204 = vset.pattern.permute.xlu0 0
      %2205 = vperm.xlu0 %2204, %v2175
      %v2206 = vpop.permute.xlu0 %2205
      %2209 = vset.pattern.permute.xlu0 0
      %2210 = vperm.xlu0 %2209, %v2176
      %v2211 = vpop.permute.xlu0 %2210
      %2214 = vset.pattern.permute.xlu0 0
      %2215 = vperm.xlu0 %2214, %v2177
      %v2216 = vpop.permute.xlu0 %2215
      %2219 = vset.pattern.permute.xlu0 0
      %2220 = vperm.xlu0 %2219, %v2178
      %v2221 = vpop.permute.xlu0 %2220
      %2224 = vset.pattern.permute.xlu0 0
      %2225 = vperm.xlu0 %2224, %v2179
      %v2226 = vpop.permute.xlu0 %2225
      %2229 = vset.pattern.permute.xlu0 0
      %2230 = vperm.xlu0 %2229, %v2180
      %v2231 = vpop.permute.xlu0 %2230
      %2234 = vset.pattern.permute.xlu0 0
      %2235 = vperm.xlu0 %2234, %v2181
      %v2236 = vpop.permute.xlu0 %2235
      %2239 = vset.pattern.permute.xlu0 0
      %2240 = vperm.xlu0 %2239, %v2182
      %v2241 = vpop.permute.xlu0 %2240
      %2244 = vset.pattern.permute.xlu0 0
      %2245 = vperm.xlu0 %2244, %v2183
      %v2246 = vpop.permute.xlu0 %2245
      %2249 = vset.pattern.permute.xlu0 0
      %2250 = vperm.xlu0 %2249, %v2184
      %v2251 = vpop.permute.xlu0 %2250
      %2254 = vset.pattern.permute.xlu0 0
      %2255 = vperm.xlu0 %2254, %v2185
      %v2256 = vpop.permute.xlu0 %2255
      %2259 = vset.pattern.permute.xlu0 0
      %2260 = vperm.xlu0 %2259, %v2186
      %v2261 = vpop.permute.xlu0 %2260
      %2264 = vset.pattern.permute.xlu0 0
      %2265 = vperm.xlu0 %2264, %v2187
      %v2266 = vpop.permute.xlu0 %2265
      %v2268 = vmul.f32 %v2140, %v2191
      %v2269 = vmul.f32 %v2141, %v2196
      %v2270 = vmul.f32 %v2142, %v2201
      %v2271 = vmul.f32 %v2143, %v2206
      %v2272 = vmul.f32 %v2144, %v2211
      %v2273 = vmul.f32 %v2145, %v2216
      %v2274 = vmul.f32 %v2146, %v2221
      %v2275 = vmul.f32 %v2147, %v2226
      %v2276 = vmul.f32 %v2148, %v2231
      %v2277 = vmul.f32 %v2149, %v2236
      %v2278 = vmul.f32 %v2150, %v2241
      %v2279 = vmul.f32 %v2151, %v2246
      %v2280 = vmul.f32 %v2152, %v2251
      %v2281 = vmul.f32 %v2153, %v2256
      %v2282 = vmul.f32 %v2154, %v2261
      %v2283 = vmul.f32 %v2155, %v2266
      %v2284 = vsel %vm270, %v2268, 0.0
      %v2285 = vsel %vm270, %v2269, 0.0
      %v2286 = vadd.f32 %v2284, %v2285
      %v2287 = vsel %vm270, %v2270, 0.0
      %v2288 = vadd.f32 %v2286, %v2287
      %v2289 = vsel %vm270, %v2271, 0.0
      %v2290 = vadd.f32 %v2288, %v2289
      %v2291 = vsel %vm270, %v2272, 0.0
      %v2292 = vadd.f32 %v2290, %v2291
      %v2293 = vsel %vm270, %v2273, 0.0
      %v2294 = vadd.f32 %v2292, %v2293
      %v2295 = vsel %vm270, %v2274, 0.0
      %v2296 = vadd.f32 %v2294, %v2295
      %v2297 = vsel %vm270, %v2275, 0.0
      %v2298 = vadd.f32 %v2296, %v2297
      %v2299 = vsel %vm270, %v2276, 0.0
      %v2300 = vadd.f32 %v2298, %v2299
      %v2301 = vsel %vm270, %v2277, 0.0
      %v2302 = vadd.f32 %v2300, %v2301
      %v2303 = vsel %vm270, %v2278, 0.0
      %v2304 = vadd.f32 %v2302, %v2303
      %v2305 = vsel %vm270, %v2279, 0.0
      %v2306 = vadd.f32 %v2304, %v2305
      %v2307 = vsel %vm270, %v2280, 0.0
      %v2308 = vadd.f32 %v2306, %v2307
      %v2309 = vsel %vm270, %v2281, 0.0
      %v2310 = vadd.f32 %v2308, %v2309
      %v2311 = vsel %vm270, %v2282, 0.0
      %v2312 = vadd.f32 %v2310, %v2311
      %v2313 = vsel %vm270, %v2283, 0.0
      %v2314 = vadd.f32 %v2312, %v2313
      %v2315 = vrot.slane %v2314, 4
      %v2316 = vadd.f32 %v2314, %v2315
      %v2317 = vrot.slane %v2316, 2
      %v2318 = vadd.f32 %v2316, %v2317
      %v2319 = vrot.slane %v2318, 1
      %v2320 = vadd.f32 %v2318, %v2319
      %vm2321 = vcmask 122880
      %2322 = vst.msk [vmem:[%s265] sm:$0x1] %vm2321, %v2320
      %v2323 = vmul.f32 %v2140, %v2140
      %v2324 = vmul.f32 %v2141, %v2141
      %v2325 = vmul.f32 %v2142, %v2142
      %v2326 = vmul.f32 %v2143, %v2143
      %v2327 = vmul.f32 %v2144, %v2144
      %v2328 = vmul.f32 %v2145, %v2145
      %v2329 = vmul.f32 %v2146, %v2146
      %v2330 = vmul.f32 %v2147, %v2147
      %v2331 = vmul.f32 %v2148, %v2148
      %v2332 = vmul.f32 %v2149, %v2149
      %v2333 = vmul.f32 %v2150, %v2150
      %v2334 = vmul.f32 %v2151, %v2151
      %v2335 = vmul.f32 %v2152, %v2152
      %v2336 = vmul.f32 %v2153, %v2153
      %v2337 = vmul.f32 %v2154, %v2154
      %v2338 = vmul.f32 %v2155, %v2155
      %v2339 = vmul.f32 %v2323, %v2191
      %v2340 = vmul.f32 %v2324, %v2196
      %v2341 = vmul.f32 %v2325, %v2201
      %v2342 = vmul.f32 %v2326, %v2206
      %v2343 = vmul.f32 %v2327, %v2211
      %v2344 = vmul.f32 %v2328, %v2216
      %v2345 = vmul.f32 %v2329, %v2221
      %v2346 = vmul.f32 %v2330, %v2226
      %v2347 = vmul.f32 %v2331, %v2231
      %v2348 = vmul.f32 %v2332, %v2236
      %v2349 = vmul.f32 %v2333, %v2241
      %v2350 = vmul.f32 %v2334, %v2246
      %v2351 = vmul.f32 %v2335, %v2251
      %v2352 = vmul.f32 %v2336, %v2256
      %v2353 = vmul.f32 %v2337, %v2261
      %v2354 = vmul.f32 %v2338, %v2266
      %v2355 = vsel %vm270, %v2339, 0.0
      %v2356 = vsel %vm270, %v2340, 0.0
      %v2357 = vadd.f32 %v2355, %v2356
      %v2358 = vsel %vm270, %v2341, 0.0
      %v2359 = vadd.f32 %v2357, %v2358
      %v2360 = vsel %vm270, %v2342, 0.0
      %v2361 = vadd.f32 %v2359, %v2360
      %v2362 = vsel %vm270, %v2343, 0.0
      %v2363 = vadd.f32 %v2361, %v2362
      %v2364 = vsel %vm270, %v2344, 0.0
      %v2365 = vadd.f32 %v2363, %v2364
      %v2366 = vsel %vm270, %v2345, 0.0
      %v2367 = vadd.f32 %v2365, %v2366
      %v2368 = vsel %vm270, %v2346, 0.0
      %v2369 = vadd.f32 %v2367, %v2368
      %v2370 = vsel %vm270, %v2347, 0.0
      %v2371 = vadd.f32 %v2369, %v2370
      %v2372 = vsel %vm270, %v2348, 0.0
      %v2373 = vadd.f32 %v2371, %v2372
      %v2374 = vsel %vm270, %v2349, 0.0
      %v2375 = vadd.f32 %v2373, %v2374
      %v2376 = vsel %vm270, %v2350, 0.0
      %v2377 = vadd.f32 %v2375, %v2376
      %v2378 = vsel %vm270, %v2351, 0.0
      %v2379 = vadd.f32 %v2377, %v2378
      %v2380 = vsel %vm270, %v2352, 0.0
      %v2381 = vadd.f32 %v2379, %v2380
      %v2382 = vsel %vm270, %v2353, 0.0
      %v2383 = vadd.f32 %v2381, %v2382
      %v2384 = vsel %vm270, %v2354, 0.0
      %v2385 = vadd.f32 %v2383, %v2384
      %v2386 = vrot.slane %v2385, 4
      %v2387 = vadd.f32 %v2385, %v2386
      %v2388 = vrot.slane %v2387, 2
      %v2389 = vadd.f32 %v2387, %v2388
      %v2390 = vrot.slane %v2389, 1
      %v2391 = vadd.f32 %v2389, %v2390
      %2392 = vst.msk [vmem:[%s268] sm:$0x1] %vm2321, %v2391
      %p2393 = scmp.lt.s32.totalorder %s18, 1
      %s2394 = scalar_select %p2393, %s18, 1
      %s2395 = smul.addr %s2394, 16
      %s2396 = smul.addr %s2395, 8
      %s2397 = scalar_lea.vmem %s4, %s2396
      %p2398 = scmp.lt.s32.totalorder %s18, 1
      %s2399 = scalar_select %p2398, %s18, 1
      %s2400 = scalar_lea.vmem %s5, %s2399
      %p2401 = scmp.lt.s32.totalorder %s18, 1
      %s2402 = scalar_select %p2401, %s18, 1
      %s2403 = scalar_lea.vmem %s6, %s2402
      // Predicated region
      $region37: #{bsq_vq_forward.25} parent=35 // pred_check
        %p2404 = pneg %p125
      $region38: #{bsq_vq_forward.25} parent=35 // pred_check_branch
        %2406 = sbr.rel (%p2404) target = $region40
      $region39: #{bsq_vq_forward.25} parent=35 // pred_region
        _
      $region40: #{bsq_vq_forward.25} parent=35 // pred_fallthru
        _
      // Predicated region
      $region41: #{bsq_vq_forward.25} parent=35 // pred_check
        %p2407 = pneg %p151
      $region42: #{bsq_vq_forward.25} parent=35 // pred_check_branch
        %2409 = sbr.rel (%p2407) target = $region44
      $region43: #{bsq_vq_forward.25} parent=35 // pred_region
        _
      $region44: #{bsq_vq_forward.25} parent=35 // pred_fallthru
        _
      // Predicated region
      $region45: #{bsq_vq_forward.25} parent=35 // pred_check
        %p2410 = pneg %p177
      $region46: #{bsq_vq_forward.25} parent=35 // pred_check_branch
        %2412 = sbr.rel (%p2410) target = $region48
      $region47: #{bsq_vq_forward.25} parent=35 // pred_region
        _
      $region48: #{bsq_vq_forward.25} parent=35 // pred_fallthru
        _
    $region36: #{bsq_vq_forward.25} parent=5 // pred_fallthru
      _
    %p2413 = scmp.le.s32.totalorder 2, %s13
    // Predicated region
    $region49: #{bsq_vq_forward.25} parent=5 // pred_check
      %p2414 = pneg %p2413
    $region50: #{bsq_vq_forward.25} parent=5 // pred_check_branch
      %2416 = sbr.rel (%p2414) target = $region52
    $region51: #{bsq_vq_forward.25} parent=5 // pred_region
      %s2417 = ssub.s32 %s13, 2
      // Predicated region
      $region53: #{bsq_vq_forward.25} parent=51 // pred_check
        %p2418 = pneg %p131
      $region54: #{bsq_vq_forward.25} parent=51 // pred_check_branch
        %2420 = sbr.rel (%p2418) target = $region56
      $region55: #{bsq_vq_forward.25} parent=51 // pred_region
        %p2421 = scmp.lt.s32.totalorder %s19, 1
        %s2422 = scalar_select %p2421, %s19, 1
        %s2423 = smul.addr %s2422, 16
        %s2424 = smul.addr %s2423, 8
        %s2425 = scalar_lea.vmem %s4, %s2424
      $region56: #{bsq_vq_forward.25} parent=51 // pred_fallthru
        _
      // Predicated region
      $region57: #{bsq_vq_forward.25} parent=51 // pred_check
        %p2426 = pneg %p157
      $region58: #{bsq_vq_forward.25} parent=51 // pred_check_branch
        %2428 = sbr.rel (%p2426) target = $region60
      $region59: #{bsq_vq_forward.25} parent=51 // pred_region
        %p2429 = scmp.lt.s32.totalorder %s19, 1
        %s2430 = scalar_select %p2429, %s19, 1
        %s2431 = scalar_lea.vmem %s5, %s2430
      $region60: #{bsq_vq_forward.25} parent=51 // pred_fallthru
        _
      // Predicated region
      $region61: #{bsq_vq_forward.25} parent=51 // pred_check
        %p2432 = pneg %p183
      $region62: #{bsq_vq_forward.25} parent=51 // pred_check_branch
        %2434 = sbr.rel (%p2432) target = $region64
      $region63: #{bsq_vq_forward.25} parent=51 // pred_region
        %p2435 = scmp.lt.s32.totalorder %s19, 1
        %s2436 = scalar_select %p2435, %s19, 1
        %s2437 = scalar_lea.vmem %s6, %s2436
      $region64: #{bsq_vq_forward.25} parent=51 // pred_fallthru
        _
    $region52: #{bsq_vq_forward.25} parent=5 // pred_fallthru
      _
  $region6: #{bsq_vq_forward.25} parent=0 // loop_footer
    %s17 = sadd.s32 1, %s13
  $region7: #{bsq_vq_forward.25} parent=0 // loop_footer_branch
    %12 = sbr.rel target = $region3
  $region8: #{bsq_vq_forward.25} parent=0 // loop_exit
    _

// kernel: bsq_vq_forward.29
$region0: #{bsq_vq_forward.29}
  #allocation0 [shape = 'u32[]', space=smem, size = 0x4, offset = 0x4, fixed_abs, tag = 'smem constant byte address 0x4 - core index']
  #allocation1 [shape = 'u32[144,128]{1,0:T(1,128)}', space=vmem, size = 0x12000, scoped, tag = 'internal scratch']
  #allocation2 [shape = 'f32[32,32]{1,0:T(8,128)}', space=vmem, size = 0x4000, scoped, tag = 'scratch operand']
  %s0 = inlined_call_operand.vmem [shape: bf16[32,64], index: 0, kind: input, shape index: {}]
  %s1 = inlined_call_operand.vmem [shape: bf16[64,32], index: 1, kind: input, shape index: {}]
  %s2 = inlined_call_operand.vmem [shape: f32[1,32], index: 2, kind: input, shape index: {}]
  %s3 = inlined_call_operand.vmem [shape: f32[32,32], index: 3, kind: output, shape index: {}]
  %s4 = sld [smem:[#allocation0]]
  $region30: #{bsq_vq_forward.29} parent=0
    _
  %s6 = ssub.s32 1, %s4
  %s7 = scalar_select 0, %s6, %s4
  // Predicated region
  $region2: #{bsq_vq_forward.29} parent=0 // pred_check
    _
  $region3: #{bsq_vq_forward.29} parent=0 // pred_check_branch
    %9 = sbr.rel (0) target = $region5
  $region4: #{bsq_vq_forward.29} parent=0 // pred_region
    _
  $region5: #{bsq_vq_forward.29} parent=0 // pred_fallthru
    _
  // Predicated region
  $region6: #{bsq_vq_forward.29} parent=0 // pred_check
    _
  $region7: #{bsq_vq_forward.29} parent=0 // pred_check_branch
    %11 = sbr.rel (0) target = $region9
  $region8: #{bsq_vq_forward.29} parent=0 // pred_region
    _
  $region9: #{bsq_vq_forward.29} parent=0 // pred_fallthru
    _
  // Predicated region
  $region10: #{bsq_vq_forward.29} parent=0 // pred_check
    _
  $region11: #{bsq_vq_forward.29} parent=0 // pred_check_branch
    %13 = sbr.rel (0) target = $region13
  $region12: #{bsq_vq_forward.29} parent=0 // pred_region
    _
  $region13: #{bsq_vq_forward.29} parent=0 // pred_fallthru
    _
  %p15 = scmp.eq.s32.totalorder 0, 0
  // Predicated region
  $region14: #{bsq_vq_forward.29} parent=0 // pred_check
    %p16 = pneg %p15
  $region15: #{bsq_vq_forward.29} parent=0 // pred_check_branch
    %18 = sbr.rel (%p16) target = $region17
  $region16: #{bsq_vq_forward.29} parent=0 // pred_region
    %vm19 = vcmask 261120
    %20 = vst.msk [vmem:[#allocation2] sm:$0xff] %vm19, 0.0
    %21 = vst.msk [vmem:[#allocation2 + $0x8] sm:$0xff] %vm19, 0.0
    %22 = vst.msk [vmem:[#allocation2 + $0x10] sm:$0xff] %vm19, 0.0
    %23 = vst.msk [vmem:[#allocation2 + $0x18] sm:$0xff] %vm19, 0.0
  $region17: #{bsq_vq_forward.29} parent=0 // pred_fallthru
    _
  %v24 = vld [vmem:[#allocation2] sm:$0xff]
  %v25 = vld [vmem:[#allocation2 + $0x8] sm:$0xff]
  %v26 = vld [vmem:[#allocation2 + $0x10] sm:$0xff]
  %v27 = vld [vmem:[#allocation2 + $0x18] sm:$0xff]
  %v28 = vld [vmem:[%s0] sm:$0xf]
  %v29 = vld [vmem:[%s0 + $0x4] sm:$0xf]
  %v30 = vld [vmem:[%s0 + $0x8] sm:$0xf]
  %v31 = vld [vmem:[%s0 + $0xc] sm:$0xf]
  %v32 = vld [vmem:[%s1] sm:$0xf]
  %v33 = vld [vmem:[%s1 + $0x4] sm:$0xf]
  %v34 = vld [vmem:[%s1 + $0x8] sm:$0xf]
  %v35 = vld [vmem:[%s1 + $0xc] sm:$0xf]
  %v36 = vld [vmem:[%s1 + $0x10] sm:$0xf]
  %v37 = vld [vmem:[%s1 + $0x14] sm:$0xf]
  %v38 = vld [vmem:[%s1 + $0x18] sm:$0xf]
  %v39 = vld [vmem:[%s1 + $0x1c] sm:$0xf]
  %v44 = vunpack.c.l.b16 %v28
  %v45 = vunpack.c.l.b16 %v29
  %v46 = vunpack.c.l.b16 %v30
  %v47 = vunpack.c.l.b16 %v31
  %v48 = vpack.c.b16 %v45, %v44
  %v49 = vpack.c.b16 %v47, %v46
  %v58 = vunpack.c.l.b16 %v32
  %v59 = vunpack.c.l.b16 %v33
  %v60 = vunpack.c.l.b16 %v34
  %v61 = vunpack.c.l.b16 %v35
  %v62 = vunpack.c.l.b16 %v36
  %v63 = vunpack.c.l.b16 %v37
  %v64 = vunpack.c.l.b16 %v38
  %v65 = vunpack.c.l.b16 %v39
  %v66 = vpack.c.b16 %v59, %v58
  %v67 = vpack.c.b16 %v61, %v60
  %v68 = vpack.c.b16 %v63, %v62
  %v69 = vpack.c.b16 %v65, %v64
  %vm74 = vcmask 523264
  %v76 = vsel %vm74, %v48, 0
  %v79 = vsel %vm74, %v49, 0
  %81 = vmatprep.subr.bf16.mxu0 0
  %82 = vmatpush1.bf16.msra.mxu0 %v66
  %83 = vmatprep.subr.bf16.mxu0 0
  %84 = vmatpush1.bf16.msra.mxu0 %v67
  %85 = vmatprep.subr.bf16.mxu0 0
  %86 = vmatpush1.bf16.msra.mxu0 %v68
  %87 = vmatprep.subr.bf16.mxu0 0
  %88 = vmatpush1.bf16.msra.mxu0 %v69
  %89 = vmatprep.subr.bf16.mxu0 0
  %90 = vmatpush1.bf16.msra.mxu0 0
  %91 = vmatprep.subr.bf16.mxu0 0
  %92 = vmatpush1.bf16.msra.mxu0 0
  %93 = vmatprep.subr.bf16.mxu0 0
  %94 = vmatpush1.bf16.msra.mxu0 0
  %95 = vmatprep.subr.bf16.mxu0 0
  %96 = vmatpush1.bf16.msra.mxu0 0
  %97 = vmatprep.subr.bf16.mxu0 0
  %98 = vmatpush1.bf16.msra.mxu0 0
  %99 = vmatprep.subr.bf16.mxu0 0
  %100 = vmatpush1.bf16.msra.mxu0 0
  %101 = vmatprep.subr.bf16.mxu0 0
  %102 = vmatpush1.bf16.msra.mxu0 0
  %103 = vmatprep.subr.bf16.mxu0 0
  %104 = vmatpush1.bf16.msra.mxu0 0
  %105 = vmatprep.subr.bf16.mxu0 0
  %106 = vmatpush1.bf16.msra.mxu0 0
  %107 = vmatprep.subr.bf16.mxu0 0
  %108 = vmatpush1.bf16.msra.mxu0 0
  %109 = vmatprep.subr.bf16.mxu0 0
  %110 = vmatpush1.bf16.msra.mxu0 0
  %111 = vmatprep.subr.bf16.mxu0 0
  %112 = vmatpush1.bf16.msra.mxu0 0
  %113 = vmatprep.mubr.bf16.mxu0 0
  %114 = vmatmul.mubr.bf16.gmra.mrb[0].mxu0 %v76
  %v115 = vpop.f32.mrb[0].mxu0
  %v116 = vadd.f32 0.0, %v115
  %v117 = vpop.f32.mrb[0].mxu0
  %v118 = vpop.f32.mrb[0].mxu0
  %v119 = vadd.f32 0.0, %v118
  %v120 = vpop.f32.mrb[0].mxu0
  %121 = vmatprep.mubr.bf16.mxu0 0
  %122 = vmatmul.mubr.bf16.gmra.mrb[0].mxu0 %v79
  %v123 = vpop.f32.mrb[0].mxu0
  %v124 = vadd.f32 0.0, %v123
  %v125 = vpop.f32.mrb[0].mxu0
  %v126 = vpop.f32.mrb[0].mxu0
  %v127 = vadd.f32 0.0, %v126
  %v128 = vpop.f32.mrb[0].mxu0
  %129 = vdwg.mxu0
  %v130 = vadd.f32 %v24, %v116
  %v131 = vadd.f32 %v25, %v119
  %v132 = vadd.f32 %v26, %v124
  %v133 = vadd.f32 %v27, %v127
  %vm134 = vcmask 261120
  %135 = vst.msk [vmem:[#allocation2] sm:$0xff] %vm134, %v130
  %136 = vst.msk [vmem:[#allocation2 + $0x8] sm:$0xff] %vm134, %v131
  %137 = vst.msk [vmem:[#allocation2 + $0x10] sm:$0xff] %vm134, %v132
  %138 = vst.msk [vmem:[#allocation2 + $0x18] sm:$0xff] %vm134, %v133
  // Predicated region
  $region18: #{bsq_vq_forward.29} parent=0 // pred_check
    %p139 = pneg %p15
  $region19: #{bsq_vq_forward.29} parent=0 // pred_check_branch
    %141 = sbr.rel (%p139) target = $region21
  $region20: #{bsq_vq_forward.29} parent=0 // pred_region
    %v142 = vld [vmem:[#allocation2] sm:$0xff]
    %v143 = vld [vmem:[#allocation2 + $0x8] sm:$0xff]
    %v144 = vld [vmem:[#allocation2 + $0x10] sm:$0xff]
    %v145 = vld [vmem:[#allocation2 + $0x18] sm:$0xff]
    %v146 = vld [vmem:[%s2] sm:$0x1]
    %v148 = vlaneseq
    %v149 = vshrl.u32 %v148, 7
    %v150 = vsub.s32 0, %v149
    %v151 = vrot.slane %v146, %v150
    %v153 = vadd.f32 %v142, %v151
    %v154 = vadd.f32 %v143, %v151
    %v155 = vadd.f32 %v144, %v151
    %v156 = vadd.f32 %v145, %v151
    %157 = vst.msk [vmem:[%s3] sm:$0xff] %vm134, %v153
    %158 = vst.msk [vmem:[%s3 + $0x8] sm:$0xff] %vm134, %v154
    %159 = vst.msk [vmem:[%s3 + $0x10] sm:$0xff] %vm134, %v155
    %160 = vst.msk [vmem:[%s3 + $0x18] sm:$0xff] %vm134, %v156
  $region21: #{bsq_vq_forward.29} parent=0 // pred_fallthru
    _
  // Predicated region
  $region22: #{bsq_vq_forward.29} parent=0 // pred_check
    _
  $region23: #{bsq_vq_forward.29} parent=0 // pred_check_branch
    %162 = sbr.rel (0) target = $region25
  $region24: #{bsq_vq_forward.29} parent=0 // pred_region
    _
  $region25: #{bsq_vq_forward.29} parent=0 // pred_fallthru
    _
  // Predicated region
  $region26: #{bsq_vq_forward.29} parent=0 // pred_check
    _
  $region27: #{bsq_vq_forward.29} parent=0 // pred_check_branch
    %164 = sbr.rel (0) target = $region29
  $region28: #{bsq_vq_forward.29} parent=0 // pred_region
    _
  $region29: #{bsq_vq_forward.29} parent=0 // pred_fallthru
    _

// kernel: bsq_vq_forward.31
$region0: #{bsq_vq_forward.31}
  #allocation0 [shape = 'u32[]', space=smem, size = 0x4, offset = 0x4, fixed_abs, tag = 'smem constant byte address 0x4 - core index']
  #allocation1 [shape = 'u32[144,128]{1,0:T(1,128)}', space=vmem, size = 0x12000, scoped, tag = 'internal scratch']
  %s0 = inlined_call_operand.vmem [shape: f32[8,128], index: 0, kind: input, shape index: {}]
  %s1 = inlined_call_operand.vmem [shape: f32[1,128], index: 1, kind: input, shape index: {}]
  %s2 = inlined_call_operand.vmem [shape: f32[1,128], index: 2, kind: input, shape index: {}]
  %s3 = inlined_call_operand.vmem [shape: f32[8,128], index: 3, kind: output, shape index: {}]
  %s4 = sld [smem:[#allocation0]]
  $region22: #{bsq_vq_forward.31} parent=0
    _
  %s6 = ssub.s32 1, %s4
  %s7 = scalar_select 0, %s6, %s4
  // Predicated region
  $region2: #{bsq_vq_forward.31} parent=0 // pred_check
    _
  $region3: #{bsq_vq_forward.31} parent=0 // pred_check_branch
    %9 = sbr.rel (0) target = $region5
  $region4: #{bsq_vq_forward.31} parent=0 // pred_region
    _
  $region5: #{bsq_vq_forward.31} parent=0 // pred_fallthru
    _
  // Predicated region
  $region6: #{bsq_vq_forward.31} parent=0 // pred_check
    _
  $region7: #{bsq_vq_forward.31} parent=0 // pred_check_branch
    %11 = sbr.rel (0) target = $region9
  $region8: #{bsq_vq_forward.31} parent=0 // pred_region
    _
  $region9: #{bsq_vq_forward.31} parent=0 // pred_fallthru
    _
  // Predicated region
  $region10: #{bsq_vq_forward.31} parent=0 // pred_check
    _
  $region11: #{bsq_vq_forward.31} parent=0 // pred_check_branch
    %13 = sbr.rel (0) target = $region13
  $region12: #{bsq_vq_forward.31} parent=0 // pred_region
    _
  $region13: #{bsq_vq_forward.31} parent=0 // pred_fallthru
    _
  %v14 = vld [vmem:[%s0] sm:$0xff]
  %v15 = vld [vmem:[%s1] sm:$0x1]
  %v17 = vlaneseq
  %v18 = vshrl.u32 %v17, 7
  %v19 = vsub.s32 0, %v18
  %v20 = vrot.slane %v15, %v19
  %v22 = vmul.f32 %v14, %v20
  %v23 = vld [vmem:[%s2] sm:$0x1]
  %v25 = vlaneseq
  %v26 = vshrl.u32 %v25, 7
  %v27 = vsub.s32 0, %v26
  %v28 = vrot.slane %v23, %v27
  %v30 = vadd.f32 %v22, %v28
  %v31 = vxor.u32 %v30, 2147483648
  %v32 = vmul.f32 %v31, 1.442695
  %v33 = vpow.pop %v32
  %v34 = vadd.f32 %v33, 1.0
  %v35 = vrcp.pop %v34
  %v36 = vmul.f32 1.0, %v35
  %v37 = vmul.f32 %v30, %v36
  %38 = vst [vmem:[%s3] sm:$0xff] %v37
  // Predicated region
  $region14: #{bsq_vq_forward.31} parent=0 // pred_check
    _
  $region15: #{bsq_vq_forward.31} parent=0 // pred_check_branch
    %40 = sbr.rel (0) target = $region17
  $region16: #{bsq_vq_forward.31} parent=0 // pred_region
    _
  $region17: #{bsq_vq_forward.31} parent=0 // pred_fallthru
    _
  // Predicated region
  $region18: #{bsq_vq_forward.31} parent=0 // pred_check
    _
  $region19: #{bsq_vq_forward.31} parent=0 // pred_check_branch
    %42 = sbr.rel (0) target = $region21
  $region20: #{bsq_vq_forward.31} parent=0 // pred_region
    _
  $region21: #{bsq_vq_forward.31} parent=0 // pred_fallthru
    _

// kernel: bsq_vq_forward.33
$region0: #{bsq_vq_forward.33}
  #allocation0 [shape = 'u32[]', space=smem, size = 0x4, offset = 0x4, fixed_abs, tag = 'smem constant byte address 0x4 - core index']
  #allocation1 [shape = 'u32[144,128]{1,0:T(1,128)}', space=vmem, size = 0x12000, scoped, tag = 'internal scratch']
  %s0 = inlined_call_operand.vmem [shape: f32[8,128], index: 0, kind: input, shape index: {}]
  %s1 = inlined_call_operand.vmem [shape: f32[1,128], index: 1, kind: input, shape index: {}]
  %s2 = inlined_call_operand.vmem [shape: f32[1,128], index: 2, kind: input, shape index: {}]
  %s3 = inlined_call_operand.vmem [shape: f32[8,128], index: 3, kind: input, shape index: {}]
  %s4 = inlined_call_operand.vmem [shape: f32[8,128], index: 4, kind: output, shape index: {}]
  %s5 = sld [smem:[#allocation0]]
  $region26: #{bsq_vq_forward.33} parent=0
    _
  %s7 = ssub.s32 1, %s5
  %s8 = scalar_select 0, %s7, %s5
  // Predicated region
  $region2: #{bsq_vq_forward.33} parent=0 // pred_check
    _
  $region3: #{bsq_vq_forward.33} parent=0 // pred_check_branch
    %10 = sbr.rel (0) target = $region5
  $region4: #{bsq_vq_forward.33} parent=0 // pred_region
    _
  $region5: #{bsq_vq_forward.33} parent=0 // pred_fallthru
    _
  // Predicated region
  $region6: #{bsq_vq_forward.33} parent=0 // pred_check
    _
  $region7: #{bsq_vq_forward.33} parent=0 // pred_check_branch
    %12 = sbr.rel (0) target = $region9
  $region8: #{bsq_vq_forward.33} parent=0 // pred_region
    _
  $region9: #{bsq_vq_forward.33} parent=0 // pred_fallthru
    _
  // Predicated region
  $region10: #{bsq_vq_forward.33} parent=0 // pred_check
    _
  $region11: #{bsq_vq_forward.33} parent=0 // pred_check_branch
    %14 = sbr.rel (0) target = $region13
  $region12: #{bsq_vq_forward.33} parent=0 // pred_region
    _
  $region13: #{bsq_vq_forward.33} parent=0 // pred_fallthru
    _
  // Predicated region
  $region14: #{bsq_vq_forward.33} parent=0 // pred_check
    _
  $region15: #{bsq_vq_forward.33} parent=0 // pred_check_branch
    %16 = sbr.rel (0) target = $region17
  $region16: #{bsq_vq_forward.33} parent=0 // pred_region
    _
  $region17: #{bsq_vq_forward.33} parent=0 // pred_fallthru
    _
  %v17 = vld [vmem:[%s0] sm:$0xff]
  %v18 = vld [vmem:[%s1] sm:$0x1]
  %v20 = vlaneseq
  %v21 = vshrl.u32 %v20, 7
  %v22 = vsub.s32 0, %v21
  %v23 = vrot.slane %v18, %v22
  %v25 = vmul.f32 %v17, %v23
  %v26 = vld [vmem:[%s2] sm:$0x1]
  %v28 = vlaneseq
  %v29 = vshrl.u32 %v28, 7
  %v30 = vsub.s32 0, %v29
  %v31 = vrot.slane %v26, %v30
  %v33 = vadd.f32 %v25, %v31
  %v34 = vld [vmem:[%s3] sm:$0xff]
  %v35 = vadd.f32 %v33, %v34
  %36 = vst [vmem:[%s4] sm:$0xff] %v35
  // Predicated region
  $region18: #{bsq_vq_forward.33} parent=0 // pred_check
    _
  $region19: #{bsq_vq_forward.33} parent=0 // pred_check_branch
    %38 = sbr.rel (0) target = $region21
  $region20: #{bsq_vq_forward.33} parent=0 // pred_region
    _
  $region21: #{bsq_vq_forward.33} parent=0 // pred_fallthru
    _
  // Predicated region
  $region22: #{bsq_vq_forward.33} parent=0 // pred_check
    _
  $region23: #{bsq_vq_forward.33} parent=0 // pred_check_branch
    %40 = sbr.rel (0) target = $region25
  $region24: #{bsq_vq_forward.33} parent=0 // pred_region
    _
  $region25: #{bsq_vq_forward.33} parent=0 // pred_fallthru
    _

// kernel: bsq_vq_forward.35
$region0: #{bsq_vq_forward.35}
  #allocation0 [shape = 'u32[]', space=smem, size = 0x4, offset = 0x4, fixed_abs, tag = 'smem constant byte address 0x4 - core index']
  #allocation1 [shape = 'u32[144,128]{1,0:T(1,128)}', space=vmem, size = 0x12000, scoped, tag = 'internal scratch']
  %s0 = inlined_call_operand.vmem [shape: f32[32,64], index: 0, kind: input, shape index: {}]
  %s1 = inlined_call_operand.vmem [shape: bf16[64,8], index: 1, kind: input, shape index: {}]
  %s2 = inlined_call_operand.vmem [shape: f32[1,8], index: 2, kind: input, shape index: {}]
  %s3 = inlined_call_operand.vmem [shape: f32[1,8], index: 3, kind: input, shape index: {}]
  %s4 = inlined_call_operand.vmem [shape: bf16[8,64], index: 4, kind: input, shape index: {}]
  %s5 = inlined_call_operand.vmem [shape: f32[1,64], index: 5, kind: input, shape index: {}]
  %s6 = inlined_call_operand.vmem [shape: f32[32,64], index: 6, kind: output, shape index: {0}]
  %s7 = inlined_call_operand.vmem [shape: s32[32,1], index: 7, kind: output, shape index: {1}]
  %s8 = inlined_call_operand.hbm [shape: f32[1,1,1], index: 8, kind: output, shape index: {2}]
  %s9 = inlined_call_operand.hbm [shape: f32[1,1,1], index: 9, kind: output, shape index: {3}]
  %10 = xla_tuple %s6, %s7, %s8, %s9
  %s11 = sld [smem:[#allocation0]]
  $region58: #{bsq_vq_forward.35} parent=0
    _
  %s13 = ssub.s32 1, %s11
  %s14 = scalar_select 0, %s13, %s11
  $region1: #{bsq_vq_forward.35} parent=0
    #allocation2 [shape = 'u8[512]{0}', space=vmem, size = 0x400, scoped, tag = 'output window, operand 2, single buffered']
    #allocation3 [shape = 's32[1]{0}', space=sflag, size = 0x4, scoped, tag = 'scoped memory for bsq_vq_forward.35']
    #allocation4 [shape = 'u8[512]{0}', space=vmem, size = 0x400, scoped, tag = 'output window, operand 3, single buffered']
    #allocation5 [shape = 's32[1]{0}', space=sflag, size = 0x4, scoped, tag = 'scoped memory for bsq_vq_forward.35']
    %15 = vsyncpa [#allocation3], 0
    %16 = vsyncpa [#allocation5], 0
    // Predicated region
    $region2: #{bsq_vq_forward.35} parent=1 // pred_check
      _
    $region3: #{bsq_vq_forward.35} parent=1 // pred_check_branch
      %18 = sbr.rel (0) target = $region5
    $region4: #{bsq_vq_forward.35} parent=1 // pred_region
      _
    $region5: #{bsq_vq_forward.35} parent=1 // pred_fallthru
      _
    // Predicated region
    $region6: #{bsq_vq_forward.35} parent=1 // pred_check
      _
    $region7: #{bsq_vq_forward.35} parent=1 // pred_check_branch
      %20 = sbr.rel (0) target = $region9
    $region8: #{bsq_vq_forward.35} parent=1 // pred_region
      _
    $region9: #{bsq_vq_forward.35} parent=1 // pred_fallthru
      _
    // Predicated region
    $region10: #{bsq_vq_forward.35} parent=1 // pred_check
      _
    $region11: #{bsq_vq_forward.35} parent=1 // pred_check_branch
      %22 = sbr.rel (0) target = $region13
    $region12: #{bsq_vq_forward.35} parent=1 // pred_region
      _
    $region13: #{bsq_vq_forward.35} parent=1 // pred_fallthru
      _
    // Predicated region
    $region14: #{bsq_vq_forward.35} parent=1 // pred_check
      _
    $region15: #{bsq_vq_forward.35} parent=1 // pred_check_branch
      %24 = sbr.rel (0) target = $region17
    $region16: #{bsq_vq_forward.35} parent=1 // pred_region
      _
    $region17: #{bsq_vq_forward.35} parent=1 // pred_fallthru
      _
    // Predicated region
    $region18: #{bsq_vq_forward.35} parent=1 // pred_check
      _
    $region19: #{bsq_vq_forward.35} parent=1 // pred_check_branch
      %26 = sbr.rel (0) target = $region21
    $region20: #{bsq_vq_forward.35} parent=1 // pred_region
      _
    $region21: #{bsq_vq_forward.35} parent=1 // pred_fallthru
      _
    // Predicated region
    $region22: #{bsq_vq_forward.35} parent=1 // pred_check
      _
    $region23: #{bsq_vq_forward.35} parent=1 // pred_check_branch
      %28 = sbr.rel (0) target = $region25
    $region24: #{bsq_vq_forward.35} parent=1 // pred_region
      _
    $region25: #{bsq_vq_forward.35} parent=1 // pred_fallthru
      _
    %v30 = vld [vmem:[%s0] sm:$0xff]
    %v31 = vld [vmem:[%s0 + $0x8] sm:$0xff]
    %v32 = vld [vmem:[%s0 + $0x10] sm:$0xff]
    %v33 = vld [vmem:[%s0 + $0x18] sm:$0xff]
    %v34 = vpack.c.bf16 %v31, %v30
    %v35 = vpack.c.bf16 %v33, %v32
    %v36 = vld [vmem:[%s1] sm:$0xf]
    %v37 = vld [vmem:[%s1 + $0x4] sm:$0xf]
    %v38 = vld [vmem:[%s1 + $0x8] sm:$0xf]
    %v39 = vld [vmem:[%s1 + $0xc] sm:$0xf]
    %v40 = vld [vmem:[%s1 + $0x10] sm:$0xf]
    %v41 = vld [vmem:[%s1 + $0x14] sm:$0xf]
    %v42 = vld [vmem:[%s1 + $0x18] sm:$0xf]
    %v43 = vld [vmem:[%s1 + $0x1c] sm:$0xf]
    %v44 = vld [vmem:[%s2] sm:$0x1]
    %v46 = vlaneseq
    %v47 = vshrl.u32 %v46, 7
    %v48 = vsub.s32 0, %v47
    %v49 = vrot.slane %v44, %v48
    %v59 = vunpack.c.l.b16 %v36
    %v60 = vunpack.c.l.b16 %v37
    %v61 = vunpack.c.l.b16 %v38
    %v62 = vunpack.c.l.b16 %v39
    %v63 = vunpack.c.l.b16 %v40
    %v64 = vunpack.c.l.b16 %v41
    %v65 = vunpack.c.l.b16 %v42
    %v66 = vunpack.c.l.b16 %v43
    %v67 = vpack.c.b16 %v60, %v59
    %v68 = vpack.c.b16 %v62, %v61
    %v69 = vpack.c.b16 %v64, %v63
    %v70 = vpack.c.b16 %v66, %v65
    %vm75 = vcmask 523264
    %v77 = vsel %vm75, %v34, 0
    %v80 = vsel %vm75, %v35, 0
    %82 = vmatprep.subr.bf16.mxu0 0
    %83 = vmatpush1.bf16.msra.mxu0 %v67
    %84 = vmatprep.subr.bf16.mxu0 0
    %85 = vmatpush1.bf16.msra.mxu0 %v68
    %86 = vmatprep.subr.bf16.mxu0 0
    %87 = vmatpush1.bf16.msra.mxu0 %v69
    %88 = vmatprep.subr.bf16.mxu0 0
    %89 = vmatpush1.bf16.msra.mxu0 %v70
    %90 = vmatprep.subr.bf16.mxu0 0
    %91 = vmatpush1.bf16.msra.mxu0 0
    %92 = vmatprep.subr.bf16.mxu0 0
    %93 = vmatpush1.bf16.msra.mxu0 0
    %94 = vmatprep.subr.bf16.mxu0 0
    %95 = vmatpush1.bf16.msra.mxu0 0
    %96 = vmatprep.subr.bf16.mxu0 0
    %97 = vmatpush1.bf16.msra.mxu0 0
    %98 = vmatprep.subr.bf16.mxu0 0
    %99 = vmatpush1.bf16.msra.mxu0 0
    %100 = vmatprep.subr.bf16.mxu0 0
    %101 = vmatpush1.bf16.msra.mxu0 0
    %102 = vmatprep.subr.bf16.mxu0 0
    %103 = vmatpush1.bf16.msra.mxu0 0
    %104 = vmatprep.subr.bf16.mxu0 0
    %105 = vmatpush1.bf16.msra.mxu0 0
    %106 = vmatprep.subr.bf16.mxu0 0
    %107 = vmatpush1.bf16.msra.mxu0 0
    %108 = vmatprep.subr.bf16.mxu0 0
    %109 = vmatpush1.bf16.msra.mxu0 0
    %110 = vmatprep.subr.bf16.mxu0 0
    %111 = vmatpush1.bf16.msra.mxu0 0
    %112 = vmatprep.subr.bf16.mxu0 0
    %113 = vmatpush1.bf16.msra.mxu0 0
    %114 = vmatprep.mubr.bf16.mxu0 0
    %115 = vmatmul.mubr.bf16.gmra.mrb[0].mxu0 %v77
    %v116 = vpop.f32.mrb[0].mxu0
    %v117 = vadd.f32 %v49, %v116
    %v118 = vpop.f32.mrb[0].mxu0
    %v119 = vpop.f32.mrb[0].mxu0
    %v120 = vadd.f32 %v49, %v119
    %v121 = vpop.f32.mrb[0].mxu0
    %122 = vmatprep.mubr.bf16.mxu0 0
    %123 = vmatmul.mubr.bf16.gmra.mrb[0].mxu0 %v80
    %v124 = vpop.f32.mrb[0].mxu0
    %v125 = vadd.f32 %v49, %v124
    %v126 = vpop.f32.mrb[0].mxu0
    %v127 = vpop.f32.mrb[0].mxu0
    %v128 = vadd.f32 %v49, %v127
    %v129 = vpop.f32.mrb[0].mxu0
    %130 = vdwg.mxu0
    %v131 = vand.u32 2147483647, %v117
    %v132 = vand.u32 2147483647, %v120
    %v133 = vand.u32 2147483647, %v125
    %v134 = vand.u32 2147483647, %v128
    %vm135 = vcmask 64512
    %v136 = vsel %vm135, %v131, 0.0
    %137 = vadd.xlane.f32.xlu0 %v136
    %v138 = vpop.xlane.xlu0 %137
    %v139 = vsel %vm135, %v132, 0.0
    %140 = vadd.xlane.f32.xlu0 %v139
    %v141 = vpop.xlane.xlu0 %140
    %v142 = vsel %vm135, %v133, 0.0
    %143 = vadd.xlane.f32.xlu0 %v142
    %v144 = vpop.xlane.xlu0 %143
    %v145 = vsel %vm135, %v134, 0.0
    %146 = vadd.xlane.f32.xlu0 %v145
    %v147 = vpop.xlane.xlu0 %146
    %v148 = vmax.f32 %v138, 1e-12
    %v149 = vmax.f32 %v141, 1e-12
    %v150 = vmax.f32 %v144, 1e-12
    %v151 = vmax.f32 %v147, 1e-12
    %v152 = vrcp.pop %v148
    %v153 = vmul.f32 %v117, %v152
    %v154 = vrcp.pop %v149
    %v155 = vmul.f32 %v120, %v154
    %v156 = vrcp.pop %v150
    %v157 = vmul.f32 %v125, %v156
    %v158 = vrcp.pop %v151
    %v159 = vmul.f32 %v128, %v158
    %vm160 = vcmp.gt.f32.partialorder %v153, 0.0
    %vm161 = vcmp.gt.f32.partialorder %v155, 0.0
    %vm162 = vcmp.gt.f32.partialorder %v157, 0.0
    %vm163 = vcmp.gt.f32.partialorder %v159, 0.0
    %v164 = vsel %vm160, 0.35355338, -0.35355338
    %v165 = vsel %vm161, 0.35355338, -0.35355338
    %v166 = vsel %vm162, 0.35355338, -0.35355338
    %v167 = vsel %vm163, 0.35355338, -0.35355338
    %v168 = vsel %vm160, 1.0, 0.0
    %v169 = vsel %vm161, 1.0, 0.0
    %v170 = vsel %vm162, 1.0, 0.0
    %v171 = vsel %vm163, 1.0, 0.0
    %s172 = smul.u32 0, 32
    %v173 = vlaneseq
    %v174 = vshrl.u32 %v173, 7
    %v175 = vadd.s32 %v174, 8
    %v176 = vadd.s32 %v174, 16
    %v177 = vadd.s32 %v174, 24
    %v178 = vstv %s172
    %v179 = vadd.s32 %v178, %v174
    %v180 = vadd.s32 %v178, %v175
    %v181 = vadd.s32 %v178, %v176
    %v182 = vadd.s32 %v178, %v177
    %vm183 = vcmp.lt.s32.totalorder %v179, 32
    %vm184 = vcmp.lt.s32.totalorder %v180, 32
    %vm185 = vcmp.lt.s32.totalorder %v181, 32
    %vm186 = vcmp.lt.s32.totalorder %v182, 32
    %v187 = vsel %vm183, 1, 0
    %v188 = vsel %vm184, 1, 0
    %v189 = vsel %vm185, 1, 0
    %v190 = vsel %vm186, 1, 0
    %v191 = vcvt.s32.f32 %v187
    %v192 = vcvt.s32.f32 %v188
    %v193 = vcvt.s32.f32 %v189
    %v194 = vcvt.s32.f32 %v190
    %v195 = vsub.f32 %v164, %v153
    %v196 = vsub.f32 %v165, %v155
    %v197 = vsub.f32 %v166, %v157
    %v198 = vsub.f32 %v167, %v159
    %v199 = vmul.f32 %v195, %v195
    %v200 = vmul.f32 %v196, %v196
    %v201 = vmul.f32 %v197, %v197
    %v202 = vmul.f32 %v198, %v198
    %v203 = vmul.f32 %v199, %v191
    %v204 = vmul.f32 %v200, %v192
    %v205 = vmul.f32 %v201, %v193
    %v206 = vmul.f32 %v202, %v194
    %v207 = vsel %vm135, %v203, 0.0
    %v208 = vsel %vm135, %v204, 0.0
    %v209 = vadd.f32 %v207, %v208
    %v210 = vsel %vm135, %v205, 0.0
    %v211 = vadd.f32 %v209, %v210
    %v212 = vsel %vm135, %v206, 0.0
    %v213 = vadd.f32 %v211, %v212
    %214 = vadd.xlane.f32.xlu0 %v213
    %v215 = vpop.xlane.xlu0 %214
    %v216 = vrot.slane %v215, 4
    %v217 = vadd.f32 %v215, %v216
    %v218 = vrot.slane %v217, 2
    %v219 = vadd.f32 %v217, %v218
    %v220 = vrot.slane %v219, 1
    %v221 = vadd.f32 %v219, %v220
    %s222 = vtos %v221
    %v223 = vstv %s222
    %vm224 = vcmask 0
    %225 = vst.msk [vmem:[#allocation2] sm:$0x1] %vm224, %v223
    %v226 = vmul.f32 %v153, 2.0
    %v227 = vmul.f32 %v155, 2.0
    %v228 = vmul.f32 %v157, 2.0
    %v229 = vmul.f32 %v159, 2.0
    %v230 = vxor.u32 %v226, 2147483648
    %v231 = vxor.u32 %v227, 2147483648
    %v232 = vxor.u32 %v228, 2147483648
    %v233 = vxor.u32 %v229, 2147483648
    %v234 = vmul.f32 %v230, 1.442695
    %v235 = vpow.pop %v234
    %v236 = vmul.f32 %v231, 1.442695
    %v237 = vpow.pop %v236
    %v238 = vmul.f32 %v232, 1.442695
    %v239 = vpow.pop %v238
    %v240 = vmul.f32 %v233, 1.442695
    %v241 = vpow.pop %v240
    %v242 = vadd.f32 %v235, 1.0
    %v243 = vadd.f32 %v237, 1.0
    %v244 = vadd.f32 %v239, 1.0
    %v245 = vadd.f32 %v241, 1.0
    %v246 = vrcp.pop %v242
    %v247 = vmul.f32 1.0, %v246
    %v248 = vrcp.pop %v243
    %v249 = vmul.f32 1.0, %v248
    %v250 = vrcp.pop %v244
    %v251 = vmul.f32 1.0, %v250
    %v252 = vrcp.pop %v245
    %v253 = vmul.f32 1.0, %v252
    %v254 = vadd.f32 %v247, 1e-10
    %v255 = vadd.f32 %v249, 1e-10
    %v256 = vadd.f32 %v251, 1e-10
    %v257 = vadd.f32 %v253, 1e-10
    %v258 = vlog2.pop %v254
    %v259 = vmul.f32 %v258, 0.6931472
    %v260 = vlog2.pop %v255
    %v261 = vmul.f32 %v260, 0.6931472
    %v262 = vlog2.pop %v256
    %v263 = vmul.f32 %v262, 0.6931472
    %v264 = vlog2.pop %v257
    %v265 = vmul.f32 %v264, 0.6931472
    %v266 = vmul.f32 %v247, %v259
    %v267 = vmul.f32 %v249, %v261
    %v268 = vmul.f32 %v251, %v263
    %v269 = vmul.f32 %v253, %v265
    %v270 = vsub.f32 1.0, %v247
    %v271 = vsub.f32 1.0, %v249
    %v272 = vsub.f32 1.0, %v251
    %v273 = vsub.f32 1.0, %v253
    %v274 = vadd.f32 %v270, 1e-10
    %v275 = vadd.f32 %v271, 1e-10
    %v276 = vadd.f32 %v272, 1e-10
    %v277 = vadd.f32 %v273, 1e-10
    %v278 = vlog2.pop %v274
    %v279 = vmul.f32 %v278, 0.6931472
    %v280 = vlog2.pop %v275
    %v281 = vmul.f32 %v280, 0.6931472
    %v282 = vlog2.pop %v276
    %v283 = vmul.f32 %v282, 0.6931472
    %v284 = vlog2.pop %v277
    %v285 = vmul.f32 %v284, 0.6931472
    %v286 = vmul.f32 %v270, %v279
    %v287 = vmul.f32 %v271, %v281
    %v288 = vmul.f32 %v272, %v283
    %v289 = vmul.f32 %v273, %v285
    %v290 = vadd.f32 %v266, %v286
    %v291 = vadd.f32 %v267, %v287
    %v292 = vadd.f32 %v268, %v288
    %v293 = vadd.f32 %v269, %v289
    %v294 = vsub.f32 0.0, %v290
    %v295 = vsub.f32 0.0, %v291
    %v296 = vsub.f32 0.0, %v292
    %v297 = vsub.f32 0.0, %v293
    %v298 = vmul.f32 %v294, %v191
    %v299 = vmul.f32 %v295, %v192
    %v300 = vmul.f32 %v296, %v193
    %v301 = vmul.f32 %v297, %v194
    %v302 = vsel %vm135, %v298, 0.0
    %v303 = vsel %vm135, %v299, 0.0
    %v304 = vadd.f32 %v302, %v303
    %v305 = vsel %vm135, %v300, 0.0
    %v306 = vadd.f32 %v304, %v305
    %v307 = vsel %vm135, %v301, 0.0
    %v308 = vadd.f32 %v306, %v307
    %309 = vadd.xlane.f32.xlu0 %v308
    %v310 = vpop.xlane.xlu0 %309
    %v311 = vrot.slane %v310, 4
    %v312 = vadd.f32 %v310, %v311
    %v313 = vrot.slane %v312, 2
    %v314 = vadd.f32 %v312, %v313
    %v315 = vrot.slane %v314, 1
    %v316 = vadd.f32 %v314, %v315
    %s317 = vtos %v316
    %v318 = vstv %s317
    %319 = vst.msk [vmem:[#allocation4] sm:$0x1] %vm224, %v318
    %v320 = vld [vmem:[%s3] sm:$0x1]
    %v322 = vlaneseq
    %v323 = vshrl.u32 %v322, 7
    %v324 = vsub.s32 0, %v323
    %v325 = vrot.slane %v320, %v324
    %v327 = vmul.f32 %v168, %v325
    %v328 = vmul.f32 %v169, %v325
    %v329 = vmul.f32 %v170, %v325
    %v330 = vmul.f32 %v171, %v325
    %v331 = vsel %vm135, %v327, 0.0
    %332 = vadd.xlane.f32.xlu0 %v331
    %v333 = vpop.xlane.xlu0 %332
    %v334 = vsel %vm135, %v328, 0.0
    %335 = vadd.xlane.f32.xlu0 %v334
    %v336 = vpop.xlane.xlu0 %335
    %v337 = vsel %vm135, %v329, 0.0
    %338 = vadd.xlane.f32.xlu0 %v337
    %v339 = vpop.xlane.xlu0 %338
    %v340 = vsel %vm135, %v330, 0.0
    %341 = vadd.xlane.f32.xlu0 %v340
    %v342 = vpop.xlane.xlu0 %341
    %v343 = vcvt.f32.s32.to.zero.pseudo %v333
    %v344 = vcvt.f32.s32.to.zero.pseudo %v336
    %v345 = vcvt.f32.s32.to.zero.pseudo %v339
    %v346 = vcvt.f32.s32.to.zero.pseudo %v342
    %vm347 = vcmask 7168
    %348 = vst.msk [vmem:[%s7] sm:$0xff] %vm347, %v343
    %349 = vst.msk [vmem:[%s7 + $0x8] sm:$0xff] %vm347, %v344
    %350 = vst.msk [vmem:[%s7 + $0x10] sm:$0xff] %vm347, %v345
    %351 = vst.msk [vmem:[%s7 + $0x18] sm:$0xff] %vm347, %v346
    %v352 = vpack.c.bf16 %v169, %v168
    %v353 = vpack.c.bf16 %v171, %v170
    %v354 = vld [vmem:[%s4] sm:$0xf]
    %v355 = vld [vmem:[%s5] sm:$0x1]
    %v357 = vlaneseq
    %v358 = vshrl.u32 %v357, 7
    %v359 = vsub.s32 0, %v358
    %v360 = vrot.slane %v355, %v359
    %v363 = vsel %vm135, %v352, 0
    %v366 = vsel %vm135, %v353, 0
    %vm368 = vcmask 1043456
    %v370 = vsel %vm368, %v354, 0
    %372 = vmatprep.subr.bf16.mxu0 0
    %373 = vmatpush1.bf16.msra.mxu0 %v370
    %374 = vmatprep.subr.bf16.mxu0 0
    %375 = vmatpush1.bf16.msra.mxu0 0
    %376 = vmatprep.subr.bf16.mxu0 0
    %377 = vmatpush1.bf16.msra.mxu0 0
    %378 = vmatprep.subr.bf16.mxu0 0
    %379 = vmatpush1.bf16.msra.mxu0 0
    %380 = vmatprep.subr.bf16.mxu0 0
    %381 = vmatpush1.bf16.msra.mxu0 0
    %382 = vmatprep.subr.bf16.mxu0 0
    %383 = vmatpush1.bf16.msra.mxu0 0
    %384 = vmatprep.subr.bf16.mxu0 0
    %385 = vmatpush1.bf16.msra.mxu0 0
    %386 = vmatprep.subr.bf16.mxu0 0
    %387 = vmatpush1.bf16.msra.mxu0 0
    %388 = vmatprep.subr.bf16.mxu0 0
    %389 = vmatpush1.bf16.msra.mxu0 0
    %390 = vmatprep.subr.bf16.mxu0 0
    %391 = vmatpush1.bf16.msra.mxu0 0
    %392 = vmatprep.subr.bf16.mxu0 0
    %393 = vmatpush1.bf16.msra.mxu0 0
    %394 = vmatprep.subr.bf16.mxu0 0
    %395 = vmatpush1.bf16.msra.mxu0 0
    %396 = vmatprep.subr.bf16.mxu0 0
    %397 = vmatpush1.bf16.msra.mxu0 0
    %398 = vmatprep.subr.bf16.mxu0 0
    %399 = vmatpush1.bf16.msra.mxu0 0
    %400 = vmatprep.subr.bf16.mxu0 0
    %401 = vmatpush1.bf16.msra.mxu0 0
    %402 = vmatprep.subr.bf16.mxu0 0
    %403 = vmatpush1.bf16.msra.mxu0 0
    %404 = vmatprep.mubr.bf16.mxu0 0
    %405 = vmatmul.mubr.bf16.gmra.mrb[0].mxu0 %v363
    %v406 = vpop.f32.mrb[0].mxu0
    %v407 = vadd.f32 %v360, %v406
    %v408 = vpop.f32.mrb[0].mxu0
    %v409 = vpop.f32.mrb[0].mxu0
    %v410 = vadd.f32 %v360, %v409
    %v411 = vpop.f32.mrb[0].mxu0
    %412 = vmatprep.mubr.bf16.mxu0 0
    %413 = vmatmul.mubr.bf16.gmra.mrb[0].mxu0 %v366
    %v414 = vpop.f32.mrb[0].mxu0
    %v415 = vadd.f32 %v360, %v414
    %v416 = vpop.f32.mrb[0].mxu0
    %v417 = vpop.f32.mrb[0].mxu0
    %v418 = vadd.f32 %v360, %v417
    %v419 = vpop.f32.mrb[0].mxu0
    %420 = vdwg.mxu0
    %421 = vst.msk [vmem:[%s6] sm:$0xff] %vm75, %v407
    %422 = vst.msk [vmem:[%s6 + $0x8] sm:$0xff] %vm75, %v410
    %423 = vst.msk [vmem:[%s6 + $0x10] sm:$0xff] %vm75, %v415
    %424 = vst.msk [vmem:[%s6 + $0x18] sm:$0xff] %vm75, %v418
    // Predicated region
    $region26: #{bsq_vq_forward.35} parent=1 // pred_check
      _
    $region27: #{bsq_vq_forward.35} parent=1 // pred_check_branch
      %426 = sbr.rel (0) target = $region29
    $region28: #{bsq_vq_forward.35} parent=1 // pred_region
      _
    $region29: #{bsq_vq_forward.35} parent=1 // pred_fallthru
      _
    // Predicated region
    $region30: #{bsq_vq_forward.35} parent=1 // pred_check
      _
    $region31: #{bsq_vq_forward.35} parent=1 // pred_check_branch
      %428 = sbr.rel (0) target = $region33
    $region32: #{bsq_vq_forward.35} parent=1 // pred_region
      _
    $region33: #{bsq_vq_forward.35} parent=1 // pred_fallthru
      _
    // Predicated region
    $region34: #{bsq_vq_forward.35} parent=1 // pred_check
      _
    $region35: #{bsq_vq_forward.35} parent=1 // pred_check_branch
      %430 = sbr.rel (0) target = $region37
    $region36: #{bsq_vq_forward.35} parent=1 // pred_region
      %s432 = ssub.s32 16, 16
      %433 = vsyncadd [#allocation3], %s432
      %s435 = sshll.u32 [#allocation2], 4
      %s436 = int_to_ptr.vmem [resolvable:$true] %s435
      %438 = dma.vmem_to_hbm [thread:$0]  %s436, 16, %s8, [#allocation3]
    $region37: #{bsq_vq_forward.35} parent=1 // pred_fallthru
      _
    // Predicated region
    $region38: #{bsq_vq_forward.35} parent=1 // pred_check
      _
    $region39: #{bsq_vq_forward.35} parent=1 // pred_check_branch
      %440 = sbr.rel (0) target = $region41
    $region40: #{bsq_vq_forward.35} parent=1 // pred_region
      %s442 = ssub.s32 16, 16
      %443 = vsyncadd [#allocation5], %s442
      %s445 = sshll.u32 [#allocation4], 4
      %s446 = int_to_ptr.vmem [resolvable:$true] %s445
      %448 = dma.vmem_to_hbm [thread:$0]  %s446, 16, %s9, [#allocation5]
    $region41: #{bsq_vq_forward.35} parent=1 // pred_fallthru
      _
    // Predicated region
    $region42: #{bsq_vq_forward.35} parent=1 // pred_check
      _
    $region43: #{bsq_vq_forward.35} parent=1 // pred_check_branch
      %450 = sbr.rel (0) target = $region45
    $region44: #{bsq_vq_forward.35} parent=1 // pred_region
      _
    $region45: #{bsq_vq_forward.35} parent=1 // pred_fallthru
      _
    // Predicated region
    $region46: #{bsq_vq_forward.35} parent=1 // pred_check
      _
    $region47: #{bsq_vq_forward.35} parent=1 // pred_check_branch
      %452 = sbr.rel (0) target = $region49
    $region48: #{bsq_vq_forward.35} parent=1 // pred_region
      _
    $region49: #{bsq_vq_forward.35} parent=1 // pred_fallthru
      _
    // Predicated region
    $region50: #{bsq_vq_forward.35} parent=1 // pred_check
      _
    $region51: #{bsq_vq_forward.35} parent=1 // pred_check_branch
      %454 = sbr.rel (0) target = $region53
    $region52: #{bsq_vq_forward.35} parent=1 // pred_region
      %455 = dma.done [#allocation3], 16
    $region53: #{bsq_vq_forward.35} parent=1 // pred_fallthru
      _
    // Predicated region
    $region54: #{bsq_vq_forward.35} parent=1 // pred_check
      _
    $region55: #{bsq_vq_forward.35} parent=1 // pred_check_branch
      %457 = sbr.rel (0) target = $region57
    $region56: #{bsq_vq_forward.35} parent=1 // pred_region
      %458 = dma.done [#allocation5], 16
    $region57: #{bsq_vq_forward.35} parent=1 // pred_fallthru
      _
    %459 = vsyncpa [#allocation3], 1
    %460 = vsyncpa [#allocation5], 1

// kernel: bsq_vq_forward.30
$region0: #{bsq_vq_forward.30}
  #allocation0 [shape = 'u32[]', space=smem, size = 0x4, offset = 0x4, fixed_abs, tag = 'smem constant byte address 0x4 - core index']
  #allocation1 [shape = 'u32[144,128]{1,0:T(1,128)}', space=vmem, size = 0x12000, scoped, tag = 'internal scratch']
  #allocation2 [shape = 'f32[32,32]{1,0:T(8,128)}', space=vmem, size = 0x4000, scoped, tag = 'scratch operand']
  %s0 = inlined_call_operand.vmem [shape: bf16[2,56,32], index: 0, kind: input, shape index: {}]
  %s1 = inlined_call_operand.vmem [shape: bf16[9,32,32], index: 1, kind: input, shape index: {}]
  %s2 = inlined_call_operand.vmem [shape: f32[1,32], index: 2, kind: input, shape index: {}]
  %s3 = inlined_call_operand.vmem [shape: f32[32,1], index: 3, kind: input, shape index: {}]
  %s4 = inlined_call_operand.vmem [shape: f32[2,32,32], index: 4, kind: output, shape index: {0}]
  %s5 = inlined_call_operand.vmem [shape: f32[2,1,32], index: 5, kind: output, shape index: {1}]
  %s6 = inlined_call_operand.vmem [shape: f32[2,1,32], index: 6, kind: output, shape index: {2}]
  %7 = xla_tuple %s4, %s5, %s6
  %s8 = sld [smem:[#allocation0]]
  $region65: #{bsq_vq_forward.30} parent=0
    _
  %s10 = ssub.s32 1, %s8
  %s11 = scalar_select 0, %s10, %s8
  loop: start=0, step=1, limit=4
  $region2: #{bsq_vq_forward.30} parent=0 // loop_pre_header
    _
  $region3: #{bsq_vq_forward.30} parent=0 // loop_header
    %s13 = sphi 0, %s17
    %p14 = scmp.ge.s32.totalorder %s13, 4
    %s23 = sphi 0, %s25
    %s26 = sphi 0, %s23
    %s27 = sphi 0, %s26
    %s43 = sphi 0, %s27
    %s47 = sphi 0, %s47
    %s49 = sphi 0, %s47
    %s50 = sphi 0, %s49
    %s64 = sphi 0, %s50
    %s68 = sphi 0, %s68
    %s70 = sphi 0, %s68
    %s71 = sphi 0, %s70
    %s85 = sphi 0, %s71
    %s89 = sphi 0, %s89
    %s91 = sphi 0, %s89
    %s92 = sphi 0, %s91
    %s106 = sphi 0, %s92
    %s112 = sphi 0, %s114
    %s115 = sphi 0, %s112
    %s116 = sphi 0, %s115
    %s132 = sphi 0, %s116
    %s138 = sphi 0, %s140
    %s141 = sphi 0, %s138
    %s142 = sphi 0, %s141
    %s158 = sphi 0, %s142
    %s164 = sphi 0, %s166
    %s167 = sphi 0, %s164
    %s168 = sphi 0, %s167
    %s184 = sphi 0, %s168
  $region4: #{bsq_vq_forward.30} parent=0 // loop_header_branch
    %16 = sbr.rel (%p14) target = $region8
  $region5: #{bsq_vq_forward.30} parent=0 // loop_body
    %s18 = ssub.s32 %s13, 1
    %s19 = ssub.s32 %s13, 2
    %s20 = sadd.s32 %s13, 1
    %s21 = ssub.s32 %s13, %s20
    %p22 = scmp.eq.s32.totalorder %s21, 0
    %s24 = sadd.s32 %s23, 1
    %s25 = scalar_select %p22, %s23, %s24
    %p28 = pneg %p22
    %p29 = scmp.eq.s32.totalorder %s13, 1
    %p30 = por %p28, %p29
    %p31 = scmp.ne.s32.totalorder %s23, %s26
    %p32 = scmp.eq.s32.totalorder %s13, 0
    %p33 = por %p31, %p32
    %p34 = scmp.ne.s32.totalorder %s23, %s26
    %p35 = scmp.eq.s32.totalorder %s18, 1
    %p36 = por %p34, %p35
    %p37 = scmp.ne.s32.totalorder %s26, %s27
    %p38 = scmp.eq.s32.totalorder %s18, 0
    %p39 = por %p37, %p38
    %p40 = scmp.ne.s32.totalorder %s26, %s27
    %p41 = scmp.eq.s32.totalorder %s19, 1
    %p42 = por %p40, %p41
    %p44 = scmp.ne.s32.totalorder %s27, %s43
    %p45 = scmp.eq.s32.totalorder %s19, 0
    %p46 = por %p44, %p45
    %s48 = sadd.s32 %s47, 1
    %p51 = scmp.eq.s32.totalorder %s13, 1
    %p52 = scmp.ne.s32.totalorder %s47, %s49
    %p53 = scmp.eq.s32.totalorder %s13, 0
    %p54 = por %p52, %p53
    %p55 = scmp.ne.s32.totalorder %s47, %s49
    %p56 = scmp.eq.s32.totalorder %s18, 1
    %p57 = por %p55, %p56
    %p58 = scmp.ne.s32.totalorder %s49, %s50
    %p59 = scmp.eq.s32.totalorder %s18, 0
    %p60 = por %p58, %p59
    %p61 = scmp.ne.s32.totalorder %s49, %s50
    %p62 = scmp.eq.s32.totalorder %s19, 1
    %p63 = por %p61, %p62
    %p65 = scmp.ne.s32.totalorder %s50, %s64
    %p66 = scmp.eq.s32.totalorder %s19, 0
    %p67 = por %p65, %p66
    %s69 = sadd.s32 %s68, 1
    %p72 = scmp.eq.s32.totalorder %s13, 1
    %p73 = scmp.ne.s32.totalorder %s68, %s70
    %p74 = scmp.eq.s32.totalorder %s13, 0
    %p75 = por %p73, %p74
    %p76 = scmp.ne.s32.totalorder %s68, %s70
    %p77 = scmp.eq.s32.totalorder %s18, 1
    %p78 = por %p76, %p77
    %p79 = scmp.ne.s32.totalorder %s70, %s71
    %p80 = scmp.eq.s32.totalorder %s18, 0
    %p81 = por %p79, %p80
    %p82 = scmp.ne.s32.totalorder %s70, %s71
    %p83 = scmp.eq.s32.totalorder %s19, 1
    %p84 = por %p82, %p83
    %p86 = scmp.ne.s32.totalorder %s71, %s85
    %p87 = scmp.eq.s32.totalorder %s19, 0
    %p88 = por %p86, %p87
    %s90 = sadd.s32 %s89, 1
    %p93 = scmp.eq.s32.totalorder %s13, 1
    %p94 = scmp.ne.s32.totalorder %s89, %s91
    %p95 = scmp.eq.s32.totalorder %s13, 0
    %p96 = por %p94, %p95
    %p97 = scmp.ne.s32.totalorder %s89, %s91
    %p98 = scmp.eq.s32.totalorder %s18, 1
    %p99 = por %p97, %p98
    %p100 = scmp.ne.s32.totalorder %s91, %s92
    %p101 = scmp.eq.s32.totalorder %s18, 0
    %p102 = por %p100, %p101
    %p103 = scmp.ne.s32.totalorder %s91, %s92
    %p104 = scmp.eq.s32.totalorder %s19, 1
    %p105 = por %p103, %p104
    %p107 = scmp.ne.s32.totalorder %s92, %s106
    %p108 = scmp.eq.s32.totalorder %s19, 0
    %p109 = por %p107, %p108
    %s110 = ssub.s32 %s13, %s20
    %p111 = scmp.eq.s32.totalorder %s110, 0
    %s113 = sadd.s32 %s112, 1
    %s114 = scalar_select %p111, %s112, %s113
    %p117 = pneg %p111
    %p118 = scmp.eq.s32.totalorder %s13, 1
    %p119 = por %p117, %p118
    %p120 = scmp.ne.s32.totalorder %s112, %s115
    %p121 = scmp.eq.s32.totalorder %s13, 0
    %p122 = por %p120, %p121
    %p123 = scmp.ne.s32.totalorder %s112, %s115
    %p124 = scmp.eq.s32.totalorder %s18, 1
    %p125 = por %p123, %p124
    %p126 = scmp.ne.s32.totalorder %s115, %s116
    %p127 = scmp.eq.s32.totalorder %s18, 0
    %p128 = por %p126, %p127
    %p129 = scmp.ne.s32.totalorder %s115, %s116
    %p130 = scmp.eq.s32.totalorder %s19, 1
    %p131 = por %p129, %p130
    %p133 = scmp.ne.s32.totalorder %s116, %s132
    %p134 = scmp.eq.s32.totalorder %s19, 0
    %p135 = por %p133, %p134
    %s136 = ssub.s32 %s13, %s20
    %p137 = scmp.eq.s32.totalorder %s136, 0
    %s139 = sadd.s32 %s138, 1
    %s140 = scalar_select %p137, %s138, %s139
    %p143 = pneg %p137
    %p144 = scmp.eq.s32.totalorder %s13, 1
    %p145 = por %p143, %p144
    %p146 = scmp.ne.s32.totalorder %s138, %s141
    %p147 = scmp.eq.s32.totalorder %s13, 0
    %p148 = por %p146, %p147
    %p149 = scmp.ne.s32.totalorder %s138, %s141
    %p150 = scmp.eq.s32.totalorder %s18, 1
    %p151 = por %p149, %p150
    %p152 = scmp.ne.s32.totalorder %s141, %s142
    %p153 = scmp.eq.s32.totalorder %s18, 0
    %p154 = por %p152, %p153
    %p155 = scmp.ne.s32.totalorder %s141, %s142
    %p156 = scmp.eq.s32.totalorder %s19, 1
    %p157 = por %p155, %p156
    %p159 = scmp.ne.s32.totalorder %s142, %s158
    %p160 = scmp.eq.s32.totalorder %s19, 0
    %p161 = por %p159, %p160
    %s162 = ssub.s32 %s13, %s20
    %p163 = scmp.eq.s32.totalorder %s162, 0
    %s165 = sadd.s32 %s164, 1
    %s166 = scalar_select %p163, %s164, %s165
    %p169 = pneg %p163
    %p170 = scmp.eq.s32.totalorder %s13, 1
    %p171 = por %p169, %p170
    %p172 = scmp.ne.s32.totalorder %s164, %s167
    %p173 = scmp.eq.s32.totalorder %s13, 0
    %p174 = por %p172, %p173
    %p175 = scmp.ne.s32.totalorder %s164, %s167
    %p176 = scmp.eq.s32.totalorder %s18, 1
    %p177 = por %p175, %p176
    %p178 = scmp.ne.s32.totalorder %s167, %s168
    %p179 = scmp.eq.s32.totalorder %s18, 0
    %p180 = por %p178, %p179
    %p181 = scmp.ne.s32.totalorder %s167, %s168
    %p182 = scmp.eq.s32.totalorder %s19, 1
    %p183 = por %p181, %p182
    %p185 = scmp.ne.s32.totalorder %s168, %s184
    %p186 = scmp.eq.s32.totalorder %s19, 0
    %p187 = por %p185, %p186
    %p188 = scmp.le.s32.totalorder 1, %s13
    %p189 = scmp.lt.s32.totalorder %s13, 3
    %p190 = pnand %p188, %p189
    %p191 = pneg %p190
    // Predicated region
    $region9: #{bsq_vq_forward.30} parent=5 // pred_check
      _
    $region10: #{bsq_vq_forward.30} parent=5 // pred_check_branch
      %193 = sbr.rel (%p190) target = $region12
    $region11: #{bsq_vq_forward.30} parent=5 // pred_region
      %s194 = ssub.s32 %s13, 1
      // Predicated region
      $region13: #{bsq_vq_forward.30} parent=11 // pred_check
        %p195 = pneg %p60
      $region14: #{bsq_vq_forward.30} parent=11 // pred_check_branch
        %197 = sbr.rel (%p195) target = $region16
      $region15: #{bsq_vq_forward.30} parent=11 // pred_region
        _
      $region16: #{bsq_vq_forward.30} parent=11 // pred_fallthru
        _
      // Predicated region
      $region17: #{bsq_vq_forward.30} parent=11 // pred_check
        %p198 = pneg %p81
      $region18: #{bsq_vq_forward.30} parent=11 // pred_check_branch
        %200 = sbr.rel (%p198) target = $region20
      $region19: #{bsq_vq_forward.30} parent=11 // pred_region
        _
      $region20: #{bsq_vq_forward.30} parent=11 // pred_fallthru
        _
      // Predicated region
      $region21: #{bsq_vq_forward.30} parent=11 // pred_check
        %p201 = pneg %p102
      $region22: #{bsq_vq_forward.30} parent=11 // pred_check_branch
        %203 = sbr.rel (%p201) target = $region24
      $region23: #{bsq_vq_forward.30} parent=11 // pred_region
        _
      $region24: #{bsq_vq_forward.30} parent=11 // pred_fallthru
        _
    $region12: #{bsq_vq_forward.30} parent=5 // pred_fallthru
      _
    %p204 = scmp.lt.s32.totalorder %s13, 2
    // Predicated region
    $region25: #{bsq_vq_forward.30} parent=5 // pred_check
      %p205 = pneg %p204
    $region26: #{bsq_vq_forward.30} parent=5 // pred_check_branch
      %207 = sbr.rel (%p205) target = $region28
    $region27: #{bsq_vq_forward.30} parent=5 // pred_region
      // Predicated region
      $region29: #{bsq_vq_forward.30} parent=27 // pred_check
        %p208 = pneg %p33
      $region30: #{bsq_vq_forward.30} parent=27 // pred_check_branch
        %210 = sbr.rel (%p208) target = $region32
      $region31: #{bsq_vq_forward.30} parent=27 // pred_region
        %p211 = scmp.lt.s32.totalorder %s13, 1
        %s212 = scalar_select %p211, %s13, 1
        %s213 = smul.addr %s212, 7
        %s214 = smul.addr %s213, 4
        %s215 = scalar_lea.vmem %s0, %s214
      $region32: #{bsq_vq_forward.30} parent=27 // pred_fallthru
        _
    $region28: #{bsq_vq_forward.30} parent=5 // pred_fallthru
      _
    %p216 = scmp.le.s32.totalorder 1, %s13
    %p217 = scmp.lt.s32.totalorder %s13, 3
    %p218 = pnand %p216, %p217
    %p219 = pneg %p218
    // Predicated region
    $region33: #{bsq_vq_forward.30} parent=5 // pred_check
      _
    $region34: #{bsq_vq_forward.30} parent=5 // pred_check_branch
      %221 = sbr.rel (%p218) target = $region36
    $region35: #{bsq_vq_forward.30} parent=5 // pred_region
      %s222 = ssub.s32 %s13, 1
      %p223 = scmp.lt.s32.totalorder %s18, 1
      %s224 = scalar_select %p223, %s18, 1
      %s225 = smul.addr %s224, 7
      %s226 = smul.addr %s225, 4
      %s227 = scalar_lea.vmem %s0, %s226
      %p228 = pneg %p39
      %p229 = pneg %p36
      %p230 = pneg %p60
      %p231 = pneg %p57
      %p232 = pneg %p81
      %p233 = pneg %p78
      %p234 = pneg %p102
      %p235 = pneg %p99
      %p236 = pneg %p128
      %p237 = pneg %p125
      %p238 = scmp.lt.s32.totalorder %s18, 1
      %s239 = scalar_select %p238, %s18, 1
      %s240 = smul.addr %s239, 4
      %s241 = smul.addr %s240, 8
      %s242 = scalar_lea.vmem %s4, %s241
      %p243 = pneg %p154
      %p244 = pneg %p151
      %p245 = scmp.lt.s32.totalorder %s18, 1
      %s246 = scalar_select %p245, %s18, 1
      %s247 = scalar_lea.vmem %s5, %s246
      %p248 = pneg %p180
      %p249 = pneg %p177
      %p250 = scmp.lt.s32.totalorder %s18, 1
      %s251 = scalar_select %p250, %s18, 1
      %s252 = scalar_lea.vmem %s6, %s251
      %p253 = scmp.lt.s32.totalorder %s18, 1
      %s254 = scalar_select %p253, %s18, 1
      %s255 = smul.addr %s254, 7
      %s256 = smul.addr %s255, 4
      %s257 = scalar_lea.vmem %s0, %s256
      %p258 = scmp.lt.s32.totalorder %s18, 1
      %s259 = scalar_select %p258, %s18, 1
      %s260 = smul.addr %s259, 4
      %s261 = smul.addr %s260, 8
      %s262 = scalar_lea.vmem %s4, %s261
      %p263 = scmp.lt.s32.totalorder %s18, 1
      %s264 = scalar_select %p263, %s18, 1
      %s265 = scalar_lea.vmem %s5, %s264
      %p266 = scmp.lt.s32.totalorder %s18, 1
      %s267 = scalar_select %p266, %s18, 1
      %s268 = scalar_lea.vmem %s6, %s267
      %vm270 = vcmask 261120
      %271 = vst.msk [vmem:[#allocation2] sm:$0xff] %vm270, 0.0
      %272 = vst.msk [vmem:[#allocation2 + $0x8] sm:$0xff] %vm270, 0.0
      %273 = vst.msk [vmem:[#allocation2 + $0x10] sm:$0xff] %vm270, 0.0
      %274 = vst.msk [vmem:[#allocation2 + $0x18] sm:$0xff] %vm270, 0.0
      %v275 = vld [vmem:[%s257] sm:$0xf]
      %v276 = vld [vmem:[%s257 + $0x4] sm:$0xf]
      %v277 = vld [vmem:[%s257 + $0x8] sm:$0xf]
      %v278 = vld [vmem:[%s257 + $0xc] sm:$0xf]
      %v279 = vld [vmem:[%s257 + $0x10] sm:$0xf]
      %v280 = vld [vmem:[%s257 + $0x14] sm:$0xf]
      %v281 = vld [vmem:[#allocation2] sm:$0xff]
      %v282 = vld [vmem:[#allocation2 + $0x8] sm:$0xff]
      %v283 = vld [vmem:[#allocation2 + $0x10] sm:$0xff]
      %v284 = vld [vmem:[#allocation2 + $0x18] sm:$0xff]
      %v285 = vld [vmem:[%s1] sm:$0xf]
      %v286 = vld [vmem:[%s1 + $0x4] sm:$0xf]
      %v287 = vld [vmem:[%s1 + $0x8] sm:$0xf]
      %v288 = vld [vmem:[%s1 + $0xc] sm:$0xf]
      %v293 = vunpack.c.l.b16 %v275
      %v294 = vunpack.c.l.b16 %v276
      %v295 = vunpack.c.l.b16 %v277
      %v296 = vunpack.c.l.b16 %v278
      %v297 = vpack.c.b16 %v294, %v293
      %v298 = vpack.c.b16 %v296, %v295
      %v303 = vunpack.c.l.b16 %v285
      %v304 = vunpack.c.l.b16 %v286
      %v305 = vunpack.c.l.b16 %v287
      %v306 = vunpack.c.l.b16 %v288
      %v307 = vpack.c.b16 %v304, %v303
      %v308 = vpack.c.b16 %v306, %v305
      %v312 = vsel %vm270, %v297, 0
      %v315 = vsel %vm270, %v298, 0
      %317 = vmatprep.subr.bf16.mxu0 0
      %318 = vmatpush1.bf16.msra.mxu0 %v307
      %319 = vmatprep.subr.bf16.mxu0 0
      %320 = vmatpush1.bf16.msra.mxu0 %v308
      %321 = vmatprep.subr.bf16.mxu0 0
      %322 = vmatpush1.bf16.msra.mxu0 0
      %323 = vmatprep.subr.bf16.mxu0 0
      %324 = vmatpush1.bf16.msra.mxu0 0
      %325 = vmatprep.subr.bf16.mxu0 0
      %326 = vmatpush1.bf16.msra.mxu0 0
      %327 = vmatprep.subr.bf16.mxu0 0
      %328 = vmatpush1.bf16.msra.mxu0 0
      %329 = vmatprep.subr.bf16.mxu0 0
      %330 = vmatpush1.bf16.msra.mxu0 0
      %331 = vmatprep.subr.bf16.mxu0 0
      %332 = vmatpush1.bf16.msra.mxu0 0
      %333 = vmatprep.subr.bf16.mxu0 0
      %334 = vmatpush1.bf16.msra.mxu0 0
      %335 = vmatprep.subr.bf16.mxu0 0
      %336 = vmatpush1.bf16.msra.mxu0 0
      %337 = vmatprep.subr.bf16.mxu0 0
      %338 = vmatpush1.bf16.msra.mxu0 0
      %339 = vmatprep.subr.bf16.mxu0 0
      %340 = vmatpush1.bf16.msra.mxu0 0
      %341 = vmatprep.subr.bf16.mxu0 0
      %342 = vmatpush1.bf16.msra.mxu0 0
      %343 = vmatprep.subr.bf16.mxu0 0
      %344 = vmatpush1.bf16.msra.mxu0 0
      %345 = vmatprep.subr.bf16.mxu0 0
      %346 = vmatpush1.bf16.msra.mxu0 0
      %347 = vmatprep.subr.bf16.mxu0 0
      %348 = vmatpush1.bf16.msra.mxu0 0
      %349 = vmatprep.mubr.bf16.mxu0 0
      %350 = vmatmul.mubr.bf16.gmra.mrb[0].mxu0 %v312
      %v351 = vpop.f32.mrb[0].mxu0
      %v352 = vadd.f32 0.0, %v351
      %v353 = vpop.f32.mrb[0].mxu0
      %v354 = vpop.f32.mrb[0].mxu0
      %v355 = vadd.f32 0.0, %v354
      %v356 = vpop.f32.mrb[0].mxu0
      %357 = vmatprep.mubr.bf16.mxu0 0
      %358 = vmatmul.mubr.bf16.gmra.mrb[0].mxu0 %v315
      %v359 = vpop.f32.mrb[0].mxu0
      %v360 = vadd.f32 0.0, %v359
      %v361 = vpop.f32.mrb[0].mxu0
      %v362 = vpop.f32.mrb[0].mxu0
      %v363 = vadd.f32 0.0, %v362
      %v364 = vpop.f32.mrb[0].mxu0
      %365 = vdwg.mxu0
      %v366 = vadd.f32 %v281, %v352
      %v367 = vadd.f32 %v282, %v355
      %v368 = vadd.f32 %v283, %v360
      %v369 = vadd.f32 %v284, %v363
      %370 = vst.msk [vmem:[#allocation2] sm:$0xff] %vm270, %v366
      %371 = vst.msk [vmem:[#allocation2 + $0x8] sm:$0xff] %vm270, %v367
      %372 = vst.msk [vmem:[#allocation2 + $0x10] sm:$0xff] %vm270, %v368
      %373 = vst.msk [vmem:[#allocation2 + $0x18] sm:$0xff] %vm270, %v369
      %v374 = vld [vmem:[#allocation2] sm:$0xff]
      %v375 = vld [vmem:[#allocation2 + $0x8] sm:$0xff]
      %v376 = vld [vmem:[#allocation2 + $0x10] sm:$0xff]
      %v377 = vld [vmem:[#allocation2 + $0x18] sm:$0xff]
      %s378 = scalar_lea.vmem %s1, 48
      %v379 = vld [vmem:[%s378] sm:$0xf]
      %v380 = vld [vmem:[%s378 + $0x4] sm:$0xf]
      %v381 = vld [vmem:[%s378 + $0x8] sm:$0xf]
      %v382 = vld [vmem:[%s378 + $0xc] sm:$0xf]
      %v384 = vunpack.c.l.b16 %v279
      %v385 = vpack.c.b16 %v295, %v294
      %v386 = vpack.c.b16 %v384, %v296
      %v391 = vunpack.c.l.b16 %v379
      %v392 = vunpack.c.l.b16 %v380
      %v393 = vunpack.c.l.b16 %v381
      %v394 = vunpack.c.l.b16 %v382
      %v395 = vpack.c.b16 %v392, %v391
      %v396 = vpack.c.b16 %v394, %v393
      %v400 = vsel %vm270, %v385, 0
      %v403 = vsel %vm270, %v386, 0
      %405 = vmatprep.subr.bf16.mxu0 0
      %406 = vmatpush1.bf16.msra.mxu0 %v395
      %407 = vmatprep.subr.bf16.mxu0 0
      %408 = vmatpush1.bf16.msra.mxu0 %v396
      %409 = vmatprep.subr.bf16.mxu0 0
      %410 = vmatpush1.bf16.msra.mxu0 0
      %411 = vmatprep.subr.bf16.mxu0 0
      %412 = vmatpush1.bf16.msra.mxu0 0
      %413 = vmatprep.subr.bf16.mxu0 0
      %414 = vmatpush1.bf16.msra.mxu0 0
      %415 = vmatprep.subr.bf16.mxu0 0
      %416 = vmatpush1.bf16.msra.mxu0 0
      %417 = vmatprep.subr.bf16.mxu0 0
      %418 = vmatpush1.bf16.msra.mxu0 0
      %419 = vmatprep.subr.bf16.mxu0 0
      %420 = vmatpush1.bf16.msra.mxu0 0
      %421 = vmatprep.subr.bf16.mxu0 0
      %422 = vmatpush1.bf16.msra.mxu0 0
      %423 = vmatprep.subr.bf16.mxu0 0
      %424 = vmatpush1.bf16.msra.mxu0 0
      %425 = vmatprep.subr.bf16.mxu0 0
      %426 = vmatpush1.bf16.msra.mxu0 0
      %427 = vmatprep.subr.bf16.mxu0 0
      %428 = vmatpush1.bf16.msra.mxu0 0
      %429 = vmatprep.subr.bf16.mxu0 0
      %430 = vmatpush1.bf16.msra.mxu0 0
      %431 = vmatprep.subr.bf16.mxu0 0
      %432 = vmatpush1.bf16.msra.mxu0 0
      %433 = vmatprep.subr.bf16.mxu0 0
      %434 = vmatpush1.bf16.msra.mxu0 0
      %435 = vmatprep.subr.bf16.mxu0 0
      %436 = vmatpush1.bf16.msra.mxu0 0
      %437 = vmatprep.mubr.bf16.mxu0 0
      %438 = vmatmul.mubr.bf16.gmra.mrb[0].mxu0 %v400
      %v439 = vpop.f32.mrb[0].mxu0
      %v440 = vadd.f32 0.0, %v439
      %v441 = vpop.f32.mrb[0].mxu0
      %v442 = vpop.f32.mrb[0].mxu0
      %v443 = vadd.f32 0.0, %v442
      %v444 = vpop.f32.mrb[0].mxu0
      %445 = vmatprep.mubr.bf16.mxu0 0
      %446 = vmatmul.mubr.bf16.gmra.mrb[0].mxu0 %v403
      %v447 = vpop.f32.mrb[0].mxu0
      %v448 = vadd.f32 0.0, %v447
      %v449 = vpop.f32.mrb[0].mxu0
      %v450 = vpop.f32.mrb[0].mxu0
      %v451 = vadd.f32 0.0, %v450
      %v452 = vpop.f32.mrb[0].mxu0
      %453 = vdwg.mxu0
      %v454 = vadd.f32 %v374, %v440
      %v455 = vadd.f32 %v375, %v443
      %v456 = vadd.f32 %v376, %v448
      %v457 = vadd.f32 %v377, %v451
      %458 = vst.msk [vmem:[#allocation2] sm:$0xff] %vm270, %v454
      %459 = vst.msk [vmem:[#allocation2 + $0x8] sm:$0xff] %vm270, %v455
      %460 = vst.msk [vmem:[#allocation2 + $0x10] sm:$0xff] %vm270, %v456
      %461 = vst.msk [vmem:[#allocation2 + $0x18] sm:$0xff] %vm270, %v457
      %v462 = vld [vmem:[#allocation2] sm:$0xff]
      %v463 = vld [vmem:[#allocation2 + $0x8] sm:$0xff]
      %v464 = vld [vmem:[#allocation2 + $0x10] sm:$0xff]
      %v465 = vld [vmem:[#allocation2 + $0x18] sm:$0xff]
      %s466 = scalar_lea.vmem %s1, 96
      %v467 = vld [vmem:[%s466] sm:$0xf]
      %v468 = vld [vmem:[%s466 + $0x4] sm:$0xf]
      %v469 = vld [vmem:[%s466 + $0x8] sm:$0xf]
      %v470 = vld [vmem:[%s466 + $0xc] sm:$0xf]
      %v472 = vunpack.c.l.b16 %v280
      %v473 = vpack.c.b16 %v472, %v384
      %v478 = vunpack.c.l.b16 %v467
      %v479 = vunpack.c.l.b16 %v468
      %v480 = vunpack.c.l.b16 %v469
      %v481 = vunpack.c.l.b16 %v470
      %v482 = vpack.c.b16 %v479, %v478
      %v483 = vpack.c.b16 %v481, %v480
      %v487 = vsel %vm270, %v473, 0
      %489 = vmatprep.subr.bf16.mxu0 0
      %490 = vmatpush1.bf16.msra.mxu0 %v482
      %491 = vmatprep.subr.bf16.mxu0 0
      %492 = vmatpush1.bf16.msra.mxu0 %v483
      %493 = vmatprep.subr.bf16.mxu0 0
      %494 = vmatpush1.bf16.msra.mxu0 0
      %495 = vmatprep.subr.bf16.mxu0 0
      %496 = vmatpush1.bf16.msra.mxu0 0
      %497 = vmatprep.subr.bf16.mxu0 0
      %498 = vmatpush1.bf16.msra.mxu0 0
      %499 = vmatprep.subr.bf16.mxu0 0
      %500 = vmatpush1.bf16.msra.mxu0 0
      %501 = vmatprep.subr.bf16.mxu0 0
      %502 = vmatpush1.bf16.msra.mxu0 0
      %503 = vmatprep.subr.bf16.mxu0 0
      %504 = vmatpush1.bf16.msra.mxu0 0
      %505 = vmatprep.subr.bf16.mxu0 0
      %506 = vmatpush1.bf16.msra.mxu0 0
      %507 = vmatprep.subr.bf16.mxu0 0
      %508 = vmatpush1.bf16.msra.mxu0 0
      %509 = vmatprep.subr.bf16.mxu0 0
      %510 = vmatpush1.bf16.msra.mxu0 0
      %511 = vmatprep.subr.bf16.mxu0 0
      %512 = vmatpush1.bf16.msra.mxu0 0
      %513 = vmatprep.subr.bf16.mxu0 0
      %514 = vmatpush1.bf16.msra.mxu0 0
      %515 = vmatprep.subr.bf16.mxu0 0
      %516 = vmatpush1.bf16.msra.mxu0 0
      %517 = vmatprep.subr.bf16.mxu0 0
      %518 = vmatpush1.bf16.msra.mxu0 0
      %519 = vmatprep.subr.bf16.mxu0 0
      %520 = vmatpush1.bf16.msra.mxu0 0
      %521 = vmatprep.mubr.bf16.mxu0 0
      %522 = vmatmul.mubr.bf16.gmra.mrb[0].mxu0 %v315
      %v523 = vpop.f32.mrb[0].mxu0
      %v524 = vadd.f32 0.0, %v523
      %v525 = vpop.f32.mrb[0].mxu0
      %v526 = vpop.f32.mrb[0].mxu0
      %v527 = vadd.f32 0.0, %v526
      %v528 = vpop.f32.mrb[0].mxu0
      %529 = vmatprep.mubr.bf16.mxu0 0
      %530 = vmatmul.mubr.bf16.gmra.mrb[0].mxu0 %v487
      %v531 = vpop.f32.mrb[0].mxu0
      %v532 = vadd.f32 0.0, %v531
      %v533 = vpop.f32.mrb[0].mxu0
      %v534 = vpop.f32.mrb[0].mxu0
      %v535 = vadd.f32 0.0, %v534
      %v536 = vpop.f32.mrb[0].mxu0
      %537 = vdwg.mxu0
      %v538 = vadd.f32 %v462, %v524
      %v539 = vadd.f32 %v463, %v527
      %v540 = vadd.f32 %v464, %v532
      %v541 = vadd.f32 %v465, %v535
      %542 = vst.msk [vmem:[#allocation2] sm:$0xff] %vm270, %v538
      %543 = vst.msk [vmem:[#allocation2 + $0x8] sm:$0xff] %vm270, %v539
      %544 = vst.msk [vmem:[#allocation2 + $0x10] sm:$0xff] %vm270, %v540
      %545 = vst.msk [vmem:[#allocation2 + $0x18] sm:$0xff] %vm270, %v541
      %v546 = vld [vmem:[%s257] sm:$0xf]
      %v547 = vld [vmem:[%s257 + $0x4] sm:$0xf]
      %v548 = vld [vmem:[%s257 + $0x8] sm:$0xf]
      %v549 = vld [vmem:[%s257 + $0xc] sm:$0xf]
      %v550 = vld [vmem:[%s257 + $0x10] sm:$0xf]
      %v551 = vld [vmem:[%s257 + $0x14] sm:$0xf]
      %v552 = vld [vmem:[%s257 + $0x18] sm:$0x1]
      %v553 = vld [vmem:[#allocation2] sm:$0xff]
      %v554 = vld [vmem:[#allocation2 + $0x8] sm:$0xff]
      %v555 = vld [vmem:[#allocation2 + $0x10] sm:$0xff]
      %v556 = vld [vmem:[#allocation2 + $0x18] sm:$0xff]
      %s557 = scalar_lea.vmem %s1, 16
      %v558 = vld [vmem:[%s557] sm:$0xf]
      %v559 = vld [vmem:[%s557 + $0x4] sm:$0xf]
      %v560 = vld [vmem:[%s557 + $0x8] sm:$0xf]
      %v561 = vld [vmem:[%s557 + $0xc] sm:$0xf]
      %v567 = vunpack.c.l.b16 %v546
      %v568 = vunpack.c.l.b16 %v547
      %v569 = vunpack.c.l.b16 %v548
      %v570 = vunpack.c.l.b16 %v549
      %v571 = vunpack.c.l.b16 %v550
      %v572 = vpack.c.b16 %v568, %v567
      %v573 = vpack.c.b16 %v570, %v569
      %v574 = vpack.c.b16 %v571, %v571
      %vm575 = vsmask.f32 7424
      %v577 = vshrl.u32 %v572, 16
      %v579 = vshll.u32 %v572, 16
      %v581 = vrot.slane %v579, 1
      %v582 = vor.u32 %v577, %v581
      %v584 = vshll.u32 %v573, 16
      %v586 = vrot.slane %v584, 1
      %v587 = vsel %vm575, %v582, %v586
      %v588 = vshrl.u32 %v573, 16
      %v590 = vor.u32 %v588, %v586
      %v592 = vshll.u32 %v574, 16
      %v594 = vrot.slane %v592, 1
      %v595 = vsel %vm575, %v590, %v594
      %v600 = vunpack.c.l.b16 %v558
      %v601 = vunpack.c.l.b16 %v559
      %v602 = vunpack.c.l.b16 %v560
      %v603 = vunpack.c.l.b16 %v561
      %v604 = vpack.c.b16 %v601, %v600
      %v605 = vpack.c.b16 %v603, %v602
      %v609 = vsel %vm270, %v587, 0
      %v612 = vsel %vm270, %v595, 0
      %614 = vmatprep.subr.bf16.mxu0 0
      %615 = vmatpush1.bf16.msra.mxu0 %v604
      %616 = vmatprep.subr.bf16.mxu0 0
      %617 = vmatpush1.bf16.msra.mxu0 %v605
      %618 = vmatprep.subr.bf16.mxu0 0
      %619 = vmatpush1.bf16.msra.mxu0 0
      %620 = vmatprep.subr.bf16.mxu0 0
      %621 = vmatpush1.bf16.msra.mxu0 0
      %622 = vmatprep.subr.bf16.mxu0 0
      %623 = vmatpush1.bf16.msra.mxu0 0
      %624 = vmatprep.subr.bf16.mxu0 0
      %625 = vmatpush1.bf16.msra.mxu0 0
      %626 = vmatprep.subr.bf16.mxu0 0
      %627 = vmatpush1.bf16.msra.mxu0 0
      %628 = vmatprep.subr.bf16.mxu0 0
      %629 = vmatpush1.bf16.msra.mxu0 0
      %630 = vmatprep.subr.bf16.mxu0 0
      %631 = vmatpush1.bf16.msra.mxu0 0
      %632 = vmatprep.subr.bf16.mxu0 0
      %633 = vmatpush1.bf16.msra.mxu0 0
      %634 = vmatprep.subr.bf16.mxu0 0
      %635 = vmatpush1.bf16.msra.mxu0 0
      %636 = vmatprep.subr.bf16.mxu0 0
      %637 = vmatpush1.bf16.msra.mxu0 0
      %638 = vmatprep.subr.bf16.mxu0 0
      %639 = vmatpush1.bf16.msra.mxu0 0
      %640 = vmatprep.subr.bf16.mxu0 0
      %641 = vmatpush1.bf16.msra.mxu0 0
      %642 = vmatprep.subr.bf16.mxu0 0
      %643 = vmatpush1.bf16.msra.mxu0 0
      %644 = vmatprep.subr.bf16.mxu0 0
      %645 = vmatpush1.bf16.msra.mxu0 0
      %646 = vmatprep.mubr.bf16.mxu0 0
      %647 = vmatmul.mubr.bf16.gmra.mrb[0].mxu0 %v609
      %v648 = vpop.f32.mrb[0].mxu0
      %v649 = vadd.f32 0.0, %v648
      %v650 = vpop.f32.mrb[0].mxu0
      %v651 = vpop.f32.mrb[0].mxu0
      %v652 = vadd.f32 0.0, %v651
      %v653 = vpop.f32.mrb[0].mxu0
      %654 = vmatprep.mubr.bf16.mxu0 0
      %655 = vmatmul.mubr.bf16.gmra.mrb[0].mxu0 %v612
      %v656 = vpop.f32.mrb[0].mxu0
      %v657 = vadd.f32 0.0, %v656
      %v658 = vpop.f32.mrb[0].mxu0
      %v659 = vpop.f32.mrb[0].mxu0
      %v660 = vadd.f32 0.0, %v659
      %v661 = vpop.f32.mrb[0].mxu0
      %662 = vdwg.mxu0
      %v663 = vadd.f32 %v553, %v649
      %v664 = vadd.f32 %v554, %v652
      %v665 = vadd.f32 %v555, %v657
      %v666 = vadd.f32 %v556, %v660
      %667 = vst.msk [vmem:[#allocation2] sm:$0xff] %vm270, %v663
      %668 = vst.msk [vmem:[#allocation2 + $0x8] sm:$0xff] %vm270, %v664
      %669 = vst.msk [vmem:[#allocation2 + $0x10] sm:$0xff] %vm270, %v665
      %670 = vst.msk [vmem:[#allocation2 + $0x18] sm:$0xff] %vm270, %v666
      %v671 = vld [vmem:[#allocation2] sm:$0xff]
      %v672 = vld [vmem:[#allocation2 + $0x8] sm:$0xff]
      %v673 = vld [vmem:[#allocation2 + $0x10] sm:$0xff]
      %v674 = vld [vmem:[#allocation2 + $0x18] sm:$0xff]
      %s675 = scalar_lea.vmem %s1, 64
      %v676 = vld [vmem:[%s675] sm:$0xf]
      %v677 = vld [vmem:[%s675 + $0x4] sm:$0xf]
      %v678 = vld [vmem:[%s675 + $0x8] sm:$0xf]
      %v679 = vld [vmem:[%s675 + $0xc] sm:$0xf]
      %v681 = vunpack.c.l.b16 %v551
      %v682 = vpack.c.b16 %v569, %v568
      %v683 = vpack.c.b16 %v571, %v570
      %v684 = vpack.c.b16 %v681, %v681
      %v686 = vshrl.u32 %v682, 16
      %v688 = vshll.u32 %v682, 16
      %v690 = vrot.slane %v688, 1
      %v691 = vor.u32 %v686, %v690
      %v693 = vshll.u32 %v683, 16
      %v695 = vrot.slane %v693, 1
      %v696 = vsel %vm575, %v691, %v695
      %v697 = vshrl.u32 %v683, 16
      %v699 = vor.u32 %v697, %v695
      %v701 = vshll.u32 %v684, 16
      %v703 = vrot.slane %v701, 1
      %v704 = vsel %vm575, %v699, %v703
      %v709 = vunpack.c.l.b16 %v676
      %v710 = vunpack.c.l.b16 %v677
      %v711 = vunpack.c.l.b16 %v678
      %v712 = vunpack.c.l.b16 %v679
      %v713 = vpack.c.b16 %v710, %v709
      %v714 = vpack.c.b16 %v712, %v711
      %v718 = vsel %vm270, %v696, 0
      %v721 = vsel %vm270, %v704, 0
      %723 = vmatprep.subr.bf16.mxu0 0
      %724 = vmatpush1.bf16.msra.mxu0 %v713
      %725 = vmatprep.subr.bf16.mxu0 0
      %726 = vmatpush1.bf16.msra.mxu0 %v714
      %727 = vmatprep.subr.bf16.mxu0 0
      %728 = vmatpush1.bf16.msra.mxu0 0
      %729 = vmatprep.subr.bf16.mxu0 0
      %730 = vmatpush1.bf16.msra.mxu0 0
      %731 = vmatprep.subr.bf16.mxu0 0
      %732 = vmatpush1.bf16.msra.mxu0 0
      %733 = vmatprep.subr.bf16.mxu0 0
      %734 = vmatpush1.bf16.msra.mxu0 0
      %735 = vmatprep.subr.bf16.mxu0 0
      %736 = vmatpush1.bf16.msra.mxu0 0
      %737 = vmatprep.subr.bf16.mxu0 0
      %738 = vmatpush1.bf16.msra.mxu0 0
      %739 = vmatprep.subr.bf16.mxu0 0
      %740 = vmatpush1.bf16.msra.mxu0 0
      %741 = vmatprep.subr.bf16.mxu0 0
      %742 = vmatpush1.bf16.msra.mxu0 0
      %743 = vmatprep.subr.bf16.mxu0 0
      %744 = vmatpush1.bf16.msra.mxu0 0
      %745 = vmatprep.subr.bf16.mxu0 0
      %746 = vmatpush1.bf16.msra.mxu0 0
      %747 = vmatprep.subr.bf16.mxu0 0
      %748 = vmatpush1.bf16.msra.mxu0 0
      %749 = vmatprep.subr.bf16.mxu0 0
      %750 = vmatpush1.bf16.msra.mxu0 0
      %751 = vmatprep.subr.bf16.mxu0 0
      %752 = vmatpush1.bf16.msra.mxu0 0
      %753 = vmatprep.subr.bf16.mxu0 0
      %754 = vmatpush1.bf16.msra.mxu0 0
      %755 = vmatprep.mubr.bf16.mxu0 0
      %756 = vmatmul.mubr.bf16.gmra.mrb[0].mxu0 %v718
      %v757 = vpop.f32.mrb[0].mxu0
      %v758 = vadd.f32 0.0, %v757
      %v759 = vpop.f32.mrb[0].mxu0
      %v760 = vpop.f32.mrb[0].mxu0
      %v761 = vadd.f32 0.0, %v760
      %v762 = vpop.f32.mrb[0].mxu0
      %763 = vmatprep.mubr.bf16.mxu0 0
      %764 = vmatmul.mubr.bf16.gmra.mrb[0].mxu0 %v721
      %v765 = vpop.f32.mrb[0].mxu0
      %v766 = vadd.f32 0.0, %v765
      %v767 = vpop.f32.mrb[0].mxu0
      %v768 = vpop.f32.mrb[0].mxu0
      %v769 = vadd.f32 0.0, %v768
      %v770 = vpop.f32.mrb[0].mxu0
      %771 = vdwg.mxu0
      %v772 = vadd.f32 %v671, %v758
      %v773 = vadd.f32 %v672, %v761
      %v774 = vadd.f32 %v673, %v766
      %v775 = vadd.f32 %v674, %v769
      %776 = vst.msk [vmem:[#allocation2] sm:$0xff] %vm270, %v772
      %777 = vst.msk [vmem:[#allocation2 + $0x8] sm:$0xff] %vm270, %v773
      %778 = vst.msk [vmem:[#allocation2 + $0x10] sm:$0xff] %vm270, %v774
      %779 = vst.msk [vmem:[#allocation2 + $0x18] sm:$0xff] %vm270, %v775
      %v780 = vld [vmem:[#allocation2] sm:$0xff]
      %v781 = vld [vmem:[#allocation2 + $0x8] sm:$0xff]
      %v782 = vld [vmem:[#allocation2 + $0x10] sm:$0xff]
      %v783 = vld [vmem:[#allocation2 + $0x18] sm:$0xff]
      %s784 = scalar_lea.vmem %s1, 112
      %v785 = vld [vmem:[%s784] sm:$0xf]
      %v786 = vld [vmem:[%s784 + $0x4] sm:$0xf]
      %v787 = vld [vmem:[%s784 + $0x8] sm:$0xf]
      %v788 = vld [vmem:[%s784 + $0xc] sm:$0xf]
      %v790 = vunpack.c.l.b16 %v552
      %v791 = vpack.c.b16 %v681, %v571
      %v792 = vpack.c.b16 %v790, %v790
      %v794 = vshll.u32 %v791, 16
      %v796 = vrot.slane %v794, 1
      %v797 = vsel %vm575, %v590, %v796
      %v798 = vshrl.u32 %v791, 16
      %v800 = vor.u32 %v798, %v796
      %v802 = vshll.u32 %v792, 16
      %v804 = vrot.slane %v802, 1
      %v805 = vsel %vm575, %v800, %v804
      %v810 = vunpack.c.l.b16 %v785
      %v811 = vunpack.c.l.b16 %v786
      %v812 = vunpack.c.l.b16 %v787
      %v813 = vunpack.c.l.b16 %v788
      %v814 = vpack.c.b16 %v811, %v810
      %v815 = vpack.c.b16 %v813, %v812
      %v819 = vsel %vm270, %v797, 0
      %v822 = vsel %vm270, %v805, 0
      %824 = vmatprep.subr.bf16.mxu0 0
      %825 = vmatpush1.bf16.msra.mxu0 %v814
      %826 = vmatprep.subr.bf16.mxu0 0
      %827 = vmatpush1.bf16.msra.mxu0 %v815
      %828 = vmatprep.subr.bf16.mxu0 0
      %829 = vmatpush1.bf16.msra.mxu0 0
      %830 = vmatprep.subr.bf16.mxu0 0
      %831 = vmatpush1.bf16.msra.mxu0 0
      %832 = vmatprep.subr.bf16.mxu0 0
      %833 = vmatpush1.bf16.msra.mxu0 0
      %834 = vmatprep.subr.bf16.mxu0 0
      %835 = vmatpush1.bf16.msra.mxu0 0
      %836 = vmatprep.subr.bf16.mxu0 0
      %837 = vmatpush1.bf16.msra.mxu0 0
      %838 = vmatprep.subr.bf16.mxu0 0
      %839 = vmatpush1.bf16.msra.mxu0 0
      %840 = vmatprep.subr.bf16.mxu0 0
      %841 = vmatpush1.bf16.msra.mxu0 0
      %842 = vmatprep.subr.bf16.mxu0 0
      %843 = vmatpush1.bf16.msra.mxu0 0
      %844 = vmatprep.subr.bf16.mxu0 0
      %845 = vmatpush1.bf16.msra.mxu0 0
      %846 = vmatprep.subr.bf16.mxu0 0
      %847 = vmatpush1.bf16.msra.mxu0 0
      %848 = vmatprep.subr.bf16.mxu0 0
      %849 = vmatpush1.bf16.msra.mxu0 0
      %850 = vmatprep.subr.bf16.mxu0 0
      %851 = vmatpush1.bf16.msra.mxu0 0
      %852 = vmatprep.subr.bf16.mxu0 0
      %853 = vmatpush1.bf16.msra.mxu0 0
      %854 = vmatprep.subr.bf16.mxu0 0
      %855 = vmatpush1.bf16.msra.mxu0 0
      %856 = vmatprep.mubr.bf16.mxu0 0
      %857 = vmatmul.mubr.bf16.gmra.mrb[0].mxu0 %v819
      %v858 = vpop.f32.mrb[0].mxu0
      %v859 = vadd.f32 0.0, %v858
      %v860 = vpop.f32.mrb[0].mxu0
      %v861 = vpop.f32.mrb[0].mxu0
      %v862 = vadd.f32 0.0, %v861
      %v863 = vpop.f32.mrb[0].mxu0
      %864 = vmatprep.mubr.bf16.mxu0 0
      %865 = vmatmul.mubr.bf16.gmra.mrb[0].mxu0 %v822
      %v866 = vpop.f32.mrb[0].mxu0
      %v867 = vadd.f32 0.0, %v866
      %v868 = vpop.f32.mrb[0].mxu0
      %v869 = vpop.f32.mrb[0].mxu0
      %v870 = vadd.f32 0.0, %v869
      %v871 = vpop.f32.mrb[0].mxu0
      %872 = vdwg.mxu0
      %v873 = vadd.f32 %v780, %v859
      %v874 = vadd.f32 %v781, %v862
      %v875 = vadd.f32 %v782, %v867
      %v876 = vadd.f32 %v783, %v870
      %877 = vst.msk [vmem:[#allocation2] sm:$0xff] %vm270, %v873
      %878 = vst.msk [vmem:[#allocation2 + $0x8] sm:$0xff] %vm270, %v874
      %879 = vst.msk [vmem:[#allocation2 + $0x10] sm:$0xff] %vm270, %v875
      %880 = vst.msk [vmem:[#allocation2 + $0x18] sm:$0xff] %vm270, %v876
      %v881 = vld [vmem:[%s257] sm:$0xe]
      %v882 = vld [vmem:[%s257 + $0x4] sm:$0xf]
      %v883 = vld [vmem:[%s257 + $0x8] sm:$0xf]
      %v884 = vld [vmem:[%s257 + $0xc] sm:$0xf]
      %v885 = vld [vmem:[%s257 + $0x10] sm:$0xf]
      %v886 = vld [vmem:[%s257 + $0x14] sm:$0xf]
      %v887 = vld [vmem:[%s257 + $0x18] sm:$0x1]
      %v888 = vld [vmem:[#allocation2] sm:$0xff]
      %v889 = vld [vmem:[#allocation2 + $0x8] sm:$0xff]
      %v890 = vld [vmem:[#allocation2 + $0x10] sm:$0xff]
      %v891 = vld [vmem:[#allocation2 + $0x18] sm:$0xff]
      %s892 = scalar_lea.vmem %s1, 32
      %v893 = vld [vmem:[%s892] sm:$0xf]
      %v894 = vld [vmem:[%s892 + $0x4] sm:$0xf]
      %v895 = vld [vmem:[%s892 + $0x8] sm:$0xf]
      %v896 = vld [vmem:[%s892 + $0xc] sm:$0xf]
      %v902 = vunpack.c.l.b16 %v881
      %v903 = vunpack.c.l.b16 %v882
      %v904 = vunpack.c.l.b16 %v883
      %v905 = vunpack.c.l.b16 %v884
      %v906 = vunpack.c.l.b16 %v885
      %v907 = vpack.c.b16 %v903, %v902
      %v908 = vpack.c.b16 %v905, %v904
      %v909 = vpack.c.b16 %v906, %v906
      %vm910 = vcmask 1046528
      %v911 = vrot.slane %v907, 1
      %v912 = vrot.slane %v908, 1
      %v913 = vsel %vm910, %v911, %v912
      %v914 = vrot.slane %v909, 1
      %v915 = vsel %vm910, %v912, %v914
      %v920 = vunpack.c.l.b16 %v893
      %v921 = vunpack.c.l.b16 %v894
      %v922 = vunpack.c.l.b16 %v895
      %v923 = vunpack.c.l.b16 %v896
      %v924 = vpack.c.b16 %v921, %v920
      %v925 = vpack.c.b16 %v923, %v922
      %v929 = vsel %vm270, %v913, 0
      %v932 = vsel %vm270, %v915, 0
      %934 = vmatprep.subr.bf16.mxu0 0
      %935 = vmatpush1.bf16.msra.mxu0 %v924
      %936 = vmatprep.subr.bf16.mxu0 0
      %937 = vmatpush1.bf16.msra.mxu0 %v925
      %938 = vmatprep.subr.bf16.mxu0 0
      %939 = vmatpush1.bf16.msra.mxu0 0
      %940 = vmatprep.subr.bf16.mxu0 0
      %941 = vmatpush1.bf16.msra.mxu0 0
      %942 = vmatprep.subr.bf16.mxu0 0
      %943 = vmatpush1.bf16.msra.mxu0 0
      %944 = vmatprep.subr.bf16.mxu0 0
      %945 = vmatpush1.bf16.msra.mxu0 0
      %946 = vmatprep.subr.bf16.mxu0 0
      %947 = vmatpush1.bf16.msra.mxu0 0
      %948 = vmatprep.subr.bf16.mxu0 0
      %949 = vmatpush1.bf16.msra.mxu0 0
      %950 = vmatprep.subr.bf16.mxu0 0
      %951 = vmatpush1.bf16.msra.mxu0 0
      %952 = vmatprep.subr.bf16.mxu0 0
      %953 = vmatpush1.bf16.msra.mxu0 0
      %954 = vmatprep.subr.bf16.mxu0 0
      %955 = vmatpush1.bf16.msra.mxu0 0
      %956 = vmatprep.subr.bf16.mxu0 0
      %957 = vmatpush1.bf16.msra.mxu0 0
      %958 = vmatprep.subr.bf16.mxu0 0
      %959 = vmatpush1.bf16.msra.mxu0 0
      %960 = vmatprep.subr.bf16.mxu0 0
      %961 = vmatpush1.bf16.msra.mxu0 0
      %962 = vmatprep.subr.bf16.mxu0 0
      %963 = vmatpush1.bf16.msra.mxu0 0
      %964 = vmatprep.subr.bf16.mxu0 0
      %965 = vmatpush1.bf16.msra.mxu0 0
      %966 = vmatprep.mubr.bf16.mxu0 0
      %967 = vmatmul.mubr.bf16.gmra.mrb[0].mxu0 %v929
      %v968 = vpop.f32.mrb[0].mxu0
      %v969 = vadd.f32 0.0, %v968
      %v970 = vpop.f32.mrb[0].mxu0
      %v971 = vpop.f32.mrb[0].mxu0
      %v972 = vadd.f32 0.0, %v971
      %v973 = vpop.f32.mrb[0].mxu0
      %974 = vmatprep.mubr.bf16.mxu0 0
      %975 = vmatmul.mubr.bf16.gmra.mrb[0].mxu0 %v932
      %v976 = vpop.f32.mrb[0].mxu0
      %v977 = vadd.f32 0.0, %v976
      %v978 = vpop.f32.mrb[0].mxu0
      %v979 = vpop.f32.mrb[0].mxu0
      %v980 = vadd.f32 0.0, %v979
      %v981 = vpop.f32.mrb[0].mxu0
      %982 = vdwg.mxu0
      %v983 = vadd.f32 %v888, %v969
      %v984 = vadd.f32 %v889, %v972
      %v985 = vadd.f32 %v890, %v977
      %v986 = vadd.f32 %v891, %v980
      %987 = vst.msk [vmem:[#allocation2] sm:$0xff] %vm270, %v983
      %988 = vst.msk [vmem:[#allocation2 + $0x8] sm:$0xff] %vm270, %v984
      %989 = vst.msk [vmem:[#allocation2 + $0x10] sm:$0xff] %vm270, %v985
      %990 = vst.msk [vmem:[#allocation2 + $0x18] sm:$0xff] %vm270, %v986
      %v991 = vld [vmem:[#allocation2] sm:$0xff]
      %v992 = vld [vmem:[#allocation2 + $0x8] sm:$0xff]
      %v993 = vld [vmem:[#allocation2 + $0x10] sm:$0xff]
      %v994 = vld [vmem:[#allocation2 + $0x18] sm:$0xff]
      %s995 = scalar_lea.vmem %s1, 80
      %v996 = vld [vmem:[%s995] sm:$0xf]
      %v997 = vld [vmem:[%s995 + $0x4] sm:$0xf]
      %v998 = vld [vmem:[%s995 + $0x8] sm:$0xf]
      %v999 = vld [vmem:[%s995 + $0xc] sm:$0xf]
      %v1001 = vunpack.c.l.b16 %v886
      %v1002 = vpack.c.b16 %v904, %v903
      %v1003 = vpack.c.b16 %v906, %v905
      %v1004 = vpack.c.b16 %v1001, %v1001
      %v1005 = vrot.slane %v1002, 1
      %v1006 = vrot.slane %v1003, 1
      %v1007 = vsel %vm910, %v1005, %v1006
      %v1008 = vrot.slane %v1004, 1
      %v1009 = vsel %vm910, %v1006, %v1008
      %v1014 = vunpack.c.l.b16 %v996
      %v1015 = vunpack.c.l.b16 %v997
      %v1016 = vunpack.c.l.b16 %v998
      %v1017 = vunpack.c.l.b16 %v999
      %v1018 = vpack.c.b16 %v1015, %v1014
      %v1019 = vpack.c.b16 %v1017, %v1016
      %v1023 = vsel %vm270, %v1007, 0
      %v1026 = vsel %vm270, %v1009, 0
      %1028 = vmatprep.subr.bf16.mxu0 0
      %1029 = vmatpush1.bf16.msra.mxu0 %v1018
      %1030 = vmatprep.subr.bf16.mxu0 0
      %1031 = vmatpush1.bf16.msra.mxu0 %v1019
      %1032 = vmatprep.subr.bf16.mxu0 0
      %1033 = vmatpush1.bf16.msra.mxu0 0
      %1034 = vmatprep.subr.bf16.mxu0 0
      %1035 = vmatpush1.bf16.msra.mxu0 0
      %1036 = vmatprep.subr.bf16.mxu0 0
      %1037 = vmatpush1.bf16.msra.mxu0 0
      %1038 = vmatprep.subr.bf16.mxu0 0
      %1039 = vmatpush1.bf16.msra.mxu0 0
      %1040 = vmatprep.subr.bf16.mxu0 0
      %1041 = vmatpush1.bf16.msra.mxu0 0
      %1042 = vmatprep.subr.bf16.mxu0 0
      %1043 = vmatpush1.bf16.msra.mxu0 0
      %1044 = vmatprep.subr.bf16.mxu0 0
      %1045 = vmatpush1.bf16.msra.mxu0 0
      %1046 = vmatprep.subr.bf16.mxu0 0
      %1047 = vmatpush1.bf16.msra.mxu0 0
      %1048 = vmatprep.subr.bf16.mxu0 0
      %1049 = vmatpush1.bf16.msra.mxu0 0
      %1050 = vmatprep.subr.bf16.mxu0 0
      %1051 = vmatpush1.bf16.msra.mxu0 0
      %1052 = vmatprep.subr.bf16.mxu0 0
      %1053 = vmatpush1.bf16.msra.mxu0 0
      %1054 = vmatprep.subr.bf16.mxu0 0
      %1055 = vmatpush1.bf16.msra.mxu0 0
      %1056 = vmatprep.subr.bf16.mxu0 0
      %1057 = vmatpush1.bf16.msra.mxu0 0
      %1058 = vmatprep.subr.bf16.mxu0 0
      %1059 = vmatpush1.bf16.msra.mxu0 0
      %1060 = vmatprep.mubr.bf16.mxu0 0
      %1061 = vmatmul.mubr.bf16.gmra.mrb[0].mxu0 %v1023
      %v1062 = vpop.f32.mrb[0].mxu0
      %v1063 = vadd.f32 0.0, %v1062
      %v1064 = vpop.f32.mrb[0].mxu0
      %v1065 = vpop.f32.mrb[0].mxu0
      %v1066 = vadd.f32 0.0, %v1065
      %v1067 = vpop.f32.mrb[0].mxu0
      %1068 = vmatprep.mubr.bf16.mxu0 0
      %1069 = vmatmul.mubr.bf16.gmra.mrb[0].mxu0 %v1026
      %v1070 = vpop.f32.mrb[0].mxu0
      %v1071 = vadd.f32 0.0, %v1070
      %v1072 = vpop.f32.mrb[0].mxu0
      %v1073 = vpop.f32.mrb[0].mxu0
      %v1074 = vadd.f32 0.0, %v1073
      %v1075 = vpop.f32.mrb[0].mxu0
      %1076 = vdwg.mxu0
      %v1077 = vadd.f32 %v991, %v1063
      %v1078 = vadd.f32 %v992, %v1066
      %v1079 = vadd.f32 %v993, %v1071
      %v1080 = vadd.f32 %v994, %v1074
      %1081 = vst.msk [vmem:[#allocation2] sm:$0xff] %vm270, %v1077
      %1082 = vst.msk [vmem:[#allocation2 + $0x8] sm:$0xff] %vm270, %v1078
      %1083 = vst.msk [vmem:[#allocation2 + $0x10] sm:$0xff] %vm270, %v1079
      %1084 = vst.msk [vmem:[#allocation2 + $0x18] sm:$0xff] %vm270, %v1080
      %v1085 = vld [vmem:[#allocation2] sm:$0xff]
      %v1086 = vld [vmem:[#allocation2 + $0x8] sm:$0xff]
      %v1087 = vld [vmem:[#allocation2 + $0x10] sm:$0xff]
      %v1088 = vld [vmem:[#allocation2 + $0x18] sm:$0xff]
      %s1089 = scalar_lea.vmem %s1, 128
      %v1090 = vld [vmem:[%s1089] sm:$0xf]
      %v1091 = vld [vmem:[%s1089 + $0x4] sm:$0xf]
      %v1092 = vld [vmem:[%s1089 + $0x8] sm:$0xf]
      %v1093 = vld [vmem:[%s1089 + $0xc] sm:$0xf]
      %v1095 = vunpack.c.l.b16 %v887
      %v1096 = vpack.c.b16 %v1001, %v906
      %v1097 = vpack.c.b16 %v1095, %v1095
      %v1098 = vrot.slane %v1096, 1
      %v1099 = vsel %vm910, %v912, %v1098
      %v1100 = vrot.slane %v1097, 1
      %v1101 = vsel %vm910, %v1098, %v1100
      %v1106 = vunpack.c.l.b16 %v1090
      %v1107 = vunpack.c.l.b16 %v1091
      %v1108 = vunpack.c.l.b16 %v1092
      %v1109 = vunpack.c.l.b16 %v1093
      %v1110 = vpack.c.b16 %v1107, %v1106
      %v1111 = vpack.c.b16 %v1109, %v1108
      %v1115 = vsel %vm270, %v1099, 0
      %v1118 = vsel %vm270, %v1101, 0
      %1120 = vmatprep.subr.bf16.mxu0 0
      %1121 = vmatpush1.bf16.msra.mxu0 %v1110
      %1122 = vmatprep.subr.bf16.mxu0 0
      %1123 = vmatpush1.bf16.msra.mxu0 %v1111
      %1124 = vmatprep.subr.bf16.mxu0 0
      %1125 = vmatpush1.bf16.msra.mxu0 0
      %1126 = vmatprep.subr.bf16.mxu0 0
      %1127 = vmatpush1.bf16.msra.mxu0 0
      %1128 = vmatprep.subr.bf16.mxu0 0
      %1129 = vmatpush1.bf16.msra.mxu0 0
      %1130 = vmatprep.subr.bf16.mxu0 0
      %1131 = vmatpush1.bf16.msra.mxu0 0
      %1132 = vmatprep.subr.bf16.mxu0 0
      %1133 = vmatpush1.bf16.msra.mxu0 0
      %1134 = vmatprep.subr.bf16.mxu0 0
      %1135 = vmatpush1.bf16.msra.mxu0 0
      %1136 = vmatprep.subr.bf16.mxu0 0
      %1137 = vmatpush1.bf16.msra.mxu0 0
      %1138 = vmatprep.subr.bf16.mxu0 0
      %1139 = vmatpush1.bf16.msra.mxu0 0
      %1140 = vmatprep.subr.bf16.mxu0 0
      %1141 = vmatpush1.bf16.msra.mxu0 0
      %1142 = vmatprep.subr.bf16.mxu0 0
      %1143 = vmatpush1.bf16.msra.mxu0 0
      %1144 = vmatprep.subr.bf16.mxu0 0
      %1145 = vmatpush1.bf16.msra.mxu0 0
      %1146 = vmatprep.subr.bf16.mxu0 0
      %1147 = vmatpush1.bf16.msra.mxu0 0
      %1148 = vmatprep.subr.bf16.mxu0 0
      %1149 = vmatpush1.bf16.msra.mxu0 0
      %1150 = vmatprep.subr.bf16.mxu0 0
      %1151 = vmatpush1.bf16.msra.mxu0 0
      %1152 = vmatprep.mubr.bf16.mxu0 0
      %1153 = vmatmul.mubr.bf16.gmra.mrb[0].mxu0 %v1115
      %v1154 = vpop.f32.mrb[0].mxu0
      %v1155 = vadd.f32 0.0, %v1154
      %v1156 = vpop.f32.mrb[0].mxu0
      %v1157 = vpop.f32.mrb[0].mxu0
      %v1158 = vadd.f32 0.0, %v1157
      %v1159 = vpop.f32.mrb[0].mxu0
      %1160 = vmatprep.mubr.bf16.mxu0 0
      %1161 = vmatmul.mubr.bf16.gmra.mrb[0].mxu0 %v1118
      %v1162 = vpop.f32.mrb[0].mxu0
      %v1163 = vadd.f32 0.0, %v1162
      %v1164 = vpop.f32.mrb[0].mxu0
      %v1165 = vpop.f32.mrb[0].mxu0
      %v1166 = vadd.f32 0.0, %v1165
      %v1167 = vpop.f32.mrb[0].mxu0
      %1168 = vdwg.mxu0
      %v1169 = vadd.f32 %v1085, %v1155
      %v1170 = vadd.f32 %v1086, %v1158
      %v1171 = vadd.f32 %v1087, %v1163
      %v1172 = vadd.f32 %v1088, %v1166
      %1173 = vst.msk [vmem:[#allocation2] sm:$0xff] %vm270, %v1169
      %1174 = vst.msk [vmem:[#allocation2 + $0x8] sm:$0xff] %vm270, %v1170
      %1175 = vst.msk [vmem:[#allocation2 + $0x10] sm:$0xff] %vm270, %v1171
      %1176 = vst.msk [vmem:[#allocation2 + $0x18] sm:$0xff] %vm270, %v1172
      %v1177 = vld [vmem:[#allocation2] sm:$0xff]
      %v1178 = vld [vmem:[#allocation2 + $0x8] sm:$0xff]
      %v1179 = vld [vmem:[#allocation2 + $0x10] sm:$0xff]
      %v1180 = vld [vmem:[#allocation2 + $0x18] sm:$0xff]
      %v1181 = vld [vmem:[%s2] sm:$0x1]
      %v1183 = vlaneseq
      %v1184 = vshrl.u32 %v1183, 7
      %v1185 = vsub.s32 0, %v1184
      %v1186 = vrot.slane %v1181, %v1185
      %v1188 = vadd.f32 %v1177, %v1186
      %v1189 = vadd.f32 %v1178, %v1186
      %v1190 = vadd.f32 %v1179, %v1186
      %v1191 = vadd.f32 %v1180, %v1186
      %1192 = vst.msk [vmem:[%s262] sm:$0xff] %vm270, %v1188
      %1193 = vst.msk [vmem:[%s262 + $0x8] sm:$0xff] %vm270, %v1189
      %1194 = vst.msk [vmem:[%s262 + $0x10] sm:$0xff] %vm270, %v1190
      %1195 = vst.msk [vmem:[%s262 + $0x18] sm:$0xff] %vm270, %v1191
      %v1196 = vld [vmem:[%s3] sm:$0xff]
      %v1197 = vld [vmem:[%s3 + $0x8] sm:$0xff]
      %v1198 = vld [vmem:[%s3 + $0x10] sm:$0xff]
      %v1199 = vld [vmem:[%s3 + $0x18] sm:$0xff]
      %1201 = vset.pattern.permute.xlu0 0
      %1202 = vperm.xlu0 %1201, %v1196
      %v1203 = vpop.permute.xlu0 %1202
      %1206 = vset.pattern.permute.xlu0 0
      %1207 = vperm.xlu0 %1206, %v1197
      %v1208 = vpop.permute.xlu0 %1207
      %1211 = vset.pattern.permute.xlu0 0
      %1212 = vperm.xlu0 %1211, %v1198
      %v1213 = vpop.permute.xlu0 %1212
      %1216 = vset.pattern.permute.xlu0 0
      %1217 = vperm.xlu0 %1216, %v1199
      %v1218 = vpop.permute.xlu0 %1217
      %v1220 = vmul.f32 %v1188, %v1203
      %v1221 = vmul.f32 %v1189, %v1208
      %v1222 = vmul.f32 %v1190, %v1213
      %v1223 = vmul.f32 %v1191, %v1218
      %v1224 = vsel %vm270, %v1220, 0.0
      %v1225 = vsel %vm270, %v1221, 0.0
      %v1226 = vadd.f32 %v1224, %v1225
      %v1227 = vsel %vm270, %v1222, 0.0
      %v1228 = vadd.f32 %v1226, %v1227
      %v1229 = vsel %vm270, %v1223, 0.0
      %v1230 = vadd.f32 %v1228, %v1229
      %v1231 = vrot.slane %v1230, 4
      %v1232 = vadd.f32 %v1230, %v1231
      %v1233 = vrot.slane %v1232, 2
      %v1234 = vadd.f32 %v1232, %v1233
      %v1235 = vrot.slane %v1234, 1
      %v1236 = vadd.f32 %v1234, %v1235
      %vm1237 = vcmask 253952
      %1238 = vst.msk [vmem:[%s265] sm:$0x1] %vm1237, %v1236
      %v1239 = vmul.f32 %v1188, %v1188
      %v1240 = vmul.f32 %v1189, %v1189
      %v1241 = vmul.f32 %v1190, %v1190
      %v1242 = vmul.f32 %v1191, %v1191
      %v1243 = vmul.f32 %v1239, %v1203
      %v1244 = vmul.f32 %v1240, %v1208
      %v1245 = vmul.f32 %v1241, %v1213
      %v1246 = vmul.f32 %v1242, %v1218
      %v1247 = vsel %vm270, %v1243, 0.0
      %v1248 = vsel %vm270, %v1244, 0.0
      %v1249 = vadd.f32 %v1247, %v1248
      %v1250 = vsel %vm270, %v1245, 0.0
      %v1251 = vadd.f32 %v1249, %v1250
      %v1252 = vsel %vm270, %v1246, 0.0
      %v1253 = vadd.f32 %v1251, %v1252
      %v1254 = vrot.slane %v1253, 4
      %v1255 = vadd.f32 %v1253, %v1254
      %v1256 = vrot.slane %v1255, 2
      %v1257 = vadd.f32 %v1255, %v1256
      %v1258 = vrot.slane %v1257, 1
      %v1259 = vadd.f32 %v1257, %v1258
      %1260 = vst.msk [vmem:[%s268] sm:$0x1] %vm1237, %v1259
      %p1261 = scmp.lt.s32.totalorder %s18, 1
      %s1262 = scalar_select %p1261, %s18, 1
      %s1263 = smul.addr %s1262, 4
      %s1264 = smul.addr %s1263, 8
      %s1265 = scalar_lea.vmem %s4, %s1264
      %p1266 = scmp.lt.s32.totalorder %s18, 1
      %s1267 = scalar_select %p1266, %s18, 1
      %s1268 = scalar_lea.vmem %s5, %s1267
      %p1269 = scmp.lt.s32.totalorder %s18, 1
      %s1270 = scalar_select %p1269, %s18, 1
      %s1271 = scalar_lea.vmem %s6, %s1270
      // Predicated region
      $region37: #{bsq_vq_forward.30} parent=35 // pred_check
        %p1272 = pneg %p125
      $region38: #{bsq_vq_forward.30} parent=35 // pred_check_branch
        %1274 = sbr.rel (%p1272) target = $region40
      $region39: #{bsq_vq_forward.30} parent=35 // pred_region
        _
      $region40: #{bsq_vq_forward.30} parent=35 // pred_fallthru
        _
      // Predicated region
      $region41: #{bsq_vq_forward.30} parent=35 // pred_check
        %p1275 = pneg %p151
      $region42: #{bsq_vq_forward.30} parent=35 // pred_check_branch
        %1277 = sbr.rel (%p1275) target = $region44
      $region43: #{bsq_vq_forward.30} parent=35 // pred_region
        _
      $region44: #{bsq_vq_forward.30} parent=35 // pred_fallthru
        _
      // Predicated region
      $region45: #{bsq_vq_forward.30} parent=35 // pred_check
        %p1278 = pneg %p177
      $region46: #{bsq_vq_forward.30} parent=35 // pred_check_branch
        %1280 = sbr.rel (%p1278) target = $region48
      $region47: #{bsq_vq_forward.30} parent=35 // pred_region
        _
      $region48: #{bsq_vq_forward.30} parent=35 // pred_fallthru
        _
    $region36: #{bsq_vq_forward.30} parent=5 // pred_fallthru
      _
    %p1281 = scmp.le.s32.totalorder 2, %s13
    // Predicated region
    $region49: #{bsq_vq_forward.30} parent=5 // pred_check
      %p1282 = pneg %p1281
    $region50: #{bsq_vq_forward.30} parent=5 // pred_check_branch
      %1284 = sbr.rel (%p1282) target = $region52
    $region51: #{bsq_vq_forward.30} parent=5 // pred_region
      %s1285 = ssub.s32 %s13, 2
      // Predicated region
      $region53: #{bsq_vq_forward.30} parent=51 // pred_check
        %p1286 = pneg %p131
      $region54: #{bsq_vq_forward.30} parent=51 // pred_check_branch
        %1288 = sbr.rel (%p1286) target = $region56
      $region55: #{bsq_vq_forward.30} parent=51 // pred_region
        %p1289 = scmp.lt.s32.totalorder %s19, 1
        %s1290 = scalar_select %p1289, %s19, 1
        %s1291 = smul.addr %s1290, 4
        %s1292 = smul.addr %s1291, 8
        %s1293 = scalar_lea.vmem %s4, %s1292
      $region56: #{bsq_vq_forward.30} parent=51 // pred_fallthru
        _
      // Predicated region
      $region57: #{bsq_vq_forward.30} parent=51 // pred_check
        %p1294 = pneg %p157
      $region58: #{bsq_vq_forward.30} parent=51 // pred_check_branch
        %1296 = sbr.rel (%p1294) target = $region60
      $region59: #{bsq_vq_forward.30} parent=51 // pred_region
        %p1297 = scmp.lt.s32.totalorder %s19, 1
        %s1298 = scalar_select %p1297, %s19, 1
        %s1299 = scalar_lea.vmem %s5, %s1298
      $region60: #{bsq_vq_forward.30} parent=51 // pred_fallthru
        _
      // Predicated region
      $region61: #{bsq_vq_forward.30} parent=51 // pred_check
        %p1300 = pneg %p183
      $region62: #{bsq_vq_forward.30} parent=51 // pred_check_branch
        %1302 = sbr.rel (%p1300) target = $region64
      $region63: #{bsq_vq_forward.30} parent=51 // pred_region
        %p1303 = scmp.lt.s32.totalorder %s19, 1
        %s1304 = scalar_select %p1303, %s19, 1
        %s1305 = scalar_lea.vmem %s6, %s1304
      $region64: #{bsq_vq_forward.30} parent=51 // pred_fallthru
        _
    $region52: #{bsq_vq_forward.30} parent=5 // pred_fallthru
      _
  $region6: #{bsq_vq_forward.30} parent=0 // loop_footer
    %s17 = sadd.s32 1, %s13
  $region7: #{bsq_vq_forward.30} parent=0 // loop_footer_branch
    %12 = sbr.rel target = $region3
  $region8: #{bsq_vq_forward.30} parent=0 // loop_exit
    _

// kernel: bsq_vq_forward.34
$region0: #{bsq_vq_forward.34}
  #allocation0 [shape = 'u32[]', space=smem, size = 0x4, offset = 0x4, fixed_abs, tag = 'smem constant byte address 0x4 - core index']
  #allocation1 [shape = 'u32[144,128]{1,0:T(1,128)}', space=vmem, size = 0x12000, scoped, tag = 'internal scratch']
  #allocation2 [shape = 'f32[32,64]{1,0:T(8,128)}', space=vmem, size = 0x4000, scoped, tag = 'scratch operand']
  %s0 = inlined_call_operand.vmem [shape: bf16[2,56,32], index: 0, kind: input, shape index: {}]
  %s1 = inlined_call_operand.vmem [shape: bf16[9,32,64], index: 1, kind: input, shape index: {}]
  %s2 = inlined_call_operand.vmem [shape: f32[1,64], index: 2, kind: input, shape index: {}]
  %s3 = inlined_call_operand.vmem [shape: f32[2,32,64], index: 3, kind: output, shape index: {}]
  %s4 = sld [smem:[#allocation0]]
  $region45: #{bsq_vq_forward.34} parent=0
    _
  %s6 = ssub.s32 1, %s4
  %s7 = scalar_select 0, %s6, %s4
  loop: start=0, step=1, limit=4
  $region2: #{bsq_vq_forward.34} parent=0 // loop_pre_header
    _
  $region3: #{bsq_vq_forward.34} parent=0 // loop_header
    %s9 = sphi 0, %s13
    %p10 = scmp.ge.s32.totalorder %s9, 4
    %s19 = sphi 0, %s21
    %s22 = sphi 0, %s19
    %s23 = sphi 0, %s22
    %s39 = sphi 0, %s23
    %s43 = sphi 0, %s43
    %s45 = sphi 0, %s43
    %s46 = sphi 0, %s45
    %s60 = sphi 0, %s46
    %s64 = sphi 0, %s64
    %s66 = sphi 0, %s64
    %s67 = sphi 0, %s66
    %s81 = sphi 0, %s67
    %s87 = sphi 0, %s89
    %s90 = sphi 0, %s87
    %s91 = sphi 0, %s90
    %s107 = sphi 0, %s91
  $region4: #{bsq_vq_forward.34} parent=0 // loop_header_branch
    %12 = sbr.rel (%p10) target = $region8
  $region5: #{bsq_vq_forward.34} parent=0 // loop_body
    %s14 = ssub.s32 %s9, 1
    %s15 = ssub.s32 %s9, 2
    %s16 = sadd.s32 %s9, 1
    %s17 = ssub.s32 %s9, %s16
    %p18 = scmp.eq.s32.totalorder %s17, 0
    %s20 = sadd.s32 %s19, 1
    %s21 = scalar_select %p18, %s19, %s20
    %p24 = pneg %p18
    %p25 = scmp.eq.s32.totalorder %s9, 1
    %p26 = por %p24, %p25
    %p27 = scmp.ne.s32.totalorder %s19, %s22
    %p28 = scmp.eq.s32.totalorder %s9, 0
    %p29 = por %p27, %p28
    %p30 = scmp.ne.s32.totalorder %s19, %s22
    %p31 = scmp.eq.s32.totalorder %s14, 1
    %p32 = por %p30, %p31
    %p33 = scmp.ne.s32.totalorder %s22, %s23
    %p34 = scmp.eq.s32.totalorder %s14, 0
    %p35 = por %p33, %p34
    %p36 = scmp.ne.s32.totalorder %s22, %s23
    %p37 = scmp.eq.s32.totalorder %s15, 1
    %p38 = por %p36, %p37
    %p40 = scmp.ne.s32.totalorder %s23, %s39
    %p41 = scmp.eq.s32.totalorder %s15, 0
    %p42 = por %p40, %p41
    %s44 = sadd.s32 %s43, 1
    %p47 = scmp.eq.s32.totalorder %s9, 1
    %p48 = scmp.ne.s32.totalorder %s43, %s45
    %p49 = scmp.eq.s32.totalorder %s9, 0
    %p50 = por %p48, %p49
    %p51 = scmp.ne.s32.totalorder %s43, %s45
    %p52 = scmp.eq.s32.totalorder %s14, 1
    %p53 = por %p51, %p52
    %p54 = scmp.ne.s32.totalorder %s45, %s46
    %p55 = scmp.eq.s32.totalorder %s14, 0
    %p56 = por %p54, %p55
    %p57 = scmp.ne.s32.totalorder %s45, %s46
    %p58 = scmp.eq.s32.totalorder %s15, 1
    %p59 = por %p57, %p58
    %p61 = scmp.ne.s32.totalorder %s46, %s60
    %p62 = scmp.eq.s32.totalorder %s15, 0
    %p63 = por %p61, %p62
    %s65 = sadd.s32 %s64, 1
    %p68 = scmp.eq.s32.totalorder %s9, 1
    %p69 = scmp.ne.s32.totalorder %s64, %s66
    %p70 = scmp.eq.s32.totalorder %s9, 0
    %p71 = por %p69, %p70
    %p72 = scmp.ne.s32.totalorder %s64, %s66
    %p73 = scmp.eq.s32.totalorder %s14, 1
    %p74 = por %p72, %p73
    %p75 = scmp.ne.s32.totalorder %s66, %s67
    %p76 = scmp.eq.s32.totalorder %s14, 0
    %p77 = por %p75, %p76
    %p78 = scmp.ne.s32.totalorder %s66, %s67
    %p79 = scmp.eq.s32.totalorder %s15, 1
    %p80 = por %p78, %p79
    %p82 = scmp.ne.s32.totalorder %s67, %s81
    %p83 = scmp.eq.s32.totalorder %s15, 0
    %p84 = por %p82, %p83
    %s85 = ssub.s32 %s9, %s16
    %p86 = scmp.eq.s32.totalorder %s85, 0
    %s88 = sadd.s32 %s87, 1
    %s89 = scalar_select %p86, %s87, %s88
    %p92 = pneg %p86
    %p93 = scmp.eq.s32.totalorder %s9, 1
    %p94 = por %p92, %p93
    %p95 = scmp.ne.s32.totalorder %s87, %s90
    %p96 = scmp.eq.s32.totalorder %s9, 0
    %p97 = por %p95, %p96
    %p98 = scmp.ne.s32.totalorder %s87, %s90
    %p99 = scmp.eq.s32.totalorder %s14, 1
    %p100 = por %p98, %p99
    %p101 = scmp.ne.s32.totalorder %s90, %s91
    %p102 = scmp.eq.s32.totalorder %s14, 0
    %p103 = por %p101, %p102
    %p104 = scmp.ne.s32.totalorder %s90, %s91
    %p105 = scmp.eq.s32.totalorder %s15, 1
    %p106 = por %p104, %p105
    %p108 = scmp.ne.s32.totalorder %s91, %s107
    %p109 = scmp.eq.s32.totalorder %s15, 0
    %p110 = por %p108, %p109
    %p111 = scmp.le.s32.totalorder 1, %s9
    %p112 = scmp.lt.s32.totalorder %s9, 3
    %p113 = pnand %p111, %p112
    %p114 = pneg %p113
    // Predicated region
    $region9: #{bsq_vq_forward.34} parent=5 // pred_check
      _
    $region10: #{bsq_vq_forward.34} parent=5 // pred_check_branch
      %116 = sbr.rel (%p113) target = $region12
    $region11: #{bsq_vq_forward.34} parent=5 // pred_region
      %s117 = ssub.s32 %s9, 1
      // Predicated region
      $region13: #{bsq_vq_forward.34} parent=11 // pred_check
        %p118 = pneg %p56
      $region14: #{bsq_vq_forward.34} parent=11 // pred_check_branch
        %120 = sbr.rel (%p118) target = $region16
      $region15: #{bsq_vq_forward.34} parent=11 // pred_region
        _
      $region16: #{bsq_vq_forward.34} parent=11 // pred_fallthru
        _
      // Predicated region
      $region17: #{bsq_vq_forward.34} parent=11 // pred_check
        %p121 = pneg %p77
      $region18: #{bsq_vq_forward.34} parent=11 // pred_check_branch
        %123 = sbr.rel (%p121) target = $region20
      $region19: #{bsq_vq_forward.34} parent=11 // pred_region
        _
      $region20: #{bsq_vq_forward.34} parent=11 // pred_fallthru
        _
    $region12: #{bsq_vq_forward.34} parent=5 // pred_fallthru
      _
    %p124 = scmp.lt.s32.totalorder %s9, 2
    // Predicated region
    $region21: #{bsq_vq_forward.34} parent=5 // pred_check
      %p125 = pneg %p124
    $region22: #{bsq_vq_forward.34} parent=5 // pred_check_branch
      %127 = sbr.rel (%p125) target = $region24
    $region23: #{bsq_vq_forward.34} parent=5 // pred_region
      // Predicated region
      $region25: #{bsq_vq_forward.34} parent=23 // pred_check
        %p128 = pneg %p29
      $region26: #{bsq_vq_forward.34} parent=23 // pred_check_branch
        %130 = sbr.rel (%p128) target = $region28
      $region27: #{bsq_vq_forward.34} parent=23 // pred_region
        %p131 = scmp.lt.s32.totalorder %s9, 1
        %s132 = scalar_select %p131, %s9, 1
        %s133 = smul.addr %s132, 7
        %s134 = smul.addr %s133, 4
        %s135 = scalar_lea.vmem %s0, %s134
      $region28: #{bsq_vq_forward.34} parent=23 // pred_fallthru
        _
    $region24: #{bsq_vq_forward.34} parent=5 // pred_fallthru
      _
    %p136 = scmp.le.s32.totalorder 1, %s9
    %p137 = scmp.lt.s32.totalorder %s9, 3
    %p138 = pnand %p136, %p137
    %p139 = pneg %p138
    // Predicated region
    $region29: #{bsq_vq_forward.34} parent=5 // pred_check
      _
    $region30: #{bsq_vq_forward.34} parent=5 // pred_check_branch
      %141 = sbr.rel (%p138) target = $region32
    $region31: #{bsq_vq_forward.34} parent=5 // pred_region
      %s142 = ssub.s32 %s9, 1
      %p143 = scmp.lt.s32.totalorder %s14, 1
      %s144 = scalar_select %p143, %s14, 1
      %s145 = smul.addr %s144, 7
      %s146 = smul.addr %s145, 4
      %s147 = scalar_lea.vmem %s0, %s146
      %p148 = pneg %p35
      %p149 = pneg %p32
      %p150 = pneg %p56
      %p151 = pneg %p53
      %p152 = pneg %p77
      %p153 = pneg %p74
      %p154 = pneg %p103
      %p155 = pneg %p100
      %p156 = scmp.lt.s32.totalorder %s14, 1
      %s157 = scalar_select %p156, %s14, 1
      %s158 = smul.addr %s157, 4
      %s159 = smul.addr %s158, 8
      %s160 = scalar_lea.vmem %s3, %s159
      %p161 = scmp.lt.s32.totalorder %s14, 1
      %s162 = scalar_select %p161, %s14, 1
      %s163 = smul.addr %s162, 7
      %s164 = smul.addr %s163, 4
      %s165 = scalar_lea.vmem %s0, %s164
      %p166 = scmp.lt.s32.totalorder %s14, 1
      %s167 = scalar_select %p166, %s14, 1
      %s168 = smul.addr %s167, 4
      %s169 = smul.addr %s168, 8
      %s170 = scalar_lea.vmem %s3, %s169
      %vm172 = vcmask 523264
      %173 = vst.msk [vmem:[#allocation2] sm:$0xff] %vm172, 0.0
      %174 = vst.msk [vmem:[#allocation2 + $0x8] sm:$0xff] %vm172, 0.0
      %175 = vst.msk [vmem:[#allocation2 + $0x10] sm:$0xff] %vm172, 0.0
      %176 = vst.msk [vmem:[#allocation2 + $0x18] sm:$0xff] %vm172, 0.0
      %v177 = vld [vmem:[%s165] sm:$0xf]
      %v178 = vld [vmem:[%s165 + $0x4] sm:$0xf]
      %v179 = vld [vmem:[%s165 + $0x8] sm:$0xf]
      %v180 = vld [vmem:[%s165 + $0xc] sm:$0xf]
      %v181 = vld [vmem:[%s165 + $0x10] sm:$0xf]
      %v182 = vld [vmem:[%s165 + $0x14] sm:$0xf]
      %v183 = vld [vmem:[#allocation2] sm:$0xff]
      %v184 = vld [vmem:[#allocation2 + $0x8] sm:$0xff]
      %v185 = vld [vmem:[#allocation2 + $0x10] sm:$0xff]
      %v186 = vld [vmem:[#allocation2 + $0x18] sm:$0xff]
      %v187 = vld [vmem:[%s1] sm:$0xf]
      %v188 = vld [vmem:[%s1 + $0x4] sm:$0xf]
      %v189 = vld [vmem:[%s1 + $0x8] sm:$0xf]
      %v190 = vld [vmem:[%s1 + $0xc] sm:$0xf]
      %v195 = vunpack.c.l.b16 %v177
      %v196 = vunpack.c.l.b16 %v178
      %v197 = vunpack.c.l.b16 %v179
      %v198 = vunpack.c.l.b16 %v180
      %v199 = vpack.c.b16 %v196, %v195
      %v200 = vpack.c.b16 %v198, %v197
      %v205 = vunpack.c.l.b16 %v187
      %v206 = vunpack.c.l.b16 %v188
      %v207 = vunpack.c.l.b16 %v189
      %v208 = vunpack.c.l.b16 %v190
      %v209 = vpack.c.b16 %v206, %v205
      %v210 = vpack.c.b16 %v208, %v207
      %vm213 = vcmask 261120
      %v215 = vsel %vm213, %v199, 0
      %v218 = vsel %vm213, %v200, 0
      %220 = vmatprep.subr.bf16.mxu0 0
      %221 = vmatpush1.bf16.msra.mxu0 %v209
      %222 = vmatprep.subr.bf16.mxu0 0
      %223 = vmatpush1.bf16.msra.mxu0 %v210
      %224 = vmatprep.subr.bf16.mxu0 0
      %225 = vmatpush1.bf16.msra.mxu0 0
      %226 = vmatprep.subr.bf16.mxu0 0
      %227 = vmatpush1.bf16.msra.mxu0 0
      %228 = vmatprep.subr.bf16.mxu0 0
      %229 = vmatpush1.bf16.msra.mxu0 0
      %230 = vmatprep.subr.bf16.mxu0 0
      %231 = vmatpush1.bf16.msra.mxu0 0
      %232 = vmatprep.subr.bf16.mxu0 0
      %233 = vmatpush1.bf16.msra.mxu0 0
      %234 = vmatprep.subr.bf16.mxu0 0
      %235 = vmatpush1.bf16.msra.mxu0 0
      %236 = vmatprep.subr.bf16.mxu0 0
      %237 = vmatpush1.bf16.msra.mxu0 0
      %238 = vmatprep.subr.bf16.mxu0 0
      %239 = vmatpush1.bf16.msra.mxu0 0
      %240 = vmatprep.subr.bf16.mxu0 0
      %241 = vmatpush1.bf16.msra.mxu0 0
      %242 = vmatprep.subr.bf16.mxu0 0
      %243 = vmatpush1.bf16.msra.mxu0 0
      %244 = vmatprep.subr.bf16.mxu0 0
      %245 = vmatpush1.bf16.msra.mxu0 0
      %246 = vmatprep.subr.bf16.mxu0 0
      %247 = vmatpush1.bf16.msra.mxu0 0
      %248 = vmatprep.subr.bf16.mxu0 0
      %249 = vmatpush1.bf16.msra.mxu0 0
      %250 = vmatprep.subr.bf16.mxu0 0
      %251 = vmatpush1.bf16.msra.mxu0 0
      %252 = vmatprep.mubr.bf16.mxu0 0
      %253 = vmatmul.mubr.bf16.gmra.mrb[0].mxu0 %v215
      %v254 = vpop.f32.mrb[0].mxu0
      %v255 = vadd.f32 0.0, %v254
      %v256 = vpop.f32.mrb[0].mxu0
      %v257 = vpop.f32.mrb[0].mxu0
      %v258 = vadd.f32 0.0, %v257
      %v259 = vpop.f32.mrb[0].mxu0
      %260 = vmatprep.mubr.bf16.mxu0 0
      %261 = vmatmul.mubr.bf16.gmra.mrb[0].mxu0 %v218
      %v262 = vpop.f32.mrb[0].mxu0
      %v263 = vadd.f32 0.0, %v262
      %v264 = vpop.f32.mrb[0].mxu0
      %v265 = vpop.f32.mrb[0].mxu0
      %v266 = vadd.f32 0.0, %v265
      %v267 = vpop.f32.mrb[0].mxu0
      %268 = vdwg.mxu0
      %v269 = vadd.f32 %v183, %v255
      %v270 = vadd.f32 %v184, %v258
      %v271 = vadd.f32 %v185, %v263
      %v272 = vadd.f32 %v186, %v266
      %273 = vst.msk [vmem:[#allocation2] sm:$0xff] %vm172, %v269
      %274 = vst.msk [vmem:[#allocation2 + $0x8] sm:$0xff] %vm172, %v270
      %275 = vst.msk [vmem:[#allocation2 + $0x10] sm:$0xff] %vm172, %v271
      %276 = vst.msk [vmem:[#allocation2 + $0x18] sm:$0xff] %vm172, %v272
      %v277 = vld [vmem:[#allocation2] sm:$0xff]
      %v278 = vld [vmem:[#allocation2 + $0x8] sm:$0xff]
      %v279 = vld [vmem:[#allocation2 + $0x10] sm:$0xff]
      %v280 = vld [vmem:[#allocation2 + $0x18] sm:$0xff]
      %s281 = scalar_lea.vmem %s1, 48
      %v282 = vld [vmem:[%s281] sm:$0xf]
      %v283 = vld [vmem:[%s281 + $0x4] sm:$0xf]
      %v284 = vld [vmem:[%s281 + $0x8] sm:$0xf]
      %v285 = vld [vmem:[%s281 + $0xc] sm:$0xf]
      %v287 = vunpack.c.l.b16 %v181
      %v288 = vpack.c.b16 %v197, %v196
      %v289 = vpack.c.b16 %v287, %v198
      %v294 = vunpack.c.l.b16 %v282
      %v295 = vunpack.c.l.b16 %v283
      %v296 = vunpack.c.l.b16 %v284
      %v297 = vunpack.c.l.b16 %v285
      %v298 = vpack.c.b16 %v295, %v294
      %v299 = vpack.c.b16 %v297, %v296
      %v303 = vsel %vm213, %v288, 0
      %v306 = vsel %vm213, %v289, 0
      %308 = vmatprep.subr.bf16.mxu0 0
      %309 = vmatpush1.bf16.msra.mxu0 %v298
      %310 = vmatprep.subr.bf16.mxu0 0
      %311 = vmatpush1.bf16.msra.mxu0 %v299
      %312 = vmatprep.subr.bf16.mxu0 0
      %313 = vmatpush1.bf16.msra.mxu0 0
      %314 = vmatprep.subr.bf16.mxu0 0
      %315 = vmatpush1.bf16.msra.mxu0 0
      %316 = vmatprep.subr.bf16.mxu0 0
      %317 = vmatpush1.bf16.msra.mxu0 0
      %318 = vmatprep.subr.bf16.mxu0 0
      %319 = vmatpush1.bf16.msra.mxu0 0
      %320 = vmatprep.subr.bf16.mxu0 0
      %321 = vmatpush1.bf16.msra.mxu0 0
      %322 = vmatprep.subr.bf16.mxu0 0
      %323 = vmatpush1.bf16.msra.mxu0 0
      %324 = vmatprep.subr.bf16.mxu0 0
      %325 = vmatpush1.bf16.msra.mxu0 0
      %326 = vmatprep.subr.bf16.mxu0 0
      %327 = vmatpush1.bf16.msra.mxu0 0
      %328 = vmatprep.subr.bf16.mxu0 0
      %329 = vmatpush1.bf16.msra.mxu0 0
      %330 = vmatprep.subr.bf16.mxu0 0
      %331 = vmatpush1.bf16.msra.mxu0 0
      %332 = vmatprep.subr.bf16.mxu0 0
      %333 = vmatpush1.bf16.msra.mxu0 0
      %334 = vmatprep.subr.bf16.mxu0 0
      %335 = vmatpush1.bf16.msra.mxu0 0
      %336 = vmatprep.subr.bf16.mxu0 0
      %337 = vmatpush1.bf16.msra.mxu0 0
      %338 = vmatprep.subr.bf16.mxu0 0
      %339 = vmatpush1.bf16.msra.mxu0 0
      %340 = vmatprep.mubr.bf16.mxu0 0
      %341 = vmatmul.mubr.bf16.gmra.mrb[0].mxu0 %v303
      %v342 = vpop.f32.mrb[0].mxu0
      %v343 = vadd.f32 0.0, %v342
      %v344 = vpop.f32.mrb[0].mxu0
      %v345 = vpop.f32.mrb[0].mxu0
      %v346 = vadd.f32 0.0, %v345
      %v347 = vpop.f32.mrb[0].mxu0
      %348 = vmatprep.mubr.bf16.mxu0 0
      %349 = vmatmul.mubr.bf16.gmra.mrb[0].mxu0 %v306
      %v350 = vpop.f32.mrb[0].mxu0
      %v351 = vadd.f32 0.0, %v350
      %v352 = vpop.f32.mrb[0].mxu0
      %v353 = vpop.f32.mrb[0].mxu0
      %v354 = vadd.f32 0.0, %v353
      %v355 = vpop.f32.mrb[0].mxu0
      %356 = vdwg.mxu0
      %v357 = vadd.f32 %v277, %v343
      %v358 = vadd.f32 %v278, %v346
      %v359 = vadd.f32 %v279, %v351
      %v360 = vadd.f32 %v280, %v354
      %361 = vst.msk [vmem:[#allocation2] sm:$0xff] %vm172, %v357
      %362 = vst.msk [vmem:[#allocation2 + $0x8] sm:$0xff] %vm172, %v358
      %363 = vst.msk [vmem:[#allocation2 + $0x10] sm:$0xff] %vm172, %v359
      %364 = vst.msk [vmem:[#allocation2 + $0x18] sm:$0xff] %vm172, %v360
      %v365 = vld [vmem:[#allocation2] sm:$0xff]
      %v366 = vld [vmem:[#allocation2 + $0x8] sm:$0xff]
      %v367 = vld [vmem:[#allocation2 + $0x10] sm:$0xff]
      %v368 = vld [vmem:[#allocation2 + $0x18] sm:$0xff]
      %s369 = scalar_lea.vmem %s1, 96
      %v370 = vld [vmem:[%s369] sm:$0xf]
      %v371 = vld [vmem:[%s369 + $0x4] sm:$0xf]
      %v372 = vld [vmem:[%s369 + $0x8] sm:$0xf]
      %v373 = vld [vmem:[%s369 + $0xc] sm:$0xf]
      %v375 = vunpack.c.l.b16 %v182
      %v376 = vpack.c.b16 %v375, %v287
      %v381 = vunpack.c.l.b16 %v370
      %v382 = vunpack.c.l.b16 %v371
      %v383 = vunpack.c.l.b16 %v372
      %v384 = vunpack.c.l.b16 %v373
      %v385 = vpack.c.b16 %v382, %v381
      %v386 = vpack.c.b16 %v384, %v383
      %v390 = vsel %vm213, %v376, 0
      %392 = vmatprep.subr.bf16.mxu0 0
      %393 = vmatpush1.bf16.msra.mxu0 %v385
      %394 = vmatprep.subr.bf16.mxu0 0
      %395 = vmatpush1.bf16.msra.mxu0 %v386
      %396 = vmatprep.subr.bf16.mxu0 0
      %397 = vmatpush1.bf16.msra.mxu0 0
      %398 = vmatprep.subr.bf16.mxu0 0
      %399 = vmatpush1.bf16.msra.mxu0 0
      %400 = vmatprep.subr.bf16.mxu0 0
      %401 = vmatpush1.bf16.msra.mxu0 0
      %402 = vmatprep.subr.bf16.mxu0 0
      %403 = vmatpush1.bf16.msra.mxu0 0
      %404 = vmatprep.subr.bf16.mxu0 0
      %405 = vmatpush1.bf16.msra.mxu0 0
      %406 = vmatprep.subr.bf16.mxu0 0
      %407 = vmatpush1.bf16.msra.mxu0 0
      %408 = vmatprep.subr.bf16.mxu0 0
      %409 = vmatpush1.bf16.msra.mxu0 0
      %410 = vmatprep.subr.bf16.mxu0 0
      %411 = vmatpush1.bf16.msra.mxu0 0
      %412 = vmatprep.subr.bf16.mxu0 0
      %413 = vmatpush1.bf16.msra.mxu0 0
      %414 = vmatprep.subr.bf16.mxu0 0
      %415 = vmatpush1.bf16.msra.mxu0 0
      %416 = vmatprep.subr.bf16.mxu0 0
      %417 = vmatpush1.bf16.msra.mxu0 0
      %418 = vmatprep.subr.bf16.mxu0 0
      %419 = vmatpush1.bf16.msra.mxu0 0
      %420 = vmatprep.subr.bf16.mxu0 0
      %421 = vmatpush1.bf16.msra.mxu0 0
      %422 = vmatprep.subr.bf16.mxu0 0
      %423 = vmatpush1.bf16.msra.mxu0 0
      %424 = vmatprep.mubr.bf16.mxu0 0
      %425 = vmatmul.mubr.bf16.gmra.mrb[0].mxu0 %v218
      %v426 = vpop.f32.mrb[0].mxu0
      %v427 = vadd.f32 0.0, %v426
      %v428 = vpop.f32.mrb[0].mxu0
      %v429 = vpop.f32.mrb[0].mxu0
      %v430 = vadd.f32 0.0, %v429
      %v431 = vpop.f32.mrb[0].mxu0
      %432 = vmatprep.mubr.bf16.mxu0 0
      %433 = vmatmul.mubr.bf16.gmra.mrb[0].mxu0 %v390
      %v434 = vpop.f32.mrb[0].mxu0
      %v435 = vadd.f32 0.0, %v434
      %v436 = vpop.f32.mrb[0].mxu0
      %v437 = vpop.f32.mrb[0].mxu0
      %v438 = vadd.f32 0.0, %v437
      %v439 = vpop.f32.mrb[0].mxu0
      %440 = vdwg.mxu0
      %v441 = vadd.f32 %v365, %v427
      %v442 = vadd.f32 %v366, %v430
      %v443 = vadd.f32 %v367, %v435
      %v444 = vadd.f32 %v368, %v438
      %445 = vst.msk [vmem:[#allocation2] sm:$0xff] %vm172, %v441
      %446 = vst.msk [vmem:[#allocation2 + $0x8] sm:$0xff] %vm172, %v442
      %447 = vst.msk [vmem:[#allocation2 + $0x10] sm:$0xff] %vm172, %v443
      %448 = vst.msk [vmem:[#allocation2 + $0x18] sm:$0xff] %vm172, %v444
      %v449 = vld [vmem:[%s165] sm:$0xf]
      %v450 = vld [vmem:[%s165 + $0x4] sm:$0xf]
      %v451 = vld [vmem:[%s165 + $0x8] sm:$0xf]
      %v452 = vld [vmem:[%s165 + $0xc] sm:$0xf]
      %v453 = vld [vmem:[%s165 + $0x10] sm:$0xf]
      %v454 = vld [vmem:[%s165 + $0x14] sm:$0xf]
      %v455 = vld [vmem:[%s165 + $0x18] sm:$0x1]
      %v456 = vld [vmem:[#allocation2] sm:$0xff]
      %v457 = vld [vmem:[#allocation2 + $0x8] sm:$0xff]
      %v458 = vld [vmem:[#allocation2 + $0x10] sm:$0xff]
      %v459 = vld [vmem:[#allocation2 + $0x18] sm:$0xff]
      %s460 = scalar_lea.vmem %s1, 16
      %v461 = vld [vmem:[%s460] sm:$0xf]
      %v462 = vld [vmem:[%s460 + $0x4] sm:$0xf]
      %v463 = vld [vmem:[%s460 + $0x8] sm:$0xf]
      %v464 = vld [vmem:[%s460 + $0xc] sm:$0xf]
      %v470 = vunpack.c.l.b16 %v449
      %v471 = vunpack.c.l.b16 %v450
      %v472 = vunpack.c.l.b16 %v451
      %v473 = vunpack.c.l.b16 %v452
      %v474 = vunpack.c.l.b16 %v453
      %v475 = vpack.c.b16 %v471, %v470
      %v476 = vpack.c.b16 %v473, %v472
      %v477 = vpack.c.b16 %v474, %v474
      %vm478 = vsmask.f32 7424
      %v480 = vshrl.u32 %v475, 16
      %v482 = vshll.u32 %v475, 16
      %v484 = vrot.slane %v482, 1
      %v485 = vor.u32 %v480, %v484
      %v487 = vshll.u32 %v476, 16
      %v489 = vrot.slane %v487, 1
      %v490 = vsel %vm478, %v485, %v489
      %v491 = vshrl.u32 %v476, 16
      %v493 = vor.u32 %v491, %v489
      %v495 = vshll.u32 %v477, 16
      %v497 = vrot.slane %v495, 1
      %v498 = vsel %vm478, %v493, %v497
      %v503 = vunpack.c.l.b16 %v461
      %v504 = vunpack.c.l.b16 %v462
      %v505 = vunpack.c.l.b16 %v463
      %v506 = vunpack.c.l.b16 %v464
      %v507 = vpack.c.b16 %v504, %v503
      %v508 = vpack.c.b16 %v506, %v505
      %v512 = vsel %vm213, %v490, 0
      %v515 = vsel %vm213, %v498, 0
      %517 = vmatprep.subr.bf16.mxu0 0
      %518 = vmatpush1.bf16.msra.mxu0 %v507
      %519 = vmatprep.subr.bf16.mxu0 0
      %520 = vmatpush1.bf16.msra.mxu0 %v508
      %521 = vmatprep.subr.bf16.mxu0 0
      %522 = vmatpush1.bf16.msra.mxu0 0
      %523 = vmatprep.subr.bf16.mxu0 0
      %524 = vmatpush1.bf16.msra.mxu0 0
      %525 = vmatprep.subr.bf16.mxu0 0
      %526 = vmatpush1.bf16.msra.mxu0 0
      %527 = vmatprep.subr.bf16.mxu0 0
      %528 = vmatpush1.bf16.msra.mxu0 0
      %529 = vmatprep.subr.bf16.mxu0 0
      %530 = vmatpush1.bf16.msra.mxu0 0
      %531 = vmatprep.subr.bf16.mxu0 0
      %532 = vmatpush1.bf16.msra.mxu0 0
      %533 = vmatprep.subr.bf16.mxu0 0
      %534 = vmatpush1.bf16.msra.mxu0 0
      %535 = vmatprep.subr.bf16.mxu0 0
      %536 = vmatpush1.bf16.msra.mxu0 0
      %537 = vmatprep.subr.bf16.mxu0 0
      %538 = vmatpush1.bf16.msra.mxu0 0
      %539 = vmatprep.subr.bf16.mxu0 0
      %540 = vmatpush1.bf16.msra.mxu0 0
      %541 = vmatprep.subr.bf16.mxu0 0
      %542 = vmatpush1.bf16.msra.mxu0 0
      %543 = vmatprep.subr.bf16.mxu0 0
      %544 = vmatpush1.bf16.msra.mxu0 0
      %545 = vmatprep.subr.bf16.mxu0 0
      %546 = vmatpush1.bf16.msra.mxu0 0
      %547 = vmatprep.subr.bf16.mxu0 0
      %548 = vmatpush1.bf16.msra.mxu0 0
      %549 = vmatprep.mubr.bf16.mxu0 0
      %550 = vmatmul.mubr.bf16.gmra.mrb[0].mxu0 %v512
      %v551 = vpop.f32.mrb[0].mxu0
      %v552 = vadd.f32 0.0, %v551
      %v553 = vpop.f32.mrb[0].mxu0
      %v554 = vpop.f32.mrb[0].mxu0
      %v555 = vadd.f32 0.0, %v554
      %v556 = vpop.f32.mrb[0].mxu0
      %557 = vmatprep.mubr.bf16.mxu0 0
      %558 = vmatmul.mubr.bf16.gmra.mrb[0].mxu0 %v515
      %v559 = vpop.f32.mrb[0].mxu0
      %v560 = vadd.f32 0.0, %v559
      %v561 = vpop.f32.mrb[0].mxu0
      %v562 = vpop.f32.mrb[0].mxu0
      %v563 = vadd.f32 0.0, %v562
      %v564 = vpop.f32.mrb[0].mxu0
      %565 = vdwg.mxu0
      %v566 = vadd.f32 %v456, %v552
      %v567 = vadd.f32 %v457, %v555
      %v568 = vadd.f32 %v458, %v560
      %v569 = vadd.f32 %v459, %v563
      %570 = vst.msk [vmem:[#allocation2] sm:$0xff] %vm172, %v566
      %571 = vst.msk [vmem:[#allocation2 + $0x8] sm:$0xff] %vm172, %v567
      %572 = vst.msk [vmem:[#allocation2 + $0x10] sm:$0xff] %vm172, %v568
      %573 = vst.msk [vmem:[#allocation2 + $0x18] sm:$0xff] %vm172, %v569
      %v574 = vld [vmem:[#allocation2] sm:$0xff]
      %v575 = vld [vmem:[#allocation2 + $0x8] sm:$0xff]
      %v576 = vld [vmem:[#allocation2 + $0x10] sm:$0xff]
      %v577 = vld [vmem:[#allocation2 + $0x18] sm:$0xff]
      %s578 = scalar_lea.vmem %s1, 64
      %v579 = vld [vmem:[%s578] sm:$0xf]
      %v580 = vld [vmem:[%s578 + $0x4] sm:$0xf]
      %v581 = vld [vmem:[%s578 + $0x8] sm:$0xf]
      %v582 = vld [vmem:[%s578 + $0xc] sm:$0xf]
      %v584 = vunpack.c.l.b16 %v454
      %v585 = vpack.c.b16 %v472, %v471
      %v586 = vpack.c.b16 %v474, %v473
      %v587 = vpack.c.b16 %v584, %v584
      %v589 = vshrl.u32 %v585, 16
      %v591 = vshll.u32 %v585, 16
      %v593 = vrot.slane %v591, 1
      %v594 = vor.u32 %v589, %v593
      %v596 = vshll.u32 %v586, 16
      %v598 = vrot.slane %v596, 1
      %v599 = vsel %vm478, %v594, %v598
      %v600 = vshrl.u32 %v586, 16
      %v602 = vor.u32 %v600, %v598
      %v604 = vshll.u32 %v587, 16
      %v606 = vrot.slane %v604, 1
      %v607 = vsel %vm478, %v602, %v606
      %v612 = vunpack.c.l.b16 %v579
      %v613 = vunpack.c.l.b16 %v580
      %v614 = vunpack.c.l.b16 %v581
      %v615 = vunpack.c.l.b16 %v582
      %v616 = vpack.c.b16 %v613, %v612
      %v617 = vpack.c.b16 %v615, %v614
      %v621 = vsel %vm213, %v599, 0
      %v624 = vsel %vm213, %v607, 0
      %626 = vmatprep.subr.bf16.mxu0 0
      %627 = vmatpush1.bf16.msra.mxu0 %v616
      %628 = vmatprep.subr.bf16.mxu0 0
      %629 = vmatpush1.bf16.msra.mxu0 %v617
      %630 = vmatprep.subr.bf16.mxu0 0
      %631 = vmatpush1.bf16.msra.mxu0 0
      %632 = vmatprep.subr.bf16.mxu0 0
      %633 = vmatpush1.bf16.msra.mxu0 0
      %634 = vmatprep.subr.bf16.mxu0 0
      %635 = vmatpush1.bf16.msra.mxu0 0
      %636 = vmatprep.subr.bf16.mxu0 0
      %637 = vmatpush1.bf16.msra.mxu0 0
      %638 = vmatprep.subr.bf16.mxu0 0
      %639 = vmatpush1.bf16.msra.mxu0 0
      %640 = vmatprep.subr.bf16.mxu0 0
      %641 = vmatpush1.bf16.msra.mxu0 0
      %642 = vmatprep.subr.bf16.mxu0 0
      %643 = vmatpush1.bf16.msra.mxu0 0
      %644 = vmatprep.subr.bf16.mxu0 0
      %645 = vmatpush1.bf16.msra.mxu0 0
      %646 = vmatprep.subr.bf16.mxu0 0
      %647 = vmatpush1.bf16.msra.mxu0 0
      %648 = vmatprep.subr.bf16.mxu0 0
      %649 = vmatpush1.bf16.msra.mxu0 0
      %650 = vmatprep.subr.bf16.mxu0 0
      %651 = vmatpush1.bf16.msra.mxu0 0
      %652 = vmatprep.subr.bf16.mxu0 0
      %653 = vmatpush1.bf16.msra.mxu0 0
      %654 = vmatprep.subr.bf16.mxu0 0
      %655 = vmatpush1.bf16.msra.mxu0 0
      %656 = vmatprep.subr.bf16.mxu0 0
      %657 = vmatpush1.bf16.msra.mxu0 0
      %658 = vmatprep.mubr.bf16.mxu0 0
      %659 = vmatmul.mubr.bf16.gmra.mrb[0].mxu0 %v621
      %v660 = vpop.f32.mrb[0].mxu0
      %v661 = vadd.f32 0.0, %v660
      %v662 = vpop.f32.mrb[0].mxu0
      %v663 = vpop.f32.mrb[0].mxu0
      %v664 = vadd.f32 0.0, %v663
      %v665 = vpop.f32.mrb[0].mxu0
      %666 = vmatprep.mubr.bf16.mxu0 0
      %667 = vmatmul.mubr.bf16.gmra.mrb[0].mxu0 %v624
      %v668 = vpop.f32.mrb[0].mxu0
      %v669 = vadd.f32 0.0, %v668
      %v670 = vpop.f32.mrb[0].mxu0
      %v671 = vpop.f32.mrb[0].mxu0
      %v672 = vadd.f32 0.0, %v671
      %v673 = vpop.f32.mrb[0].mxu0
      %674 = vdwg.mxu0
      %v675 = vadd.f32 %v574, %v661
      %v676 = vadd.f32 %v575, %v664
      %v677 = vadd.f32 %v576, %v669
      %v678 = vadd.f32 %v577, %v672
      %679 = vst.msk [vmem:[#allocation2] sm:$0xff] %vm172, %v675
      %680 = vst.msk [vmem:[#allocation2 + $0x8] sm:$0xff] %vm172, %v676
      %681 = vst.msk [vmem:[#allocation2 + $0x10] sm:$0xff] %vm172, %v677
      %682 = vst.msk [vmem:[#allocation2 + $0x18] sm:$0xff] %vm172, %v678
      %v683 = vld [vmem:[#allocation2] sm:$0xff]
      %v684 = vld [vmem:[#allocation2 + $0x8] sm:$0xff]
      %v685 = vld [vmem:[#allocation2 + $0x10] sm:$0xff]
      %v686 = vld [vmem:[#allocation2 + $0x18] sm:$0xff]
      %s687 = scalar_lea.vmem %s1, 112
      %v688 = vld [vmem:[%s687] sm:$0xf]
      %v689 = vld [vmem:[%s687 + $0x4] sm:$0xf]
      %v690 = vld [vmem:[%s687 + $0x8] sm:$0xf]
      %v691 = vld [vmem:[%s687 + $0xc] sm:$0xf]
      %v693 = vunpack.c.l.b16 %v455
      %v694 = vpack.c.b16 %v584, %v474
      %v695 = vpack.c.b16 %v693, %v693
      %v697 = vshll.u32 %v694, 16
      %v699 = vrot.slane %v697, 1
      %v700 = vsel %vm478, %v493, %v699
      %v701 = vshrl.u32 %v694, 16
      %v703 = vor.u32 %v701, %v699
      %v705 = vshll.u32 %v695, 16
      %v707 = vrot.slane %v705, 1
      %v708 = vsel %vm478, %v703, %v707
      %v713 = vunpack.c.l.b16 %v688
      %v714 = vunpack.c.l.b16 %v689
      %v715 = vunpack.c.l.b16 %v690
      %v716 = vunpack.c.l.b16 %v691
      %v717 = vpack.c.b16 %v714, %v713
      %v718 = vpack.c.b16 %v716, %v715
      %v722 = vsel %vm213, %v700, 0
      %v725 = vsel %vm213, %v708, 0
      %727 = vmatprep.subr.bf16.mxu0 0
      %728 = vmatpush1.bf16.msra.mxu0 %v717
      %729 = vmatprep.subr.bf16.mxu0 0
      %730 = vmatpush1.bf16.msra.mxu0 %v718
      %731 = vmatprep.subr.bf16.mxu0 0
      %732 = vmatpush1.bf16.msra.mxu0 0
      %733 = vmatprep.subr.bf16.mxu0 0
      %734 = vmatpush1.bf16.msra.mxu0 0
      %735 = vmatprep.subr.bf16.mxu0 0
      %736 = vmatpush1.bf16.msra.mxu0 0
      %737 = vmatprep.subr.bf16.mxu0 0
      %738 = vmatpush1.bf16.msra.mxu0 0
      %739 = vmatprep.subr.bf16.mxu0 0
      %740 = vmatpush1.bf16.msra.mxu0 0
      %741 = vmatprep.subr.bf16.mxu0 0
      %742 = vmatpush1.bf16.msra.mxu0 0
      %743 = vmatprep.subr.bf16.mxu0 0
      %744 = vmatpush1.bf16.msra.mxu0 0
      %745 = vmatprep.subr.bf16.mxu0 0
      %746 = vmatpush1.bf16.msra.mxu0 0
      %747 = vmatprep.subr.bf16.mxu0 0
      %748 = vmatpush1.bf16.msra.mxu0 0
      %749 = vmatprep.subr.bf16.mxu0 0
      %750 = vmatpush1.bf16.msra.mxu0 0
      %751 = vmatprep.subr.bf16.mxu0 0
      %752 = vmatpush1.bf16.msra.mxu0 0
      %753 = vmatprep.subr.bf16.mxu0 0
      %754 = vmatpush1.bf16.msra.mxu0 0
      %755 = vmatprep.subr.bf16.mxu0 0
      %756 = vmatpush1.bf16.msra.mxu0 0
      %757 = vmatprep.subr.bf16.mxu0 0
      %758 = vmatpush1.bf16.msra.mxu0 0
      %759 = vmatprep.mubr.bf16.mxu0 0
      %760 = vmatmul.mubr.bf16.gmra.mrb[0].mxu0 %v722
      %v761 = vpop.f32.mrb[0].mxu0
      %v762 = vadd.f32 0.0, %v761
      %v763 = vpop.f32.mrb[0].mxu0
      %v764 = vpop.f32.mrb[0].mxu0
      %v765 = vadd.f32 0.0, %v764
      %v766 = vpop.f32.mrb[0].mxu0
      %767 = vmatprep.mubr.bf16.mxu0 0
      %768 = vmatmul.mubr.bf16.gmra.mrb[0].mxu0 %v725
      %v769 = vpop.f32.mrb[0].mxu0
      %v770 = vadd.f32 0.0, %v769
      %v771 = vpop.f32.mrb[0].mxu0
      %v772 = vpop.f32.mrb[0].mxu0
      %v773 = vadd.f32 0.0, %v772
      %v774 = vpop.f32.mrb[0].mxu0
      %775 = vdwg.mxu0
      %v776 = vadd.f32 %v683, %v762
      %v777 = vadd.f32 %v684, %v765
      %v778 = vadd.f32 %v685, %v770
      %v779 = vadd.f32 %v686, %v773
      %780 = vst.msk [vmem:[#allocation2] sm:$0xff] %vm172, %v776
      %781 = vst.msk [vmem:[#allocation2 + $0x8] sm:$0xff] %vm172, %v777
      %782 = vst.msk [vmem:[#allocation2 + $0x10] sm:$0xff] %vm172, %v778
      %783 = vst.msk [vmem:[#allocation2 + $0x18] sm:$0xff] %vm172, %v779
      %v784 = vld [vmem:[%s165] sm:$0xe]
      %v785 = vld [vmem:[%s165 + $0x4] sm:$0xf]
      %v786 = vld [vmem:[%s165 + $0x8] sm:$0xf]
      %v787 = vld [vmem:[%s165 + $0xc] sm:$0xf]
      %v788 = vld [vmem:[%s165 + $0x10] sm:$0xf]
      %v789 = vld [vmem:[%s165 + $0x14] sm:$0xf]
      %v790 = vld [vmem:[%s165 + $0x18] sm:$0x1]
      %v791 = vld [vmem:[#allocation2] sm:$0xff]
      %v792 = vld [vmem:[#allocation2 + $0x8] sm:$0xff]
      %v793 = vld [vmem:[#allocation2 + $0x10] sm:$0xff]
      %v794 = vld [vmem:[#allocation2 + $0x18] sm:$0xff]
      %s795 = scalar_lea.vmem %s1, 32
      %v796 = vld [vmem:[%s795] sm:$0xf]
      %v797 = vld [vmem:[%s795 + $0x4] sm:$0xf]
      %v798 = vld [vmem:[%s795 + $0x8] sm:$0xf]
      %v799 = vld [vmem:[%s795 + $0xc] sm:$0xf]
      %v805 = vunpack.c.l.b16 %v784
      %v806 = vunpack.c.l.b16 %v785
      %v807 = vunpack.c.l.b16 %v786
      %v808 = vunpack.c.l.b16 %v787
      %v809 = vunpack.c.l.b16 %v788
      %v810 = vpack.c.b16 %v806, %v805
      %v811 = vpack.c.b16 %v808, %v807
      %v812 = vpack.c.b16 %v809, %v809
      %vm813 = vcmask 1046528
      %v814 = vrot.slane %v810, 1
      %v815 = vrot.slane %v811, 1
      %v816 = vsel %vm813, %v814, %v815
      %v817 = vrot.slane %v812, 1
      %v818 = vsel %vm813, %v815, %v817
      %v823 = vunpack.c.l.b16 %v796
      %v824 = vunpack.c.l.b16 %v797
      %v825 = vunpack.c.l.b16 %v798
      %v826 = vunpack.c.l.b16 %v799
      %v827 = vpack.c.b16 %v824, %v823
      %v828 = vpack.c.b16 %v826, %v825
      %v832 = vsel %vm213, %v816, 0
      %v835 = vsel %vm213, %v818, 0
      %837 = vmatprep.subr.bf16.mxu0 0
      %838 = vmatpush1.bf16.msra.mxu0 %v827
      %839 = vmatprep.subr.bf16.mxu0 0
      %840 = vmatpush1.bf16.msra.mxu0 %v828
      %841 = vmatprep.subr.bf16.mxu0 0
      %842 = vmatpush1.bf16.msra.mxu0 0
      %843 = vmatprep.subr.bf16.mxu0 0
      %844 = vmatpush1.bf16.msra.mxu0 0
      %845 = vmatprep.subr.bf16.mxu0 0
      %846 = vmatpush1.bf16.msra.mxu0 0
      %847 = vmatprep.subr.bf16.mxu0 0
      %848 = vmatpush1.bf16.msra.mxu0 0
      %849 = vmatprep.subr.bf16.mxu0 0
      %850 = vmatpush1.bf16.msra.mxu0 0
      %851 = vmatprep.subr.bf16.mxu0 0
      %852 = vmatpush1.bf16.msra.mxu0 0
      %853 = vmatprep.subr.bf16.mxu0 0
      %854 = vmatpush1.bf16.msra.mxu0 0
      %855 = vmatprep.subr.bf16.mxu0 0
      %856 = vmatpush1.bf16.msra.mxu0 0
      %857 = vmatprep.subr.bf16.mxu0 0
      %858 = vmatpush1.bf16.msra.mxu0 0
      %859 = vmatprep.subr.bf16.mxu0 0
      %860 = vmatpush1.bf16.msra.mxu0 0
      %861 = vmatprep.subr.bf16.mxu0 0
      %862 = vmatpush1.bf16.msra.mxu0 0
      %863 = vmatprep.subr.bf16.mxu0 0
      %864 = vmatpush1.bf16.msra.mxu0 0
      %865 = vmatprep.subr.bf16.mxu0 0
      %866 = vmatpush1.bf16.msra.mxu0 0
      %867 = vmatprep.subr.bf16.mxu0 0
      %868 = vmatpush1.bf16.msra.mxu0 0
      %869 = vmatprep.mubr.bf16.mxu0 0
      %870 = vmatmul.mubr.bf16.gmra.mrb[0].mxu0 %v832
      %v871 = vpop.f32.mrb[0].mxu0
      %v872 = vadd.f32 0.0, %v871
      %v873 = vpop.f32.mrb[0].mxu0
      %v874 = vpop.f32.mrb[0].mxu0
      %v875 = vadd.f32 0.0, %v874
      %v876 = vpop.f32.mrb[0].mxu0
      %877 = vmatprep.mubr.bf16.mxu0 0
      %878 = vmatmul.mubr.bf16.gmra.mrb[0].mxu0 %v835
      %v879 = vpop.f32.mrb[0].mxu0
      %v880 = vadd.f32 0.0, %v879
      %v881 = vpop.f32.mrb[0].mxu0
      %v882 = vpop.f32.mrb[0].mxu0
      %v883 = vadd.f32 0.0, %v882
      %v884 = vpop.f32.mrb[0].mxu0
      %885 = vdwg.mxu0
      %v886 = vadd.f32 %v791, %v872
      %v887 = vadd.f32 %v792, %v875
      %v888 = vadd.f32 %v793, %v880
      %v889 = vadd.f32 %v794, %v883
      %890 = vst.msk [vmem:[#allocation2] sm:$0xff] %vm172, %v886
      %891 = vst.msk [vmem:[#allocation2 + $0x8] sm:$0xff] %vm172, %v887
      %892 = vst.msk [vmem:[#allocation2 + $0x10] sm:$0xff] %vm172, %v888
      %893 = vst.msk [vmem:[#allocation2 + $0x18] sm:$0xff] %vm172, %v889
      %v894 = vld [vmem:[#allocation2] sm:$0xff]
      %v895 = vld [vmem:[#allocation2 + $0x8] sm:$0xff]
      %v896 = vld [vmem:[#allocation2 + $0x10] sm:$0xff]
      %v897 = vld [vmem:[#allocation2 + $0x18] sm:$0xff]
      %s898 = scalar_lea.vmem %s1, 80
      %v899 = vld [vmem:[%s898] sm:$0xf]
      %v900 = vld [vmem:[%s898 + $0x4] sm:$0xf]
      %v901 = vld [vmem:[%s898 + $0x8] sm:$0xf]
      %v902 = vld [vmem:[%s898 + $0xc] sm:$0xf]
      %v904 = vunpack.c.l.b16 %v789
      %v905 = vpack.c.b16 %v807, %v806
      %v906 = vpack.c.b16 %v809, %v808
      %v907 = vpack.c.b16 %v904, %v904
      %v908 = vrot.slane %v905, 1
      %v909 = vrot.slane %v906, 1
      %v910 = vsel %vm813, %v908, %v909
      %v911 = vrot.slane %v907, 1
      %v912 = vsel %vm813, %v909, %v911
      %v917 = vunpack.c.l.b16 %v899
      %v918 = vunpack.c.l.b16 %v900
      %v919 = vunpack.c.l.b16 %v901
      %v920 = vunpack.c.l.b16 %v902
      %v921 = vpack.c.b16 %v918, %v917
      %v922 = vpack.c.b16 %v920, %v919
      %v926 = vsel %vm213, %v910, 0
      %v929 = vsel %vm213, %v912, 0
      %931 = vmatprep.subr.bf16.mxu0 0
      %932 = vmatpush1.bf16.msra.mxu0 %v921
      %933 = vmatprep.subr.bf16.mxu0 0
      %934 = vmatpush1.bf16.msra.mxu0 %v922
      %935 = vmatprep.subr.bf16.mxu0 0
      %936 = vmatpush1.bf16.msra.mxu0 0
      %937 = vmatprep.subr.bf16.mxu0 0
      %938 = vmatpush1.bf16.msra.mxu0 0
      %939 = vmatprep.subr.bf16.mxu0 0
      %940 = vmatpush1.bf16.msra.mxu0 0
      %941 = vmatprep.subr.bf16.mxu0 0
      %942 = vmatpush1.bf16.msra.mxu0 0
      %943 = vmatprep.subr.bf16.mxu0 0
      %944 = vmatpush1.bf16.msra.mxu0 0
      %945 = vmatprep.subr.bf16.mxu0 0
      %946 = vmatpush1.bf16.msra.mxu0 0
      %947 = vmatprep.subr.bf16.mxu0 0
      %948 = vmatpush1.bf16.msra.mxu0 0
      %949 = vmatprep.subr.bf16.mxu0 0
      %950 = vmatpush1.bf16.msra.mxu0 0
      %951 = vmatprep.subr.bf16.mxu0 0
      %952 = vmatpush1.bf16.msra.mxu0 0
      %953 = vmatprep.subr.bf16.mxu0 0
      %954 = vmatpush1.bf16.msra.mxu0 0
      %955 = vmatprep.subr.bf16.mxu0 0
      %956 = vmatpush1.bf16.msra.mxu0 0
      %957 = vmatprep.subr.bf16.mxu0 0
      %958 = vmatpush1.bf16.msra.mxu0 0
      %959 = vmatprep.subr.bf16.mxu0 0
      %960 = vmatpush1.bf16.msra.mxu0 0
      %961 = vmatprep.subr.bf16.mxu0 0
      %962 = vmatpush1.bf16.msra.mxu0 0
      %963 = vmatprep.mubr.bf16.mxu0 0
      %964 = vmatmul.mubr.bf16.gmra.mrb[0].mxu0 %v926
      %v965 = vpop.f32.mrb[0].mxu0
      %v966 = vadd.f32 0.0, %v965
      %v967 = vpop.f32.mrb[0].mxu0
      %v968 = vpop.f32.mrb[0].mxu0
      %v969 = vadd.f32 0.0, %v968
      %v970 = vpop.f32.mrb[0].mxu0
      %971 = vmatprep.mubr.bf16.mxu0 0
      %972 = vmatmul.mubr.bf16.gmra.mrb[0].mxu0 %v929
      %v973 = vpop.f32.mrb[0].mxu0
      %v974 = vadd.f32 0.0, %v973
      %v975 = vpop.f32.mrb[0].mxu0
      %v976 = vpop.f32.mrb[0].mxu0
      %v977 = vadd.f32 0.0, %v976
      %v978 = vpop.f32.mrb[0].mxu0
      %979 = vdwg.mxu0
      %v980 = vadd.f32 %v894, %v966
      %v981 = vadd.f32 %v895, %v969
      %v982 = vadd.f32 %v896, %v974
      %v983 = vadd.f32 %v897, %v977
      %984 = vst.msk [vmem:[#allocation2] sm:$0xff] %vm172, %v980
      %985 = vst.msk [vmem:[#allocation2 + $0x8] sm:$0xff] %vm172, %v981
      %986 = vst.msk [vmem:[#allocation2 + $0x10] sm:$0xff] %vm172, %v982
      %987 = vst.msk [vmem:[#allocation2 + $0x18] sm:$0xff] %vm172, %v983
      %v988 = vld [vmem:[#allocation2] sm:$0xff]
      %v989 = vld [vmem:[#allocation2 + $0x8] sm:$0xff]
      %v990 = vld [vmem:[#allocation2 + $0x10] sm:$0xff]
      %v991 = vld [vmem:[#allocation2 + $0x18] sm:$0xff]
      %s992 = scalar_lea.vmem %s1, 128
      %v993 = vld [vmem:[%s992] sm:$0xf]
      %v994 = vld [vmem:[%s992 + $0x4] sm:$0xf]
      %v995 = vld [vmem:[%s992 + $0x8] sm:$0xf]
      %v996 = vld [vmem:[%s992 + $0xc] sm:$0xf]
      %v998 = vunpack.c.l.b16 %v790
      %v999 = vpack.c.b16 %v904, %v809
      %v1000 = vpack.c.b16 %v998, %v998
      %v1001 = vrot.slane %v999, 1
      %v1002 = vsel %vm813, %v815, %v1001
      %v1003 = vrot.slane %v1000, 1
      %v1004 = vsel %vm813, %v1001, %v1003
      %v1009 = vunpack.c.l.b16 %v993
      %v1010 = vunpack.c.l.b16 %v994
      %v1011 = vunpack.c.l.b16 %v995
      %v1012 = vunpack.c.l.b16 %v996
      %v1013 = vpack.c.b16 %v1010, %v1009
      %v1014 = vpack.c.b16 %v1012, %v1011
      %v1018 = vsel %vm213, %v1002, 0
      %v1021 = vsel %vm213, %v1004, 0
      %1023 = vmatprep.subr.bf16.mxu0 0
      %1024 = vmatpush1.bf16.msra.mxu0 %v1013
      %1025 = vmatprep.subr.bf16.mxu0 0
      %1026 = vmatpush1.bf16.msra.mxu0 %v1014
      %1027 = vmatprep.subr.bf16.mxu0 0
      %1028 = vmatpush1.bf16.msra.mxu0 0
      %1029 = vmatprep.subr.bf16.mxu0 0
      %1030 = vmatpush1.bf16.msra.mxu0 0
      %1031 = vmatprep.subr.bf16.mxu0 0
      %1032 = vmatpush1.bf16.msra.mxu0 0
      %1033 = vmatprep.subr.bf16.mxu0 0
      %1034 = vmatpush1.bf16.msra.mxu0 0
      %1035 = vmatprep.subr.bf16.mxu0 0
      %1036 = vmatpush1.bf16.msra.mxu0 0
      %1037 = vmatprep.subr.bf16.mxu0 0
      %1038 = vmatpush1.bf16.msra.mxu0 0
      %1039 = vmatprep.subr.bf16.mxu0 0
      %1040 = vmatpush1.bf16.msra.mxu0 0
      %1041 = vmatprep.subr.bf16.mxu0 0
      %1042 = vmatpush1.bf16.msra.mxu0 0
      %1043 = vmatprep.subr.bf16.mxu0 0
      %1044 = vmatpush1.bf16.msra.mxu0 0
      %1045 = vmatprep.subr.bf16.mxu0 0
      %1046 = vmatpush1.bf16.msra.mxu0 0
      %1047 = vmatprep.subr.bf16.mxu0 0
      %1048 = vmatpush1.bf16.msra.mxu0 0
      %1049 = vmatprep.subr.bf16.mxu0 0
      %1050 = vmatpush1.bf16.msra.mxu0 0
      %1051 = vmatprep.subr.bf16.mxu0 0
      %1052 = vmatpush1.bf16.msra.mxu0 0
      %1053 = vmatprep.subr.bf16.mxu0 0
      %1054 = vmatpush1.bf16.msra.mxu0 0
      %1055 = vmatprep.mubr.bf16.mxu0 0
      %1056 = vmatmul.mubr.bf16.gmra.mrb[0].mxu0 %v1018
      %v1057 = vpop.f32.mrb[0].mxu0
      %v1058 = vadd.f32 0.0, %v1057
      %v1059 = vpop.f32.mrb[0].mxu0
      %v1060 = vpop.f32.mrb[0].mxu0
      %v1061 = vadd.f32 0.0, %v1060
      %v1062 = vpop.f32.mrb[0].mxu0
      %1063 = vmatprep.mubr.bf16.mxu0 0
      %1064 = vmatmul.mubr.bf16.gmra.mrb[0].mxu0 %v1021
      %v1065 = vpop.f32.mrb[0].mxu0
      %v1066 = vadd.f32 0.0, %v1065
      %v1067 = vpop.f32.mrb[0].mxu0
      %v1068 = vpop.f32.mrb[0].mxu0
      %v1069 = vadd.f32 0.0, %v1068
      %v1070 = vpop.f32.mrb[0].mxu0
      %1071 = vdwg.mxu0
      %v1072 = vadd.f32 %v988, %v1058
      %v1073 = vadd.f32 %v989, %v1061
      %v1074 = vadd.f32 %v990, %v1066
      %v1075 = vadd.f32 %v991, %v1069
      %1076 = vst.msk [vmem:[#allocation2] sm:$0xff] %vm172, %v1072
      %1077 = vst.msk [vmem:[#allocation2 + $0x8] sm:$0xff] %vm172, %v1073
      %1078 = vst.msk [vmem:[#allocation2 + $0x10] sm:$0xff] %vm172, %v1074
      %1079 = vst.msk [vmem:[#allocation2 + $0x18] sm:$0xff] %vm172, %v1075
      %v1080 = vld [vmem:[#allocation2] sm:$0xff]
      %v1081 = vld [vmem:[#allocation2 + $0x8] sm:$0xff]
      %v1082 = vld [vmem:[#allocation2 + $0x10] sm:$0xff]
      %v1083 = vld [vmem:[#allocation2 + $0x18] sm:$0xff]
      %v1084 = vld [vmem:[%s2] sm:$0x1]
      %v1086 = vlaneseq
      %v1087 = vshrl.u32 %v1086, 7
      %v1088 = vsub.s32 0, %v1087
      %v1089 = vrot.slane %v1084, %v1088
      %v1091 = vadd.f32 %v1080, %v1089
      %v1092 = vadd.f32 %v1081, %v1089
      %v1093 = vadd.f32 %v1082, %v1089
      %v1094 = vadd.f32 %v1083, %v1089
      %1095 = vst.msk [vmem:[%s170] sm:$0xff] %vm172, %v1091
      %1096 = vst.msk [vmem:[%s170 + $0x8] sm:$0xff] %vm172, %v1092
      %1097 = vst.msk [vmem:[%s170 + $0x10] sm:$0xff] %vm172, %v1093
      %1098 = vst.msk [vmem:[%s170 + $0x18] sm:$0xff] %vm172, %v1094
      %p1099 = scmp.lt.s32.totalorder %s14, 1
      %s1100 = scalar_select %p1099, %s14, 1
      %s1101 = smul.addr %s1100, 4
      %s1102 = smul.addr %s1101, 8
      %s1103 = scalar_lea.vmem %s3, %s1102
      // Predicated region
      $region33: #{bsq_vq_forward.34} parent=31 // pred_check
        %p1104 = pneg %p100
      $region34: #{bsq_vq_forward.34} parent=31 // pred_check_branch
        %1106 = sbr.rel (%p1104) target = $region36
      $region35: #{bsq_vq_forward.34} parent=31 // pred_region
        _
      $region36: #{bsq_vq_forward.34} parent=31 // pred_fallthru
        _
    $region32: #{bsq_vq_forward.34} parent=5 // pred_fallthru
      _
    %p1107 = scmp.le.s32.totalorder 2, %s9
    // Predicated region
    $region37: #{bsq_vq_forward.34} parent=5 // pred_check
      %p1108 = pneg %p1107
    $region38: #{bsq_vq_forward.34} parent=5 // pred_check_branch
      %1110 = sbr.rel (%p1108) target = $region40
    $region39: #{bsq_vq_forward.34} parent=5 // pred_region
      %s1111 = ssub.s32 %s9, 2
      // Predicated region
      $region41: #{bsq_vq_forward.34} parent=39 // pred_check
        %p1112 = pneg %p106
      $region42: #{bsq_vq_forward.34} parent=39 // pred_check_branch
        %1114 = sbr.rel (%p1112) target = $region44
      $region43: #{bsq_vq_forward.34} parent=39 // pred_region
        %p1115 = scmp.lt.s32.totalorder %s15, 1
        %s1116 = scalar_select %p1115, %s15, 1
        %s1117 = smul.addr %s1116, 4
        %s1118 = smul.addr %s1117, 8
        %s1119 = scalar_lea.vmem %s3, %s1118
      $region44: #{bsq_vq_forward.34} parent=39 // pred_fallthru
        _
    $region40: #{bsq_vq_forward.34} parent=5 // pred_fallthru
      _
  $region6: #{bsq_vq_forward.34} parent=0 // loop_footer
    %s13 = sadd.s32 1, %s9
  $region7: #{bsq_vq_forward.34} parent=0 // loop_footer_branch
    %8 = sbr.rel target = $region3
  $region8: #{bsq_vq_forward.34} parent=0 // loop_exit
    _

// kernel: bsq_vq_forward.41
$region0: #{bsq_vq_forward.41}
  #allocation0 [shape = 'u32[]', space=smem, size = 0x4, offset = 0x4, fixed_abs, tag = 'smem constant byte address 0x4 - core index']
  #allocation1 [shape = 'u32[144,128]{1,0:T(1,128)}', space=vmem, size = 0x12000, scoped, tag = 'internal scratch']
  #allocation2 [shape = 'f32[32,64]{1,0:T(8,128)}', space=vmem, size = 0x4000, scoped, tag = 'scratch operand']
  %s0 = inlined_call_operand.vmem [shape: bf16[32,32], index: 0, kind: input, shape index: {}]
  %s1 = inlined_call_operand.vmem [shape: bf16[32,64], index: 1, kind: input, shape index: {}]
  %s2 = inlined_call_operand.vmem [shape: f32[1,64], index: 2, kind: input, shape index: {}]
  %s3 = inlined_call_operand.vmem [shape: f32[32,64], index: 3, kind: output, shape index: {}]
  %s4 = sld [smem:[#allocation0]]
  $region30: #{bsq_vq_forward.41} parent=0
    _
  %s6 = ssub.s32 1, %s4
  %s7 = scalar_select 0, %s6, %s4
  // Predicated region
  $region2: #{bsq_vq_forward.41} parent=0 // pred_check
    _
  $region3: #{bsq_vq_forward.41} parent=0 // pred_check_branch
    %9 = sbr.rel (0) target = $region5
  $region4: #{bsq_vq_forward.41} parent=0 // pred_region
    _
  $region5: #{bsq_vq_forward.41} parent=0 // pred_fallthru
    _
  // Predicated region
  $region6: #{bsq_vq_forward.41} parent=0 // pred_check
    _
  $region7: #{bsq_vq_forward.41} parent=0 // pred_check_branch
    %11 = sbr.rel (0) target = $region9
  $region8: #{bsq_vq_forward.41} parent=0 // pred_region
    _
  $region9: #{bsq_vq_forward.41} parent=0 // pred_fallthru
    _
  // Predicated region
  $region10: #{bsq_vq_forward.41} parent=0 // pred_check
    _
  $region11: #{bsq_vq_forward.41} parent=0 // pred_check_branch
    %13 = sbr.rel (0) target = $region13
  $region12: #{bsq_vq_forward.41} parent=0 // pred_region
    _
  $region13: #{bsq_vq_forward.41} parent=0 // pred_fallthru
    _
  %p15 = scmp.eq.s32.totalorder 0, 0
  // Predicated region
  $region14: #{bsq_vq_forward.41} parent=0 // pred_check
    %p16 = pneg %p15
  $region15: #{bsq_vq_forward.41} parent=0 // pred_check_branch
    %18 = sbr.rel (%p16) target = $region17
  $region16: #{bsq_vq_forward.41} parent=0 // pred_region
    %vm19 = vcmask 523264
    %20 = vst.msk [vmem:[#allocation2] sm:$0xff] %vm19, 0.0
    %21 = vst.msk [vmem:[#allocation2 + $0x8] sm:$0xff] %vm19, 0.0
    %22 = vst.msk [vmem:[#allocation2 + $0x10] sm:$0xff] %vm19, 0.0
    %23 = vst.msk [vmem:[#allocation2 + $0x18] sm:$0xff] %vm19, 0.0
  $region17: #{bsq_vq_forward.41} parent=0 // pred_fallthru
    _
  %v24 = vld [vmem:[#allocation2] sm:$0xff]
  %v25 = vld [vmem:[#allocation2 + $0x8] sm:$0xff]
  %v26 = vld [vmem:[#allocation2 + $0x10] sm:$0xff]
  %v27 = vld [vmem:[#allocation2 + $0x18] sm:$0xff]
  %v28 = vld [vmem:[%s0] sm:$0xf]
  %v29 = vld [vmem:[%s0 + $0x4] sm:$0xf]
  %v30 = vld [vmem:[%s0 + $0x8] sm:$0xf]
  %v31 = vld [vmem:[%s0 + $0xc] sm:$0xf]
  %v32 = vld [vmem:[%s1] sm:$0xf]
  %v33 = vld [vmem:[%s1 + $0x4] sm:$0xf]
  %v34 = vld [vmem:[%s1 + $0x8] sm:$0xf]
  %v35 = vld [vmem:[%s1 + $0xc] sm:$0xf]
  %v40 = vunpack.c.l.b16 %v28
  %v41 = vunpack.c.l.b16 %v29
  %v42 = vunpack.c.l.b16 %v30
  %v43 = vunpack.c.l.b16 %v31
  %v44 = vpack.c.b16 %v41, %v40
  %v45 = vpack.c.b16 %v43, %v42
  %v50 = vunpack.c.l.b16 %v32
  %v51 = vunpack.c.l.b16 %v33
  %v52 = vunpack.c.l.b16 %v34
  %v53 = vunpack.c.l.b16 %v35
  %v54 = vpack.c.b16 %v51, %v50
  %v55 = vpack.c.b16 %v53, %v52
  %vm58 = vcmask 261120
  %v60 = vsel %vm58, %v44, 0
  %v63 = vsel %vm58, %v45, 0
  %65 = vmatprep.subr.bf16.mxu0 0
  %66 = vmatpush1.bf16.msra.mxu0 %v54
  %67 = vmatprep.subr.bf16.mxu0 0
  %68 = vmatpush1.bf16.msra.mxu0 %v55
  %69 = vmatprep.subr.bf16.mxu0 0
  %70 = vmatpush1.bf16.msra.mxu0 0
  %71 = vmatprep.subr.bf16.mxu0 0
  %72 = vmatpush1.bf16.msra.mxu0 0
  %73 = vmatprep.subr.bf16.mxu0 0
  %74 = vmatpush1.bf16.msra.mxu0 0
  %75 = vmatprep.subr.bf16.mxu0 0
  %76 = vmatpush1.bf16.msra.mxu0 0
  %77 = vmatprep.subr.bf16.mxu0 0
  %78 = vmatpush1.bf16.msra.mxu0 0
  %79 = vmatprep.subr.bf16.mxu0 0
  %80 = vmatpush1.bf16.msra.mxu0 0
  %81 = vmatprep.subr.bf16.mxu0 0
  %82 = vmatpush1.bf16.msra.mxu0 0
  %83 = vmatprep.subr.bf16.mxu0 0
  %84 = vmatpush1.bf16.msra.mxu0 0
  %85 = vmatprep.subr.bf16.mxu0 0
  %86 = vmatpush1.bf16.msra.mxu0 0
  %87 = vmatprep.subr.bf16.mxu0 0
  %88 = vmatpush1.bf16.msra.mxu0 0
  %89 = vmatprep.subr.bf16.mxu0 0
  %90 = vmatpush1.bf16.msra.mxu0 0
  %91 = vmatprep.subr.bf16.mxu0 0
  %92 = vmatpush1.bf16.msra.mxu0 0
  %93 = vmatprep.subr.bf16.mxu0 0
  %94 = vmatpush1.bf16.msra.mxu0 0
  %95 = vmatprep.subr.bf16.mxu0 0
  %96 = vmatpush1.bf16.msra.mxu0 0
  %97 = vmatprep.mubr.bf16.mxu0 0
  %98 = vmatmul.mubr.bf16.gmra.mrb[0].mxu0 %v60
  %v99 = vpop.f32.mrb[0].mxu0
  %v100 = vadd.f32 0.0, %v99
  %v101 = vpop.f32.mrb[0].mxu0
  %v102 = vpop.f32.mrb[0].mxu0
  %v103 = vadd.f32 0.0, %v102
  %v104 = vpop.f32.mrb[0].mxu0
  %105 = vmatprep.mubr.bf16.mxu0 0
  %106 = vmatmul.mubr.bf16.gmra.mrb[0].mxu0 %v63
  %v107 = vpop.f32.mrb[0].mxu0
  %v108 = vadd.f32 0.0, %v107
  %v109 = vpop.f32.mrb[0].mxu0
  %v110 = vpop.f32.mrb[0].mxu0
  %v111 = vadd.f32 0.0, %v110
  %v112 = vpop.f32.mrb[0].mxu0
  %113 = vdwg.mxu0
  %v114 = vadd.f32 %v24, %v100
  %v115 = vadd.f32 %v25, %v103
  %v116 = vadd.f32 %v26, %v108
  %v117 = vadd.f32 %v27, %v111
  %vm118 = vcmask 523264
  %119 = vst.msk [vmem:[#allocation2] sm:$0xff] %vm118, %v114
  %120 = vst.msk [vmem:[#allocation2 + $0x8] sm:$0xff] %vm118, %v115
  %121 = vst.msk [vmem:[#allocation2 + $0x10] sm:$0xff] %vm118, %v116
  %122 = vst.msk [vmem:[#allocation2 + $0x18] sm:$0xff] %vm118, %v117
  // Predicated region
  $region18: #{bsq_vq_forward.41} parent=0 // pred_check
    %p123 = pneg %p15
  $region19: #{bsq_vq_forward.41} parent=0 // pred_check_branch
    %125 = sbr.rel (%p123) target = $region21
  $region20: #{bsq_vq_forward.41} parent=0 // pred_region
    %v126 = vld [vmem:[#allocation2] sm:$0xff]
    %v127 = vld [vmem:[#allocation2 + $0x8] sm:$0xff]
    %v128 = vld [vmem:[#allocation2 + $0x10] sm:$0xff]
    %v129 = vld [vmem:[#allocation2 + $0x18] sm:$0xff]
    %v130 = vld [vmem:[%s2] sm:$0x1]
    %v132 = vlaneseq
    %v133 = vshrl.u32 %v132, 7
    %v134 = vsub.s32 0, %v133
    %v135 = vrot.slane %v130, %v134
    %v137 = vadd.f32 %v126, %v135
    %v138 = vadd.f32 %v127, %v135
    %v139 = vadd.f32 %v128, %v135
    %v140 = vadd.f32 %v129, %v135
    %141 = vst.msk [vmem:[%s3] sm:$0xff] %vm118, %v137
    %142 = vst.msk [vmem:[%s3 + $0x8] sm:$0xff] %vm118, %v138
    %143 = vst.msk [vmem:[%s3 + $0x10] sm:$0xff] %vm118, %v139
    %144 = vst.msk [vmem:[%s3 + $0x18] sm:$0xff] %vm118, %v140
  $region21: #{bsq_vq_forward.41} parent=0 // pred_fallthru
    _
  // Predicated region
  $region22: #{bsq_vq_forward.41} parent=0 // pred_check
    _
  $region23: #{bsq_vq_forward.41} parent=0 // pred_check_branch
    %146 = sbr.rel (0) target = $region25
  $region24: #{bsq_vq_forward.41} parent=0 // pred_region
    _
  $region25: #{bsq_vq_forward.41} parent=0 // pred_fallthru
    _
  // Predicated region
  $region26: #{bsq_vq_forward.41} parent=0 // pred_check
    _
  $region27: #{bsq_vq_forward.41} parent=0 // pred_check_branch
    %148 = sbr.rel (0) target = $region29
  $region28: #{bsq_vq_forward.41} parent=0 // pred_region
    _
  $region29: #{bsq_vq_forward.41} parent=0 // pred_fallthru
    _

// kernel: bsq_vq_forward.36
$region0: #{bsq_vq_forward.36}
  #allocation0 [shape = 'u32[]', space=smem, size = 0x4, offset = 0x4, fixed_abs, tag = 'smem constant byte address 0x4 - core index']
  #allocation1 [shape = 'u32[144,128]{1,0:T(1,128)}', space=vmem, size = 0x12000, scoped, tag = 'internal scratch']
  #allocation2 [shape = 'f32[32,32]{1,0:T(8,128)}', space=vmem, size = 0x4000, scoped, tag = 'scratch operand']
  %s0 = inlined_call_operand.vmem [shape: bf16[2,56,64], index: 0, kind: input, shape index: {}]
  %s1 = inlined_call_operand.vmem [shape: bf16[9,64,32], index: 1, kind: input, shape index: {}]
  %s2 = inlined_call_operand.vmem [shape: f32[1,32], index: 2, kind: input, shape index: {}]
  %s3 = inlined_call_operand.vmem [shape: f32[2,32,32], index: 3, kind: output, shape index: {}]
  %s4 = sld [smem:[#allocation0]]
  $region45: #{bsq_vq_forward.36} parent=0
    _
  %s6 = ssub.s32 1, %s4
  %s7 = scalar_select 0, %s6, %s4
  loop: start=0, step=1, limit=4
  $region2: #{bsq_vq_forward.36} parent=0 // loop_pre_header
    _
  $region3: #{bsq_vq_forward.36} parent=0 // loop_header
    %s9 = sphi 0, %s13
    %p10 = scmp.ge.s32.totalorder %s9, 4
    %s19 = sphi 0, %s21
    %s22 = sphi 0, %s19
    %s23 = sphi 0, %s22
    %s39 = sphi 0, %s23
    %s43 = sphi 0, %s43
    %s45 = sphi 0, %s43
    %s46 = sphi 0, %s45
    %s60 = sphi 0, %s46
    %s64 = sphi 0, %s64
    %s66 = sphi 0, %s64
    %s67 = sphi 0, %s66
    %s81 = sphi 0, %s67
    %s87 = sphi 0, %s89
    %s90 = sphi 0, %s87
    %s91 = sphi 0, %s90
    %s107 = sphi 0, %s91
  $region4: #{bsq_vq_forward.36} parent=0 // loop_header_branch
    %12 = sbr.rel (%p10) target = $region8
  $region5: #{bsq_vq_forward.36} parent=0 // loop_body
    %s14 = ssub.s32 %s9, 1
    %s15 = ssub.s32 %s9, 2
    %s16 = sadd.s32 %s9, 1
    %s17 = ssub.s32 %s9, %s16
    %p18 = scmp.eq.s32.totalorder %s17, 0
    %s20 = sadd.s32 %s19, 1
    %s21 = scalar_select %p18, %s19, %s20
    %p24 = pneg %p18
    %p25 = scmp.eq.s32.totalorder %s9, 1
    %p26 = por %p24, %p25
    %p27 = scmp.ne.s32.totalorder %s19, %s22
    %p28 = scmp.eq.s32.totalorder %s9, 0
    %p29 = por %p27, %p28
    %p30 = scmp.ne.s32.totalorder %s19, %s22
    %p31 = scmp.eq.s32.totalorder %s14, 1
    %p32 = por %p30, %p31
    %p33 = scmp.ne.s32.totalorder %s22, %s23
    %p34 = scmp.eq.s32.totalorder %s14, 0
    %p35 = por %p33, %p34
    %p36 = scmp.ne.s32.totalorder %s22, %s23
    %p37 = scmp.eq.s32.totalorder %s15, 1
    %p38 = por %p36, %p37
    %p40 = scmp.ne.s32.totalorder %s23, %s39
    %p41 = scmp.eq.s32.totalorder %s15, 0
    %p42 = por %p40, %p41
    %s44 = sadd.s32 %s43, 1
    %p47 = scmp.eq.s32.totalorder %s9, 1
    %p48 = scmp.ne.s32.totalorder %s43, %s45
    %p49 = scmp.eq.s32.totalorder %s9, 0
    %p50 = por %p48, %p49
    %p51 = scmp.ne.s32.totalorder %s43, %s45
    %p52 = scmp.eq.s32.totalorder %s14, 1
    %p53 = por %p51, %p52
    %p54 = scmp.ne.s32.totalorder %s45, %s46
    %p55 = scmp.eq.s32.totalorder %s14, 0
    %p56 = por %p54, %p55
    %p57 = scmp.ne.s32.totalorder %s45, %s46
    %p58 = scmp.eq.s32.totalorder %s15, 1
    %p59 = por %p57, %p58
    %p61 = scmp.ne.s32.totalorder %s46, %s60
    %p62 = scmp.eq.s32.totalorder %s15, 0
    %p63 = por %p61, %p62
    %s65 = sadd.s32 %s64, 1
    %p68 = scmp.eq.s32.totalorder %s9, 1
    %p69 = scmp.ne.s32.totalorder %s64, %s66
    %p70 = scmp.eq.s32.totalorder %s9, 0
    %p71 = por %p69, %p70
    %p72 = scmp.ne.s32.totalorder %s64, %s66
    %p73 = scmp.eq.s32.totalorder %s14, 1
    %p74 = por %p72, %p73
    %p75 = scmp.ne.s32.totalorder %s66, %s67
    %p76 = scmp.eq.s32.totalorder %s14, 0
    %p77 = por %p75, %p76
    %p78 = scmp.ne.s32.totalorder %s66, %s67
    %p79 = scmp.eq.s32.totalorder %s15, 1
    %p80 = por %p78, %p79
    %p82 = scmp.ne.s32.totalorder %s67, %s81
    %p83 = scmp.eq.s32.totalorder %s15, 0
    %p84 = por %p82, %p83
    %s85 = ssub.s32 %s9, %s16
    %p86 = scmp.eq.s32.totalorder %s85, 0
    %s88 = sadd.s32 %s87, 1
    %s89 = scalar_select %p86, %s87, %s88
    %p92 = pneg %p86
    %p93 = scmp.eq.s32.totalorder %s9, 1
    %p94 = por %p92, %p93
    %p95 = scmp.ne.s32.totalorder %s87, %s90
    %p96 = scmp.eq.s32.totalorder %s9, 0
    %p97 = por %p95, %p96
    %p98 = scmp.ne.s32.totalorder %s87, %s90
    %p99 = scmp.eq.s32.totalorder %s14, 1
    %p100 = por %p98, %p99
    %p101 = scmp.ne.s32.totalorder %s90, %s91
    %p102 = scmp.eq.s32.totalorder %s14, 0
    %p103 = por %p101, %p102
    %p104 = scmp.ne.s32.totalorder %s90, %s91
    %p105 = scmp.eq.s32.totalorder %s15, 1
    %p106 = por %p104, %p105
    %p108 = scmp.ne.s32.totalorder %s91, %s107
    %p109 = scmp.eq.s32.totalorder %s15, 0
    %p110 = por %p108, %p109
    %p111 = scmp.le.s32.totalorder 1, %s9
    %p112 = scmp.lt.s32.totalorder %s9, 3
    %p113 = pnand %p111, %p112
    %p114 = pneg %p113
    // Predicated region
    $region9: #{bsq_vq_forward.36} parent=5 // pred_check
      _
    $region10: #{bsq_vq_forward.36} parent=5 // pred_check_branch
      %116 = sbr.rel (%p113) target = $region12
    $region11: #{bsq_vq_forward.36} parent=5 // pred_region
      %s117 = ssub.s32 %s9, 1
      // Predicated region
      $region13: #{bsq_vq_forward.36} parent=11 // pred_check
        %p118 = pneg %p56
      $region14: #{bsq_vq_forward.36} parent=11 // pred_check_branch
        %120 = sbr.rel (%p118) target = $region16
      $region15: #{bsq_vq_forward.36} parent=11 // pred_region
        _
      $region16: #{bsq_vq_forward.36} parent=11 // pred_fallthru
        _
      // Predicated region
      $region17: #{bsq_vq_forward.36} parent=11 // pred_check
        %p121 = pneg %p77
      $region18: #{bsq_vq_forward.36} parent=11 // pred_check_branch
        %123 = sbr.rel (%p121) target = $region20
      $region19: #{bsq_vq_forward.36} parent=11 // pred_region
        _
      $region20: #{bsq_vq_forward.36} parent=11 // pred_fallthru
        _
    $region12: #{bsq_vq_forward.36} parent=5 // pred_fallthru
      _
    %p124 = scmp.lt.s32.totalorder %s9, 2
    // Predicated region
    $region21: #{bsq_vq_forward.36} parent=5 // pred_check
      %p125 = pneg %p124
    $region22: #{bsq_vq_forward.36} parent=5 // pred_check_branch
      %127 = sbr.rel (%p125) target = $region24
    $region23: #{bsq_vq_forward.36} parent=5 // pred_region
      // Predicated region
      $region25: #{bsq_vq_forward.36} parent=23 // pred_check
        %p128 = pneg %p29
      $region26: #{bsq_vq_forward.36} parent=23 // pred_check_branch
        %130 = sbr.rel (%p128) target = $region28
      $region27: #{bsq_vq_forward.36} parent=23 // pred_region
        %p131 = scmp.lt.s32.totalorder %s9, 1
        %s132 = scalar_select %p131, %s9, 1
        %s133 = smul.addr %s132, 7
        %s134 = smul.addr %s133, 4
        %s135 = scalar_lea.vmem %s0, %s134
      $region28: #{bsq_vq_forward.36} parent=23 // pred_fallthru
        _
    $region24: #{bsq_vq_forward.36} parent=5 // pred_fallthru
      _
    %p136 = scmp.le.s32.totalorder 1, %s9
    %p137 = scmp.lt.s32.totalorder %s9, 3
    %p138 = pnand %p136, %p137
    %p139 = pneg %p138
    // Predicated region
    $region29: #{bsq_vq_forward.36} parent=5 // pred_check
      _
    $region30: #{bsq_vq_forward.36} parent=5 // pred_check_branch
      %141 = sbr.rel (%p138) target = $region32
    $region31: #{bsq_vq_forward.36} parent=5 // pred_region
      %s142 = ssub.s32 %s9, 1
      %p143 = scmp.lt.s32.totalorder %s14, 1
      %s144 = scalar_select %p143, %s14, 1
      %s145 = smul.addr %s144, 7
      %s146 = smul.addr %s145, 4
      %s147 = scalar_lea.vmem %s0, %s146
      %p148 = pneg %p35
      %p149 = pneg %p32
      %p150 = pneg %p56
      %p151 = pneg %p53
      %p152 = pneg %p77
      %p153 = pneg %p74
      %p154 = pneg %p103
      %p155 = pneg %p100
      %p156 = scmp.lt.s32.totalorder %s14, 1
      %s157 = scalar_select %p156, %s14, 1
      %s158 = smul.addr %s157, 4
      %s159 = smul.addr %s158, 8
      %s160 = scalar_lea.vmem %s3, %s159
      %p161 = scmp.lt.s32.totalorder %s14, 1
      %s162 = scalar_select %p161, %s14, 1
      %s163 = smul.addr %s162, 7
      %s164 = smul.addr %s163, 4
      %s165 = scalar_lea.vmem %s0, %s164
      %p166 = scmp.lt.s32.totalorder %s14, 1
      %s167 = scalar_select %p166, %s14, 1
      %s168 = smul.addr %s167, 4
      %s169 = smul.addr %s168, 8
      %s170 = scalar_lea.vmem %s3, %s169
      %vm172 = vcmask 261120
      %173 = vst.msk [vmem:[#allocation2] sm:$0xff] %vm172, 0.0
      %174 = vst.msk [vmem:[#allocation2 + $0x8] sm:$0xff] %vm172, 0.0
      %175 = vst.msk [vmem:[#allocation2 + $0x10] sm:$0xff] %vm172, 0.0
      %176 = vst.msk [vmem:[#allocation2 + $0x18] sm:$0xff] %vm172, 0.0
      %v177 = vld [vmem:[%s165] sm:$0xf]
      %v178 = vld [vmem:[%s165 + $0x4] sm:$0xf]
      %v179 = vld [vmem:[%s165 + $0x8] sm:$0xf]
      %v180 = vld [vmem:[%s165 + $0xc] sm:$0xf]
      %v181 = vld [vmem:[%s165 + $0x10] sm:$0xf]
      %v182 = vld [vmem:[%s165 + $0x14] sm:$0xf]
      %v183 = vld [vmem:[#allocation2] sm:$0xff]
      %v184 = vld [vmem:[#allocation2 + $0x8] sm:$0xff]
      %v185 = vld [vmem:[#allocation2 + $0x10] sm:$0xff]
      %v186 = vld [vmem:[#allocation2 + $0x18] sm:$0xff]
      %v187 = vld [vmem:[%s1] sm:$0xf]
      %v188 = vld [vmem:[%s1 + $0x4] sm:$0xf]
      %v189 = vld [vmem:[%s1 + $0x8] sm:$0xf]
      %v190 = vld [vmem:[%s1 + $0xc] sm:$0xf]
      %v191 = vld [vmem:[%s1 + $0x10] sm:$0xf]
      %v192 = vld [vmem:[%s1 + $0x14] sm:$0xf]
      %v193 = vld [vmem:[%s1 + $0x18] sm:$0xf]
      %v194 = vld [vmem:[%s1 + $0x1c] sm:$0xf]
      %v199 = vunpack.c.l.b16 %v177
      %v200 = vunpack.c.l.b16 %v178
      %v201 = vunpack.c.l.b16 %v179
      %v202 = vunpack.c.l.b16 %v180
      %v203 = vpack.c.b16 %v200, %v199
      %v204 = vpack.c.b16 %v202, %v201
      %v213 = vunpack.c.l.b16 %v187
      %v214 = vunpack.c.l.b16 %v188
      %v215 = vunpack.c.l.b16 %v189
      %v216 = vunpack.c.l.b16 %v190
      %v217 = vunpack.c.l.b16 %v191
      %v218 = vunpack.c.l.b16 %v192
      %v219 = vunpack.c.l.b16 %v193
      %v220 = vunpack.c.l.b16 %v194
      %v221 = vpack.c.b16 %v214, %v213
      %v222 = vpack.c.b16 %v216, %v215
      %v223 = vpack.c.b16 %v218, %v217
      %v224 = vpack.c.b16 %v220, %v219
      %vm229 = vcmask 523264
      %v231 = vsel %vm229, %v203, 0
      %v234 = vsel %vm229, %v204, 0
      %236 = vmatprep.subr.bf16.mxu0 0
      %237 = vmatpush1.bf16.msra.mxu0 %v221
      %238 = vmatprep.subr.bf16.mxu0 0
      %239 = vmatpush1.bf16.msra.mxu0 %v222
      %240 = vmatprep.subr.bf16.mxu0 0
      %241 = vmatpush1.bf16.msra.mxu0 %v223
      %242 = vmatprep.subr.bf16.mxu0 0
      %243 = vmatpush1.bf16.msra.mxu0 %v224
      %244 = vmatprep.subr.bf16.mxu0 0
      %245 = vmatpush1.bf16.msra.mxu0 0
      %246 = vmatprep.subr.bf16.mxu0 0
      %247 = vmatpush1.bf16.msra.mxu0 0
      %248 = vmatprep.subr.bf16.mxu0 0
      %249 = vmatpush1.bf16.msra.mxu0 0
      %250 = vmatprep.subr.bf16.mxu0 0
      %251 = vmatpush1.bf16.msra.mxu0 0
      %252 = vmatprep.subr.bf16.mxu0 0
      %253 = vmatpush1.bf16.msra.mxu0 0
      %254 = vmatprep.subr.bf16.mxu0 0
      %255 = vmatpush1.bf16.msra.mxu0 0
      %256 = vmatprep.subr.bf16.mxu0 0
      %257 = vmatpush1.bf16.msra.mxu0 0
      %258 = vmatprep.subr.bf16.mxu0 0
      %259 = vmatpush1.bf16.msra.mxu0 0
      %260 = vmatprep.subr.bf16.mxu0 0
      %261 = vmatpush1.bf16.msra.mxu0 0
      %262 = vmatprep.subr.bf16.mxu0 0
      %263 = vmatpush1.bf16.msra.mxu0 0
      %264 = vmatprep.subr.bf16.mxu0 0
      %265 = vmatpush1.bf16.msra.mxu0 0
      %266 = vmatprep.subr.bf16.mxu0 0
      %267 = vmatpush1.bf16.msra.mxu0 0
      %268 = vmatprep.mubr.bf16.mxu0 0
      %269 = vmatmul.mubr.bf16.gmra.mrb[0].mxu0 %v231
      %v270 = vpop.f32.mrb[0].mxu0
      %v271 = vadd.f32 0.0, %v270
      %v272 = vpop.f32.mrb[0].mxu0
      %v273 = vpop.f32.mrb[0].mxu0
      %v274 = vadd.f32 0.0, %v273
      %v275 = vpop.f32.mrb[0].mxu0
      %276 = vmatprep.mubr.bf16.mxu0 0
      %277 = vmatmul.mubr.bf16.gmra.mrb[0].mxu0 %v234
      %v278 = vpop.f32.mrb[0].mxu0
      %v279 = vadd.f32 0.0, %v278
      %v280 = vpop.f32.mrb[0].mxu0
      %v281 = vpop.f32.mrb[0].mxu0
      %v282 = vadd.f32 0.0, %v281
      %v283 = vpop.f32.mrb[0].mxu0
      %284 = vdwg.mxu0
      %v285 = vadd.f32 %v183, %v271
      %v286 = vadd.f32 %v184, %v274
      %v287 = vadd.f32 %v185, %v279
      %v288 = vadd.f32 %v186, %v282
      %289 = vst.msk [vmem:[#allocation2] sm:$0xff] %vm172, %v285
      %290 = vst.msk [vmem:[#allocation2 + $0x8] sm:$0xff] %vm172, %v286
      %291 = vst.msk [vmem:[#allocation2 + $0x10] sm:$0xff] %vm172, %v287
      %292 = vst.msk [vmem:[#allocation2 + $0x18] sm:$0xff] %vm172, %v288
      %v293 = vld [vmem:[#allocation2] sm:$0xff]
      %v294 = vld [vmem:[#allocation2 + $0x8] sm:$0xff]
      %v295 = vld [vmem:[#allocation2 + $0x10] sm:$0xff]
      %v296 = vld [vmem:[#allocation2 + $0x18] sm:$0xff]
      %s297 = scalar_lea.vmem %s1, 96
      %v298 = vld [vmem:[%s297] sm:$0xf]
      %v299 = vld [vmem:[%s297 + $0x4] sm:$0xf]
      %v300 = vld [vmem:[%s297 + $0x8] sm:$0xf]
      %v301 = vld [vmem:[%s297 + $0xc] sm:$0xf]
      %v302 = vld [vmem:[%s297 + $0x10] sm:$0xf]
      %v303 = vld [vmem:[%s297 + $0x14] sm:$0xf]
      %v304 = vld [vmem:[%s297 + $0x18] sm:$0xf]
      %v305 = vld [vmem:[%s297 + $0x1c] sm:$0xf]
      %v307 = vunpack.c.l.b16 %v181
      %v308 = vpack.c.b16 %v201, %v200
      %v309 = vpack.c.b16 %v307, %v202
      %v318 = vunpack.c.l.b16 %v298
      %v319 = vunpack.c.l.b16 %v299
      %v320 = vunpack.c.l.b16 %v300
      %v321 = vunpack.c.l.b16 %v301
      %v322 = vunpack.c.l.b16 %v302
      %v323 = vunpack.c.l.b16 %v303
      %v324 = vunpack.c.l.b16 %v304
      %v325 = vunpack.c.l.b16 %v305
      %v326 = vpack.c.b16 %v319, %v318
      %v327 = vpack.c.b16 %v321, %v320
      %v328 = vpack.c.b16 %v323, %v322
      %v329 = vpack.c.b16 %v325, %v324
      %v335 = vsel %vm229, %v308, 0
      %v338 = vsel %vm229, %v309, 0
      %340 = vmatprep.subr.bf16.mxu0 0
      %341 = vmatpush1.bf16.msra.mxu0 %v326
      %342 = vmatprep.subr.bf16.mxu0 0
      %343 = vmatpush1.bf16.msra.mxu0 %v327
      %344 = vmatprep.subr.bf16.mxu0 0
      %345 = vmatpush1.bf16.msra.mxu0 %v328
      %346 = vmatprep.subr.bf16.mxu0 0
      %347 = vmatpush1.bf16.msra.mxu0 %v329
      %348 = vmatprep.subr.bf16.mxu0 0
      %349 = vmatpush1.bf16.msra.mxu0 0
      %350 = vmatprep.subr.bf16.mxu0 0
      %351 = vmatpush1.bf16.msra.mxu0 0
      %352 = vmatprep.subr.bf16.mxu0 0
      %353 = vmatpush1.bf16.msra.mxu0 0
      %354 = vmatprep.subr.bf16.mxu0 0
      %355 = vmatpush1.bf16.msra.mxu0 0
      %356 = vmatprep.subr.bf16.mxu0 0
      %357 = vmatpush1.bf16.msra.mxu0 0
      %358 = vmatprep.subr.bf16.mxu0 0
      %359 = vmatpush1.bf16.msra.mxu0 0
      %360 = vmatprep.subr.bf16.mxu0 0
      %361 = vmatpush1.bf16.msra.mxu0 0
      %362 = vmatprep.subr.bf16.mxu0 0
      %363 = vmatpush1.bf16.msra.mxu0 0
      %364 = vmatprep.subr.bf16.mxu0 0
      %365 = vmatpush1.bf16.msra.mxu0 0
      %366 = vmatprep.subr.bf16.mxu0 0
      %367 = vmatpush1.bf16.msra.mxu0 0
      %368 = vmatprep.subr.bf16.mxu0 0
      %369 = vmatpush1.bf16.msra.mxu0 0
      %370 = vmatprep.subr.bf16.mxu0 0
      %371 = vmatpush1.bf16.msra.mxu0 0
      %372 = vmatprep.mubr.bf16.mxu0 0
      %373 = vmatmul.mubr.bf16.gmra.mrb[0].mxu0 %v335
      %v374 = vpop.f32.mrb[0].mxu0
      %v375 = vadd.f32 0.0, %v374
      %v376 = vpop.f32.mrb[0].mxu0
      %v377 = vpop.f32.mrb[0].mxu0
      %v378 = vadd.f32 0.0, %v377
      %v379 = vpop.f32.mrb[0].mxu0
      %380 = vmatprep.mubr.bf16.mxu0 0
      %381 = vmatmul.mubr.bf16.gmra.mrb[0].mxu0 %v338
      %v382 = vpop.f32.mrb[0].mxu0
      %v383 = vadd.f32 0.0, %v382
      %v384 = vpop.f32.mrb[0].mxu0
      %v385 = vpop.f32.mrb[0].mxu0
      %v386 = vadd.f32 0.0, %v385
      %v387 = vpop.f32.mrb[0].mxu0
      %388 = vdwg.mxu0
      %v389 = vadd.f32 %v293, %v375
      %v390 = vadd.f32 %v294, %v378
      %v391 = vadd.f32 %v295, %v383
      %v392 = vadd.f32 %v296, %v386
      %393 = vst.msk [vmem:[#allocation2] sm:$0xff] %vm172, %v389
      %394 = vst.msk [vmem:[#allocation2 + $0x8] sm:$0xff] %vm172, %v390
      %395 = vst.msk [vmem:[#allocation2 + $0x10] sm:$0xff] %vm172, %v391
      %396 = vst.msk [vmem:[#allocation2 + $0x18] sm:$0xff] %vm172, %v392
      %v397 = vld [vmem:[#allocation2] sm:$0xff]
      %v398 = vld [vmem:[#allocation2 + $0x8] sm:$0xff]
      %v399 = vld [vmem:[#allocation2 + $0x10] sm:$0xff]
      %v400 = vld [vmem:[#allocation2 + $0x18] sm:$0xff]
      %s401 = scalar_lea.vmem %s1, 192
      %v402 = vld [vmem:[%s401] sm:$0xf]
      %v403 = vld [vmem:[%s401 + $0x4] sm:$0xf]
      %v404 = vld [vmem:[%s401 + $0x8] sm:$0xf]
      %v405 = vld [vmem:[%s401 + $0xc] sm:$0xf]
      %v406 = vld [vmem:[%s401 + $0x10] sm:$0xf]
      %v407 = vld [vmem:[%s401 + $0x14] sm:$0xf]
      %v408 = vld [vmem:[%s401 + $0x18] sm:$0xf]
      %v409 = vld [vmem:[%s401 + $0x1c] sm:$0xf]
      %v411 = vunpack.c.l.b16 %v182
      %v412 = vpack.c.b16 %v411, %v307
      %v421 = vunpack.c.l.b16 %v402
      %v422 = vunpack.c.l.b16 %v403
      %v423 = vunpack.c.l.b16 %v404
      %v424 = vunpack.c.l.b16 %v405
      %v425 = vunpack.c.l.b16 %v406
      %v426 = vunpack.c.l.b16 %v407
      %v427 = vunpack.c.l.b16 %v408
      %v428 = vunpack.c.l.b16 %v409
      %v429 = vpack.c.b16 %v422, %v421
      %v430 = vpack.c.b16 %v424, %v423
      %v431 = vpack.c.b16 %v426, %v425
      %v432 = vpack.c.b16 %v428, %v427
      %v438 = vsel %vm229, %v412, 0
      %440 = vmatprep.subr.bf16.mxu0 0
      %441 = vmatpush1.bf16.msra.mxu0 %v429
      %442 = vmatprep.subr.bf16.mxu0 0
      %443 = vmatpush1.bf16.msra.mxu0 %v430
      %444 = vmatprep.subr.bf16.mxu0 0
      %445 = vmatpush1.bf16.msra.mxu0 %v431
      %446 = vmatprep.subr.bf16.mxu0 0
      %447 = vmatpush1.bf16.msra.mxu0 %v432
      %448 = vmatprep.subr.bf16.mxu0 0
      %449 = vmatpush1.bf16.msra.mxu0 0
      %450 = vmatprep.subr.bf16.mxu0 0
      %451 = vmatpush1.bf16.msra.mxu0 0
      %452 = vmatprep.subr.bf16.mxu0 0
      %453 = vmatpush1.bf16.msra.mxu0 0
      %454 = vmatprep.subr.bf16.mxu0 0
      %455 = vmatpush1.bf16.msra.mxu0 0
      %456 = vmatprep.subr.bf16.mxu0 0
      %457 = vmatpush1.bf16.msra.mxu0 0
      %458 = vmatprep.subr.bf16.mxu0 0
      %459 = vmatpush1.bf16.msra.mxu0 0
      %460 = vmatprep.subr.bf16.mxu0 0
      %461 = vmatpush1.bf16.msra.mxu0 0
      %462 = vmatprep.subr.bf16.mxu0 0
      %463 = vmatpush1.bf16.msra.mxu0 0
      %464 = vmatprep.subr.bf16.mxu0 0
      %465 = vmatpush1.bf16.msra.mxu0 0
      %466 = vmatprep.subr.bf16.mxu0 0
      %467 = vmatpush1.bf16.msra.mxu0 0
      %468 = vmatprep.subr.bf16.mxu0 0
      %469 = vmatpush1.bf16.msra.mxu0 0
      %470 = vmatprep.subr.bf16.mxu0 0
      %471 = vmatpush1.bf16.msra.mxu0 0
      %472 = vmatprep.mubr.bf16.mxu0 0
      %473 = vmatmul.mubr.bf16.gmra.mrb[0].mxu0 %v234
      %v474 = vpop.f32.mrb[0].mxu0
      %v475 = vadd.f32 0.0, %v474
      %v476 = vpop.f32.mrb[0].mxu0
      %v477 = vpop.f32.mrb[0].mxu0
      %v478 = vadd.f32 0.0, %v477
      %v479 = vpop.f32.mrb[0].mxu0
      %480 = vmatprep.mubr.bf16.mxu0 0
      %481 = vmatmul.mubr.bf16.gmra.mrb[0].mxu0 %v438
      %v482 = vpop.f32.mrb[0].mxu0
      %v483 = vadd.f32 0.0, %v482
      %v484 = vpop.f32.mrb[0].mxu0
      %v485 = vpop.f32.mrb[0].mxu0
      %v486 = vadd.f32 0.0, %v485
      %v487 = vpop.f32.mrb[0].mxu0
      %488 = vdwg.mxu0
      %v489 = vadd.f32 %v397, %v475
      %v490 = vadd.f32 %v398, %v478
      %v491 = vadd.f32 %v399, %v483
      %v492 = vadd.f32 %v400, %v486
      %493 = vst.msk [vmem:[#allocation2] sm:$0xff] %vm172, %v489
      %494 = vst.msk [vmem:[#allocation2 + $0x8] sm:$0xff] %vm172, %v490
      %495 = vst.msk [vmem:[#allocation2 + $0x10] sm:$0xff] %vm172, %v491
      %496 = vst.msk [vmem:[#allocation2 + $0x18] sm:$0xff] %vm172, %v492
      %v497 = vld [vmem:[%s165] sm:$0xf]
      %v498 = vld [vmem:[%s165 + $0x4] sm:$0xf]
      %v499 = vld [vmem:[%s165 + $0x8] sm:$0xf]
      %v500 = vld [vmem:[%s165 + $0xc] sm:$0xf]
      %v501 = vld [vmem:[%s165 + $0x10] sm:$0xf]
      %v502 = vld [vmem:[%s165 + $0x14] sm:$0xf]
      %v503 = vld [vmem:[%s165 + $0x18] sm:$0x1]
      %v504 = vld [vmem:[#allocation2] sm:$0xff]
      %v505 = vld [vmem:[#allocation2 + $0x8] sm:$0xff]
      %v506 = vld [vmem:[#allocation2 + $0x10] sm:$0xff]
      %v507 = vld [vmem:[#allocation2 + $0x18] sm:$0xff]
      %s508 = scalar_lea.vmem %s1, 32
      %v509 = vld [vmem:[%s508] sm:$0xf]
      %v510 = vld [vmem:[%s508 + $0x4] sm:$0xf]
      %v511 = vld [vmem:[%s508 + $0x8] sm:$0xf]
      %v512 = vld [vmem:[%s508 + $0xc] sm:$0xf]
      %v513 = vld [vmem:[%s508 + $0x10] sm:$0xf]
      %v514 = vld [vmem:[%s508 + $0x14] sm:$0xf]
      %v515 = vld [vmem:[%s508 + $0x18] sm:$0xf]
      %v516 = vld [vmem:[%s508 + $0x1c] sm:$0xf]
      %v522 = vunpack.c.l.b16 %v497
      %v523 = vunpack.c.l.b16 %v498
      %v524 = vunpack.c.l.b16 %v499
      %v525 = vunpack.c.l.b16 %v500
      %v526 = vunpack.c.l.b16 %v501
      %v527 = vpack.c.b16 %v523, %v522
      %v528 = vpack.c.b16 %v525, %v524
      %v529 = vpack.c.b16 %v526, %v526
      %vm530 = vsmask.f32 7424
      %v532 = vshrl.u32 %v527, 16
      %v534 = vshll.u32 %v527, 16
      %v536 = vrot.slane %v534, 1
      %v537 = vor.u32 %v532, %v536
      %v539 = vshll.u32 %v528, 16
      %v541 = vrot.slane %v539, 1
      %v542 = vsel %vm530, %v537, %v541
      %v543 = vshrl.u32 %v528, 16
      %v545 = vor.u32 %v543, %v541
      %v547 = vshll.u32 %v529, 16
      %v549 = vrot.slane %v547, 1
      %v550 = vsel %vm530, %v545, %v549
      %v559 = vunpack.c.l.b16 %v509
      %v560 = vunpack.c.l.b16 %v510
      %v561 = vunpack.c.l.b16 %v511
      %v562 = vunpack.c.l.b16 %v512
      %v563 = vunpack.c.l.b16 %v513
      %v564 = vunpack.c.l.b16 %v514
      %v565 = vunpack.c.l.b16 %v515
      %v566 = vunpack.c.l.b16 %v516
      %v567 = vpack.c.b16 %v560, %v559
      %v568 = vpack.c.b16 %v562, %v561
      %v569 = vpack.c.b16 %v564, %v563
      %v570 = vpack.c.b16 %v566, %v565
      %v576 = vsel %vm229, %v542, 0
      %v579 = vsel %vm229, %v550, 0
      %581 = vmatprep.subr.bf16.mxu0 0
      %582 = vmatpush1.bf16.msra.mxu0 %v567
      %583 = vmatprep.subr.bf16.mxu0 0
      %584 = vmatpush1.bf16.msra.mxu0 %v568
      %585 = vmatprep.subr.bf16.mxu0 0
      %586 = vmatpush1.bf16.msra.mxu0 %v569
      %587 = vmatprep.subr.bf16.mxu0 0
      %588 = vmatpush1.bf16.msra.mxu0 %v570
      %589 = vmatprep.subr.bf16.mxu0 0
      %590 = vmatpush1.bf16.msra.mxu0 0
      %591 = vmatprep.subr.bf16.mxu0 0
      %592 = vmatpush1.bf16.msra.mxu0 0
      %593 = vmatprep.subr.bf16.mxu0 0
      %594 = vmatpush1.bf16.msra.mxu0 0
      %595 = vmatprep.subr.bf16.mxu0 0
      %596 = vmatpush1.bf16.msra.mxu0 0
      %597 = vmatprep.subr.bf16.mxu0 0
      %598 = vmatpush1.bf16.msra.mxu0 0
      %599 = vmatprep.subr.bf16.mxu0 0
      %600 = vmatpush1.bf16.msra.mxu0 0
      %601 = vmatprep.subr.bf16.mxu0 0
      %602 = vmatpush1.bf16.msra.mxu0 0
      %603 = vmatprep.subr.bf16.mxu0 0
      %604 = vmatpush1.bf16.msra.mxu0 0
      %605 = vmatprep.subr.bf16.mxu0 0
      %606 = vmatpush1.bf16.msra.mxu0 0
      %607 = vmatprep.subr.bf16.mxu0 0
      %608 = vmatpush1.bf16.msra.mxu0 0
      %609 = vmatprep.subr.bf16.mxu0 0
      %610 = vmatpush1.bf16.msra.mxu0 0
      %611 = vmatprep.subr.bf16.mxu0 0
      %612 = vmatpush1.bf16.msra.mxu0 0
      %613 = vmatprep.mubr.bf16.mxu0 0
      %614 = vmatmul.mubr.bf16.gmra.mrb[0].mxu0 %v576
      %v615 = vpop.f32.mrb[0].mxu0
      %v616 = vadd.f32 0.0, %v615
      %v617 = vpop.f32.mrb[0].mxu0
      %v618 = vpop.f32.mrb[0].mxu0
      %v619 = vadd.f32 0.0, %v618
      %v620 = vpop.f32.mrb[0].mxu0
      %621 = vmatprep.mubr.bf16.mxu0 0
      %622 = vmatmul.mubr.bf16.gmra.mrb[0].mxu0 %v579
      %v623 = vpop.f32.mrb[0].mxu0
      %v624 = vadd.f32 0.0, %v623
      %v625 = vpop.f32.mrb[0].mxu0
      %v626 = vpop.f32.mrb[0].mxu0
      %v627 = vadd.f32 0.0, %v626
      %v628 = vpop.f32.mrb[0].mxu0
      %629 = vdwg.mxu0
      %v630 = vadd.f32 %v504, %v616
      %v631 = vadd.f32 %v505, %v619
      %v632 = vadd.f32 %v506, %v624
      %v633 = vadd.f32 %v507, %v627
      %634 = vst.msk [vmem:[#allocation2] sm:$0xff] %vm172, %v630
      %635 = vst.msk [vmem:[#allocation2 + $0x8] sm:$0xff] %vm172, %v631
      %636 = vst.msk [vmem:[#allocation2 + $0x10] sm:$0xff] %vm172, %v632
      %637 = vst.msk [vmem:[#allocation2 + $0x18] sm:$0xff] %vm172, %v633
      %v638 = vld [vmem:[#allocation2] sm:$0xff]
      %v639 = vld [vmem:[#allocation2 + $0x8] sm:$0xff]
      %v640 = vld [vmem:[#allocation2 + $0x10] sm:$0xff]
      %v641 = vld [vmem:[#allocation2 + $0x18] sm:$0xff]
      %s642 = scalar_lea.vmem %s1, 128
      %v643 = vld [vmem:[%s642] sm:$0xf]
      %v644 = vld [vmem:[%s642 + $0x4] sm:$0xf]
      %v645 = vld [vmem:[%s642 + $0x8] sm:$0xf]
      %v646 = vld [vmem:[%s642 + $0xc] sm:$0xf]
      %v647 = vld [vmem:[%s642 + $0x10] sm:$0xf]
      %v648 = vld [vmem:[%s642 + $0x14] sm:$0xf]
      %v649 = vld [vmem:[%s642 + $0x18] sm:$0xf]
      %v650 = vld [vmem:[%s642 + $0x1c] sm:$0xf]
      %v652 = vunpack.c.l.b16 %v502
      %v653 = vpack.c.b16 %v524, %v523
      %v654 = vpack.c.b16 %v526, %v525
      %v655 = vpack.c.b16 %v652, %v652
      %v657 = vshrl.u32 %v653, 16
      %v659 = vshll.u32 %v653, 16
      %v661 = vrot.slane %v659, 1
      %v662 = vor.u32 %v657, %v661
      %v664 = vshll.u32 %v654, 16
      %v666 = vrot.slane %v664, 1
      %v667 = vsel %vm530, %v662, %v666
      %v668 = vshrl.u32 %v654, 16
      %v670 = vor.u32 %v668, %v666
      %v672 = vshll.u32 %v655, 16
      %v674 = vrot.slane %v672, 1
      %v675 = vsel %vm530, %v670, %v674
      %v684 = vunpack.c.l.b16 %v643
      %v685 = vunpack.c.l.b16 %v644
      %v686 = vunpack.c.l.b16 %v645
      %v687 = vunpack.c.l.b16 %v646
      %v688 = vunpack.c.l.b16 %v647
      %v689 = vunpack.c.l.b16 %v648
      %v690 = vunpack.c.l.b16 %v649
      %v691 = vunpack.c.l.b16 %v650
      %v692 = vpack.c.b16 %v685, %v684
      %v693 = vpack.c.b16 %v687, %v686
      %v694 = vpack.c.b16 %v689, %v688
      %v695 = vpack.c.b16 %v691, %v690
      %v701 = vsel %vm229, %v667, 0
      %v704 = vsel %vm229, %v675, 0
      %706 = vmatprep.subr.bf16.mxu0 0
      %707 = vmatpush1.bf16.msra.mxu0 %v692
      %708 = vmatprep.subr.bf16.mxu0 0
      %709 = vmatpush1.bf16.msra.mxu0 %v693
      %710 = vmatprep.subr.bf16.mxu0 0
      %711 = vmatpush1.bf16.msra.mxu0 %v694
      %712 = vmatprep.subr.bf16.mxu0 0
      %713 = vmatpush1.bf16.msra.mxu0 %v695
      %714 = vmatprep.subr.bf16.mxu0 0
      %715 = vmatpush1.bf16.msra.mxu0 0
      %716 = vmatprep.subr.bf16.mxu0 0
      %717 = vmatpush1.bf16.msra.mxu0 0
      %718 = vmatprep.subr.bf16.mxu0 0
      %719 = vmatpush1.bf16.msra.mxu0 0
      %720 = vmatprep.subr.bf16.mxu0 0
      %721 = vmatpush1.bf16.msra.mxu0 0
      %722 = vmatprep.subr.bf16.mxu0 0
      %723 = vmatpush1.bf16.msra.mxu0 0
      %724 = vmatprep.subr.bf16.mxu0 0
      %725 = vmatpush1.bf16.msra.mxu0 0
      %726 = vmatprep.subr.bf16.mxu0 0
      %727 = vmatpush1.bf16.msra.mxu0 0
      %728 = vmatprep.subr.bf16.mxu0 0
      %729 = vmatpush1.bf16.msra.mxu0 0
      %730 = vmatprep.subr.bf16.mxu0 0
      %731 = vmatpush1.bf16.msra.mxu0 0
      %732 = vmatprep.subr.bf16.mxu0 0
      %733 = vmatpush1.bf16.msra.mxu0 0
      %734 = vmatprep.subr.bf16.mxu0 0
      %735 = vmatpush1.bf16.msra.mxu0 0
      %736 = vmatprep.subr.bf16.mxu0 0
      %737 = vmatpush1.bf16.msra.mxu0 0
      %738 = vmatprep.mubr.bf16.mxu0 0
      %739 = vmatmul.mubr.bf16.gmra.mrb[0].mxu0 %v701
      %v740 = vpop.f32.mrb[0].mxu0
      %v741 = vadd.f32 0.0, %v740
      %v742 = vpop.f32.mrb[0].mxu0
      %v743 = vpop.f32.mrb[0].mxu0
      %v744 = vadd.f32 0.0, %v743
      %v745 = vpop.f32.mrb[0].mxu0
      %746 = vmatprep.mubr.bf16.mxu0 0
      %747 = vmatmul.mubr.bf16.gmra.mrb[0].mxu0 %v704
      %v748 = vpop.f32.mrb[0].mxu0
      %v749 = vadd.f32 0.0, %v748
      %v750 = vpop.f32.mrb[0].mxu0
      %v751 = vpop.f32.mrb[0].mxu0
      %v752 = vadd.f32 0.0, %v751
      %v753 = vpop.f32.mrb[0].mxu0
      %754 = vdwg.mxu0
      %v755 = vadd.f32 %v638, %v741
      %v756 = vadd.f32 %v639, %v744
      %v757 = vadd.f32 %v640, %v749
      %v758 = vadd.f32 %v641, %v752
      %759 = vst.msk [vmem:[#allocation2] sm:$0xff] %vm172, %v755
      %760 = vst.msk [vmem:[#allocation2 + $0x8] sm:$0xff] %vm172, %v756
      %761 = vst.msk [vmem:[#allocation2 + $0x10] sm:$0xff] %vm172, %v757
      %762 = vst.msk [vmem:[#allocation2 + $0x18] sm:$0xff] %vm172, %v758
      %v763 = vld [vmem:[#allocation2] sm:$0xff]
      %v764 = vld [vmem:[#allocation2 + $0x8] sm:$0xff]
      %v765 = vld [vmem:[#allocation2 + $0x10] sm:$0xff]
      %v766 = vld [vmem:[#allocation2 + $0x18] sm:$0xff]
      %s767 = scalar_lea.vmem %s1, 224
      %v768 = vld [vmem:[%s767] sm:$0xf]
      %v769 = vld [vmem:[%s767 + $0x4] sm:$0xf]
      %v770 = vld [vmem:[%s767 + $0x8] sm:$0xf]
      %v771 = vld [vmem:[%s767 + $0xc] sm:$0xf]
      %v772 = vld [vmem:[%s767 + $0x10] sm:$0xf]
      %v773 = vld [vmem:[%s767 + $0x14] sm:$0xf]
      %v774 = vld [vmem:[%s767 + $0x18] sm:$0xf]
      %v775 = vld [vmem:[%s767 + $0x1c] sm:$0xf]
      %v777 = vunpack.c.l.b16 %v503
      %v778 = vpack.c.b16 %v652, %v526
      %v779 = vpack.c.b16 %v777, %v777
      %v781 = vshll.u32 %v778, 16
      %v783 = vrot.slane %v781, 1
      %v784 = vsel %vm530, %v545, %v783
      %v785 = vshrl.u32 %v778, 16
      %v787 = vor.u32 %v785, %v783
      %v789 = vshll.u32 %v779, 16
      %v791 = vrot.slane %v789, 1
      %v792 = vsel %vm530, %v787, %v791
      %v801 = vunpack.c.l.b16 %v768
      %v802 = vunpack.c.l.b16 %v769
      %v803 = vunpack.c.l.b16 %v770
      %v804 = vunpack.c.l.b16 %v771
      %v805 = vunpack.c.l.b16 %v772
      %v806 = vunpack.c.l.b16 %v773
      %v807 = vunpack.c.l.b16 %v774
      %v808 = vunpack.c.l.b16 %v775
      %v809 = vpack.c.b16 %v802, %v801
      %v810 = vpack.c.b16 %v804, %v803
      %v811 = vpack.c.b16 %v806, %v805
      %v812 = vpack.c.b16 %v808, %v807
      %v818 = vsel %vm229, %v784, 0
      %v821 = vsel %vm229, %v792, 0
      %823 = vmatprep.subr.bf16.mxu0 0
      %824 = vmatpush1.bf16.msra.mxu0 %v809
      %825 = vmatprep.subr.bf16.mxu0 0
      %826 = vmatpush1.bf16.msra.mxu0 %v810
      %827 = vmatprep.subr.bf16.mxu0 0
      %828 = vmatpush1.bf16.msra.mxu0 %v811
      %829 = vmatprep.subr.bf16.mxu0 0
      %830 = vmatpush1.bf16.msra.mxu0 %v812
      %831 = vmatprep.subr.bf16.mxu0 0
      %832 = vmatpush1.bf16.msra.mxu0 0
      %833 = vmatprep.subr.bf16.mxu0 0
      %834 = vmatpush1.bf16.msra.mxu0 0
      %835 = vmatprep.subr.bf16.mxu0 0
      %836 = vmatpush1.bf16.msra.mxu0 0
      %837 = vmatprep.subr.bf16.mxu0 0
      %838 = vmatpush1.bf16.msra.mxu0 0
      %839 = vmatprep.subr.bf16.mxu0 0
      %840 = vmatpush1.bf16.msra.mxu0 0
      %841 = vmatprep.subr.bf16.mxu0 0
      %842 = vmatpush1.bf16.msra.mxu0 0
      %843 = vmatprep.subr.bf16.mxu0 0
      %844 = vmatpush1.bf16.msra.mxu0 0
      %845 = vmatprep.subr.bf16.mxu0 0
      %846 = vmatpush1.bf16.msra.mxu0 0
      %847 = vmatprep.subr.bf16.mxu0 0
      %848 = vmatpush1.bf16.msra.mxu0 0
      %849 = vmatprep.subr.bf16.mxu0 0
      %850 = vmatpush1.bf16.msra.mxu0 0
      %851 = vmatprep.subr.bf16.mxu0 0
      %852 = vmatpush1.bf16.msra.mxu0 0
      %853 = vmatprep.subr.bf16.mxu0 0
      %854 = vmatpush1.bf16.msra.mxu0 0
      %855 = vmatprep.mubr.bf16.mxu0 0
      %856 = vmatmul.mubr.bf16.gmra.mrb[0].mxu0 %v818
      %v857 = vpop.f32.mrb[0].mxu0
      %v858 = vadd.f32 0.0, %v857
      %v859 = vpop.f32.mrb[0].mxu0
      %v860 = vpop.f32.mrb[0].mxu0
      %v861 = vadd.f32 0.0, %v860
      %v862 = vpop.f32.mrb[0].mxu0
      %863 = vmatprep.mubr.bf16.mxu0 0
      %864 = vmatmul.mubr.bf16.gmra.mrb[0].mxu0 %v821
      %v865 = vpop.f32.mrb[0].mxu0
      %v866 = vadd.f32 0.0, %v865
      %v867 = vpop.f32.mrb[0].mxu0
      %v868 = vpop.f32.mrb[0].mxu0
      %v869 = vadd.f32 0.0, %v868
      %v870 = vpop.f32.mrb[0].mxu0
      %871 = vdwg.mxu0
      %v872 = vadd.f32 %v763, %v858
      %v873 = vadd.f32 %v764, %v861
      %v874 = vadd.f32 %v765, %v866
      %v875 = vadd.f32 %v766, %v869
      %876 = vst.msk [vmem:[#allocation2] sm:$0xff] %vm172, %v872
      %877 = vst.msk [vmem:[#allocation2 + $0x8] sm:$0xff] %vm172, %v873
      %878 = vst.msk [vmem:[#allocation2 + $0x10] sm:$0xff] %vm172, %v874
      %879 = vst.msk [vmem:[#allocation2 + $0x18] sm:$0xff] %vm172, %v875
      %v880 = vld [vmem:[%s165] sm:$0xe]
      %v881 = vld [vmem:[%s165 + $0x4] sm:$0xf]
      %v882 = vld [vmem:[%s165 + $0x8] sm:$0xf]
      %v883 = vld [vmem:[%s165 + $0xc] sm:$0xf]
      %v884 = vld [vmem:[%s165 + $0x10] sm:$0xf]
      %v885 = vld [vmem:[%s165 + $0x14] sm:$0xf]
      %v886 = vld [vmem:[%s165 + $0x18] sm:$0x1]
      %v887 = vld [vmem:[#allocation2] sm:$0xff]
      %v888 = vld [vmem:[#allocation2 + $0x8] sm:$0xff]
      %v889 = vld [vmem:[#allocation2 + $0x10] sm:$0xff]
      %v890 = vld [vmem:[#allocation2 + $0x18] sm:$0xff]
      %s891 = scalar_lea.vmem %s1, 64
      %v892 = vld [vmem:[%s891] sm:$0xf]
      %v893 = vld [vmem:[%s891 + $0x4] sm:$0xf]
      %v894 = vld [vmem:[%s891 + $0x8] sm:$0xf]
      %v895 = vld [vmem:[%s891 + $0xc] sm:$0xf]
      %v896 = vld [vmem:[%s891 + $0x10] sm:$0xf]
      %v897 = vld [vmem:[%s891 + $0x14] sm:$0xf]
      %v898 = vld [vmem:[%s891 + $0x18] sm:$0xf]
      %v899 = vld [vmem:[%s891 + $0x1c] sm:$0xf]
      %v905 = vunpack.c.l.b16 %v880
      %v906 = vunpack.c.l.b16 %v881
      %v907 = vunpack.c.l.b16 %v882
      %v908 = vunpack.c.l.b16 %v883
      %v909 = vunpack.c.l.b16 %v884
      %v910 = vpack.c.b16 %v906, %v905
      %v911 = vpack.c.b16 %v908, %v907
      %v912 = vpack.c.b16 %v909, %v909
      %vm913 = vcmask 1046528
      %v914 = vrot.slane %v910, 1
      %v915 = vrot.slane %v911, 1
      %v916 = vsel %vm913, %v914, %v915
      %v917 = vrot.slane %v912, 1
      %v918 = vsel %vm913, %v915, %v917
      %v927 = vunpack.c.l.b16 %v892
      %v928 = vunpack.c.l.b16 %v893
      %v929 = vunpack.c.l.b16 %v894
      %v930 = vunpack.c.l.b16 %v895
      %v931 = vunpack.c.l.b16 %v896
      %v932 = vunpack.c.l.b16 %v897
      %v933 = vunpack.c.l.b16 %v898
      %v934 = vunpack.c.l.b16 %v899
      %v935 = vpack.c.b16 %v928, %v927
      %v936 = vpack.c.b16 %v930, %v929
      %v937 = vpack.c.b16 %v932, %v931
      %v938 = vpack.c.b16 %v934, %v933
      %v944 = vsel %vm229, %v916, 0
      %v947 = vsel %vm229, %v918, 0
      %949 = vmatprep.subr.bf16.mxu0 0
      %950 = vmatpush1.bf16.msra.mxu0 %v935
      %951 = vmatprep.subr.bf16.mxu0 0
      %952 = vmatpush1.bf16.msra.mxu0 %v936
      %953 = vmatprep.subr.bf16.mxu0 0
      %954 = vmatpush1.bf16.msra.mxu0 %v937
      %955 = vmatprep.subr.bf16.mxu0 0
      %956 = vmatpush1.bf16.msra.mxu0 %v938
      %957 = vmatprep.subr.bf16.mxu0 0
      %958 = vmatpush1.bf16.msra.mxu0 0
      %959 = vmatprep.subr.bf16.mxu0 0
      %960 = vmatpush1.bf16.msra.mxu0 0
      %961 = vmatprep.subr.bf16.mxu0 0
      %962 = vmatpush1.bf16.msra.mxu0 0
      %963 = vmatprep.subr.bf16.mxu0 0
      %964 = vmatpush1.bf16.msra.mxu0 0
      %965 = vmatprep.subr.bf16.mxu0 0
      %966 = vmatpush1.bf16.msra.mxu0 0
      %967 = vmatprep.subr.bf16.mxu0 0
      %968 = vmatpush1.bf16.msra.mxu0 0
      %969 = vmatprep.subr.bf16.mxu0 0
      %970 = vmatpush1.bf16.msra.mxu0 0
      %971 = vmatprep.subr.bf16.mxu0 0
      %972 = vmatpush1.bf16.msra.mxu0 0
      %973 = vmatprep.subr.bf16.mxu0 0
      %974 = vmatpush1.bf16.msra.mxu0 0
      %975 = vmatprep.subr.bf16.mxu0 0
      %976 = vmatpush1.bf16.msra.mxu0 0
      %977 = vmatprep.subr.bf16.mxu0 0
      %978 = vmatpush1.bf16.msra.mxu0 0
      %979 = vmatprep.subr.bf16.mxu0 0
      %980 = vmatpush1.bf16.msra.mxu0 0
      %981 = vmatprep.mubr.bf16.mxu0 0
      %982 = vmatmul.mubr.bf16.gmra.mrb[0].mxu0 %v944
      %v983 = vpop.f32.mrb[0].mxu0
      %v984 = vadd.f32 0.0, %v983
      %v985 = vpop.f32.mrb[0].mxu0
      %v986 = vpop.f32.mrb[0].mxu0
      %v987 = vadd.f32 0.0, %v986
      %v988 = vpop.f32.mrb[0].mxu0
      %989 = vmatprep.mubr.bf16.mxu0 0
      %990 = vmatmul.mubr.bf16.gmra.mrb[0].mxu0 %v947
      %v991 = vpop.f32.mrb[0].mxu0
      %v992 = vadd.f32 0.0, %v991
      %v993 = vpop.f32.mrb[0].mxu0
      %v994 = vpop.f32.mrb[0].mxu0
      %v995 = vadd.f32 0.0, %v994
      %v996 = vpop.f32.mrb[0].mxu0
      %997 = vdwg.mxu0
      %v998 = vadd.f32 %v887, %v984
      %v999 = vadd.f32 %v888, %v987
      %v1000 = vadd.f32 %v889, %v992
      %v1001 = vadd.f32 %v890, %v995
      %1002 = vst.msk [vmem:[#allocation2] sm:$0xff] %vm172, %v998
      %1003 = vst.msk [vmem:[#allocation2 + $0x8] sm:$0xff] %vm172, %v999
      %1004 = vst.msk [vmem:[#allocation2 + $0x10] sm:$0xff] %vm172, %v1000
      %1005 = vst.msk [vmem:[#allocation2 + $0x18] sm:$0xff] %vm172, %v1001
      %v1006 = vld [vmem:[#allocation2] sm:$0xff]
      %v1007 = vld [vmem:[#allocation2 + $0x8] sm:$0xff]
      %v1008 = vld [vmem:[#allocation2 + $0x10] sm:$0xff]
      %v1009 = vld [vmem:[#allocation2 + $0x18] sm:$0xff]
      %s1010 = scalar_lea.vmem %s1, 160
      %v1011 = vld [vmem:[%s1010] sm:$0xf]
      %v1012 = vld [vmem:[%s1010 + $0x4] sm:$0xf]
      %v1013 = vld [vmem:[%s1010 + $0x8] sm:$0xf]
      %v1014 = vld [vmem:[%s1010 + $0xc] sm:$0xf]
      %v1015 = vld [vmem:[%s1010 + $0x10] sm:$0xf]
      %v1016 = vld [vmem:[%s1010 + $0x14] sm:$0xf]
      %v1017 = vld [vmem:[%s1010 + $0x18] sm:$0xf]
      %v1018 = vld [vmem:[%s1010 + $0x1c] sm:$0xf]
      %v1020 = vunpack.c.l.b16 %v885
      %v1021 = vpack.c.b16 %v907, %v906
      %v1022 = vpack.c.b16 %v909, %v908
      %v1023 = vpack.c.b16 %v1020, %v1020
      %v1024 = vrot.slane %v1021, 1
      %v1025 = vrot.slane %v1022, 1
      %v1026 = vsel %vm913, %v1024, %v1025
      %v1027 = vrot.slane %v1023, 1
      %v1028 = vsel %vm913, %v1025, %v1027
      %v1037 = vunpack.c.l.b16 %v1011
      %v1038 = vunpack.c.l.b16 %v1012
      %v1039 = vunpack.c.l.b16 %v1013
      %v1040 = vunpack.c.l.b16 %v1014
      %v1041 = vunpack.c.l.b16 %v1015
      %v1042 = vunpack.c.l.b16 %v1016
      %v1043 = vunpack.c.l.b16 %v1017
      %v1044 = vunpack.c.l.b16 %v1018
      %v1045 = vpack.c.b16 %v1038, %v1037
      %v1046 = vpack.c.b16 %v1040, %v1039
      %v1047 = vpack.c.b16 %v1042, %v1041
      %v1048 = vpack.c.b16 %v1044, %v1043
      %v1054 = vsel %vm229, %v1026, 0
      %v1057 = vsel %vm229, %v1028, 0
      %1059 = vmatprep.subr.bf16.mxu0 0
      %1060 = vmatpush1.bf16.msra.mxu0 %v1045
      %1061 = vmatprep.subr.bf16.mxu0 0
      %1062 = vmatpush1.bf16.msra.mxu0 %v1046
      %1063 = vmatprep.subr.bf16.mxu0 0
      %1064 = vmatpush1.bf16.msra.mxu0 %v1047
      %1065 = vmatprep.subr.bf16.mxu0 0
      %1066 = vmatpush1.bf16.msra.mxu0 %v1048
      %1067 = vmatprep.subr.bf16.mxu0 0
      %1068 = vmatpush1.bf16.msra.mxu0 0
      %1069 = vmatprep.subr.bf16.mxu0 0
      %1070 = vmatpush1.bf16.msra.mxu0 0
      %1071 = vmatprep.subr.bf16.mxu0 0
      %1072 = vmatpush1.bf16.msra.mxu0 0
      %1073 = vmatprep.subr.bf16.mxu0 0
      %1074 = vmatpush1.bf16.msra.mxu0 0
      %1075 = vmatprep.subr.bf16.mxu0 0
      %1076 = vmatpush1.bf16.msra.mxu0 0
      %1077 = vmatprep.subr.bf16.mxu0 0
      %1078 = vmatpush1.bf16.msra.mxu0 0
      %1079 = vmatprep.subr.bf16.mxu0 0
      %1080 = vmatpush1.bf16.msra.mxu0 0
      %1081 = vmatprep.subr.bf16.mxu0 0
      %1082 = vmatpush1.bf16.msra.mxu0 0
      %1083 = vmatprep.subr.bf16.mxu0 0
      %1084 = vmatpush1.bf16.msra.mxu0 0
      %1085 = vmatprep.subr.bf16.mxu0 0
      %1086 = vmatpush1.bf16.msra.mxu0 0
      %1087 = vmatprep.subr.bf16.mxu0 0
      %1088 = vmatpush1.bf16.msra.mxu0 0
      %1089 = vmatprep.subr.bf16.mxu0 0
      %1090 = vmatpush1.bf16.msra.mxu0 0
      %1091 = vmatprep.mubr.bf16.mxu0 0
      %1092 = vmatmul.mubr.bf16.gmra.mrb[0].mxu0 %v1054
      %v1093 = vpop.f32.mrb[0].mxu0
      %v1094 = vadd.f32 0.0, %v1093
      %v1095 = vpop.f32.mrb[0].mxu0
      %v1096 = vpop.f32.mrb[0].mxu0
      %v1097 = vadd.f32 0.0, %v1096
      %v1098 = vpop.f32.mrb[0].mxu0
      %1099 = vmatprep.mubr.bf16.mxu0 0
      %1100 = vmatmul.mubr.bf16.gmra.mrb[0].mxu0 %v1057
      %v1101 = vpop.f32.mrb[0].mxu0
      %v1102 = vadd.f32 0.0, %v1101
      %v1103 = vpop.f32.mrb[0].mxu0
      %v1104 = vpop.f32.mrb[0].mxu0
      %v1105 = vadd.f32 0.0, %v1104
      %v1106 = vpop.f32.mrb[0].mxu0
      %1107 = vdwg.mxu0
      %v1108 = vadd.f32 %v1006, %v1094
      %v1109 = vadd.f32 %v1007, %v1097
      %v1110 = vadd.f32 %v1008, %v1102
      %v1111 = vadd.f32 %v1009, %v1105
      %1112 = vst.msk [vmem:[#allocation2] sm:$0xff] %vm172, %v1108
      %1113 = vst.msk [vmem:[#allocation2 + $0x8] sm:$0xff] %vm172, %v1109
      %1114 = vst.msk [vmem:[#allocation2 + $0x10] sm:$0xff] %vm172, %v1110
      %1115 = vst.msk [vmem:[#allocation2 + $0x18] sm:$0xff] %vm172, %v1111
      %v1116 = vld [vmem:[#allocation2] sm:$0xff]
      %v1117 = vld [vmem:[#allocation2 + $0x8] sm:$0xff]
      %v1118 = vld [vmem:[#allocation2 + $0x10] sm:$0xff]
      %v1119 = vld [vmem:[#allocation2 + $0x18] sm:$0xff]
      %s1120 = scalar_lea.vmem %s1, 256
      %v1121 = vld [vmem:[%s1120] sm:$0xf]
      %v1122 = vld [vmem:[%s1120 + $0x4] sm:$0xf]
      %v1123 = vld [vmem:[%s1120 + $0x8] sm:$0xf]
      %v1124 = vld [vmem:[%s1120 + $0xc] sm:$0xf]
      %v1125 = vld [vmem:[%s1120 + $0x10] sm:$0xf]
      %v1126 = vld [vmem:[%s1120 + $0x14] sm:$0xf]
      %v1127 = vld [vmem:[%s1120 + $0x18] sm:$0xf]
      %v1128 = vld [vmem:[%s1120 + $0x1c] sm:$0xf]
      %v1130 = vunpack.c.l.b16 %v886
      %v1131 = vpack.c.b16 %v1020, %v909
      %v1132 = vpack.c.b16 %v1130, %v1130
      %v1133 = vrot.slane %v1131, 1
      %v1134 = vsel %vm913, %v915, %v1133
      %v1135 = vrot.slane %v1132, 1
      %v1136 = vsel %vm913, %v1133, %v1135
      %v1145 = vunpack.c.l.b16 %v1121
      %v1146 = vunpack.c.l.b16 %v1122
      %v1147 = vunpack.c.l.b16 %v1123
      %v1148 = vunpack.c.l.b16 %v1124
      %v1149 = vunpack.c.l.b16 %v1125
      %v1150 = vunpack.c.l.b16 %v1126
      %v1151 = vunpack.c.l.b16 %v1127
      %v1152 = vunpack.c.l.b16 %v1128
      %v1153 = vpack.c.b16 %v1146, %v1145
      %v1154 = vpack.c.b16 %v1148, %v1147
      %v1155 = vpack.c.b16 %v1150, %v1149
      %v1156 = vpack.c.b16 %v1152, %v1151
      %v1162 = vsel %vm229, %v1134, 0
      %v1165 = vsel %vm229, %v1136, 0
      %1167 = vmatprep.subr.bf16.mxu0 0
      %1168 = vmatpush1.bf16.msra.mxu0 %v1153
      %1169 = vmatprep.subr.bf16.mxu0 0
      %1170 = vmatpush1.bf16.msra.mxu0 %v1154
      %1171 = vmatprep.subr.bf16.mxu0 0
      %1172 = vmatpush1.bf16.msra.mxu0 %v1155
      %1173 = vmatprep.subr.bf16.mxu0 0
      %1174 = vmatpush1.bf16.msra.mxu0 %v1156
      %1175 = vmatprep.subr.bf16.mxu0 0
      %1176 = vmatpush1.bf16.msra.mxu0 0
      %1177 = vmatprep.subr.bf16.mxu0 0
      %1178 = vmatpush1.bf16.msra.mxu0 0
      %1179 = vmatprep.subr.bf16.mxu0 0
      %1180 = vmatpush1.bf16.msra.mxu0 0
      %1181 = vmatprep.subr.bf16.mxu0 0
      %1182 = vmatpush1.bf16.msra.mxu0 0
      %1183 = vmatprep.subr.bf16.mxu0 0
      %1184 = vmatpush1.bf16.msra.mxu0 0
      %1185 = vmatprep.subr.bf16.mxu0 0
      %1186 = vmatpush1.bf16.msra.mxu0 0
      %1187 = vmatprep.subr.bf16.mxu0 0
      %1188 = vmatpush1.bf16.msra.mxu0 0
      %1189 = vmatprep.subr.bf16.mxu0 0
      %1190 = vmatpush1.bf16.msra.mxu0 0
      %1191 = vmatprep.subr.bf16.mxu0 0
      %1192 = vmatpush1.bf16.msra.mxu0 0
      %1193 = vmatprep.subr.bf16.mxu0 0
      %1194 = vmatpush1.bf16.msra.mxu0 0
      %1195 = vmatprep.subr.bf16.mxu0 0
      %1196 = vmatpush1.bf16.msra.mxu0 0
      %1197 = vmatprep.subr.bf16.mxu0 0
      %1198 = vmatpush1.bf16.msra.mxu0 0
      %1199 = vmatprep.mubr.bf16.mxu0 0
      %1200 = vmatmul.mubr.bf16.gmra.mrb[0].mxu0 %v1162
      %v1201 = vpop.f32.mrb[0].mxu0
      %v1202 = vadd.f32 0.0, %v1201
      %v1203 = vpop.f32.mrb[0].mxu0
      %v1204 = vpop.f32.mrb[0].mxu0
      %v1205 = vadd.f32 0.0, %v1204
      %v1206 = vpop.f32.mrb[0].mxu0
      %1207 = vmatprep.mubr.bf16.mxu0 0
      %1208 = vmatmul.mubr.bf16.gmra.mrb[0].mxu0 %v1165
      %v1209 = vpop.f32.mrb[0].mxu0
      %v1210 = vadd.f32 0.0, %v1209
      %v1211 = vpop.f32.mrb[0].mxu0
      %v1212 = vpop.f32.mrb[0].mxu0
      %v1213 = vadd.f32 0.0, %v1212
      %v1214 = vpop.f32.mrb[0].mxu0
      %1215 = vdwg.mxu0
      %v1216 = vadd.f32 %v1116, %v1202
      %v1217 = vadd.f32 %v1117, %v1205
      %v1218 = vadd.f32 %v1118, %v1210
      %v1219 = vadd.f32 %v1119, %v1213
      %1220 = vst.msk [vmem:[#allocation2] sm:$0xff] %vm172, %v1216
      %1221 = vst.msk [vmem:[#allocation2 + $0x8] sm:$0xff] %vm172, %v1217
      %1222 = vst.msk [vmem:[#allocation2 + $0x10] sm:$0xff] %vm172, %v1218
      %1223 = vst.msk [vmem:[#allocation2 + $0x18] sm:$0xff] %vm172, %v1219
      %v1224 = vld [vmem:[#allocation2] sm:$0xff]
      %v1225 = vld [vmem:[#allocation2 + $0x8] sm:$0xff]
      %v1226 = vld [vmem:[#allocation2 + $0x10] sm:$0xff]
      %v1227 = vld [vmem:[#allocation2 + $0x18] sm:$0xff]
      %v1228 = vld [vmem:[%s2] sm:$0x1]
      %v1230 = vlaneseq
      %v1231 = vshrl.u32 %v1230, 7
      %v1232 = vsub.s32 0, %v1231
      %v1233 = vrot.slane %v1228, %v1232
      %v1235 = vadd.f32 %v1224, %v1233
      %v1236 = vadd.f32 %v1225, %v1233
      %v1237 = vadd.f32 %v1226, %v1233
      %v1238 = vadd.f32 %v1227, %v1233
      %1239 = vst.msk [vmem:[%s170] sm:$0xff] %vm172, %v1235
      %1240 = vst.msk [vmem:[%s170 + $0x8] sm:$0xff] %vm172, %v1236
      %1241 = vst.msk [vmem:[%s170 + $0x10] sm:$0xff] %vm172, %v1237
      %1242 = vst.msk [vmem:[%s170 + $0x18] sm:$0xff] %vm172, %v1238
      %p1243 = scmp.lt.s32.totalorder %s14, 1
      %s1244 = scalar_select %p1243, %s14, 1
      %s1245 = smul.addr %s1244, 4
      %s1246 = smul.addr %s1245, 8
      %s1247 = scalar_lea.vmem %s3, %s1246
      // Predicated region
      $region33: #{bsq_vq_forward.36} parent=31 // pred_check
        %p1248 = pneg %p100
      $region34: #{bsq_vq_forward.36} parent=31 // pred_check_branch
        %1250 = sbr.rel (%p1248) target = $region36
      $region35: #{bsq_vq_forward.36} parent=31 // pred_region
        _
      $region36: #{bsq_vq_forward.36} parent=31 // pred_fallthru
        _
    $region32: #{bsq_vq_forward.36} parent=5 // pred_fallthru
      _
    %p1251 = scmp.le.s32.totalorder 2, %s9
    // Predicated region
    $region37: #{bsq_vq_forward.36} parent=5 // pred_check
      %p1252 = pneg %p1251
    $region38: #{bsq_vq_forward.36} parent=5 // pred_check_branch
      %1254 = sbr.rel (%p1252) target = $region40
    $region39: #{bsq_vq_forward.36} parent=5 // pred_region
      %s1255 = ssub.s32 %s9, 2
      // Predicated region
      $region41: #{bsq_vq_forward.36} parent=39 // pred_check
        %p1256 = pneg %p106
      $region42: #{bsq_vq_forward.36} parent=39 // pred_check_branch
        %1258 = sbr.rel (%p1256) target = $region44
      $region43: #{bsq_vq_forward.36} parent=39 // pred_region
        %p1259 = scmp.lt.s32.totalorder %s15, 1
        %s1260 = scalar_select %p1259, %s15, 1
        %s1261 = smul.addr %s1260, 4
        %s1262 = smul.addr %s1261, 8
        %s1263 = scalar_lea.vmem %s3, %s1262
      $region44: #{bsq_vq_forward.36} parent=39 // pred_fallthru
        _
    $region40: #{bsq_vq_forward.36} parent=5 // pred_fallthru
      _
  $region6: #{bsq_vq_forward.36} parent=0 // loop_footer
    %s13 = sadd.s32 1, %s9
  $region7: #{bsq_vq_forward.36} parent=0 // loop_footer_branch
    %8 = sbr.rel target = $region3
  $region8: #{bsq_vq_forward.36} parent=0 // loop_exit
    _

// kernel: bsq_vq_forward.46
$region0: #{bsq_vq_forward.46}
  #allocation0 [shape = 'u32[]', space=smem, size = 0x4, offset = 0x4, fixed_abs, tag = 'smem constant byte address 0x4 - core index']
  #allocation1 [shape = 'u32[144,128]{1,0:T(1,128)}', space=vmem, size = 0x12000, scoped, tag = 'internal scratch']
  #allocation2 [shape = 'f32[128,12]{1,0:T(8,128)}', space=vmem, size = 0x10000, scoped, tag = 'scratch operand']
  %s0 = inlined_call_operand.vmem [shape: bf16[128,16], index: 0, kind: input, shape index: {}]
  %s1 = inlined_call_operand.vmem [shape: bf16[16,12], index: 1, kind: input, shape index: {}]
  %s2 = inlined_call_operand.vmem [shape: f32[1,12], index: 2, kind: input, shape index: {}]
  %s3 = inlined_call_operand.vmem [shape: f32[128,12], index: 3, kind: output, shape index: {}]
  %s4 = sld [smem:[#allocation0]]
  $region30: #{bsq_vq_forward.46} parent=0
    _
  %s6 = ssub.s32 1, %s4
  %s7 = scalar_select 0, %s6, %s4
  // Predicated region
  $region2: #{bsq_vq_forward.46} parent=0 // pred_check
    _
  $region3: #{bsq_vq_forward.46} parent=0 // pred_check_branch
    %9 = sbr.rel (0) target = $region5
  $region4: #{bsq_vq_forward.46} parent=0 // pred_region
    _
  $region5: #{bsq_vq_forward.46} parent=0 // pred_fallthru
    _
  // Predicated region
  $region6: #{bsq_vq_forward.46} parent=0 // pred_check
    _
  $region7: #{bsq_vq_forward.46} parent=0 // pred_check_branch
    %11 = sbr.rel (0) target = $region9
  $region8: #{bsq_vq_forward.46} parent=0 // pred_region
    _
  $region9: #{bsq_vq_forward.46} parent=0 // pred_fallthru
    _
  // Predicated region
  $region10: #{bsq_vq_forward.46} parent=0 // pred_check
    _
  $region11: #{bsq_vq_forward.46} parent=0 // pred_check_branch
    %13 = sbr.rel (0) target = $region13
  $region12: #{bsq_vq_forward.46} parent=0 // pred_region
    _
  $region13: #{bsq_vq_forward.46} parent=0 // pred_fallthru
    _
  %p15 = scmp.eq.s32.totalorder 0, 0
  // Predicated region
  $region14: #{bsq_vq_forward.46} parent=0 // pred_check
    %p16 = pneg %p15
  $region15: #{bsq_vq_forward.46} parent=0 // pred_check_branch
    %18 = sbr.rel (%p16) target = $region17
  $region16: #{bsq_vq_forward.46} parent=0 // pred_region
    %vm19 = vcmask 97280
    %20 = vst.msk [vmem:[#allocation2] sm:$0xff] %vm19, 0.0
    %21 = vst.msk [vmem:[#allocation2 + $0x8] sm:$0xff] %vm19, 0.0
    %22 = vst.msk [vmem:[#allocation2 + $0x10] sm:$0xff] %vm19, 0.0
    %23 = vst.msk [vmem:[#allocation2 + $0x18] sm:$0xff] %vm19, 0.0
    %24 = vst.msk [vmem:[#allocation2 + $0x20] sm:$0xff] %vm19, 0.0
    %25 = vst.msk [vmem:[#allocation2 + $0x28] sm:$0xff] %vm19, 0.0
    %26 = vst.msk [vmem:[#allocation2 + $0x30] sm:$0xff] %vm19, 0.0
    %27 = vst.msk [vmem:[#allocation2 + $0x38] sm:$0xff] %vm19, 0.0
    %28 = vst.msk [vmem:[#allocation2 + $0x40] sm:$0xff] %vm19, 0.0
    %29 = vst.msk [vmem:[#allocation2 + $0x48] sm:$0xff] %vm19, 0.0
    %30 = vst.msk [vmem:[#allocation2 + $0x50] sm:$0xff] %vm19, 0.0
    %31 = vst.msk [vmem:[#allocation2 + $0x58] sm:$0xff] %vm19, 0.0
    %32 = vst.msk [vmem:[#allocation2 + $0x60] sm:$0xff] %vm19, 0.0
    %33 = vst.msk [vmem:[#allocation2 + $0x68] sm:$0xff] %vm19, 0.0
    %34 = vst.msk [vmem:[#allocation2 + $0x70] sm:$0xff] %vm19, 0.0
    %35 = vst.msk [vmem:[#allocation2 + $0x78] sm:$0xff] %vm19, 0.0
  $region17: #{bsq_vq_forward.46} parent=0 // pred_fallthru
    _
  %v36 = vld [vmem:[#allocation2] sm:$0xff]
  %v37 = vld [vmem:[#allocation2 + $0x8] sm:$0xff]
  %v38 = vld [vmem:[#allocation2 + $0x10] sm:$0xff]
  %v39 = vld [vmem:[#allocation2 + $0x18] sm:$0xff]
  %v40 = vld [vmem:[#allocation2 + $0x20] sm:$0xff]
  %v41 = vld [vmem:[#allocation2 + $0x28] sm:$0xff]
  %v42 = vld [vmem:[#allocation2 + $0x30] sm:$0xff]
  %v43 = vld [vmem:[#allocation2 + $0x38] sm:$0xff]
  %v44 = vld [vmem:[#allocation2 + $0x40] sm:$0xff]
  %v45 = vld [vmem:[#allocation2 + $0x48] sm:$0xff]
  %v46 = vld [vmem:[#allocation2 + $0x50] sm:$0xff]
  %v47 = vld [vmem:[#allocation2 + $0x58] sm:$0xff]
  %v48 = vld [vmem:[#allocation2 + $0x60] sm:$0xff]
  %v49 = vld [vmem:[#allocation2 + $0x68] sm:$0xff]
  %v50 = vld [vmem:[#allocation2 + $0x70] sm:$0xff]
  %v51 = vld [vmem:[#allocation2 + $0x78] sm:$0xff]
  %v52 = vld [vmem:[%s0] sm:$0xf]
  %v53 = vld [vmem:[%s0 + $0x4] sm:$0xf]
  %v54 = vld [vmem:[%s0 + $0x8] sm:$0xf]
  %v55 = vld [vmem:[%s0 + $0xc] sm:$0xf]
  %v56 = vld [vmem:[%s0 + $0x10] sm:$0xf]
  %v57 = vld [vmem:[%s0 + $0x14] sm:$0xf]
  %v58 = vld [vmem:[%s0 + $0x18] sm:$0xf]
  %v59 = vld [vmem:[%s0 + $0x1c] sm:$0xf]
  %v60 = vld [vmem:[%s0 + $0x20] sm:$0xf]
  %v61 = vld [vmem:[%s0 + $0x24] sm:$0xf]
  %v62 = vld [vmem:[%s0 + $0x28] sm:$0xf]
  %v63 = vld [vmem:[%s0 + $0x2c] sm:$0xf]
  %v64 = vld [vmem:[%s0 + $0x30] sm:$0xf]
  %v65 = vld [vmem:[%s0 + $0x34] sm:$0xf]
  %v66 = vld [vmem:[%s0 + $0x38] sm:$0xf]
  %v67 = vld [vmem:[%s0 + $0x3c] sm:$0xf]
  %v68 = vld [vmem:[%s1] sm:$0xf]
  %v69 = vld [vmem:[%s1 + $0x4] sm:$0xf]
  %v86 = vunpack.c.l.b16 %v52
  %v87 = vunpack.c.l.b16 %v53
  %v88 = vunpack.c.l.b16 %v54
  %v89 = vunpack.c.l.b16 %v55
  %v90 = vunpack.c.l.b16 %v56
  %v91 = vunpack.c.l.b16 %v57
  %v92 = vunpack.c.l.b16 %v58
  %v93 = vunpack.c.l.b16 %v59
  %v94 = vunpack.c.l.b16 %v60
  %v95 = vunpack.c.l.b16 %v61
  %v96 = vunpack.c.l.b16 %v62
  %v97 = vunpack.c.l.b16 %v63
  %v98 = vunpack.c.l.b16 %v64
  %v99 = vunpack.c.l.b16 %v65
  %v100 = vunpack.c.l.b16 %v66
  %v101 = vunpack.c.l.b16 %v67
  %v102 = vpack.c.b16 %v87, %v86
  %v103 = vpack.c.b16 %v89, %v88
  %v104 = vpack.c.b16 %v91, %v90
  %v105 = vpack.c.b16 %v93, %v92
  %v106 = vpack.c.b16 %v95, %v94
  %v107 = vpack.c.b16 %v97, %v96
  %v108 = vpack.c.b16 %v99, %v98
  %v109 = vpack.c.b16 %v101, %v100
  %v112 = vunpack.c.l.b16 %v68
  %v113 = vunpack.c.l.b16 %v69
  %v114 = vpack.c.b16 %v113, %v112
  %vm116 = vcmask 130048
  %v118 = vsel %vm116, %v102, 0
  %v121 = vsel %vm116, %v103, 0
  %v124 = vsel %vm116, %v104, 0
  %v127 = vsel %vm116, %v105, 0
  %v130 = vsel %vm116, %v106, 0
  %v133 = vsel %vm116, %v107, 0
  %v136 = vsel %vm116, %v108, 0
  %v139 = vsel %vm116, %v109, 0
  %141 = vmatprep.subr.bf16.mxu0 0
  %142 = vmatpush1.bf16.msra.mxu0 %v114
  %143 = vmatprep.subr.bf16.mxu0 0
  %144 = vmatpush1.bf16.msra.mxu0 0
  %145 = vmatprep.subr.bf16.mxu0 0
  %146 = vmatpush1.bf16.msra.mxu0 0
  %147 = vmatprep.subr.bf16.mxu0 0
  %148 = vmatpush1.bf16.msra.mxu0 0
  %149 = vmatprep.subr.bf16.mxu0 0
  %150 = vmatpush1.bf16.msra.mxu0 0
  %151 = vmatprep.subr.bf16.mxu0 0
  %152 = vmatpush1.bf16.msra.mxu0 0
  %153 = vmatprep.subr.bf16.mxu0 0
  %154 = vmatpush1.bf16.msra.mxu0 0
  %155 = vmatprep.subr.bf16.mxu0 0
  %156 = vmatpush1.bf16.msra.mxu0 0
  %157 = vmatprep.subr.bf16.mxu0 0
  %158 = vmatpush1.bf16.msra.mxu0 0
  %159 = vmatprep.subr.bf16.mxu0 0
  %160 = vmatpush1.bf16.msra.mxu0 0
  %161 = vmatprep.subr.bf16.mxu0 0
  %162 = vmatpush1.bf16.msra.mxu0 0
  %163 = vmatprep.subr.bf16.mxu0 0
  %164 = vmatpush1.bf16.msra.mxu0 0
  %165 = vmatprep.subr.bf16.mxu0 0
  %166 = vmatpush1.bf16.msra.mxu0 0
  %167 = vmatprep.subr.bf16.mxu0 0
  %168 = vmatpush1.bf16.msra.mxu0 0
  %169 = vmatprep.subr.bf16.mxu0 0
  %170 = vmatpush1.bf16.msra.mxu0 0
  %171 = vmatprep.subr.bf16.mxu0 0
  %172 = vmatpush1.bf16.msra.mxu0 0
  %173 = vmatprep.mubr.bf16.mxu0 0
  %174 = vmatmul.mubr.bf16.gmra.mrb[0].mxu0 %v118
  %v175 = vpop.f32.mrb[0].mxu0
  %v176 = vadd.f32 0.0, %v175
  %v177 = vpop.f32.mrb[0].mxu0
  %v178 = vpop.f32.mrb[0].mxu0
  %v179 = vadd.f32 0.0, %v178
  %v180 = vpop.f32.mrb[0].mxu0
  %181 = vmatprep.mubr.bf16.mxu0 0
  %182 = vmatmul.mubr.bf16.gmra.mrb[0].mxu0 %v121
  %v183 = vpop.f32.mrb[0].mxu0
  %v184 = vadd.f32 0.0, %v183
  %v185 = vpop.f32.mrb[0].mxu0
  %v186 = vpop.f32.mrb[0].mxu0
  %v187 = vadd.f32 0.0, %v186
  %v188 = vpop.f32.mrb[0].mxu0
  %189 = vmatprep.mubr.bf16.mxu0 0
  %190 = vmatmul.mubr.bf16.gmra.mrb[0].mxu0 %v124
  %v191 = vpop.f32.mrb[0].mxu0
  %v192 = vadd.f32 0.0, %v191
  %v193 = vpop.f32.mrb[0].mxu0
  %v194 = vpop.f32.mrb[0].mxu0
  %v195 = vadd.f32 0.0, %v194
  %v196 = vpop.f32.mrb[0].mxu0
  %197 = vmatprep.mubr.bf16.mxu0 0
  %198 = vmatmul.mubr.bf16.gmra.mrb[0].mxu0 %v127
  %v199 = vpop.f32.mrb[0].mxu0
  %v200 = vadd.f32 0.0, %v199
  %v201 = vpop.f32.mrb[0].mxu0
  %v202 = vpop.f32.mrb[0].mxu0
  %v203 = vadd.f32 0.0, %v202
  %v204 = vpop.f32.mrb[0].mxu0
  %205 = vmatprep.mubr.bf16.mxu0 0
  %206 = vmatmul.mubr.bf16.gmra.mrb[0].mxu0 %v130
  %v207 = vpop.f32.mrb[0].mxu0
  %v208 = vadd.f32 0.0, %v207
  %v209 = vpop.f32.mrb[0].mxu0
  %v210 = vpop.f32.mrb[0].mxu0
  %v211 = vadd.f32 0.0, %v210
  %v212 = vpop.f32.mrb[0].mxu0
  %213 = vmatprep.mubr.bf16.mxu0 0
  %214 = vmatmul.mubr.bf16.gmra.mrb[0].mxu0 %v133
  %v215 = vpop.f32.mrb[0].mxu0
  %v216 = vadd.f32 0.0, %v215
  %v217 = vpop.f32.mrb[0].mxu0
  %v218 = vpop.f32.mrb[0].mxu0
  %v219 = vadd.f32 0.0, %v218
  %v220 = vpop.f32.mrb[0].mxu0
  %221 = vmatprep.mubr.bf16.mxu0 0
  %222 = vmatmul.mubr.bf16.gmra.mrb[0].mxu0 %v136
  %v223 = vpop.f32.mrb[0].mxu0
  %v224 = vadd.f32 0.0, %v223
  %v225 = vpop.f32.mrb[0].mxu0
  %v226 = vpop.f32.mrb[0].mxu0
  %v227 = vadd.f32 0.0, %v226
  %v228 = vpop.f32.mrb[0].mxu0
  %229 = vmatprep.mubr.bf16.mxu0 0
  %230 = vmatmul.mubr.bf16.gmra.mrb[0].mxu0 %v139
  %v231 = vpop.f32.mrb[0].mxu0
  %v232 = vadd.f32 0.0, %v231
  %v233 = vpop.f32.mrb[0].mxu0
  %v234 = vpop.f32.mrb[0].mxu0
  %v235 = vadd.f32 0.0, %v234
  %v236 = vpop.f32.mrb[0].mxu0
  %237 = vdwg.mxu0
  %v238 = vadd.f32 %v36, %v176
  %v239 = vadd.f32 %v37, %v179
  %v240 = vadd.f32 %v38, %v184
  %v241 = vadd.f32 %v39, %v187
  %v242 = vadd.f32 %v40, %v192
  %v243 = vadd.f32 %v41, %v195
  %v244 = vadd.f32 %v42, %v200
  %v245 = vadd.f32 %v43, %v203
  %v246 = vadd.f32 %v44, %v208
  %v247 = vadd.f32 %v45, %v211
  %v248 = vadd.f32 %v46, %v216
  %v249 = vadd.f32 %v47, %v219
  %v250 = vadd.f32 %v48, %v224
  %v251 = vadd.f32 %v49, %v227
  %v252 = vadd.f32 %v50, %v232
  %v253 = vadd.f32 %v51, %v235
  %vm254 = vcmask 97280
  %255 = vst.msk [vmem:[#allocation2] sm:$0xff] %vm254, %v238
  %256 = vst.msk [vmem:[#allocation2 + $0x8] sm:$0xff] %vm254, %v239
  %257 = vst.msk [vmem:[#allocation2 + $0x10] sm:$0xff] %vm254, %v240
  %258 = vst.msk [vmem:[#allocation2 + $0x18] sm:$0xff] %vm254, %v241
  %259 = vst.msk [vmem:[#allocation2 + $0x20] sm:$0xff] %vm254, %v242
  %260 = vst.msk [vmem:[#allocation2 + $0x28] sm:$0xff] %vm254, %v243
  %261 = vst.msk [vmem:[#allocation2 + $0x30] sm:$0xff] %vm254, %v244
  %262 = vst.msk [vmem:[#allocation2 + $0x38] sm:$0xff] %vm254, %v245
  %263 = vst.msk [vmem:[#allocation2 + $0x40] sm:$0xff] %vm254, %v246
  %264 = vst.msk [vmem:[#allocation2 + $0x48] sm:$0xff] %vm254, %v247
  %265 = vst.msk [vmem:[#allocation2 + $0x50] sm:$0xff] %vm254, %v248
  %266 = vst.msk [vmem:[#allocation2 + $0x58] sm:$0xff] %vm254, %v249
  %267 = vst.msk [vmem:[#allocation2 + $0x60] sm:$0xff] %vm254, %v250
  %268 = vst.msk [vmem:[#allocation2 + $0x68] sm:$0xff] %vm254, %v251
  %269 = vst.msk [vmem:[#allocation2 + $0x70] sm:$0xff] %vm254, %v252
  %270 = vst.msk [vmem:[#allocation2 + $0x78] sm:$0xff] %vm254, %v253
  // Predicated region
  $region18: #{bsq_vq_forward.46} parent=0 // pred_check
    %p271 = pneg %p15
  $region19: #{bsq_vq_forward.46} parent=0 // pred_check_branch
    %273 = sbr.rel (%p271) target = $region21
  $region20: #{bsq_vq_forward.46} parent=0 // pred_region
    %v274 = vld [vmem:[#allocation2] sm:$0xff]
    %v275 = vld [vmem:[#allocation2 + $0x8] sm:$0xff]
    %v276 = vld [vmem:[#allocation2 + $0x10] sm:$0xff]
    %v277 = vld [vmem:[#allocation2 + $0x18] sm:$0xff]
    %v278 = vld [vmem:[#allocation2 + $0x20] sm:$0xff]
    %v279 = vld [vmem:[#allocation2 + $0x28] sm:$0xff]
    %v280 = vld [vmem:[#allocation2 + $0x30] sm:$0xff]
    %v281 = vld [vmem:[#allocation2 + $0x38] sm:$0xff]
    %v282 = vld [vmem:[#allocation2 + $0x40] sm:$0xff]
    %v283 = vld [vmem:[#allocation2 + $0x48] sm:$0xff]
    %v284 = vld [vmem:[#allocation2 + $0x50] sm:$0xff]
    %v285 = vld [vmem:[#allocation2 + $0x58] sm:$0xff]
    %v286 = vld [vmem:[#allocation2 + $0x60] sm:$0xff]
    %v287 = vld [vmem:[#allocation2 + $0x68] sm:$0xff]
    %v288 = vld [vmem:[#allocation2 + $0x70] sm:$0xff]
    %v289 = vld [vmem:[#allocation2 + $0x78] sm:$0xff]
    %v290 = vld [vmem:[%s2] sm:$0x1]
    %v292 = vlaneseq
    %v293 = vshrl.u32 %v292, 7
    %v294 = vsub.s32 0, %v293
    %v295 = vrot.slane %v290, %v294
    %v297 = vadd.f32 %v274, %v295
    %v298 = vadd.f32 %v275, %v295
    %v299 = vadd.f32 %v276, %v295
    %v300 = vadd.f32 %v277, %v295
    %v301 = vadd.f32 %v278, %v295
    %v302 = vadd.f32 %v279, %v295
    %v303 = vadd.f32 %v280, %v295
    %v304 = vadd.f32 %v281, %v295
    %v305 = vadd.f32 %v282, %v295
    %v306 = vadd.f32 %v283, %v295
    %v307 = vadd.f32 %v284, %v295
    %v308 = vadd.f32 %v285, %v295
    %v309 = vadd.f32 %v286, %v295
    %v310 = vadd.f32 %v287, %v295
    %v311 = vadd.f32 %v288, %v295
    %v312 = vadd.f32 %v289, %v295
    %313 = vst.msk [vmem:[%s3] sm:$0xff] %vm254, %v297
    %314 = vst.msk [vmem:[%s3 + $0x8] sm:$0xff] %vm254, %v298
    %315 = vst.msk [vmem:[%s3 + $0x10] sm:$0xff] %vm254, %v299
    %316 = vst.msk [vmem:[%s3 + $0x18] sm:$0xff] %vm254, %v300
    %317 = vst.msk [vmem:[%s3 + $0x20] sm:$0xff] %vm254, %v301
    %318 = vst.msk [vmem:[%s3 + $0x28] sm:$0xff] %vm254, %v302
    %319 = vst.msk [vmem:[%s3 + $0x30] sm:$0xff] %vm254, %v303
    %320 = vst.msk [vmem:[%s3 + $0x38] sm:$0xff] %vm254, %v304
    %321 = vst.msk [vmem:[%s3 + $0x40] sm:$0xff] %vm254, %v305
    %322 = vst.msk [vmem:[%s3 + $0x48] sm:$0xff] %vm254, %v306
    %323 = vst.msk [vmem:[%s3 + $0x50] sm:$0xff] %vm254, %v307
    %324 = vst.msk [vmem:[%s3 + $0x58] sm:$0xff] %vm254, %v308
    %325 = vst.msk [vmem:[%s3 + $0x60] sm:$0xff] %vm254, %v309
    %326 = vst.msk [vmem:[%s3 + $0x68] sm:$0xff] %vm254, %v310
    %327 = vst.msk [vmem:[%s3 + $0x70] sm:$0xff] %vm254, %v311
    %328 = vst.msk [vmem:[%s3 + $0x78] sm:$0xff] %vm254, %v312
  $region21: #{bsq_vq_forward.46} parent=0 // pred_fallthru
    _
  // Predicated region
  $region22: #{bsq_vq_forward.46} parent=0 // pred_check
    _
  $region23: #{bsq_vq_forward.46} parent=0 // pred_check_branch
    %330 = sbr.rel (0) target = $region25
  $region24: #{bsq_vq_forward.46} parent=0 // pred_region
    _
  $region25: #{bsq_vq_forward.46} parent=0 // pred_fallthru
    _
  // Predicated region
  $region26: #{bsq_vq_forward.46} parent=0 // pred_check
    _
  $region27: #{bsq_vq_forward.46} parent=0 // pred_check_branch
    %332 = sbr.rel (0) target = $region29
  $region28: #{bsq_vq_forward.46} parent=0 // pred_region
    _
  $region29: #{bsq_vq_forward.46} parent=0 // pred_fallthru
    _

// kernel: bsq_vq_forward.47
$region0: #{bsq_vq_forward.47}
  #allocation0 [shape = 'u32[]', space=smem, size = 0x4, offset = 0x4, fixed_abs, tag = 'smem constant byte address 0x4 - core index']
  #allocation1 [shape = 'u32[144,128]{1,0:T(1,128)}', space=vmem, size = 0x12000, scoped, tag = 'internal scratch']
  %s0 = inlined_call_operand.vmem [shape: f32[16,128], index: 0, kind: input, shape index: {}]
  %s1 = inlined_call_operand.vmem [shape: f32[16,128], index: 1, kind: input, shape index: {}]
  %s2 = inlined_call_operand.hbm [shape: f32[1,1,1], index: 2, kind: output, shape index: {}]
  %s3 = sld [smem:[#allocation0]]
  $region18: #{bsq_vq_forward.47} parent=0
    _
  %s5 = ssub.s32 1, %s3
  %s6 = scalar_select 0, %s5, %s3
  $region1: #{bsq_vq_forward.47} parent=0
    #allocation2 [shape = 'u8[512]{0}', space=vmem, size = 0x400, scoped, tag = 'output window, operand 0, single buffered']
    #allocation3 [shape = 's32[1]{0}', space=sflag, size = 0x4, scoped, tag = 'scoped memory for bsq_vq_forward.47']
    %7 = vsyncpa [#allocation3], 0
    // Predicated region
    $region2: #{bsq_vq_forward.47} parent=1 // pred_check
      _
    $region3: #{bsq_vq_forward.47} parent=1 // pred_check_branch
      %9 = sbr.rel (0) target = $region5
    $region4: #{bsq_vq_forward.47} parent=1 // pred_region
      _
    $region5: #{bsq_vq_forward.47} parent=1 // pred_fallthru
      _
    // Predicated region
    $region6: #{bsq_vq_forward.47} parent=1 // pred_check
      _
    $region7: #{bsq_vq_forward.47} parent=1 // pred_check_branch
      %11 = sbr.rel (0) target = $region9
    $region8: #{bsq_vq_forward.47} parent=1 // pred_region
      _
    $region9: #{bsq_vq_forward.47} parent=1 // pred_fallthru
      _
    %v12 = vld [vmem:[%s0] sm:$0xff]
    %v13 = vld [vmem:[%s0 + $0x8] sm:$0xff]
    %v14 = vld [vmem:[%s1] sm:$0xff]
    %v15 = vld [vmem:[%s1 + $0x8] sm:$0xff]
    %v16 = vsub.f32 %v12, %v14
    %v17 = vsub.f32 %v13, %v15
    %v18 = vmul.f32 %v16, %v16
    %v19 = vmul.f32 %v17, %v17
    %v20 = vadd.f32 %v18, %v19
    %21 = vadd.xlane.f32.xlu0 %v20
    %v22 = vpop.xlane.xlu0 %21
    %v23 = vrot.slane %v22, 4
    %v24 = vadd.f32 %v22, %v23
    %v25 = vrot.slane %v24, 2
    %v26 = vadd.f32 %v24, %v25
    %v27 = vrot.slane %v26, 1
    %v28 = vadd.f32 %v26, %v27
    %s29 = vtos %v28
    %v30 = vstv %s29
    %vm31 = vcmask 0
    %32 = vst.msk [vmem:[#allocation2] sm:$0x1] %vm31, %v30
    // Predicated region
    $region10: #{bsq_vq_forward.47} parent=1 // pred_check
      _
    $region11: #{bsq_vq_forward.47} parent=1 // pred_check_branch
      %34 = sbr.rel (0) target = $region13
    $region12: #{bsq_vq_forward.47} parent=1 // pred_region
      %s36 = ssub.s32 16, 16
      %37 = vsyncadd [#allocation3], %s36
      %s39 = sshll.u32 [#allocation2], 4
      %s40 = int_to_ptr.vmem [resolvable:$true] %s39
      %42 = dma.vmem_to_hbm [thread:$0]  %s40, 16, %s2, [#allocation3]
    $region13: #{bsq_vq_forward.47} parent=1 // pred_fallthru
      _
    // Predicated region
    $region14: #{bsq_vq_forward.47} parent=1 // pred_check
      _
    $region15: #{bsq_vq_forward.47} parent=1 // pred_check_branch
      %44 = sbr.rel (0) target = $region17
    $region16: #{bsq_vq_forward.47} parent=1 // pred_region
      %45 = dma.done [#allocation3], 16
    $region17: #{bsq_vq_forward.47} parent=1 // pred_fallthru
      _
    %46 = vsyncpa [#allocation3], 1

</llo_original>
